<compile_context>
chip_gen: v6e
topology: v6e:2x2x1
jax: 0.10.0
libtpu: 0.0.40
codegen_flags: <defaults>
</compile_context>

<pallas_src>
import functools

import jax
import jax.numpy as jnp
from jax import lax
from jax.experimental import pallas as pl
from jax.experimental.pallas import tpu as pltpu


# ------------------------------ fused kernel --------------------------------
def _lstm_classifier_kernel(*refs, num_layers, t_chunk):
    n_lstm = 5 * num_layers
    x_ref = refs[0]                                     # (T, 2tb, D) pre-stacked
    layer_refs = refs[1:1 + n_lstm]                     # (wih, whh, b, gamma, beta) * L
    w1_ref, b1_ref, w2_ref, b2_ref = refs[1 + n_lstm:5 + n_lstm]
    out_ref = refs[5 + n_lstm]
    buf_ref, hraw_ref, gx_ref = refs[6 + n_lstm:9 + n_lstm]    # VMEM scratch

    T, B2, d_in = x_ref.shape                           # B2 = 2*tb, multiple of 8
    H = layer_refs[1].shape[0]                          # W_hh is (H, 4H)
    tb = B2 // 2

    for layer in range(num_layers):
        wih_ref, whh_ref, b_ref, gam_ref, bet_ref = layer_refs[5 * layer:5 * layer + 5]
        whh = whh_ref[...]                              # (H, 4H) bf16

        h = jnp.zeros((B2, H), jnp.float32)
        c = jnp.zeros((B2, H), jnp.float32)

        # ---- recurrence, T-chunked hoisted input projection ------------------
        for c0 in range(0, T, t_chunk):
            clen = min(t_chunk, T - c0)
            # One big MXU matmul (+ fused bias) per chunk; only h @ W_hh stays
            # on the serial per-timestep critical path.  B2 % 8 == 0 makes the
            # reshapes free sublane merges (no relayout copies).
            if layer == 0:
                inp2d = x_ref[c0:c0 + clen].reshape(clen * B2, d_in)
            else:
                inp2d = buf_ref[c0:c0 + clen].reshape(clen * B2, H)
            gx = (jnp.dot(inp2d, wih_ref[...], preferred_element_type=jnp.float32)
                  + b_ref[...])                                       # (clen*B2, 4H) f32
            gx_ref[0:clen] = gx.reshape(clen, B2, 4 * H)

            def step(tl, carry, c0=c0, whh=whh):
                h, c = carry
                gates = gx_ref[tl] + jnp.dot(h.astype(whh.dtype), whh,
                                             preferred_element_type=jnp.float32)
                i_g = jax.nn.sigmoid(gates[:, 0 * H:1 * H])
                f_g = jax.nn.sigmoid(gates[:, 1 * H:2 * H])
                g_g = jnp.tanh(gates[:, 2 * H:3 * H])
                o_g = jax.nn.sigmoid(gates[:, 3 * H:4 * H])
                c_new = f_g * c + i_g * g_g
                h_new = o_g * jnp.tanh(c_new)
                # Only the raw h_t is stored; LayerNorm + residual are deferred
                # to a vectorized post-pass off the serial recurrence.
                hraw_ref[c0 + tl] = h_new.astype(hraw_ref.dtype)
                return h_new, c_new

            if T <= 32:
                # Short sequences: full unroll -> static indices + scheduler
                # visibility (overlap EUP gate math with the next MXU push).
                for tl in range(clen):
                    h, c = step(tl, (h, c))
            else:
                # Long sequences: partially-unrolled loop, carry kept explicit.
                h, c = lax.fori_loop(0, clen, step, (h, c), unroll=4)

        # ---- deferred LayerNorm(eps=1e-5) + residual (vectorized, chunked) ---
        gamma = gam_ref[...]                            # (1, H)
        beta = bet_ref[...]                             # (1, H)
        for c0 in range(0, T, t_chunk):
            clen = min(t_chunk, T - c0)
            h2d = hraw_ref[c0:c0 + clen].reshape(clen * B2, H).astype(jnp.float32)
            mu = jnp.mean(h2d, axis=-1, keepdims=True)
            var = jnp.mean((h2d - mu) ** 2, axis=-1, keepdims=True)
            normed = (h2d - mu) * lax.rsqrt(var + 1e-5) * gamma + beta
            # TODO(synk): nn.Dropout(0.1) treated as identity (eval mode).
            if layer == 0:
                buf_ref[c0:c0 + clen] = normed.reshape(clen, B2, H).astype(buf_ref.dtype)
            else:
                res = buf_ref[c0:c0 + clen].reshape(clen * B2, H).astype(jnp.float32)
                buf_ref[c0:c0 + clen] = (normed + res).reshape(clen, B2, H).astype(buf_ref.dtype)

    # ---- classifier head -----------------------------------------------------
    # mean over hidden -> (T, B2); one tiny (T, B2) transpose; the concat of
    # (out1, out2) is folded away by splitting W1 into its top/bottom T rows,
    # so no slice+concat relayout of the feature tile is needed.
    means = jnp.mean(buf_ref[...].astype(jnp.float32), axis=-1)        # (T, B2)
    means_bt = means.T.astype(w1_ref.dtype)                            # (B2, T)
    h1 = (jnp.dot(means_bt[:tb], w1_ref[:T, :], preferred_element_type=jnp.float32)
          + jnp.dot(means_bt[tb:], w1_ref[T:, :], preferred_element_type=jnp.float32)
          + b1_ref[...])                                               # (tb, 512)
    # TODO(synk): nn.Dropout(0.5) treated as identity (eval mode).
    logits = (jnp.dot(h1.astype(w2_ref.dtype), w2_ref[...],
                      preferred_element_type=jnp.float32) + b2_ref[...])
    out_ref[...] = logits.astype(out_ref.dtype)                        # (tb, out_dim)


# ------------------------------ glue / params --------------------------------
def _const_index_map(ndim):
    return lambda bi: (0,) * ndim


def _tpu_generation():
    try:
        kind = jax.devices()[0].device_kind.lower()
    except Exception:
        return 0
    for g in (7, 6, 5):
        if f"v{g}" in kind:
            return g
    return 0                                            # unknown -> conservative


def _choose_tiling(batch, seq_len, hidden, gen):
    """Generation-aware (padded batch, batch tile, gx T-chunk, vmem limit)."""
    b_pad = -(-batch // 4) * 4                          # 2*tb % 8 == 0 everywhere
    if gen in (5, 6):
        vmem_limit, tile_budget = 100 << 20, 80 << 20   # 1 TC, 128 MiB VMEM
    else:                                               # v7x (64 MiB/TC) or unknown
        vmem_limit, tile_budget = 48 << 20, 20 << 20
    candidates = sorted({c for c in range(4, b_pad + 1, 4) if b_pad % c == 0},
                        reverse=True)

    def scratch_bytes(tb, tc):
        # buf + h_raw (bf16) + gx chunk (fp32)
        return 2 * (seq_len * 2 * tb * hidden * 2) + tc * 2 * tb * 4 * hidden * 4

    def pick_chunk(tb):
        tc = min(seq_len, 64)
        while tc > 8 and scratch_bytes(tb, tc) > tile_budget:
            tc = max(8, tc // 2)
        return tc

    tb = b_pad                                          # v5e/v6e: one big tile
    if gen >= 7 and b_pad >= 8:
        # v7x: even number of tiles >= 2 so both TensorCores get work.
        tb = next((c for c in candidates
                   if (b_pad // c) >= 2 and (b_pad // c) % 2 == 0
                   and scratch_bytes(c, pick_chunk(c)) <= tile_budget),
                  candidates[-1])
    # shrink further if the tile still busts the per-tile scratch budget
    while tb > 4 and scratch_bytes(tb, pick_chunk(tb)) > tile_budget:
        smaller = [c for c in candidates if c < tb]
        if not smaller:
            break
        tb = smaller[0]
    return b_pad, tb, pick_chunk(tb), vmem_limit


def init_params(key, input_dim, hidden_dim, num_layers, output_dim, seq_length,
                compute_dtype=jnp.bfloat16):
    """Matches LstmClassifier.init_params(); MXU weights stored pre-transposed bf16."""
    params = {"lstm": []}
    for i in range(num_layers):
        d_in = input_dim if i == 0 else hidden_dim
        key, k1, k2 = jax.random.split(key, 3)
        # torch: uniform_(weight_ih/_hh, -0.08, 0.08); biases zeroed.
        w_ih = jax.random.uniform(k1, (4 * hidden_dim, d_in), jnp.float32, -0.08, 0.08)
        w_hh = jax.random.uniform(k2, (4 * hidden_dim, hidden_dim), jnp.float32, -0.08, 0.08)
        bias = jnp.zeros((1, 4 * hidden_dim), jnp.float32)      # bias_ih + bias_hh
        gamma = jnp.ones((1, hidden_dim), jnp.float32)          # LayerNorm weight
        beta = jnp.zeros((1, hidden_dim), jnp.float32)          # LayerNorm bias
        params["lstm"].append((w_ih.T.astype(compute_dtype),    # (d_in, 4H)
                               w_hh.T.astype(compute_dtype),    # (H, 4H)
                               bias, gamma, beta))
    key, k3, k4 = jax.random.split(key, 3)
    # torch: normal_(weight, 0, 0.01); bias zeroed.
    w1 = 0.01 * jax.random.normal(k3, (512, 2 * seq_length), jnp.float32)
    w2 = 0.01 * jax.random.normal(k4, (output_dim, 512), jnp.float32)
    params["w1"] = w1.T.astype(compute_dtype)                   # (2T, 512)
    params["b1"] = jnp.zeros((1, 512), jnp.float32)
    params["w2"] = w2.T.astype(compute_dtype)                   # (512, out_dim)
    params["b2"] = jnp.zeros((1, output_dim), jnp.float32)
    return params


def lstm_classifier_forward(params, x1, x2):
    """x1, x2: (B, T, input_dim) batch-first, like the PyTorch module."""
    wih0, whh0 = params["lstm"][0][0], params["lstm"][0][1]
    compute_dtype = wih0.dtype
    H = whh0.shape[0]
    num_layers = len(params["lstm"])
    B, T, d_in = x1.shape
    out_dim = params["w2"].shape[1]

    gen = _tpu_generation()
    b_pad, tb, t_chunk, vmem_limit = _choose_tiling(B, T, H, gen)
    n_tiles = b_pad // tb

    # Time-major, bf16, batch padded so every tile has 2*tb % 8 == 0 rows; the
    # two sequences are pre-stacked per tile (shared LSTM weights -> one
    # recurrence over 2*tb rows) so the kernel never concatenates.
    def prep(x):
        x = jnp.transpose(x, (1, 0, 2)).astype(compute_dtype)   # (T, B, D)
        if b_pad != B:
            x = jnp.pad(x, ((0, 0), (0, b_pad - B), (0, 0)))
        return x.reshape(T, n_tiles, tb, d_in)

    x_stk = jnp.concatenate([prep(x1), prep(x2)], axis=2).reshape(T, 2 * b_pad, d_in)

    const_arrays = []
    for layer_params in params["lstm"]:
        const_arrays.extend(layer_params)
    const_arrays += [params["w1"], params["b1"], params["w2"], params["b2"]]

    x_spec = pl.BlockSpec((T, 2 * tb, d_in), lambda bi: (0, bi, 0))
    out_spec = pl.BlockSpec((tb, out_dim), lambda bi: (bi, 0))
    scratch_shapes = [
        pltpu.VMEM((T, 2 * tb, H), jnp.bfloat16),          # layer output / residual
        pltpu.VMEM((T, 2 * tb, H), jnp.bfloat16),          # raw h_t (pre-LayerNorm)
        pltpu.VMEM((t_chunk, 2 * tb, 4 * H), jnp.float32),  # gate pre-activation chunk
    ]
    kernel = functools.partial(_lstm_classifier_kernel,
                               num_layers=num_layers, t_chunk=t_chunk)

    def const_spec(arr, single_buffer):
        if single_buffer:
            # Grid-invariant blocks: single-buffer them so their VMEM footprint
            # isn't doubled by the pipeliner.
            return pl.BlockSpec(arr.shape, _const_index_map(arr.ndim),
                                pipeline_mode=pl.Buffered(1))
        return pl.BlockSpec(arr.shape, _const_index_map(arr.ndim))

    def run(single_buffer_consts):
        in_specs = [x_spec] + [const_spec(a, single_buffer_consts) for a in const_arrays]
        call = pl.pallas_call(
            kernel,
            out_shape=jax.ShapeDtypeStruct((b_pad, out_dim), jnp.float32),
            grid=(n_tiles,),
            in_specs=in_specs,
            out_specs=out_spec,
            scratch_shapes=scratch_shapes,
            compiler_params=pltpu.CompilerParams(
                dimension_semantics=("parallel",),          # batch tiles -> both v7x TCs
                vmem_limit_bytes=vmem_limit,
            ),
        )
        return call(x_stk, *const_arrays)

    try:
        out_pad = run(True)
    except Exception:
        # pl.Buffered(1) single-buffering unsupported on this jax version ->
        # fall back to default (double-buffered) weight blocks.
        out_pad = run(False)
    return out_pad[:B]


# ------------------------------ demo -----------------------------------------
if __name__ == "__main__":
    B, T, D_IN, H, LAYERS, OUT = 2, 8, 8, 32, 2, 4

    key = jax.random.PRNGKey(0)
    kp, kx1, kx2 = jax.random.split(key, 3)
    params = init_params(kp, D_IN, H, LAYERS, OUT, T)

    x1 = jax.random.normal(kx1, (B, T, D_IN), jnp.float32)
    x2 = jax.random.normal(kx2, (B, T, D_IN), jnp.float32)

    out = lstm_classifier_forward(params, x1, x2)
    out = jax.block_until_ready(out)
    assert out.shape == (B, OUT), out.shape
    assert bool(jnp.all(jnp.isfinite(out)))
    print("KERNEL_OK")
</pallas_src>

<mosaic_0001>
module attributes {stable_mosaic.version = 11 : i64} {
  func.func @_lstm_classifier_kernel(%arg0: i32, %arg1: memref<8x8x8xbf16, #tpu.memory_space<vmem>>, %arg2: memref<8x128xbf16, #tpu.memory_space<vmem>>, %arg3: memref<32x128xbf16, #tpu.memory_space<vmem>>, %arg4: memref<1x128xf32, #tpu.memory_space<vmem>>, %arg5: memref<1x32xf32, #tpu.memory_space<vmem>>, %arg6: memref<1x32xf32, #tpu.memory_space<vmem>>, %arg7: memref<32x128xbf16, #tpu.memory_space<vmem>>, %arg8: memref<32x128xbf16, #tpu.memory_space<vmem>>, %arg9: memref<1x128xf32, #tpu.memory_space<vmem>>, %arg10: memref<1x32xf32, #tpu.memory_space<vmem>>, %arg11: memref<1x32xf32, #tpu.memory_space<vmem>>, %arg12: memref<16x512xbf16, #tpu.memory_space<vmem>>, %arg13: memref<1x512xf32, #tpu.memory_space<vmem>>, %arg14: memref<512x4xbf16, #tpu.memory_space<vmem>>, %arg15: memref<1x4xf32, #tpu.memory_space<vmem>>, %arg16: memref<4x4xf32, #tpu.memory_space<vmem>>, %arg17: memref<8x8x32xbf16, #tpu.memory_space<vmem>>, %arg18: memref<8x8x32xbf16, #tpu.memory_space<vmem>>, %arg19: memref<8x8x128xf32, #tpu.memory_space<vmem>>) attributes {dimension_semantics = [#tpu.dimension_semantics<parallel>], iteration_bounds = array<i64: 1>, scalar_prefetch = 0 : i64, scratch_operands = 3 : i64, tpu.core_type = #tpu.core_type<tc>, window_params = [{transform_indices = @transform_0, window_bounds = array<i64: 8, 8, 8>}, {pipeline_mode = #tpu.pipeline_mode<synchronous>, transform_indices = @transform_1, window_bounds = array<i64: 8, 128>}, {pipeline_mode = #tpu.pipeline_mode<synchronous>, transform_indices = @transform_2, window_bounds = array<i64: 32, 128>}, {pipeline_mode = #tpu.pipeline_mode<synchronous>, transform_indices = @transform_3, window_bounds = array<i64: 1, 128>}, {pipeline_mode = #tpu.pipeline_mode<synchronous>, transform_indices = @transform_4, window_bounds = array<i64: 1, 32>}, {pipeline_mode = #tpu.pipeline_mode<synchronous>, transform_indices = @transform_5, window_bounds = array<i64: 1, 32>}, {pipeline_mode = #tpu.pipeline_mode<synchronous>, transform_indices = @transform_6, window_bounds = array<i64: 32, 128>}, {pipeline_mode = #tpu.pipeline_mode<synchronous>, transform_indices = @transform_7, window_bounds = array<i64: 32, 128>}, {pipeline_mode = #tpu.pipeline_mode<synchronous>, transform_indices = @transform_8, window_bounds = array<i64: 1, 128>}, {pipeline_mode = #tpu.pipeline_mode<synchronous>, transform_indices = @transform_9, window_bounds = array<i64: 1, 32>}, {pipeline_mode = #tpu.pipeline_mode<synchronous>, transform_indices = @transform_10, window_bounds = array<i64: 1, 32>}, {pipeline_mode = #tpu.pipeline_mode<synchronous>, transform_indices = @transform_11, window_bounds = array<i64: 16, 512>}, {pipeline_mode = #tpu.pipeline_mode<synchronous>, transform_indices = @transform_12, window_bounds = array<i64: 1, 512>}, {pipeline_mode = #tpu.pipeline_mode<synchronous>, transform_indices = @transform_13, window_bounds = array<i64: 512, 4>}, {pipeline_mode = #tpu.pipeline_mode<synchronous>, transform_indices = @transform_14, window_bounds = array<i64: 1, 4>}, {transform_indices = @transform_15, window_bounds = array<i64: 4, 4>}]} {
    %c0 = arith.constant 0 : index
    %c0_0 = arith.constant 0 : index
    %0 = vector.load %arg3[%c0, %c0_0] : memref<32x128xbf16, #tpu.memory_space<vmem>>, vector<32x128xbf16>
    %cst = arith.constant 0.000000e+00 : f32
    %1 = vector.broadcast %cst : f32 to vector<8x32xf32>
    %cst_1 = arith.constant 0.000000e+00 : f32
    %2 = vector.broadcast %cst_1 : f32 to vector<8x32xf32>
    %c0_2 = arith.constant 0 : index
    %c0_3 = arith.constant 0 : index
    %c0_4 = arith.constant 0 : index
    %3 = vector.load %arg1[%c0_2, %c0_3, %c0_4] : memref<8x8x8xbf16, #tpu.memory_space<vmem>>, vector<8x8x8xbf16>
    %4 = vector.shape_cast %3 : vector<8x8x8xbf16> to vector<64x8xbf16>
    %c0_5 = arith.constant 0 : index
    %c0_6 = arith.constant 0 : index
    %5 = vector.load %arg2[%c0_5, %c0_6] : memref<8x128xbf16, #tpu.memory_space<vmem>>, vector<8x128xbf16>
    %cst_7 = arith.constant dense<0.000000e+00> : vector<64x128xf32>
    %6 = tpu.matmul %4, %5, %cst_7 {dimension_numbers = #tpu.dot_dimension_numbers<[1], [0], [0], [1], [0, 0, 1, 1], [], []>} : vector<64x8xbf16>, vector<8x128xbf16>, vector<64x128xf32> -> vector<64x128xf32>
    %c0_8 = arith.constant 0 : index
    %c0_9 = arith.constant 0 : index
    %7 = vector.load %arg4[%c0_8, %c0_9] : memref<1x128xf32, #tpu.memory_space<vmem>>, vector<1x128xf32>
    %8 = vector.broadcast %7 : vector<1x128xf32> to vector<64x128xf32>
    %9 = arith.addf %6, %8 : vector<64x128xf32>
    %10 = vector.shape_cast %9 : vector<64x128xf32> to vector<8x8x128xf32>
    %c0_10 = arith.constant 0 : index
    %c0_11 = arith.constant 0 : index
    %c0_12 = arith.constant 0 : index
    %11 = vector.load %arg19[%c0_10, %c0_11, %c0_12] : memref<8x8x128xf32, #tpu.memory_space<vmem>>, vector<8x8x128xf32>
    tpu.vector_store %arg19[%c0_10, %c0_11, %c0_12], %10 {strides = array<i32>} : memref<8x8x128xf32, #tpu.memory_space<vmem>>, vector<8x8x128xf32>,
    %c0_13 = arith.constant 0 : index
    %c0_14 = arith.constant 0 : index
    %c0_15 = arith.constant 0 : index
    %12 = vector.load %arg19[%c0_13, %c0_14, %c0_15] : memref<8x8x128xf32, #tpu.memory_space<vmem>>, vector<1x8x128xf32>
    %13 = vector.shape_cast %12 : vector<1x8x128xf32> to vector<8x128xf32>
    %14 = arith.truncf %1 : vector<8x32xf32> to vector<8x32xbf16>
    %cst_16 = arith.constant dense<0.000000e+00> : vector<8x128xf32>
    %15 = tpu.matmul %14, %0, %cst_16 {dimension_numbers = #tpu.dot_dimension_numbers<[1], [0], [0], [1], [0, 0, 1, 1], [], []>} : vector<8x32xbf16>, vector<32x128xbf16>, vector<8x128xf32> -> vector<8x128xf32>
    %16 = arith.addf %13, %15 : vector<8x128xf32>
    %17 = vector.extract_strided_slice %16 {offsets = [0, 0], sizes = [8, 32], strides = [1, 1]} : vector<8x128xf32> to vector<8x32xf32>
    %18 = arith.negf %17 : vector<8x32xf32>
    %19 = math.exp %18 : vector<8x32xf32>
    %cst_17 = arith.constant 1.000000e+00 : f32
    %20 = vector.broadcast %cst_17 : f32 to vector<8x32xf32>
    %21 = arith.addf %20, %19 : vector<8x32xf32>
    %22 = arith.divf %20, %21 : vector<8x32xf32>
    %23 = vector.extract_strided_slice %16 {offsets = [0, 32], sizes = [8, 32], strides = [1, 1]} : vector<8x128xf32> to vector<8x32xf32>
    %24 = arith.negf %23 : vector<8x32xf32>
    %25 = math.exp %24 : vector<8x32xf32>
    %cst_18 = arith.constant 1.000000e+00 : f32
    %26 = vector.broadcast %cst_18 : f32 to vector<8x32xf32>
    %27 = arith.addf %26, %25 : vector<8x32xf32>
    %28 = arith.divf %26, %27 : vector<8x32xf32>
    %29 = vector.extract_strided_slice %16 {offsets = [0, 64], sizes = [8, 32], strides = [1, 1]} : vector<8x128xf32> to vector<8x32xf32>
    %30 = math.tanh %29 : vector<8x32xf32>
    %31 = vector.extract_strided_slice %16 {offsets = [0, 96], sizes = [8, 32], strides = [1, 1]} : vector<8x128xf32> to vector<8x32xf32>
    %32 = arith.negf %31 : vector<8x32xf32>
    %33 = math.exp %32 : vector<8x32xf32>
    %cst_19 = arith.constant 1.000000e+00 : f32
    %34 = vector.broadcast %cst_19 : f32 to vector<8x32xf32>
    %35 = arith.addf %34, %33 : vector<8x32xf32>
    %36 = arith.divf %34, %35 : vector<8x32xf32>
    %37 = arith.mulf %28, %2 : vector<8x32xf32>
    %38 = arith.mulf %22, %30 : vector<8x32xf32>
    %39 = arith.addf %37, %38 : vector<8x32xf32>
    %40 = math.tanh %39 : vector<8x32xf32>
    %41 = arith.mulf %36, %40 : vector<8x32xf32>
    %42 = arith.truncf %41 : vector<8x32xf32> to vector<8x32xbf16>
    %c0_20 = arith.constant 0 : index
    %c0_21 = arith.constant 0 : index
    %c0_22 = arith.constant 0 : index
    %43 = vector.load %arg18[%c0_20, %c0_21, %c0_22] : memref<8x8x32xbf16, #tpu.memory_space<vmem>>, vector<1x8x32xbf16>
    %44 = vector.shape_cast %43 : vector<1x8x32xbf16> to vector<8x32xbf16>
    %45 = vector.shape_cast %42 : vector<8x32xbf16> to vector<1x8x32xbf16>
    tpu.vector_store %arg18[%c0_20, %c0_21, %c0_22], %45 {strides = array<i32>} : memref<8x8x32xbf16, #tpu.memory_space<vmem>>, vector<1x8x32xbf16>,
    %c1 = arith.constant 1 : index
    %c0_23 = arith.constant 0 : index
    %c0_24 = arith.constant 0 : index
    %46 = vector.load %arg19[%c1, %c0_23, %c0_24] : memref<8x8x128xf32, #tpu.memory_space<vmem>>, vector<1x8x128xf32>
    %47 = vector.shape_cast %46 : vector<1x8x128xf32> to vector<8x128xf32>
    %48 = arith.truncf %41 : vector<8x32xf32> to vector<8x32xbf16>
    %cst_25 = arith.constant dense<0.000000e+00> : vector<8x128xf32>
    %49 = tpu.matmul %48, %0, %cst_25 {dimension_numbers = #tpu.dot_dimension_numbers<[1], [0], [0], [1], [0, 0, 1, 1], [], []>} : vector<8x32xbf16>, vector<32x128xbf16>, vector<8x128xf32> -> vector<8x128xf32>
    %50 = arith.addf %47, %49 : vector<8x128xf32>
    %51 = vector.extract_strided_slice %50 {offsets = [0, 0], sizes = [8, 32], strides = [1, 1]} : vector<8x128xf32> to vector<8x32xf32>
    %52 = arith.negf %51 : vector<8x32xf32>
    %53 = math.exp %52 : vector<8x32xf32>
    %cst_26 = arith.constant 1.000000e+00 : f32
    %54 = vector.broadcast %cst_26 : f32 to vector<8x32xf32>
    %55 = arith.addf %54, %53 : vector<8x32xf32>
    %56 = arith.divf %54, %55 : vector<8x32xf32>
    %57 = vector.extract_strided_slice %50 {offsets = [0, 32], sizes = [8, 32], strides = [1, 1]} : vector<8x128xf32> to vector<8x32xf32>
    %58 = arith.negf %57 : vector<8x32xf32>
    %59 = math.exp %58 : vector<8x32xf32>
    %cst_27 = arith.constant 1.000000e+00 : f32
    %60 = vector.broadcast %cst_27 : f32 to vector<8x32xf32>
    %61 = arith.addf %60, %59 : vector<8x32xf32>
    %62 = arith.divf %60, %61 : vector<8x32xf32>
    %63 = vector.extract_strided_slice %50 {offsets = [0, 64], sizes = [8, 32], strides = [1, 1]} : vector<8x128xf32> to vector<8x32xf32>
    %64 = math.tanh %63 : vector<8x32xf32>
    %65 = vector.extract_strided_slice %50 {offsets = [0, 96], sizes = [8, 32], strides = [1, 1]} : vector<8x128xf32> to vector<8x32xf32>
    %66 = arith.negf %65 : vector<8x32xf32>
    %67 = math.exp %66 : vector<8x32xf32>
    %cst_28 = arith.constant 1.000000e+00 : f32
    %68 = vector.broadcast %cst_28 : f32 to vector<8x32xf32>
    %69 = arith.addf %68, %67 : vector<8x32xf32>
    %70 = arith.divf %68, %69 : vector<8x32xf32>
    %71 = arith.mulf %62, %39 : vector<8x32xf32>
    %72 = arith.mulf %56, %64 : vector<8x32xf32>
    %73 = arith.addf %71, %72 : vector<8x32xf32>
    %74 = math.tanh %73 : vector<8x32xf32>
    %75 = arith.mulf %70, %74 : vector<8x32xf32>
    %76 = arith.truncf %75 : vector<8x32xf32> to vector<8x32xbf16>
    %c1_29 = arith.constant 1 : index
    %c0_30 = arith.constant 0 : index
    %c0_31 = arith.constant 0 : index
    %77 = vector.load %arg18[%c1_29, %c0_30, %c0_31] : memref<8x8x32xbf16, #tpu.memory_space<vmem>>, vector<1x8x32xbf16>
    %78 = vector.shape_cast %77 : vector<1x8x32xbf16> to vector<8x32xbf16>
    %79 = vector.shape_cast %76 : vector<8x32xbf16> to vector<1x8x32xbf16>
    tpu.vector_store %arg18[%c1_29, %c0_30, %c0_31], %79 {strides = array<i32>} : memref<8x8x32xbf16, #tpu.memory_space<vmem>>, vector<1x8x32xbf16>,
    %c2 = arith.constant 2 : index
    %c0_32 = arith.constant 0 : index
    %c0_33 = arith.constant 0 : index
    %80 = vector.load %arg19[%c2, %c0_32, %c0_33] : memref<8x8x128xf32, #tpu.memory_space<vmem>>, vector<1x8x128xf32>
    %81 = vector.shape_cast %80 : vector<1x8x128xf32> to vector<8x128xf32>
    %82 = arith.truncf %75 : vector<8x32xf32> to vector<8x32xbf16>
    %cst_34 = arith.constant dense<0.000000e+00> : vector<8x128xf32>
    %83 = tpu.matmul %82, %0, %cst_34 {dimension_numbers = #tpu.dot_dimension_numbers<[1], [0], [0], [1], [0, 0, 1, 1], [], []>} : vector<8x32xbf16>, vector<32x128xbf16>, vector<8x128xf32> -> vector<8x128xf32>
    %84 = arith.addf %81, %83 : vector<8x128xf32>
    %85 = vector.extract_strided_slice %84 {offsets = [0, 0], sizes = [8, 32], strides = [1, 1]} : vector<8x128xf32> to vector<8x32xf32>
    %86 = arith.negf %85 : vector<8x32xf32>
    %87 = math.exp %86 : vector<8x32xf32>
    %cst_35 = arith.constant 1.000000e+00 : f32
    %88 = vector.broadcast %cst_35 : f32 to vector<8x32xf32>
    %89 = arith.addf %88, %87 : vector<8x32xf32>
    %90 = arith.divf %88, %89 : vector<8x32xf32>
    %91 = vector.extract_strided_slice %84 {offsets = [0, 32], sizes = [8, 32], strides = [1, 1]} : vector<8x128xf32> to vector<8x32xf32>
    %92 = arith.negf %91 : vector<8x32xf32>
    %93 = math.exp %92 : vector<8x32xf32>
    %cst_36 = arith.constant 1.000000e+00 : f32
    %94 = vector.broadcast %cst_36 : f32 to vector<8x32xf32>
    %95 = arith.addf %94, %93 : vector<8x32xf32>
    %96 = arith.divf %94, %95 : vector<8x32xf32>
    %97 = vector.extract_strided_slice %84 {offsets = [0, 64], sizes = [8, 32], strides = [1, 1]} : vector<8x128xf32> to vector<8x32xf32>
    %98 = math.tanh %97 : vector<8x32xf32>
    %99 = vector.extract_strided_slice %84 {offsets = [0, 96], sizes = [8, 32], strides = [1, 1]} : vector<8x128xf32> to vector<8x32xf32>
    %100 = arith.negf %99 : vector<8x32xf32>
    %101 = math.exp %100 : vector<8x32xf32>
    %cst_37 = arith.constant 1.000000e+00 : f32
    %102 = vector.broadcast %cst_37 : f32 to vector<8x32xf32>
    %103 = arith.addf %102, %101 : vector<8x32xf32>
    %104 = arith.divf %102, %103 : vector<8x32xf32>
    %105 = arith.mulf %96, %73 : vector<8x32xf32>
    %106 = arith.mulf %90, %98 : vector<8x32xf32>
    %107 = arith.addf %105, %106 : vector<8x32xf32>
    %108 = math.tanh %107 : vector<8x32xf32>
    %109 = arith.mulf %104, %108 : vector<8x32xf32>
    %110 = arith.truncf %109 : vector<8x32xf32> to vector<8x32xbf16>
    %c2_38 = arith.constant 2 : index
    %c0_39 = arith.constant 0 : index
    %c0_40 = arith.constant 0 : index
    %111 = vector.load %arg18[%c2_38, %c0_39, %c0_40] : memref<8x8x32xbf16, #tpu.memory_space<vmem>>, vector<1x8x32xbf16>
    %112 = vector.shape_cast %111 : vector<1x8x32xbf16> to vector<8x32xbf16>
    %113 = vector.shape_cast %110 : vector<8x32xbf16> to vector<1x8x32xbf16>
    tpu.vector_store %arg18[%c2_38, %c0_39, %c0_40], %113 {strides = array<i32>} : memref<8x8x32xbf16, #tpu.memory_space<vmem>>, vector<1x8x32xbf16>,
    %c3 = arith.constant 3 : index
    %c0_41 = arith.constant 0 : index
    %c0_42 = arith.constant 0 : index
    %114 = vector.load %arg19[%c3, %c0_41, %c0_42] : memref<8x8x128xf32, #tpu.memory_space<vmem>>, vector<1x8x128xf32>
    %115 = vector.shape_cast %114 : vector<1x8x128xf32> to vector<8x128xf32>
    %116 = arith.truncf %109 : vector<8x32xf32> to vector<8x32xbf16>
    %cst_43 = arith.constant dense<0.000000e+00> : vector<8x128xf32>
    %117 = tpu.matmul %116, %0, %cst_43 {dimension_numbers = #tpu.dot_dimension_numbers<[1], [0], [0], [1], [0, 0, 1, 1], [], []>} : vector<8x32xbf16>, vector<32x128xbf16>, vector<8x128xf32> -> vector<8x128xf32>
    %118 = arith.addf %115, %117 : vector<8x128xf32>
    %119 = vector.extract_strided_slice %118 {offsets = [0, 0], sizes = [8, 32], strides = [1, 1]} : vector<8x128xf32> to vector<8x32xf32>
    %120 = arith.negf %119 : vector<8x32xf32>
    %121 = math.exp %120 : vector<8x32xf32>
    %cst_44 = arith.constant 1.000000e+00 : f32
    %122 = vector.broadcast %cst_44 : f32 to vector<8x32xf32>
    %123 = arith.addf %122, %121 : vector<8x32xf32>
    %124 = arith.divf %122, %123 : vector<8x32xf32>
    %125 = vector.extract_strided_slice %118 {offsets = [0, 32], sizes = [8, 32], strides = [1, 1]} : vector<8x128xf32> to vector<8x32xf32>
    %126 = arith.negf %125 : vector<8x32xf32>
    %127 = math.exp %126 : vector<8x32xf32>
    %cst_45 = arith.constant 1.000000e+00 : f32
    %128 = vector.broadcast %cst_45 : f32 to vector<8x32xf32>
    %129 = arith.addf %128, %127 : vector<8x32xf32>
    %130 = arith.divf %128, %129 : vector<8x32xf32>
    %131 = vector.extract_strided_slice %118 {offsets = [0, 64], sizes = [8, 32], strides = [1, 1]} : vector<8x128xf32> to vector<8x32xf32>
    %132 = math.tanh %131 : vector<8x32xf32>
    %133 = vector.extract_strided_slice %118 {offsets = [0, 96], sizes = [8, 32], strides = [1, 1]} : vector<8x128xf32> to vector<8x32xf32>
    %134 = arith.negf %133 : vector<8x32xf32>
    %135 = math.exp %134 : vector<8x32xf32>
    %cst_46 = arith.constant 1.000000e+00 : f32
    %136 = vector.broadcast %cst_46 : f32 to vector<8x32xf32>
    %137 = arith.addf %136, %135 : vector<8x32xf32>
    %138 = arith.divf %136, %137 : vector<8x32xf32>
    %139 = arith.mulf %130, %107 : vector<8x32xf32>
    %140 = arith.mulf %124, %132 : vector<8x32xf32>
    %141 = arith.addf %139, %140 : vector<8x32xf32>
    %142 = math.tanh %141 : vector<8x32xf32>
    %143 = arith.mulf %138, %142 : vector<8x32xf32>
    %144 = arith.truncf %143 : vector<8x32xf32> to vector<8x32xbf16>
    %c3_47 = arith.constant 3 : index
    %c0_48 = arith.constant 0 : index
    %c0_49 = arith.constant 0 : index
    %145 = vector.load %arg18[%c3_47, %c0_48, %c0_49] : memref<8x8x32xbf16, #tpu.memory_space<vmem>>, vector<1x8x32xbf16>
    %146 = vector.shape_cast %145 : vector<1x8x32xbf16> to vector<8x32xbf16>
    %147 = vector.shape_cast %144 : vector<8x32xbf16> to vector<1x8x32xbf16>
    tpu.vector_store %arg18[%c3_47, %c0_48, %c0_49], %147 {strides = array<i32>} : memref<8x8x32xbf16, #tpu.memory_space<vmem>>, vector<1x8x32xbf16>,
    %c4 = arith.constant 4 : index
    %c0_50 = arith.constant 0 : index
    %c0_51 = arith.constant 0 : index
    %148 = vector.load %arg19[%c4, %c0_50, %c0_51] : memref<8x8x128xf32, #tpu.memory_space<vmem>>, vector<1x8x128xf32>
    %149 = vector.shape_cast %148 : vector<1x8x128xf32> to vector<8x128xf32>
    %150 = arith.truncf %143 : vector<8x32xf32> to vector<8x32xbf16>
    %cst_52 = arith.constant dense<0.000000e+00> : vector<8x128xf32>
    %151 = tpu.matmul %150, %0, %cst_52 {dimension_numbers = #tpu.dot_dimension_numbers<[1], [0], [0], [1], [0, 0, 1, 1], [], []>} : vector<8x32xbf16>, vector<32x128xbf16>, vector<8x128xf32> -> vector<8x128xf32>
    %152 = arith.addf %149, %151 : vector<8x128xf32>
    %153 = vector.extract_strided_slice %152 {offsets = [0, 0], sizes = [8, 32], strides = [1, 1]} : vector<8x128xf32> to vector<8x32xf32>
    %154 = arith.negf %153 : vector<8x32xf32>
    %155 = math.exp %154 : vector<8x32xf32>
    %cst_53 = arith.constant 1.000000e+00 : f32
    %156 = vector.broadcast %cst_53 : f32 to vector<8x32xf32>
    %157 = arith.addf %156, %155 : vector<8x32xf32>
    %158 = arith.divf %156, %157 : vector<8x32xf32>
    %159 = vector.extract_strided_slice %152 {offsets = [0, 32], sizes = [8, 32], strides = [1, 1]} : vector<8x128xf32> to vector<8x32xf32>
    %160 = arith.negf %159 : vector<8x32xf32>
    %161 = math.exp %160 : vector<8x32xf32>
    %cst_54 = arith.constant 1.000000e+00 : f32
    %162 = vector.broadcast %cst_54 : f32 to vector<8x32xf32>
    %163 = arith.addf %162, %161 : vector<8x32xf32>
    %164 = arith.divf %162, %163 : vector<8x32xf32>
    %165 = vector.extract_strided_slice %152 {offsets = [0, 64], sizes = [8, 32], strides = [1, 1]} : vector<8x128xf32> to vector<8x32xf32>
    %166 = math.tanh %165 : vector<8x32xf32>
    %167 = vector.extract_strided_slice %152 {offsets = [0, 96], sizes = [8, 32], strides = [1, 1]} : vector<8x128xf32> to vector<8x32xf32>
    %168 = arith.negf %167 : vector<8x32xf32>
    %169 = math.exp %168 : vector<8x32xf32>
    %cst_55 = arith.constant 1.000000e+00 : f32
    %170 = vector.broadcast %cst_55 : f32 to vector<8x32xf32>
    %171 = arith.addf %170, %169 : vector<8x32xf32>
    %172 = arith.divf %170, %171 : vector<8x32xf32>
    %173 = arith.mulf %164, %141 : vector<8x32xf32>
    %174 = arith.mulf %158, %166 : vector<8x32xf32>
    %175 = arith.addf %173, %174 : vector<8x32xf32>
    %176 = math.tanh %175 : vector<8x32xf32>
    %177 = arith.mulf %172, %176 : vector<8x32xf32>
    %178 = arith.truncf %177 : vector<8x32xf32> to vector<8x32xbf16>
    %c4_56 = arith.constant 4 : index
    %c0_57 = arith.constant 0 : index
    %c0_58 = arith.constant 0 : index
    %179 = vector.load %arg18[%c4_56, %c0_57, %c0_58] : memref<8x8x32xbf16, #tpu.memory_space<vmem>>, vector<1x8x32xbf16>
    %180 = vector.shape_cast %179 : vector<1x8x32xbf16> to vector<8x32xbf16>
    %181 = vector.shape_cast %178 : vector<8x32xbf16> to vector<1x8x32xbf16>
    tpu.vector_store %arg18[%c4_56, %c0_57, %c0_58], %181 {strides = array<i32>} : memref<8x8x32xbf16, #tpu.memory_space<vmem>>, vector<1x8x32xbf16>,
    %c5 = arith.constant 5 : index
    %c0_59 = arith.constant 0 : index
    %c0_60 = arith.constant 0 : index
    %182 = vector.load %arg19[%c5, %c0_59, %c0_60] : memref<8x8x128xf32, #tpu.memory_space<vmem>>, vector<1x8x128xf32>
    %183 = vector.shape_cast %182 : vector<1x8x128xf32> to vector<8x128xf32>
    %184 = arith.truncf %177 : vector<8x32xf32> to vector<8x32xbf16>
    %cst_61 = arith.constant dense<0.000000e+00> : vector<8x128xf32>
    %185 = tpu.matmul %184, %0, %cst_61 {dimension_numbers = #tpu.dot_dimension_numbers<[1], [0], [0], [1], [0, 0, 1, 1], [], []>} : vector<8x32xbf16>, vector<32x128xbf16>, vector<8x128xf32> -> vector<8x128xf32>
    %186 = arith.addf %183, %185 : vector<8x128xf32>
    %187 = vector.extract_strided_slice %186 {offsets = [0, 0], sizes = [8, 32], strides = [1, 1]} : vector<8x128xf32> to vector<8x32xf32>
    %188 = arith.negf %187 : vector<8x32xf32>
    %189 = math.exp %188 : vector<8x32xf32>
    %cst_62 = arith.constant 1.000000e+00 : f32
    %190 = vector.broadcast %cst_62 : f32 to vector<8x32xf32>
    %191 = arith.addf %190, %189 : vector<8x32xf32>
    %192 = arith.divf %190, %191 : vector<8x32xf32>
    %193 = vector.extract_strided_slice %186 {offsets = [0, 32], sizes = [8, 32], strides = [1, 1]} : vector<8x128xf32> to vector<8x32xf32>
    %194 = arith.negf %193 : vector<8x32xf32>
    %195 = math.exp %194 : vector<8x32xf32>
    %cst_63 = arith.constant 1.000000e+00 : f32
    %196 = vector.broadcast %cst_63 : f32 to vector<8x32xf32>
    %197 = arith.addf %196, %195 : vector<8x32xf32>
    %198 = arith.divf %196, %197 : vector<8x32xf32>
    %199 = vector.extract_strided_slice %186 {offsets = [0, 64], sizes = [8, 32], strides = [1, 1]} : vector<8x128xf32> to vector<8x32xf32>
    %200 = math.tanh %199 : vector<8x32xf32>
    %201 = vector.extract_strided_slice %186 {offsets = [0, 96], sizes = [8, 32], strides = [1, 1]} : vector<8x128xf32> to vector<8x32xf32>
    %202 = arith.negf %201 : vector<8x32xf32>
    %203 = math.exp %202 : vector<8x32xf32>
    %cst_64 = arith.constant 1.000000e+00 : f32
    %204 = vector.broadcast %cst_64 : f32 to vector<8x32xf32>
    %205 = arith.addf %204, %203 : vector<8x32xf32>
    %206 = arith.divf %204, %205 : vector<8x32xf32>
    %207 = arith.mulf %198, %175 : vector<8x32xf32>
    %208 = arith.mulf %192, %200 : vector<8x32xf32>
    %209 = arith.addf %207, %208 : vector<8x32xf32>
    %210 = math.tanh %209 : vector<8x32xf32>
    %211 = arith.mulf %206, %210 : vector<8x32xf32>
    %212 = arith.truncf %211 : vector<8x32xf32> to vector<8x32xbf16>
    %c5_65 = arith.constant 5 : index
    %c0_66 = arith.constant 0 : index
    %c0_67 = arith.constant 0 : index
    %213 = vector.load %arg18[%c5_65, %c0_66, %c0_67] : memref<8x8x32xbf16, #tpu.memory_space<vmem>>, vector<1x8x32xbf16>
    %214 = vector.shape_cast %213 : vector<1x8x32xbf16> to vector<8x32xbf16>
    %215 = vector.shape_cast %212 : vector<8x32xbf16> to vector<1x8x32xbf16>
    tpu.vector_store %arg18[%c5_65, %c0_66, %c0_67], %215 {strides = array<i32>} : memref<8x8x32xbf16, #tpu.memory_space<vmem>>, vector<1x8x32xbf16>,
    %c6 = arith.constant 6 : index
    %c0_68 = arith.constant 0 : index
    %c0_69 = arith.constant 0 : index
    %216 = vector.load %arg19[%c6, %c0_68, %c0_69] : memref<8x8x128xf32, #tpu.memory_space<vmem>>, vector<1x8x128xf32>
    %217 = vector.shape_cast %216 : vector<1x8x128xf32> to vector<8x128xf32>
    %218 = arith.truncf %211 : vector<8x32xf32> to vector<8x32xbf16>
    %cst_70 = arith.constant dense<0.000000e+00> : vector<8x128xf32>
    %219 = tpu.matmul %218, %0, %cst_70 {dimension_numbers = #tpu.dot_dimension_numbers<[1], [0], [0], [1], [0, 0, 1, 1], [], []>} : vector<8x32xbf16>, vector<32x128xbf16>, vector<8x128xf32> -> vector<8x128xf32>
    %220 = arith.addf %217, %219 : vector<8x128xf32>
    %221 = vector.extract_strided_slice %220 {offsets = [0, 0], sizes = [8, 32], strides = [1, 1]} : vector<8x128xf32> to vector<8x32xf32>
    %222 = arith.negf %221 : vector<8x32xf32>
    %223 = math.exp %222 : vector<8x32xf32>
    %cst_71 = arith.constant 1.000000e+00 : f32
    %224 = vector.broadcast %cst_71 : f32 to vector<8x32xf32>
    %225 = arith.addf %224, %223 : vector<8x32xf32>
    %226 = arith.divf %224, %225 : vector<8x32xf32>
    %227 = vector.extract_strided_slice %220 {offsets = [0, 32], sizes = [8, 32], strides = [1, 1]} : vector<8x128xf32> to vector<8x32xf32>
    %228 = arith.negf %227 : vector<8x32xf32>
    %229 = math.exp %228 : vector<8x32xf32>
    %cst_72 = arith.constant 1.000000e+00 : f32
    %230 = vector.broadcast %cst_72 : f32 to vector<8x32xf32>
    %231 = arith.addf %230, %229 : vector<8x32xf32>
    %232 = arith.divf %230, %231 : vector<8x32xf32>
    %233 = vector.extract_strided_slice %220 {offsets = [0, 64], sizes = [8, 32], strides = [1, 1]} : vector<8x128xf32> to vector<8x32xf32>
    %234 = math.tanh %233 : vector<8x32xf32>
    %235 = vector.extract_strided_slice %220 {offsets = [0, 96], sizes = [8, 32], strides = [1, 1]} : vector<8x128xf32> to vector<8x32xf32>
    %236 = arith.negf %235 : vector<8x32xf32>
    %237 = math.exp %236 : vector<8x32xf32>
    %cst_73 = arith.constant 1.000000e+00 : f32
    %238 = vector.broadcast %cst_73 : f32 to vector<8x32xf32>
    %239 = arith.addf %238, %237 : vector<8x32xf32>
    %240 = arith.divf %238, %239 : vector<8x32xf32>
    %241 = arith.mulf %232, %209 : vector<8x32xf32>
    %242 = arith.mulf %226, %234 : vector<8x32xf32>
    %243 = arith.addf %241, %242 : vector<8x32xf32>
    %244 = math.tanh %243 : vector<8x32xf32>
    %245 = arith.mulf %240, %244 : vector<8x32xf32>
    %246 = arith.truncf %245 : vector<8x32xf32> to vector<8x32xbf16>
    %c6_74 = arith.constant 6 : index
    %c0_75 = arith.constant 0 : index
    %c0_76 = arith.constant 0 : index
    %247 = vector.load %arg18[%c6_74, %c0_75, %c0_76] : memref<8x8x32xbf16, #tpu.memory_space<vmem>>, vector<1x8x32xbf16>
    %248 = vector.shape_cast %247 : vector<1x8x32xbf16> to vector<8x32xbf16>
    %249 = vector.shape_cast %246 : vector<8x32xbf16> to vector<1x8x32xbf16>
    tpu.vector_store %arg18[%c6_74, %c0_75, %c0_76], %249 {strides = array<i32>} : memref<8x8x32xbf16, #tpu.memory_space<vmem>>, vector<1x8x32xbf16>,
    %c7 = arith.constant 7 : index
    %c0_77 = arith.constant 0 : index
    %c0_78 = arith.constant 0 : index
    %250 = vector.load %arg19[%c7, %c0_77, %c0_78] : memref<8x8x128xf32, #tpu.memory_space<vmem>>, vector<1x8x128xf32>
    %251 = vector.shape_cast %250 : vector<1x8x128xf32> to vector<8x128xf32>
    %252 = arith.truncf %245 : vector<8x32xf32> to vector<8x32xbf16>
    %cst_79 = arith.constant dense<0.000000e+00> : vector<8x128xf32>
    %253 = tpu.matmul %252, %0, %cst_79 {dimension_numbers = #tpu.dot_dimension_numbers<[1], [0], [0], [1], [0, 0, 1, 1], [], []>} : vector<8x32xbf16>, vector<32x128xbf16>, vector<8x128xf32> -> vector<8x128xf32>
    %254 = arith.addf %251, %253 : vector<8x128xf32>
    %255 = vector.extract_strided_slice %254 {offsets = [0, 0], sizes = [8, 32], strides = [1, 1]} : vector<8x128xf32> to vector<8x32xf32>
    %256 = arith.negf %255 : vector<8x32xf32>
    %257 = math.exp %256 : vector<8x32xf32>
    %cst_80 = arith.constant 1.000000e+00 : f32
    %258 = vector.broadcast %cst_80 : f32 to vector<8x32xf32>
    %259 = arith.addf %258, %257 : vector<8x32xf32>
    %260 = arith.divf %258, %259 : vector<8x32xf32>
    %261 = vector.extract_strided_slice %254 {offsets = [0, 32], sizes = [8, 32], strides = [1, 1]} : vector<8x128xf32> to vector<8x32xf32>
    %262 = arith.negf %261 : vector<8x32xf32>
    %263 = math.exp %262 : vector<8x32xf32>
    %cst_81 = arith.constant 1.000000e+00 : f32
    %264 = vector.broadcast %cst_81 : f32 to vector<8x32xf32>
    %265 = arith.addf %264, %263 : vector<8x32xf32>
    %266 = arith.divf %264, %265 : vector<8x32xf32>
    %267 = vector.extract_strided_slice %254 {offsets = [0, 64], sizes = [8, 32], strides = [1, 1]} : vector<8x128xf32> to vector<8x32xf32>
    %268 = math.tanh %267 : vector<8x32xf32>
    %269 = vector.extract_strided_slice %254 {offsets = [0, 96], sizes = [8, 32], strides = [1, 1]} : vector<8x128xf32> to vector<8x32xf32>
    %270 = arith.negf %269 : vector<8x32xf32>
    %271 = math.exp %270 : vector<8x32xf32>
    %cst_82 = arith.constant 1.000000e+00 : f32
    %272 = vector.broadcast %cst_82 : f32 to vector<8x32xf32>
    %273 = arith.addf %272, %271 : vector<8x32xf32>
    %274 = arith.divf %272, %273 : vector<8x32xf32>
    %275 = arith.mulf %266, %243 : vector<8x32xf32>
    %276 = arith.mulf %260, %268 : vector<8x32xf32>
    %277 = arith.addf %275, %276 : vector<8x32xf32>
    %278 = math.tanh %277 : vector<8x32xf32>
    %279 = arith.mulf %274, %278 : vector<8x32xf32>
    %280 = arith.truncf %279 : vector<8x32xf32> to vector<8x32xbf16>
    %c7_83 = arith.constant 7 : index
    %c0_84 = arith.constant 0 : index
    %c0_85 = arith.constant 0 : index
    %281 = vector.load %arg18[%c7_83, %c0_84, %c0_85] : memref<8x8x32xbf16, #tpu.memory_space<vmem>>, vector<1x8x32xbf16>
    %282 = vector.shape_cast %281 : vector<1x8x32xbf16> to vector<8x32xbf16>
    %283 = vector.shape_cast %280 : vector<8x32xbf16> to vector<1x8x32xbf16>
    tpu.vector_store %arg18[%c7_83, %c0_84, %c0_85], %283 {strides = array<i32>} : memref<8x8x32xbf16, #tpu.memory_space<vmem>>, vector<1x8x32xbf16>,
    %c0_86 = arith.constant 0 : index
    %c0_87 = arith.constant 0 : index
    %284 = vector.load %arg5[%c0_86, %c0_87] : memref<1x32xf32, #tpu.memory_space<vmem>>, vector<1x32xf32>
    %c0_88 = arith.constant 0 : index
    %c0_89 = arith.constant 0 : index
    %285 = vector.load %arg6[%c0_88, %c0_89] : memref<1x32xf32, #tpu.memory_space<vmem>>, vector<1x32xf32>
    %c0_90 = arith.constant 0 : index
    %c0_91 = arith.constant 0 : index
    %c0_92 = arith.constant 0 : index
    %286 = vector.load %arg18[%c0_90, %c0_91, %c0_92] : memref<8x8x32xbf16, #tpu.memory_space<vmem>>, vector<8x8x32xbf16>
    %287 = vector.shape_cast %286 : vector<8x8x32xbf16> to vector<64x32xbf16>
    %288 = arith.extf %287 : vector<64x32xbf16> to vector<64x32xf32>
    %cst_93 = arith.constant dense<0.000000e+00> : vector<64xf32>
    %289 = vector.multi_reduction <add>, %288, %cst_93 [1] : vector<64x32xf32> to vector<64xf32>
    %290 = vector.shape_cast %289 : vector<64xf32> to vector<64x1xf32>
    %cst_94 = arith.constant 3.200000e+01 : f32
    %291 = vector.broadcast %cst_94 : f32 to vector<64x1xf32>
    %292 = arith.divf %290, %291 : vector<64x1xf32>
    %293 = vector.broadcast %292 : vector<64x1xf32> to vector<64x32xf32>
    %294 = arith.subf %288, %293 : vector<64x32xf32>
    %295 = arith.mulf %294, %294 : vector<64x32xf32>
    %cst_95 = arith.constant dense<0.000000e+00> : vector<64xf32>
    %296 = vector.multi_reduction <add>, %295, %cst_95 [1] : vector<64x32xf32> to vector<64xf32>
    %297 = vector.shape_cast %296 : vector<64xf32> to vector<64x1xf32>
    %cst_96 = arith.constant 3.200000e+01 : f32
    %298 = vector.broadcast %cst_96 : f32 to vector<64x1xf32>
    %299 = arith.divf %297, %298 : vector<64x1xf32>
    %300 = vector.broadcast %292 : vector<64x1xf32> to vector<64x32xf32>
    %301 = arith.subf %288, %300 : vector<64x32xf32>
    %cst_97 = arith.constant 9.99999974E-6 : f32
    %302 = vector.broadcast %cst_97 : f32 to vector<64x1xf32>
    %303 = arith.addf %299, %302 : vector<64x1xf32>
    %304 = math.rsqrt %303 : vector<64x1xf32>
    %305 = vector.broadcast %304 : vector<64x1xf32> to vector<64x32xf32>
    %306 = arith.mulf %301, %305 : vector<64x32xf32>
    %307 = vector.broadcast %284 : vector<1x32xf32> to vector<64x32xf32>
    %308 = arith.mulf %306, %307 : vector<64x32xf32>
    %309 = vector.broadcast %285 : vector<1x32xf32> to vector<64x32xf32>
    %310 = arith.addf %308, %309 : vector<64x32xf32>
    %311 = vector.shape_cast %310 : vector<64x32xf32> to vector<8x8x32xf32>
    %312 = arith.truncf %311 : vector<8x8x32xf32> to vector<8x8x32xbf16>
    %c0_98 = arith.constant 0 : index
    %c0_99 = arith.constant 0 : index
    %c0_100 = arith.constant 0 : index
    %313 = vector.load %arg17[%c0_98, %c0_99, %c0_100] : memref<8x8x32xbf16, #tpu.memory_space<vmem>>, vector<8x8x32xbf16>
    tpu.vector_store %arg17[%c0_98, %c0_99, %c0_100], %312 {strides = array<i32>} : memref<8x8x32xbf16, #tpu.memory_space<vmem>>, vector<8x8x32xbf16>,
    %c0_101 = arith.constant 0 : index
    %c0_102 = arith.constant 0 : index
    %314 = vector.load %arg8[%c0_101, %c0_102] : memref<32x128xbf16, #tpu.memory_space<vmem>>, vector<32x128xbf16>
    %cst_103 = arith.constant 0.000000e+00 : f32
    %315 = vector.broadcast %cst_103 : f32 to vector<8x32xf32>
    %cst_104 = arith.constant 0.000000e+00 : f32
    %316 = vector.broadcast %cst_104 : f32 to vector<8x32xf32>
    %c0_105 = arith.constant 0 : index
    %c0_106 = arith.constant 0 : index
    %c0_107 = arith.constant 0 : index
    %317 = vector.load %arg17[%c0_105, %c0_106, %c0_107] : memref<8x8x32xbf16, #tpu.memory_space<vmem>>, vector<8x8x32xbf16>
    %318 = vector.shape_cast %317 : vector<8x8x32xbf16> to vector<64x32xbf16>
    %c0_108 = arith.constant 0 : index
    %c0_109 = arith.constant 0 : index
    %319 = vector.load %arg7[%c0_108, %c0_109] : memref<32x128xbf16, #tpu.memory_space<vmem>>, vector<32x128xbf16>
    %cst_110 = arith.constant dense<0.000000e+00> : vector<64x128xf32>
    %320 = tpu.matmul %318, %319, %cst_110 {dimension_numbers = #tpu.dot_dimension_numbers<[1], [0], [0], [1], [0, 0, 1, 1], [], []>} : vector<64x32xbf16>, vector<32x128xbf16>, vector<64x128xf32> -> vector<64x128xf32>
    %c0_111 = arith.constant 0 : index
    %c0_112 = arith.constant 0 : index
    %321 = vector.load %arg9[%c0_111, %c0_112] : memref<1x128xf32, #tpu.memory_space<vmem>>, vector<1x128xf32>
    %322 = vector.broadcast %321 : vector<1x128xf32> to vector<64x128xf32>
    %323 = arith.addf %320, %322 : vector<64x128xf32>
    %324 = vector.shape_cast %323 : vector<64x128xf32> to vector<8x8x128xf32>
    %c0_113 = arith.constant 0 : index
    %c0_114 = arith.constant 0 : index
    %c0_115 = arith.constant 0 : index
    %325 = vector.load %arg19[%c0_113, %c0_114, %c0_115] : memref<8x8x128xf32, #tpu.memory_space<vmem>>, vector<8x8x128xf32>
    tpu.vector_store %arg19[%c0_113, %c0_114, %c0_115], %324 {strides = array<i32>} : memref<8x8x128xf32, #tpu.memory_space<vmem>>, vector<8x8x128xf32>,
    %c0_116 = arith.constant 0 : index
    %c0_117 = arith.constant 0 : index
    %c0_118 = arith.constant 0 : index
    %326 = vector.load %arg19[%c0_116, %c0_117, %c0_118] : memref<8x8x128xf32, #tpu.memory_space<vmem>>, vector<1x8x128xf32>
    %327 = vector.shape_cast %326 : vector<1x8x128xf32> to vector<8x128xf32>
    %328 = arith.truncf %315 : vector<8x32xf32> to vector<8x32xbf16>
    %cst_119 = arith.constant dense<0.000000e+00> : vector<8x128xf32>
    %329 = tpu.matmul %328, %314, %cst_119 {dimension_numbers = #tpu.dot_dimension_numbers<[1], [0], [0], [1], [0, 0, 1, 1], [], []>} : vector<8x32xbf16>, vector<32x128xbf16>, vector<8x128xf32> -> vector<8x128xf32>
    %330 = arith.addf %327, %329 : vector<8x128xf32>
    %331 = vector.extract_strided_slice %330 {offsets = [0, 0], sizes = [8, 32], strides = [1, 1]} : vector<8x128xf32> to vector<8x32xf32>
    %332 = arith.negf %331 : vector<8x32xf32>
    %333 = math.exp %332 : vector<8x32xf32>
    %cst_120 = arith.constant 1.000000e+00 : f32
    %334 = vector.broadcast %cst_120 : f32 to vector<8x32xf32>
    %335 = arith.addf %334, %333 : vector<8x32xf32>
    %336 = arith.divf %334, %335 : vector<8x32xf32>
    %337 = vector.extract_strided_slice %330 {offsets = [0, 32], sizes = [8, 32], strides = [1, 1]} : vector<8x128xf32> to vector<8x32xf32>
    %338 = arith.negf %337 : vector<8x32xf32>
    %339 = math.exp %338 : vector<8x32xf32>
    %cst_121 = arith.constant 1.000000e+00 : f32
    %340 = vector.broadcast %cst_121 : f32 to vector<8x32xf32>
    %341 = arith.addf %340, %339 : vector<8x32xf32>
    %342 = arith.divf %340, %341 : vector<8x32xf32>
    %343 = vector.extract_strided_slice %330 {offsets = [0, 64], sizes = [8, 32], strides = [1, 1]} : vector<8x128xf32> to vector<8x32xf32>
    %344 = math.tanh %343 : vector<8x32xf32>
    %345 = vector.extract_strided_slice %330 {offsets = [0, 96], sizes = [8, 32], strides = [1, 1]} : vector<8x128xf32> to vector<8x32xf32>
    %346 = arith.negf %345 : vector<8x32xf32>
    %347 = math.exp %346 : vector<8x32xf32>
    %cst_122 = arith.constant 1.000000e+00 : f32
    %348 = vector.broadcast %cst_122 : f32 to vector<8x32xf32>
    %349 = arith.addf %348, %347 : vector<8x32xf32>
    %350 = arith.divf %348, %349 : vector<8x32xf32>
    %351 = arith.mulf %342, %316 : vector<8x32xf32>
    %352 = arith.mulf %336, %344 : vector<8x32xf32>
    %353 = arith.addf %351, %352 : vector<8x32xf32>
    %354 = math.tanh %353 : vector<8x32xf32>
    %355 = arith.mulf %350, %354 : vector<8x32xf32>
    %356 = arith.truncf %355 : vector<8x32xf32> to vector<8x32xbf16>
    %c0_123 = arith.constant 0 : index
    %c0_124 = arith.constant 0 : index
    %c0_125 = arith.constant 0 : index
    %357 = vector.load %arg18[%c0_123, %c0_124, %c0_125] : memref<8x8x32xbf16, #tpu.memory_space<vmem>>, vector<1x8x32xbf16>
    %358 = vector.shape_cast %357 : vector<1x8x32xbf16> to vector<8x32xbf16>
    %359 = vector.shape_cast %356 : vector<8x32xbf16> to vector<1x8x32xbf16>
    tpu.vector_store %arg18[%c0_123, %c0_124, %c0_125], %359 {strides = array<i32>} : memref<8x8x32xbf16, #tpu.memory_space<vmem>>, vector<1x8x32xbf16>,
    %c1_126 = arith.constant 1 : index
    %c0_127 = arith.constant 0 : index
    %c0_128 = arith.constant 0 : index
    %360 = vector.load %arg19[%c1_126, %c0_127, %c0_128] : memref<8x8x128xf32, #tpu.memory_space<vmem>>, vector<1x8x128xf32>
    %361 = vector.shape_cast %360 : vector<1x8x128xf32> to vector<8x128xf32>
    %362 = arith.truncf %355 : vector<8x32xf32> to vector<8x32xbf16>
    %cst_129 = arith.constant dense<0.000000e+00> : vector<8x128xf32>
    %363 = tpu.matmul %362, %314, %cst_129 {dimension_numbers = #tpu.dot_dimension_numbers<[1], [0], [0], [1], [0, 0, 1, 1], [], []>} : vector<8x32xbf16>, vector<32x128xbf16>, vector<8x128xf32> -> vector<8x128xf32>
    %364 = arith.addf %361, %363 : vector<8x128xf32>
    %365 = vector.extract_strided_slice %364 {offsets = [0, 0], sizes = [8, 32], strides = [1, 1]} : vector<8x128xf32> to vector<8x32xf32>
    %366 = arith.negf %365 : vector<8x32xf32>
    %367 = math.exp %366 : vector<8x32xf32>
    %cst_130 = arith.constant 1.000000e+00 : f32
    %368 = vector.broadcast %cst_130 : f32 to vector<8x32xf32>
    %369 = arith.addf %368, %367 : vector<8x32xf32>
    %370 = arith.divf %368, %369 : vector<8x32xf32>
    %371 = vector.extract_strided_slice %364 {offsets = [0, 32], sizes = [8, 32], strides = [1, 1]} : vector<8x128xf32> to vector<8x32xf32>
    %372 = arith.negf %371 : vector<8x32xf32>
    %373 = math.exp %372 : vector<8x32xf32>
    %cst_131 = arith.constant 1.000000e+00 : f32
    %374 = vector.broadcast %cst_131 : f32 to vector<8x32xf32>
    %375 = arith.addf %374, %373 : vector<8x32xf32>
    %376 = arith.divf %374, %375 : vector<8x32xf32>
    %377 = vector.extract_strided_slice %364 {offsets = [0, 64], sizes = [8, 32], strides = [1, 1]} : vector<8x128xf32> to vector<8x32xf32>
    %378 = math.tanh %377 : vector<8x32xf32>
    %379 = vector.extract_strided_slice %364 {offsets = [0, 96], sizes = [8, 32], strides = [1, 1]} : vector<8x128xf32> to vector<8x32xf32>
    %380 = arith.negf %379 : vector<8x32xf32>
    %381 = math.exp %380 : vector<8x32xf32>
    %cst_132 = arith.constant 1.000000e+00 : f32
    %382 = vector.broadcast %cst_132 : f32 to vector<8x32xf32>
    %383 = arith.addf %382, %381 : vector<8x32xf32>
    %384 = arith.divf %382, %383 : vector<8x32xf32>
    %385 = arith.mulf %376, %353 : vector<8x32xf32>
    %386 = arith.mulf %370, %378 : vector<8x32xf32>
    %387 = arith.addf %385, %386 : vector<8x32xf32>
    %388 = math.tanh %387 : vector<8x32xf32>
    %389 = arith.mulf %384, %388 : vector<8x32xf32>
    %390 = arith.truncf %389 : vector<8x32xf32> to vector<8x32xbf16>
    %c1_133 = arith.constant 1 : index
    %c0_134 = arith.constant 0 : index
    %c0_135 = arith.constant 0 : index
    %391 = vector.load %arg18[%c1_133, %c0_134, %c0_135] : memref<8x8x32xbf16, #tpu.memory_space<vmem>>, vector<1x8x32xbf16>
    %392 = vector.shape_cast %391 : vector<1x8x32xbf16> to vector<8x32xbf16>
    %393 = vector.shape_cast %390 : vector<8x32xbf16> to vector<1x8x32xbf16>
    tpu.vector_store %arg18[%c1_133, %c0_134, %c0_135], %393 {strides = array<i32>} : memref<8x8x32xbf16, #tpu.memory_space<vmem>>, vector<1x8x32xbf16>,
    %c2_136 = arith.constant 2 : index
    %c0_137 = arith.constant 0 : index
    %c0_138 = arith.constant 0 : index
    %394 = vector.load %arg19[%c2_136, %c0_137, %c0_138] : memref<8x8x128xf32, #tpu.memory_space<vmem>>, vector<1x8x128xf32>
    %395 = vector.shape_cast %394 : vector<1x8x128xf32> to vector<8x128xf32>
    %396 = arith.truncf %389 : vector<8x32xf32> to vector<8x32xbf16>
    %cst_139 = arith.constant dense<0.000000e+00> : vector<8x128xf32>
    %397 = tpu.matmul %396, %314, %cst_139 {dimension_numbers = #tpu.dot_dimension_numbers<[1], [0], [0], [1], [0, 0, 1, 1], [], []>} : vector<8x32xbf16>, vector<32x128xbf16>, vector<8x128xf32> -> vector<8x128xf32>
    %398 = arith.addf %395, %397 : vector<8x128xf32>
    %399 = vector.extract_strided_slice %398 {offsets = [0, 0], sizes = [8, 32], strides = [1, 1]} : vector<8x128xf32> to vector<8x32xf32>
    %400 = arith.negf %399 : vector<8x32xf32>
    %401 = math.exp %400 : vector<8x32xf32>
    %cst_140 = arith.constant 1.000000e+00 : f32
    %402 = vector.broadcast %cst_140 : f32 to vector<8x32xf32>
    %403 = arith.addf %402, %401 : vector<8x32xf32>
    %404 = arith.divf %402, %403 : vector<8x32xf32>
    %405 = vector.extract_strided_slice %398 {offsets = [0, 32], sizes = [8, 32], strides = [1, 1]} : vector<8x128xf32> to vector<8x32xf32>
    %406 = arith.negf %405 : vector<8x32xf32>
    %407 = math.exp %406 : vector<8x32xf32>
    %cst_141 = arith.constant 1.000000e+00 : f32
    %408 = vector.broadcast %cst_141 : f32 to vector<8x32xf32>
    %409 = arith.addf %408, %407 : vector<8x32xf32>
    %410 = arith.divf %408, %409 : vector<8x32xf32>
    %411 = vector.extract_strided_slice %398 {offsets = [0, 64], sizes = [8, 32], strides = [1, 1]} : vector<8x128xf32> to vector<8x32xf32>
    %412 = math.tanh %411 : vector<8x32xf32>
    %413 = vector.extract_strided_slice %398 {offsets = [0, 96], sizes = [8, 32], strides = [1, 1]} : vector<8x128xf32> to vector<8x32xf32>
    %414 = arith.negf %413 : vector<8x32xf32>
    %415 = math.exp %414 : vector<8x32xf32>
    %cst_142 = arith.constant 1.000000e+00 : f32
    %416 = vector.broadcast %cst_142 : f32 to vector<8x32xf32>
    %417 = arith.addf %416, %415 : vector<8x32xf32>
    %418 = arith.divf %416, %417 : vector<8x32xf32>
    %419 = arith.mulf %410, %387 : vector<8x32xf32>
    %420 = arith.mulf %404, %412 : vector<8x32xf32>
    %421 = arith.addf %419, %420 : vector<8x32xf32>
    %422 = math.tanh %421 : vector<8x32xf32>
    %423 = arith.mulf %418, %422 : vector<8x32xf32>
    %424 = arith.truncf %423 : vector<8x32xf32> to vector<8x32xbf16>
    %c2_143 = arith.constant 2 : index
    %c0_144 = arith.constant 0 : index
    %c0_145 = arith.constant 0 : index
    %425 = vector.load %arg18[%c2_143, %c0_144, %c0_145] : memref<8x8x32xbf16, #tpu.memory_space<vmem>>, vector<1x8x32xbf16>
    %426 = vector.shape_cast %425 : vector<1x8x32xbf16> to vector<8x32xbf16>
    %427 = vector.shape_cast %424 : vector<8x32xbf16> to vector<1x8x32xbf16>
    tpu.vector_store %arg18[%c2_143, %c0_144, %c0_145], %427 {strides = array<i32>} : memref<8x8x32xbf16, #tpu.memory_space<vmem>>, vector<1x8x32xbf16>,
    %c3_146 = arith.constant 3 : index
    %c0_147 = arith.constant 0 : index
    %c0_148 = arith.constant 0 : index
    %428 = vector.load %arg19[%c3_146, %c0_147, %c0_148] : memref<8x8x128xf32, #tpu.memory_space<vmem>>, vector<1x8x128xf32>
    %429 = vector.shape_cast %428 : vector<1x8x128xf32> to vector<8x128xf32>
    %430 = arith.truncf %423 : vector<8x32xf32> to vector<8x32xbf16>
    %cst_149 = arith.constant dense<0.000000e+00> : vector<8x128xf32>
    %431 = tpu.matmul %430, %314, %cst_149 {dimension_numbers = #tpu.dot_dimension_numbers<[1], [0], [0], [1], [0, 0, 1, 1], [], []>} : vector<8x32xbf16>, vector<32x128xbf16>, vector<8x128xf32> -> vector<8x128xf32>
    %432 = arith.addf %429, %431 : vector<8x128xf32>
    %433 = vector.extract_strided_slice %432 {offsets = [0, 0], sizes = [8, 32], strides = [1, 1]} : vector<8x128xf32> to vector<8x32xf32>
    %434 = arith.negf %433 : vector<8x32xf32>
    %435 = math.exp %434 : vector<8x32xf32>
    %cst_150 = arith.constant 1.000000e+00 : f32
    %436 = vector.broadcast %cst_150 : f32 to vector<8x32xf32>
    %437 = arith.addf %436, %435 : vector<8x32xf32>
    %438 = arith.divf %436, %437 : vector<8x32xf32>
    %439 = vector.extract_strided_slice %432 {offsets = [0, 32], sizes = [8, 32], strides = [1, 1]} : vector<8x128xf32> to vector<8x32xf32>
    %440 = arith.negf %439 : vector<8x32xf32>
    %441 = math.exp %440 : vector<8x32xf32>
    %cst_151 = arith.constant 1.000000e+00 : f32
    %442 = vector.broadcast %cst_151 : f32 to vector<8x32xf32>
    %443 = arith.addf %442, %441 : vector<8x32xf32>
    %444 = arith.divf %442, %443 : vector<8x32xf32>
    %445 = vector.extract_strided_slice %432 {offsets = [0, 64], sizes = [8, 32], strides = [1, 1]} : vector<8x128xf32> to vector<8x32xf32>
    %446 = math.tanh %445 : vector<8x32xf32>
    %447 = vector.extract_strided_slice %432 {offsets = [0, 96], sizes = [8, 32], strides = [1, 1]} : vector<8x128xf32> to vector<8x32xf32>
    %448 = arith.negf %447 : vector<8x32xf32>
    %449 = math.exp %448 : vector<8x32xf32>
    %cst_152 = arith.constant 1.000000e+00 : f32
    %450 = vector.broadcast %cst_152 : f32 to vector<8x32xf32>
    %451 = arith.addf %450, %449 : vector<8x32xf32>
    %452 = arith.divf %450, %451 : vector<8x32xf32>
    %453 = arith.mulf %444, %421 : vector<8x32xf32>
    %454 = arith.mulf %438, %446 : vector<8x32xf32>
    %455 = arith.addf %453, %454 : vector<8x32xf32>
    %456 = math.tanh %455 : vector<8x32xf32>
    %457 = arith.mulf %452, %456 : vector<8x32xf32>
    %458 = arith.truncf %457 : vector<8x32xf32> to vector<8x32xbf16>
    %c3_153 = arith.constant 3 : index
    %c0_154 = arith.constant 0 : index
    %c0_155 = arith.constant 0 : index
    %459 = vector.load %arg18[%c3_153, %c0_154, %c0_155] : memref<8x8x32xbf16, #tpu.memory_space<vmem>>, vector<1x8x32xbf16>
    %460 = vector.shape_cast %459 : vector<1x8x32xbf16> to vector<8x32xbf16>
    %461 = vector.shape_cast %458 : vector<8x32xbf16> to vector<1x8x32xbf16>
    tpu.vector_store %arg18[%c3_153, %c0_154, %c0_155], %461 {strides = array<i32>} : memref<8x8x32xbf16, #tpu.memory_space<vmem>>, vector<1x8x32xbf16>,
    %c4_156 = arith.constant 4 : index
    %c0_157 = arith.constant 0 : index
    %c0_158 = arith.constant 0 : index
    %462 = vector.load %arg19[%c4_156, %c0_157, %c0_158] : memref<8x8x128xf32, #tpu.memory_space<vmem>>, vector<1x8x128xf32>
    %463 = vector.shape_cast %462 : vector<1x8x128xf32> to vector<8x128xf32>
    %464 = arith.truncf %457 : vector<8x32xf32> to vector<8x32xbf16>
    %cst_159 = arith.constant dense<0.000000e+00> : vector<8x128xf32>
    %465 = tpu.matmul %464, %314, %cst_159 {dimension_numbers = #tpu.dot_dimension_numbers<[1], [0], [0], [1], [0, 0, 1, 1], [], []>} : vector<8x32xbf16>, vector<32x128xbf16>, vector<8x128xf32> -> vector<8x128xf32>
    %466 = arith.addf %463, %465 : vector<8x128xf32>
    %467 = vector.extract_strided_slice %466 {offsets = [0, 0], sizes = [8, 32], strides = [1, 1]} : vector<8x128xf32> to vector<8x32xf32>
    %468 = arith.negf %467 : vector<8x32xf32>
    %469 = math.exp %468 : vector<8x32xf32>
    %cst_160 = arith.constant 1.000000e+00 : f32
    %470 = vector.broadcast %cst_160 : f32 to vector<8x32xf32>
    %471 = arith.addf %470, %469 : vector<8x32xf32>
    %472 = arith.divf %470, %471 : vector<8x32xf32>
    %473 = vector.extract_strided_slice %466 {offsets = [0, 32], sizes = [8, 32], strides = [1, 1]} : vector<8x128xf32> to vector<8x32xf32>
    %474 = arith.negf %473 : vector<8x32xf32>
    %475 = math.exp %474 : vector<8x32xf32>
    %cst_161 = arith.constant 1.000000e+00 : f32
    %476 = vector.broadcast %cst_161 : f32 to vector<8x32xf32>
    %477 = arith.addf %476, %475 : vector<8x32xf32>
    %478 = arith.divf %476, %477 : vector<8x32xf32>
    %479 = vector.extract_strided_slice %466 {offsets = [0, 64], sizes = [8, 32], strides = [1, 1]} : vector<8x128xf32> to vector<8x32xf32>
    %480 = math.tanh %479 : vector<8x32xf32>
    %481 = vector.extract_strided_slice %466 {offsets = [0, 96], sizes = [8, 32], strides = [1, 1]} : vector<8x128xf32> to vector<8x32xf32>
    %482 = arith.negf %481 : vector<8x32xf32>
    %483 = math.exp %482 : vector<8x32xf32>
    %cst_162 = arith.constant 1.000000e+00 : f32
    %484 = vector.broadcast %cst_162 : f32 to vector<8x32xf32>
    %485 = arith.addf %484, %483 : vector<8x32xf32>
    %486 = arith.divf %484, %485 : vector<8x32xf32>
    %487 = arith.mulf %478, %455 : vector<8x32xf32>
    %488 = arith.mulf %472, %480 : vector<8x32xf32>
    %489 = arith.addf %487, %488 : vector<8x32xf32>
    %490 = math.tanh %489 : vector<8x32xf32>
    %491 = arith.mulf %486, %490 : vector<8x32xf32>
    %492 = arith.truncf %491 : vector<8x32xf32> to vector<8x32xbf16>
    %c4_163 = arith.constant 4 : index
    %c0_164 = arith.constant 0 : index
    %c0_165 = arith.constant 0 : index
    %493 = vector.load %arg18[%c4_163, %c0_164, %c0_165] : memref<8x8x32xbf16, #tpu.memory_space<vmem>>, vector<1x8x32xbf16>
    %494 = vector.shape_cast %493 : vector<1x8x32xbf16> to vector<8x32xbf16>
    %495 = vector.shape_cast %492 : vector<8x32xbf16> to vector<1x8x32xbf16>
    tpu.vector_store %arg18[%c4_163, %c0_164, %c0_165], %495 {strides = array<i32>} : memref<8x8x32xbf16, #tpu.memory_space<vmem>>, vector<1x8x32xbf16>,
    %c5_166 = arith.constant 5 : index
    %c0_167 = arith.constant 0 : index
    %c0_168 = arith.constant 0 : index
    %496 = vector.load %arg19[%c5_166, %c0_167, %c0_168] : memref<8x8x128xf32, #tpu.memory_space<vmem>>, vector<1x8x128xf32>
    %497 = vector.shape_cast %496 : vector<1x8x128xf32> to vector<8x128xf32>
    %498 = arith.truncf %491 : vector<8x32xf32> to vector<8x32xbf16>
    %cst_169 = arith.constant dense<0.000000e+00> : vector<8x128xf32>
    %499 = tpu.matmul %498, %314, %cst_169 {dimension_numbers = #tpu.dot_dimension_numbers<[1], [0], [0], [1], [0, 0, 1, 1], [], []>} : vector<8x32xbf16>, vector<32x128xbf16>, vector<8x128xf32> -> vector<8x128xf32>
    %500 = arith.addf %497, %499 : vector<8x128xf32>
    %501 = vector.extract_strided_slice %500 {offsets = [0, 0], sizes = [8, 32], strides = [1, 1]} : vector<8x128xf32> to vector<8x32xf32>
    %502 = arith.negf %501 : vector<8x32xf32>
    %503 = math.exp %502 : vector<8x32xf32>
    %cst_170 = arith.constant 1.000000e+00 : f32
    %504 = vector.broadcast %cst_170 : f32 to vector<8x32xf32>
    %505 = arith.addf %504, %503 : vector<8x32xf32>
    %506 = arith.divf %504, %505 : vector<8x32xf32>
    %507 = vector.extract_strided_slice %500 {offsets = [0, 32], sizes = [8, 32], strides = [1, 1]} : vector<8x128xf32> to vector<8x32xf32>
    %508 = arith.negf %507 : vector<8x32xf32>
    %509 = math.exp %508 : vector<8x32xf32>
    %cst_171 = arith.constant 1.000000e+00 : f32
    %510 = vector.broadcast %cst_171 : f32 to vector<8x32xf32>
    %511 = arith.addf %510, %509 : vector<8x32xf32>
    %512 = arith.divf %510, %511 : vector<8x32xf32>
    %513 = vector.extract_strided_slice %500 {offsets = [0, 64], sizes = [8, 32], strides = [1, 1]} : vector<8x128xf32> to vector<8x32xf32>
    %514 = math.tanh %513 : vector<8x32xf32>
    %515 = vector.extract_strided_slice %500 {offsets = [0, 96], sizes = [8, 32], strides = [1, 1]} : vector<8x128xf32> to vector<8x32xf32>
    %516 = arith.negf %515 : vector<8x32xf32>
    %517 = math.exp %516 : vector<8x32xf32>
    %cst_172 = arith.constant 1.000000e+00 : f32
    %518 = vector.broadcast %cst_172 : f32 to vector<8x32xf32>
    %519 = arith.addf %518, %517 : vector<8x32xf32>
    %520 = arith.divf %518, %519 : vector<8x32xf32>
    %521 = arith.mulf %512, %489 : vector<8x32xf32>
    %522 = arith.mulf %506, %514 : vector<8x32xf32>
    %523 = arith.addf %521, %522 : vector<8x32xf32>
    %524 = math.tanh %523 : vector<8x32xf32>
    %525 = arith.mulf %520, %524 : vector<8x32xf32>
    %526 = arith.truncf %525 : vector<8x32xf32> to vector<8x32xbf16>
    %c5_173 = arith.constant 5 : index
    %c0_174 = arith.constant 0 : index
    %c0_175 = arith.constant 0 : index
    %527 = vector.load %arg18[%c5_173, %c0_174, %c0_175] : memref<8x8x32xbf16, #tpu.memory_space<vmem>>, vector<1x8x32xbf16>
    %528 = vector.shape_cast %527 : vector<1x8x32xbf16> to vector<8x32xbf16>
    %529 = vector.shape_cast %526 : vector<8x32xbf16> to vector<1x8x32xbf16>
    tpu.vector_store %arg18[%c5_173, %c0_174, %c0_175], %529 {strides = array<i32>} : memref<8x8x32xbf16, #tpu.memory_space<vmem>>, vector<1x8x32xbf16>,
    %c6_176 = arith.constant 6 : index
    %c0_177 = arith.constant 0 : index
    %c0_178 = arith.constant 0 : index
    %530 = vector.load %arg19[%c6_176, %c0_177, %c0_178] : memref<8x8x128xf32, #tpu.memory_space<vmem>>, vector<1x8x128xf32>
    %531 = vector.shape_cast %530 : vector<1x8x128xf32> to vector<8x128xf32>
    %532 = arith.truncf %525 : vector<8x32xf32> to vector<8x32xbf16>
    %cst_179 = arith.constant dense<0.000000e+00> : vector<8x128xf32>
    %533 = tpu.matmul %532, %314, %cst_179 {dimension_numbers = #tpu.dot_dimension_numbers<[1], [0], [0], [1], [0, 0, 1, 1], [], []>} : vector<8x32xbf16>, vector<32x128xbf16>, vector<8x128xf32> -> vector<8x128xf32>
    %534 = arith.addf %531, %533 : vector<8x128xf32>
    %535 = vector.extract_strided_slice %534 {offsets = [0, 0], sizes = [8, 32], strides = [1, 1]} : vector<8x128xf32> to vector<8x32xf32>
    %536 = arith.negf %535 : vector<8x32xf32>
    %537 = math.exp %536 : vector<8x32xf32>
    %cst_180 = arith.constant 1.000000e+00 : f32
    %538 = vector.broadcast %cst_180 : f32 to vector<8x32xf32>
    %539 = arith.addf %538, %537 : vector<8x32xf32>
    %540 = arith.divf %538, %539 : vector<8x32xf32>
    %541 = vector.extract_strided_slice %534 {offsets = [0, 32], sizes = [8, 32], strides = [1, 1]} : vector<8x128xf32> to vector<8x32xf32>
    %542 = arith.negf %541 : vector<8x32xf32>
    %543 = math.exp %542 : vector<8x32xf32>
    %cst_181 = arith.constant 1.000000e+00 : f32
    %544 = vector.broadcast %cst_181 : f32 to vector<8x32xf32>
    %545 = arith.addf %544, %543 : vector<8x32xf32>
    %546 = arith.divf %544, %545 : vector<8x32xf32>
    %547 = vector.extract_strided_slice %534 {offsets = [0, 64], sizes = [8, 32], strides = [1, 1]} : vector<8x128xf32> to vector<8x32xf32>
    %548 = math.tanh %547 : vector<8x32xf32>
    %549 = vector.extract_strided_slice %534 {offsets = [0, 96], sizes = [8, 32], strides = [1, 1]} : vector<8x128xf32> to vector<8x32xf32>
    %550 = arith.negf %549 : vector<8x32xf32>
    %551 = math.exp %550 : vector<8x32xf32>
    %cst_182 = arith.constant 1.000000e+00 : f32
    %552 = vector.broadcast %cst_182 : f32 to vector<8x32xf32>
    %553 = arith.addf %552, %551 : vector<8x32xf32>
    %554 = arith.divf %552, %553 : vector<8x32xf32>
    %555 = arith.mulf %546, %523 : vector<8x32xf32>
    %556 = arith.mulf %540, %548 : vector<8x32xf32>
    %557 = arith.addf %555, %556 : vector<8x32xf32>
    %558 = math.tanh %557 : vector<8x32xf32>
    %559 = arith.mulf %554, %558 : vector<8x32xf32>
    %560 = arith.truncf %559 : vector<8x32xf32> to vector<8x32xbf16>
    %c6_183 = arith.constant 6 : index
    %c0_184 = arith.constant 0 : index
    %c0_185 = arith.constant 0 : index
    %561 = vector.load %arg18[%c6_183, %c0_184, %c0_185] : memref<8x8x32xbf16, #tpu.memory_space<vmem>>, vector<1x8x32xbf16>
    %562 = vector.shape_cast %561 : vector<1x8x32xbf16> to vector<8x32xbf16>
    %563 = vector.shape_cast %560 : vector<8x32xbf16> to vector<1x8x32xbf16>
    tpu.vector_store %arg18[%c6_183, %c0_184, %c0_185], %563 {strides = array<i32>} : memref<8x8x32xbf16, #tpu.memory_space<vmem>>, vector<1x8x32xbf16>,
    %c7_186 = arith.constant 7 : index
    %c0_187 = arith.constant 0 : index
    %c0_188 = arith.constant 0 : index
    %564 = vector.load %arg19[%c7_186, %c0_187, %c0_188] : memref<8x8x128xf32, #tpu.memory_space<vmem>>, vector<1x8x128xf32>
    %565 = vector.shape_cast %564 : vector<1x8x128xf32> to vector<8x128xf32>
    %566 = arith.truncf %559 : vector<8x32xf32> to vector<8x32xbf16>
    %cst_189 = arith.constant dense<0.000000e+00> : vector<8x128xf32>
    %567 = tpu.matmul %566, %314, %cst_189 {dimension_numbers = #tpu.dot_dimension_numbers<[1], [0], [0], [1], [0, 0, 1, 1], [], []>} : vector<8x32xbf16>, vector<32x128xbf16>, vector<8x128xf32> -> vector<8x128xf32>
    %568 = arith.addf %565, %567 : vector<8x128xf32>
    %569 = vector.extract_strided_slice %568 {offsets = [0, 0], sizes = [8, 32], strides = [1, 1]} : vector<8x128xf32> to vector<8x32xf32>
    %570 = arith.negf %569 : vector<8x32xf32>
    %571 = math.exp %570 : vector<8x32xf32>
    %cst_190 = arith.constant 1.000000e+00 : f32
    %572 = vector.broadcast %cst_190 : f32 to vector<8x32xf32>
    %573 = arith.addf %572, %571 : vector<8x32xf32>
    %574 = arith.divf %572, %573 : vector<8x32xf32>
    %575 = vector.extract_strided_slice %568 {offsets = [0, 32], sizes = [8, 32], strides = [1, 1]} : vector<8x128xf32> to vector<8x32xf32>
    %576 = arith.negf %575 : vector<8x32xf32>
    %577 = math.exp %576 : vector<8x32xf32>
    %cst_191 = arith.constant 1.000000e+00 : f32
    %578 = vector.broadcast %cst_191 : f32 to vector<8x32xf32>
    %579 = arith.addf %578, %577 : vector<8x32xf32>
    %580 = arith.divf %578, %579 : vector<8x32xf32>
    %581 = vector.extract_strided_slice %568 {offsets = [0, 64], sizes = [8, 32], strides = [1, 1]} : vector<8x128xf32> to vector<8x32xf32>
    %582 = math.tanh %581 : vector<8x32xf32>
    %583 = vector.extract_strided_slice %568 {offsets = [0, 96], sizes = [8, 32], strides = [1, 1]} : vector<8x128xf32> to vector<8x32xf32>
    %584 = arith.negf %583 : vector<8x32xf32>
    %585 = math.exp %584 : vector<8x32xf32>
    %cst_192 = arith.constant 1.000000e+00 : f32
    %586 = vector.broadcast %cst_192 : f32 to vector<8x32xf32>
    %587 = arith.addf %586, %585 : vector<8x32xf32>
    %588 = arith.divf %586, %587 : vector<8x32xf32>
    %589 = arith.mulf %580, %557 : vector<8x32xf32>
    %590 = arith.mulf %574, %582 : vector<8x32xf32>
    %591 = arith.addf %589, %590 : vector<8x32xf32>
    %592 = math.tanh %591 : vector<8x32xf32>
    %593 = arith.mulf %588, %592 : vector<8x32xf32>
    %594 = arith.truncf %593 : vector<8x32xf32> to vector<8x32xbf16>
    %c7_193 = arith.constant 7 : index
    %c0_194 = arith.constant 0 : index
    %c0_195 = arith.constant 0 : index
    %595 = vector.load %arg18[%c7_193, %c0_194, %c0_195] : memref<8x8x32xbf16, #tpu.memory_space<vmem>>, vector<1x8x32xbf16>
    %596 = vector.shape_cast %595 : vector<1x8x32xbf16> to vector<8x32xbf16>
    %597 = vector.shape_cast %594 : vector<8x32xbf16> to vector<1x8x32xbf16>
    tpu.vector_store %arg18[%c7_193, %c0_194, %c0_195], %597 {strides = array<i32>} : memref<8x8x32xbf16, #tpu.memory_space<vmem>>, vector<1x8x32xbf16>,
    %c0_196 = arith.constant 0 : index
    %c0_197 = arith.constant 0 : index
    %598 = vector.load %arg10[%c0_196, %c0_197] : memref<1x32xf32, #tpu.memory_space<vmem>>, vector<1x32xf32>
    %c0_198 = arith.constant 0 : index
    %c0_199 = arith.constant 0 : index
    %599 = vector.load %arg11[%c0_198, %c0_199] : memref<1x32xf32, #tpu.memory_space<vmem>>, vector<1x32xf32>
    %c0_200 = arith.constant 0 : index
    %c0_201 = arith.constant 0 : index
    %c0_202 = arith.constant 0 : index
    %600 = vector.load %arg18[%c0_200, %c0_201, %c0_202] : memref<8x8x32xbf16, #tpu.memory_space<vmem>>, vector<8x8x32xbf16>
    %601 = vector.shape_cast %600 : vector<8x8x32xbf16> to vector<64x32xbf16>
    %602 = arith.extf %601 : vector<64x32xbf16> to vector<64x32xf32>
    %cst_203 = arith.constant dense<0.000000e+00> : vector<64xf32>
    %603 = vector.multi_reduction <add>, %602, %cst_203 [1] : vector<64x32xf32> to vector<64xf32>
    %604 = vector.shape_cast %603 : vector<64xf32> to vector<64x1xf32>
    %cst_204 = arith.constant 3.200000e+01 : f32
    %605 = vector.broadcast %cst_204 : f32 to vector<64x1xf32>
    %606 = arith.divf %604, %605 : vector<64x1xf32>
    %607 = vector.broadcast %606 : vector<64x1xf32> to vector<64x32xf32>
    %608 = arith.subf %602, %607 : vector<64x32xf32>
    %609 = arith.mulf %608, %608 : vector<64x32xf32>
    %cst_205 = arith.constant dense<0.000000e+00> : vector<64xf32>
    %610 = vector.multi_reduction <add>, %609, %cst_205 [1] : vector<64x32xf32> to vector<64xf32>
    %611 = vector.shape_cast %610 : vector<64xf32> to vector<64x1xf32>
    %cst_206 = arith.constant 3.200000e+01 : f32
    %612 = vector.broadcast %cst_206 : f32 to vector<64x1xf32>
    %613 = arith.divf %611, %612 : vector<64x1xf32>
    %614 = vector.broadcast %606 : vector<64x1xf32> to vector<64x32xf32>
    %615 = arith.subf %602, %614 : vector<64x32xf32>
    %cst_207 = arith.constant 9.99999974E-6 : f32
    %616 = vector.broadcast %cst_207 : f32 to vector<64x1xf32>
    %617 = arith.addf %613, %616 : vector<64x1xf32>
    %618 = math.rsqrt %617 : vector<64x1xf32>
    %619 = vector.broadcast %618 : vector<64x1xf32> to vector<64x32xf32>
    %620 = arith.mulf %615, %619 : vector<64x32xf32>
    %621 = vector.broadcast %598 : vector<1x32xf32> to vector<64x32xf32>
    %622 = arith.mulf %620, %621 : vector<64x32xf32>
    %623 = vector.broadcast %599 : vector<1x32xf32> to vector<64x32xf32>
    %624 = arith.addf %622, %623 : vector<64x32xf32>
    %c0_208 = arith.constant 0 : index
    %c0_209 = arith.constant 0 : index
    %c0_210 = arith.constant 0 : index
    %625 = vector.load %arg17[%c0_208, %c0_209, %c0_210] : memref<8x8x32xbf16, #tpu.memory_space<vmem>>, vector<8x8x32xbf16>
    %626 = vector.shape_cast %625 : vector<8x8x32xbf16> to vector<64x32xbf16>
    %627 = arith.extf %626 : vector<64x32xbf16> to vector<64x32xf32>
    %628 = arith.addf %624, %627 : vector<64x32xf32>
    %629 = vector.shape_cast %628 : vector<64x32xf32> to vector<8x8x32xf32>
    %630 = arith.truncf %629 : vector<8x8x32xf32> to vector<8x8x32xbf16>
    %c0_211 = arith.constant 0 : index
    %c0_212 = arith.constant 0 : index
    %c0_213 = arith.constant 0 : index
    %631 = vector.load %arg17[%c0_211, %c0_212, %c0_213] : memref<8x8x32xbf16, #tpu.memory_space<vmem>>, vector<8x8x32xbf16>
    tpu.vector_store %arg17[%c0_211, %c0_212, %c0_213], %630 {strides = array<i32>} : memref<8x8x32xbf16, #tpu.memory_space<vmem>>, vector<8x8x32xbf16>,
    %c0_214 = arith.constant 0 : index
    %c0_215 = arith.constant 0 : index
    %c0_216 = arith.constant 0 : index
    %632 = vector.load %arg17[%c0_214, %c0_215, %c0_216] : memref<8x8x32xbf16, #tpu.memory_space<vmem>>, vector<8x8x32xbf16>
    %633 = arith.extf %632 : vector<8x8x32xbf16> to vector<8x8x32xf32>
    %cst_217 = arith.constant dense<0.000000e+00> : vector<8x8xf32>
    %634 = vector.multi_reduction <add>, %633, %cst_217 [2] : vector<8x8x32xf32> to vector<8x8xf32>
    %cst_218 = arith.constant 3.200000e+01 : f32
    %635 = vector.broadcast %cst_218 : f32 to vector<8x8xf32>
    %636 = arith.divf %634, %635 : vector<8x8xf32>
    %637 = tpu.transpose %636, [1, 0] : vector<8x8xf32> -> vector<8x8xf32>
    %638 = arith.truncf %637 : vector<8x8xf32> to vector<8x8xbf16>
    %639 = vector.extract_strided_slice %638 {offsets = [0, 0], sizes = [4, 8], strides = [1, 1]} : vector<8x8xbf16> to vector<4x8xbf16>
    %c0_219 = arith.constant 0 : index
    %c0_220 = arith.constant 0 : index
    %640 = vector.load %arg12[%c0_219, %c0_220] : memref<16x512xbf16, #tpu.memory_space<vmem>>, vector<8x512xbf16>
    %cst_221 = arith.constant dense<0.000000e+00> : vector<4x512xf32>
    %641 = tpu.matmul %639, %640, %cst_221 {dimension_numbers = #tpu.dot_dimension_numbers<[1], [0], [0], [1], [0, 0, 1, 1], [], []>} : vector<4x8xbf16>, vector<8x512xbf16>, vector<4x512xf32> -> vector<4x512xf32>
    %642 = vector.extract_strided_slice %638 {offsets = [4, 0], sizes = [4, 8], strides = [1, 1]} : vector<8x8xbf16> to vector<4x8xbf16>
    %c8 = arith.constant 8 : index
    %c0_222 = arith.constant 0 : index
    %643 = vector.load %arg12[%c8, %c0_222] : memref<16x512xbf16, #tpu.memory_space<vmem>>, vector<8x512xbf16>
    %cst_223 = arith.constant dense<0.000000e+00> : vector<4x512xf32>
    %644 = tpu.matmul %642, %643, %cst_223 {dimension_numbers = #tpu.dot_dimension_numbers<[1], [0], [0], [1], [0, 0, 1, 1], [], []>} : vector<4x8xbf16>, vector<8x512xbf16>, vector<4x512xf32> -> vector<4x512xf32>
    %645 = arith.addf %641, %644 : vector<4x512xf32>
    %c0_224 = arith.constant 0 : index
    %c0_225 = arith.constant 0 : index
    %646 = vector.load %arg13[%c0_224, %c0_225] : memref<1x512xf32, #tpu.memory_space<vmem>>, vector<1x512xf32>
    %647 = vector.broadcast %646 : vector<1x512xf32> to vector<4x512xf32>
    %648 = arith.addf %645, %647 : vector<4x512xf32>
    %649 = arith.truncf %648 : vector<4x512xf32> to vector<4x512xbf16>
    %c0_226 = arith.constant 0 : index
    %c0_227 = arith.constant 0 : index
    %650 = vector.load %arg14[%c0_226, %c0_227] : memref<512x4xbf16, #tpu.memory_space<vmem>>, vector<512x4xbf16>
    %cst_228 = arith.constant dense<0.000000e+00> : vector<4x4xf32>
    %651 = tpu.matmul %649, %650, %cst_228 {dimension_numbers = #tpu.dot_dimension_numbers<[1], [0], [0], [1], [0, 0, 1, 1], [], []>} : vector<4x512xbf16>, vector<512x4xbf16>, vector<4x4xf32> -> vector<4x4xf32>
    %c0_229 = arith.constant 0 : index
    %c0_230 = arith.constant 0 : index
    %652 = vector.load %arg15[%c0_229, %c0_230] : memref<1x4xf32, #tpu.memory_space<vmem>>, vector<1x4xf32>
    %653 = vector.broadcast %652 : vector<1x4xf32> to vector<4x4xf32>
    %654 = arith.addf %651, %653 : vector<4x4xf32>
    %c0_231 = arith.constant 0 : index
    %c0_232 = arith.constant 0 : index
    %655 = vector.load %arg16[%c0_231, %c0_232] : memref<4x4xf32, #tpu.memory_space<vmem>>, vector<4x4xf32>
    tpu.vector_store %arg16[%c0_231, %c0_232], %654 {strides = array<i32>} : memref<4x4xf32, #tpu.memory_space<vmem>>, vector<4x4xf32>,
    return
  }
  func.func @transform_0(%arg0: i32) -> (i32, i32, i32) {
    %c0_i32 = arith.constant 0 : i32
    %c0_i32_0 = arith.constant 0 : i32
    %c0_i32_1 = arith.constant 0 : i32
    return %c0_i32, %arg0, %c0_i32_0 : i32, i32, i32
  }
  func.func @transform_1(%arg0: i32) -> (i32, i32) {
    %c0_i32 = arith.constant 0 : i32
    %c0_i32_0 = arith.constant 0 : i32
    %c0_i32_1 = arith.constant 0 : i32
    return %c0_i32, %c0_i32_0 : i32, i32
  }
  func.func @transform_2(%arg0: i32) -> (i32, i32) {
    %c0_i32 = arith.constant 0 : i32
    %c0_i32_0 = arith.constant 0 : i32
    %c0_i32_1 = arith.constant 0 : i32
    return %c0_i32, %c0_i32_0 : i32, i32
  }
  func.func @transform_3(%arg0: i32) -> (i32, i32) {
    %c0_i32 = arith.constant 0 : i32
    %c0_i32_0 = arith.constant 0 : i32
    %c0_i32_1 = arith.constant 0 : i32
    return %c0_i32, %c0_i32_0 : i32, i32
  }
  func.func @transform_4(%arg0: i32) -> (i32, i32) {
    %c0_i32 = arith.constant 0 : i32
    %c0_i32_0 = arith.constant 0 : i32
    %c0_i32_1 = arith.constant 0 : i32
    return %c0_i32, %c0_i32_0 : i32, i32
  }
  func.func @transform_5(%arg0: i32) -> (i32, i32) {
    %c0_i32 = arith.constant 0 : i32
    %c0_i32_0 = arith.constant 0 : i32
    %c0_i32_1 = arith.constant 0 : i32
    return %c0_i32, %c0_i32_0 : i32, i32
  }
  func.func @transform_6(%arg0: i32) -> (i32, i32) {
    %c0_i32 = arith.constant 0 : i32
    %c0_i32_0 = arith.constant 0 : i32
    %c0_i32_1 = arith.constant 0 : i32
    return %c0_i32, %c0_i32_0 : i32, i32
  }
  func.func @transform_7(%arg0: i32) -> (i32, i32) {
    %c0_i32 = arith.constant 0 : i32
    %c0_i32_0 = arith.constant 0 : i32
    %c0_i32_1 = arith.constant 0 : i32
    return %c0_i32, %c0_i32_0 : i32, i32
  }
  func.func @transform_8(%arg0: i32) -> (i32, i32) {
    %c0_i32 = arith.constant 0 : i32
    %c0_i32_0 = arith.constant 0 : i32
    %c0_i32_1 = arith.constant 0 : i32
    return %c0_i32, %c0_i32_0 : i32, i32
  }
  func.func @transform_9(%arg0: i32) -> (i32, i32) {
    %c0_i32 = arith.constant 0 : i32
    %c0_i32_0 = arith.constant 0 : i32
    %c0_i32_1 = arith.constant 0 : i32
    return %c0_i32, %c0_i32_0 : i32, i32
  }
  func.func @transform_10(%arg0: i32) -> (i32, i32) {
    %c0_i32 = arith.constant 0 : i32
    %c0_i32_0 = arith.constant 0 : i32
    %c0_i32_1 = arith.constant 0 : i32
    return %c0_i32, %c0_i32_0 : i32, i32
  }
  func.func @transform_11(%arg0: i32) -> (i32, i32) {
    %c0_i32 = arith.constant 0 : i32
    %c0_i32_0 = arith.constant 0 : i32
    %c0_i32_1 = arith.constant 0 : i32
    return %c0_i32, %c0_i32_0 : i32, i32
  }
  func.func @transform_12(%arg0: i32) -> (i32, i32) {
    %c0_i32 = arith.constant 0 : i32
    %c0_i32_0 = arith.constant 0 : i32
    %c0_i32_1 = arith.constant 0 : i32
    return %c0_i32, %c0_i32_0 : i32, i32
  }
  func.func @transform_13(%arg0: i32) -> (i32, i32) {
    %c0_i32 = arith.constant 0 : i32
    %c0_i32_0 = arith.constant 0 : i32
    %c0_i32_1 = arith.constant 0 : i32
    return %c0_i32, %c0_i32_0 : i32, i32
  }
  func.func @transform_14(%arg0: i32) -> (i32, i32) {
    %c0_i32 = arith.constant 0 : i32
    %c0_i32_0 = arith.constant 0 : i32
    %c0_i32_1 = arith.constant 0 : i32
    return %c0_i32, %c0_i32_0 : i32, i32
  }
  func.func @transform_15(%arg0: i32) -> (i32, i32) {
    %c0_i32 = arith.constant 0 : i32
    %c0_i32_0 = arith.constant 0 : i32
    return %arg0, %c0_i32 : i32, i32
  }
}

module attributes {stable_mosaic.version = 11 : i64} {
  func.func @_lstm_classifier_kernel(%arg0: i32, %arg1: memref<8x8x8xbf16, #tpu.memory_space<vmem>>, %arg2: memref<8x128xbf16, #tpu.memory_space<vmem>>, %arg3: memref<32x128xbf16, #tpu.memory_space<vmem>>, %arg4: memref<1x128xf32, #tpu.memory_space<vmem>>, %arg5: memref<1x32xf32, #tpu.memory_space<vmem>>, %arg6: memref<1x32xf32, #tpu.memory_space<vmem>>, %arg7: memref<32x128xbf16, #tpu.memory_space<vmem>>, %arg8: memref<32x128xbf16, #tpu.memory_space<vmem>>, %arg9: memref<1x128xf32, #tpu.memory_space<vmem>>, %arg10: memref<1x32xf32, #tpu.memory_space<vmem>>, %arg11: memref<1x32xf32, #tpu.memory_space<vmem>>, %arg12: memref<16x512xbf16, #tpu.memory_space<vmem>>, %arg13: memref<1x512xf32, #tpu.memory_space<vmem>>, %arg14: memref<512x4xbf16, #tpu.memory_space<vmem>>, %arg15: memref<1x4xf32, #tpu.memory_space<vmem>>, %arg16: memref<4x4xf32, #tpu.memory_space<vmem>>, %arg17: memref<8x8x32xbf16, #tpu.memory_space<vmem>>, %arg18: memref<8x8x32xbf16, #tpu.memory_space<vmem>>, %arg19: memref<8x8x128xf32, #tpu.memory_space<vmem>>) attributes {dimension_semantics = [#tpu.dimension_semantics<parallel>], iteration_bounds = array<i64: 1>, scalar_prefetch = 0 : i64, scratch_operands = 3 : i64, tpu.core_type = #tpu.core_type<tc>, window_params = [{transform_indices = @transform_0, window_bounds = array<i64: 8, 8, 8>}, {pipeline_mode = #tpu.pipeline_mode<synchronous>, transform_indices = @transform_1, window_bounds = array<i64: 8, 128>}, {pipeline_mode = #tpu.pipeline_mode<synchronous>, transform_indices = @transform_2, window_bounds = array<i64: 32, 128>}, {pipeline_mode = #tpu.pipeline_mode<synchronous>, transform_indices = @transform_3, window_bounds = array<i64: 1, 128>}, {pipeline_mode = #tpu.pipeline_mode<synchronous>, transform_indices = @transform_4, window_bounds = array<i64: 1, 32>}, {pipeline_mode = #tpu.pipeline_mode<synchronous>, transform_indices = @transform_5, window_bounds = array<i64: 1, 32>}, {pipeline_mode = #tpu.pipeline_mode<synchronous>, transform_indices = @transform_6, window_bounds = array<i64: 32, 128>}, {pipeline_mode = #tpu.pipeline_mode<synchronous>, transform_indices = @transform_7, window_bounds = array<i64: 32, 128>}, {pipeline_mode = #tpu.pipeline_mode<synchronous>, transform_indices = @transform_8, window_bounds = array<i64: 1, 128>}, {pipeline_mode = #tpu.pipeline_mode<synchronous>, transform_indices = @transform_9, window_bounds = array<i64: 1, 32>}, {pipeline_mode = #tpu.pipeline_mode<synchronous>, transform_indices = @transform_10, window_bounds = array<i64: 1, 32>}, {pipeline_mode = #tpu.pipeline_mode<synchronous>, transform_indices = @transform_11, window_bounds = array<i64: 16, 512>}, {pipeline_mode = #tpu.pipeline_mode<synchronous>, transform_indices = @transform_12, window_bounds = array<i64: 1, 512>}, {pipeline_mode = #tpu.pipeline_mode<synchronous>, transform_indices = @transform_13, window_bounds = array<i64: 512, 4>}, {pipeline_mode = #tpu.pipeline_mode<synchronous>, transform_indices = @transform_14, window_bounds = array<i64: 1, 4>}, {transform_indices = @transform_15, window_bounds = array<i64: 4, 4>}]} {
    %c0 = arith.constant 0 : index
    %c0_0 = arith.constant 0 : index
    %0 = vector.load %arg3[%c0, %c0_0] : memref<32x128xbf16, #tpu.memory_space<vmem>>, vector<32x128xbf16>
    %cst = arith.constant 0.000000e+00 : f32
    %1 = vector.broadcast %cst : f32 to vector<8x32xf32>
    %cst_1 = arith.constant 0.000000e+00 : f32
    %2 = vector.broadcast %cst_1 : f32 to vector<8x32xf32>
    %c0_2 = arith.constant 0 : index
    %c0_3 = arith.constant 0 : index
    %c0_4 = arith.constant 0 : index
    %3 = vector.load %arg1[%c0_2, %c0_3, %c0_4] : memref<8x8x8xbf16, #tpu.memory_space<vmem>>, vector<8x8x8xbf16>
    %4 = vector.shape_cast %3 : vector<8x8x8xbf16> to vector<64x8xbf16>
    %c0_5 = arith.constant 0 : index
    %c0_6 = arith.constant 0 : index
    %5 = vector.load %arg2[%c0_5, %c0_6] : memref<8x128xbf16, #tpu.memory_space<vmem>>, vector<8x128xbf16>
    %cst_7 = arith.constant dense<0.000000e+00> : vector<64x128xf32>
    %6 = tpu.matmul %4, %5, %cst_7 {dimension_numbers = #tpu.dot_dimension_numbers<[1], [0], [0], [1], [0, 0, 1, 1], [], []>} : vector<64x8xbf16>, vector<8x128xbf16>, vector<64x128xf32> -> vector<64x128xf32>
    %c0_8 = arith.constant 0 : index
    %c0_9 = arith.constant 0 : index
    %7 = vector.load %arg4[%c0_8, %c0_9] : memref<1x128xf32, #tpu.memory_space<vmem>>, vector<1x128xf32>
    %8 = vector.broadcast %7 : vector<1x128xf32> to vector<64x128xf32>
    %9 = arith.addf %6, %8 : vector<64x128xf32>
    %10 = vector.shape_cast %9 : vector<64x128xf32> to vector<8x8x128xf32>
    %c0_10 = arith.constant 0 : index
    %c0_11 = arith.constant 0 : index
    %c0_12 = arith.constant 0 : index
    %11 = vector.load %arg19[%c0_10, %c0_11, %c0_12] : memref<8x8x128xf32, #tpu.memory_space<vmem>>, vector<8x8x128xf32>
    tpu.vector_store %arg19[%c0_10, %c0_11, %c0_12], %10 {strides = array<i32>} : memref<8x8x128xf32, #tpu.memory_space<vmem>>, vector<8x8x128xf32>,
    %c0_13 = arith.constant 0 : index
    %c0_14 = arith.constant 0 : index
    %c0_15 = arith.constant 0 : index
    %12 = vector.load %arg19[%c0_13, %c0_14, %c0_15] : memref<8x8x128xf32, #tpu.memory_space<vmem>>, vector<1x8x128xf32>
    %13 = vector.shape_cast %12 : vector<1x8x128xf32> to vector<8x128xf32>
    %14 = arith.truncf %1 : vector<8x32xf32> to vector<8x32xbf16>
    %cst_16 = arith.constant dense<0.000000e+00> : vector<8x128xf32>
    %15 = tpu.matmul %14, %0, %cst_16 {dimension_numbers = #tpu.dot_dimension_numbers<[1], [0], [0], [1], [0, 0, 1, 1], [], []>} : vector<8x32xbf16>, vector<32x128xbf16>, vector<8x128xf32> -> vector<8x128xf32>
    %16 = arith.addf %13, %15 : vector<8x128xf32>
    %17 = vector.extract_strided_slice %16 {offsets = [0, 0], sizes = [8, 32], strides = [1, 1]} : vector<8x128xf32> to vector<8x32xf32>
    %18 = arith.negf %17 : vector<8x32xf32>
    %19 = math.exp %18 : vector<8x32xf32>
    %cst_17 = arith.constant 1.000000e+00 : f32
    %20 = vector.broadcast %cst_17 : f32 to vector<8x32xf32>
    %21 = arith.addf %20, %19 : vector<8x32xf32>
    %22 = arith.divf %20, %21 : vector<8x32xf32>
    %23 = vector.extract_strided_slice %16 {offsets = [0, 32], sizes = [8, 32], strides = [1, 1]} : vector<8x128xf32> to vector<8x32xf32>
    %24 = arith.negf %23 : vector<8x32xf32>
    %25 = math.exp %24 : vector<8x32xf32>
    %cst_18 = arith.constant 1.000000e+00 : f32
    %26 = vector.broadcast %cst_18 : f32 to vector<8x32xf32>
    %27 = arith.addf %26, %25 : vector<8x32xf32>
    %28 = arith.divf %26, %27 : vector<8x32xf32>
    %29 = vector.extract_strided_slice %16 {offsets = [0, 64], sizes = [8, 32], strides = [1, 1]} : vector<8x128xf32> to vector<8x32xf32>
    %30 = math.tanh %29 : vector<8x32xf32>
    %31 = vector.extract_strided_slice %16 {offsets = [0, 96], sizes = [8, 32], strides = [1, 1]} : vector<8x128xf32> to vector<8x32xf32>
    %32 = arith.negf %31 : vector<8x32xf32>
    %33 = math.exp %32 : vector<8x32xf32>
    %cst_19 = arith.constant 1.000000e+00 : f32
    %34 = vector.broadcast %cst_19 : f32 to vector<8x32xf32>
    %35 = arith.addf %34, %33 : vector<8x32xf32>
    %36 = arith.divf %34, %35 : vector<8x32xf32>
    %37 = arith.mulf %28, %2 : vector<8x32xf32>
    %38 = arith.mulf %22, %30 : vector<8x32xf32>
    %39 = arith.addf %37, %38 : vector<8x32xf32>
    %40 = math.tanh %39 : vector<8x32xf32>
    %41 = arith.mulf %36, %40 : vector<8x32xf32>
    %42 = arith.truncf %41 : vector<8x32xf32> to vector<8x32xbf16>
    %c0_20 = arith.constant 0 : index
    %c0_21 = arith.constant 0 : index
    %c0_22 = arith.constant 0 : index
    %43 = vector.load %arg18[%c0_20, %c0_21, %c0_22] : memref<8x8x32xbf16, #tpu.memory_space<vmem>>, vector<1x8x32xbf16>
    %44 = vector.shape_cast %43 : vector<1x8x32xbf16> to vector<8x32xbf16>
    %45 = vector.shape_cast %42 : vector<8x32xbf16> to vector<1x8x32xbf16>
    tpu.vector_store %arg18[%c0_20, %c0_21, %c0_22], %45 {strides = array<i32>} : memref<8x8x32xbf16, #tpu.memory_space<vmem>>, vector<1x8x32xbf16>,
    %c1 = arith.constant 1 : index
    %c0_23 = arith.constant 0 : index
    %c0_24 = arith.constant 0 : index
    %46 = vector.load %arg19[%c1, %c0_23, %c0_24] : memref<8x8x128xf32, #tpu.memory_space<vmem>>, vector<1x8x128xf32>
    %47 = vector.shape_cast %46 : vector<1x8x128xf32> to vector<8x128xf32>
    %48 = arith.truncf %41 : vector<8x32xf32> to vector<8x32xbf16>
    %cst_25 = arith.constant dense<0.000000e+00> : vector<8x128xf32>
    %49 = tpu.matmul %48, %0, %cst_25 {dimension_numbers = #tpu.dot_dimension_numbers<[1], [0], [0], [1], [0, 0, 1, 1], [], []>} : vector<8x32xbf16>, vector<32x128xbf16>, vector<8x128xf32> -> vector<8x128xf32>
    %50 = arith.addf %47, %49 : vector<8x128xf32>
    %51 = vector.extract_strided_slice %50 {offsets = [0, 0], sizes = [8, 32], strides = [1, 1]} : vector<8x128xf32> to vector<8x32xf32>
    %52 = arith.negf %51 : vector<8x32xf32>
    %53 = math.exp %52 : vector<8x32xf32>
    %cst_26 = arith.constant 1.000000e+00 : f32
    %54 = vector.broadcast %cst_26 : f32 to vector<8x32xf32>
    %55 = arith.addf %54, %53 : vector<8x32xf32>
    %56 = arith.divf %54, %55 : vector<8x32xf32>
    %57 = vector.extract_strided_slice %50 {offsets = [0, 32], sizes = [8, 32], strides = [1, 1]} : vector<8x128xf32> to vector<8x32xf32>
    %58 = arith.negf %57 : vector<8x32xf32>
    %59 = math.exp %58 : vector<8x32xf32>
    %cst_27 = arith.constant 1.000000e+00 : f32
    %60 = vector.broadcast %cst_27 : f32 to vector<8x32xf32>
    %61 = arith.addf %60, %59 : vector<8x32xf32>
    %62 = arith.divf %60, %61 : vector<8x32xf32>
    %63 = vector.extract_strided_slice %50 {offsets = [0, 64], sizes = [8, 32], strides = [1, 1]} : vector<8x128xf32> to vector<8x32xf32>
    %64 = math.tanh %63 : vector<8x32xf32>
    %65 = vector.extract_strided_slice %50 {offsets = [0, 96], sizes = [8, 32], strides = [1, 1]} : vector<8x128xf32> to vector<8x32xf32>
    %66 = arith.negf %65 : vector<8x32xf32>
    %67 = math.exp %66 : vector<8x32xf32>
    %cst_28 = arith.constant 1.000000e+00 : f32
    %68 = vector.broadcast %cst_28 : f32 to vector<8x32xf32>
    %69 = arith.addf %68, %67 : vector<8x32xf32>
    %70 = arith.divf %68, %69 : vector<8x32xf32>
    %71 = arith.mulf %62, %39 : vector<8x32xf32>
    %72 = arith.mulf %56, %64 : vector<8x32xf32>
    %73 = arith.addf %71, %72 : vector<8x32xf32>
    %74 = math.tanh %73 : vector<8x32xf32>
    %75 = arith.mulf %70, %74 : vector<8x32xf32>
    %76 = arith.truncf %75 : vector<8x32xf32> to vector<8x32xbf16>
    %c1_29 = arith.constant 1 : index
    %c0_30 = arith.constant 0 : index
    %c0_31 = arith.constant 0 : index
    %77 = vector.load %arg18[%c1_29, %c0_30, %c0_31] : memref<8x8x32xbf16, #tpu.memory_space<vmem>>, vector<1x8x32xbf16>
    %78 = vector.shape_cast %77 : vector<1x8x32xbf16> to vector<8x32xbf16>
    %79 = vector.shape_cast %76 : vector<8x32xbf16> to vector<1x8x32xbf16>
    tpu.vector_store %arg18[%c1_29, %c0_30, %c0_31], %79 {strides = array<i32>} : memref<8x8x32xbf16, #tpu.memory_space<vmem>>, vector<1x8x32xbf16>,
    %c2 = arith.constant 2 : index
    %c0_32 = arith.constant 0 : index
    %c0_33 = arith.constant 0 : index
    %80 = vector.load %arg19[%c2, %c0_32, %c0_33] : memref<8x8x128xf32, #tpu.memory_space<vmem>>, vector<1x8x128xf32>
    %81 = vector.shape_cast %80 : vector<1x8x128xf32> to vector<8x128xf32>
    %82 = arith.truncf %75 : vector<8x32xf32> to vector<8x32xbf16>
    %cst_34 = arith.constant dense<0.000000e+00> : vector<8x128xf32>
    %83 = tpu.matmul %82, %0, %cst_34 {dimension_numbers = #tpu.dot_dimension_numbers<[1], [0], [0], [1], [0, 0, 1, 1], [], []>} : vector<8x32xbf16>, vector<32x128xbf16>, vector<8x128xf32> -> vector<8x128xf32>
    %84 = arith.addf %81, %83 : vector<8x128xf32>
    %85 = vector.extract_strided_slice %84 {offsets = [0, 0], sizes = [8, 32], strides = [1, 1]} : vector<8x128xf32> to vector<8x32xf32>
    %86 = arith.negf %85 : vector<8x32xf32>
    %87 = math.exp %86 : vector<8x32xf32>
    %cst_35 = arith.constant 1.000000e+00 : f32
    %88 = vector.broadcast %cst_35 : f32 to vector<8x32xf32>
    %89 = arith.addf %88, %87 : vector<8x32xf32>
    %90 = arith.divf %88, %89 : vector<8x32xf32>
    %91 = vector.extract_strided_slice %84 {offsets = [0, 32], sizes = [8, 32], strides = [1, 1]} : vector<8x128xf32> to vector<8x32xf32>
    %92 = arith.negf %91 : vector<8x32xf32>
    %93 = math.exp %92 : vector<8x32xf32>
    %cst_36 = arith.constant 1.000000e+00 : f32
    %94 = vector.broadcast %cst_36 : f32 to vector<8x32xf32>
    %95 = arith.addf %94, %93 : vector<8x32xf32>
    %96 = arith.divf %94, %95 : vector<8x32xf32>
    %97 = vector.extract_strided_slice %84 {offsets = [0, 64], sizes = [8, 32], strides = [1, 1]} : vector<8x128xf32> to vector<8x32xf32>
    %98 = math.tanh %97 : vector<8x32xf32>
    %99 = vector.extract_strided_slice %84 {offsets = [0, 96], sizes = [8, 32], strides = [1, 1]} : vector<8x128xf32> to vector<8x32xf32>
    %100 = arith.negf %99 : vector<8x32xf32>
    %101 = math.exp %100 : vector<8x32xf32>
    %cst_37 = arith.constant 1.000000e+00 : f32
    %102 = vector.broadcast %cst_37 : f32 to vector<8x32xf32>
    %103 = arith.addf %102, %101 : vector<8x32xf32>
    %104 = arith.divf %102, %103 : vector<8x32xf32>
    %105 = arith.mulf %96, %73 : vector<8x32xf32>
    %106 = arith.mulf %90, %98 : vector<8x32xf32>
    %107 = arith.addf %105, %106 : vector<8x32xf32>
    %108 = math.tanh %107 : vector<8x32xf32>
    %109 = arith.mulf %104, %108 : vector<8x32xf32>
    %110 = arith.truncf %109 : vector<8x32xf32> to vector<8x32xbf16>
    %c2_38 = arith.constant 2 : index
    %c0_39 = arith.constant 0 : index
    %c0_40 = arith.constant 0 : index
    %111 = vector.load %arg18[%c2_38, %c0_39, %c0_40] : memref<8x8x32xbf16, #tpu.memory_space<vmem>>, vector<1x8x32xbf16>
    %112 = vector.shape_cast %111 : vector<1x8x32xbf16> to vector<8x32xbf16>
    %113 = vector.shape_cast %110 : vector<8x32xbf16> to vector<1x8x32xbf16>
    tpu.vector_store %arg18[%c2_38, %c0_39, %c0_40], %113 {strides = array<i32>} : memref<8x8x32xbf16, #tpu.memory_space<vmem>>, vector<1x8x32xbf16>,
    %c3 = arith.constant 3 : index
    %c0_41 = arith.constant 0 : index
    %c0_42 = arith.constant 0 : index
    %114 = vector.load %arg19[%c3, %c0_41, %c0_42] : memref<8x8x128xf32, #tpu.memory_space<vmem>>, vector<1x8x128xf32>
    %115 = vector.shape_cast %114 : vector<1x8x128xf32> to vector<8x128xf32>
    %116 = arith.truncf %109 : vector<8x32xf32> to vector<8x32xbf16>
    %cst_43 = arith.constant dense<0.000000e+00> : vector<8x128xf32>
    %117 = tpu.matmul %116, %0, %cst_43 {dimension_numbers = #tpu.dot_dimension_numbers<[1], [0], [0], [1], [0, 0, 1, 1], [], []>} : vector<8x32xbf16>, vector<32x128xbf16>, vector<8x128xf32> -> vector<8x128xf32>
    %118 = arith.addf %115, %117 : vector<8x128xf32>
    %119 = vector.extract_strided_slice %118 {offsets = [0, 0], sizes = [8, 32], strides = [1, 1]} : vector<8x128xf32> to vector<8x32xf32>
    %120 = arith.negf %119 : vector<8x32xf32>
    %121 = math.exp %120 : vector<8x32xf32>
    %cst_44 = arith.constant 1.000000e+00 : f32
    %122 = vector.broadcast %cst_44 : f32 to vector<8x32xf32>
    %123 = arith.addf %122, %121 : vector<8x32xf32>
    %124 = arith.divf %122, %123 : vector<8x32xf32>
    %125 = vector.extract_strided_slice %118 {offsets = [0, 32], sizes = [8, 32], strides = [1, 1]} : vector<8x128xf32> to vector<8x32xf32>
    %126 = arith.negf %125 : vector<8x32xf32>
    %127 = math.exp %126 : vector<8x32xf32>
    %cst_45 = arith.constant 1.000000e+00 : f32
    %128 = vector.broadcast %cst_45 : f32 to vector<8x32xf32>
    %129 = arith.addf %128, %127 : vector<8x32xf32>
    %130 = arith.divf %128, %129 : vector<8x32xf32>
    %131 = vector.extract_strided_slice %118 {offsets = [0, 64], sizes = [8, 32], strides = [1, 1]} : vector<8x128xf32> to vector<8x32xf32>
    %132 = math.tanh %131 : vector<8x32xf32>
    %133 = vector.extract_strided_slice %118 {offsets = [0, 96], sizes = [8, 32], strides = [1, 1]} : vector<8x128xf32> to vector<8x32xf32>
    %134 = arith.negf %133 : vector<8x32xf32>
    %135 = math.exp %134 : vector<8x32xf32>
    %cst_46 = arith.constant 1.000000e+00 : f32
    %136 = vector.broadcast %cst_46 : f32 to vector<8x32xf32>
    %137 = arith.addf %136, %135 : vector<8x32xf32>
    %138 = arith.divf %136, %137 : vector<8x32xf32>
    %139 = arith.mulf %130, %107 : vector<8x32xf32>
    %140 = arith.mulf %124, %132 : vector<8x32xf32>
    %141 = arith.addf %139, %140 : vector<8x32xf32>
    %142 = math.tanh %141 : vector<8x32xf32>
    %143 = arith.mulf %138, %142 : vector<8x32xf32>
    %144 = arith.truncf %143 : vector<8x32xf32> to vector<8x32xbf16>
    %c3_47 = arith.constant 3 : index
    %c0_48 = arith.constant 0 : index
    %c0_49 = arith.constant 0 : index
    %145 = vector.load %arg18[%c3_47, %c0_48, %c0_49] : memref<8x8x32xbf16, #tpu.memory_space<vmem>>, vector<1x8x32xbf16>
    %146 = vector.shape_cast %145 : vector<1x8x32xbf16> to vector<8x32xbf16>
    %147 = vector.shape_cast %144 : vector<8x32xbf16> to vector<1x8x32xbf16>
    tpu.vector_store %arg18[%c3_47, %c0_48, %c0_49], %147 {strides = array<i32>} : memref<8x8x32xbf16, #tpu.memory_space<vmem>>, vector<1x8x32xbf16>,
    %c4 = arith.constant 4 : index
    %c0_50 = arith.constant 0 : index
    %c0_51 = arith.constant 0 : index
    %148 = vector.load %arg19[%c4, %c0_50, %c0_51] : memref<8x8x128xf32, #tpu.memory_space<vmem>>, vector<1x8x128xf32>
    %149 = vector.shape_cast %148 : vector<1x8x128xf32> to vector<8x128xf32>
    %150 = arith.truncf %143 : vector<8x32xf32> to vector<8x32xbf16>
    %cst_52 = arith.constant dense<0.000000e+00> : vector<8x128xf32>
    %151 = tpu.matmul %150, %0, %cst_52 {dimension_numbers = #tpu.dot_dimension_numbers<[1], [0], [0], [1], [0, 0, 1, 1], [], []>} : vector<8x32xbf16>, vector<32x128xbf16>, vector<8x128xf32> -> vector<8x128xf32>
    %152 = arith.addf %149, %151 : vector<8x128xf32>
    %153 = vector.extract_strided_slice %152 {offsets = [0, 0], sizes = [8, 32], strides = [1, 1]} : vector<8x128xf32> to vector<8x32xf32>
    %154 = arith.negf %153 : vector<8x32xf32>
    %155 = math.exp %154 : vector<8x32xf32>
    %cst_53 = arith.constant 1.000000e+00 : f32
    %156 = vector.broadcast %cst_53 : f32 to vector<8x32xf32>
    %157 = arith.addf %156, %155 : vector<8x32xf32>
    %158 = arith.divf %156, %157 : vector<8x32xf32>
    %159 = vector.extract_strided_slice %152 {offsets = [0, 32], sizes = [8, 32], strides = [1, 1]} : vector<8x128xf32> to vector<8x32xf32>
    %160 = arith.negf %159 : vector<8x32xf32>
    %161 = math.exp %160 : vector<8x32xf32>
    %cst_54 = arith.constant 1.000000e+00 : f32
    %162 = vector.broadcast %cst_54 : f32 to vector<8x32xf32>
    %163 = arith.addf %162, %161 : vector<8x32xf32>
    %164 = arith.divf %162, %163 : vector<8x32xf32>
    %165 = vector.extract_strided_slice %152 {offsets = [0, 64], sizes = [8, 32], strides = [1, 1]} : vector<8x128xf32> to vector<8x32xf32>
    %166 = math.tanh %165 : vector<8x32xf32>
    %167 = vector.extract_strided_slice %152 {offsets = [0, 96], sizes = [8, 32], strides = [1, 1]} : vector<8x128xf32> to vector<8x32xf32>
    %168 = arith.negf %167 : vector<8x32xf32>
    %169 = math.exp %168 : vector<8x32xf32>
    %cst_55 = arith.constant 1.000000e+00 : f32
    %170 = vector.broadcast %cst_55 : f32 to vector<8x32xf32>
    %171 = arith.addf %170, %169 : vector<8x32xf32>
    %172 = arith.divf %170, %171 : vector<8x32xf32>
    %173 = arith.mulf %164, %141 : vector<8x32xf32>
    %174 = arith.mulf %158, %166 : vector<8x32xf32>
    %175 = arith.addf %173, %174 : vector<8x32xf32>
    %176 = math.tanh %175 : vector<8x32xf32>
    %177 = arith.mulf %172, %176 : vector<8x32xf32>
    %178 = arith.truncf %177 : vector<8x32xf32> to vector<8x32xbf16>
    %c4_56 = arith.constant 4 : index
    %c0_57 = arith.constant 0 : index
    %c0_58 = arith.constant 0 : index
    %179 = vector.load %arg18[%c4_56, %c0_57, %c0_58] : memref<8x8x32xbf16, #tpu.memory_space<vmem>>, vector<1x8x32xbf16>
    %180 = vector.shape_cast %179 : vector<1x8x32xbf16> to vector<8x32xbf16>
    %181 = vector.shape_cast %178 : vector<8x32xbf16> to vector<1x8x32xbf16>
    tpu.vector_store %arg18[%c4_56, %c0_57, %c0_58], %181 {strides = array<i32>} : memref<8x8x32xbf16, #tpu.memory_space<vmem>>, vector<1x8x32xbf16>,
    %c5 = arith.constant 5 : index
    %c0_59 = arith.constant 0 : index
    %c0_60 = arith.constant 0 : index
    %182 = vector.load %arg19[%c5, %c0_59, %c0_60] : memref<8x8x128xf32, #tpu.memory_space<vmem>>, vector<1x8x128xf32>
    %183 = vector.shape_cast %182 : vector<1x8x128xf32> to vector<8x128xf32>
    %184 = arith.truncf %177 : vector<8x32xf32> to vector<8x32xbf16>
    %cst_61 = arith.constant dense<0.000000e+00> : vector<8x128xf32>
    %185 = tpu.matmul %184, %0, %cst_61 {dimension_numbers = #tpu.dot_dimension_numbers<[1], [0], [0], [1], [0, 0, 1, 1], [], []>} : vector<8x32xbf16>, vector<32x128xbf16>, vector<8x128xf32> -> vector<8x128xf32>
    %186 = arith.addf %183, %185 : vector<8x128xf32>
    %187 = vector.extract_strided_slice %186 {offsets = [0, 0], sizes = [8, 32], strides = [1, 1]} : vector<8x128xf32> to vector<8x32xf32>
    %188 = arith.negf %187 : vector<8x32xf32>
    %189 = math.exp %188 : vector<8x32xf32>
    %cst_62 = arith.constant 1.000000e+00 : f32
    %190 = vector.broadcast %cst_62 : f32 to vector<8x32xf32>
    %191 = arith.addf %190, %189 : vector<8x32xf32>
    %192 = arith.divf %190, %191 : vector<8x32xf32>
    %193 = vector.extract_strided_slice %186 {offsets = [0, 32], sizes = [8, 32], strides = [1, 1]} : vector<8x128xf32> to vector<8x32xf32>
    %194 = arith.negf %193 : vector<8x32xf32>
    %195 = math.exp %194 : vector<8x32xf32>
    %cst_63 = arith.constant 1.000000e+00 : f32
    %196 = vector.broadcast %cst_63 : f32 to vector<8x32xf32>
    %197 = arith.addf %196, %195 : vector<8x32xf32>
    %198 = arith.divf %196, %197 : vector<8x32xf32>
    %199 = vector.extract_strided_slice %186 {offsets = [0, 64], sizes = [8, 32], strides = [1, 1]} : vector<8x128xf32> to vector<8x32xf32>
    %200 = math.tanh %199 : vector<8x32xf32>
    %201 = vector.extract_strided_slice %186 {offsets = [0, 96], sizes = [8, 32], strides = [1, 1]} : vector<8x128xf32> to vector<8x32xf32>
    %202 = arith.negf %201 : vector<8x32xf32>
    %203 = math.exp %202 : vector<8x32xf32>
    %cst_64 = arith.constant 1.000000e+00 : f32
    %204 = vector.broadcast %cst_64 : f32 to vector<8x32xf32>
    %205 = arith.addf %204, %203 : vector<8x32xf32>
    %206 = arith.divf %204, %205 : vector<8x32xf32>
    %207 = arith.mulf %198, %175 : vector<8x32xf32>
    %208 = arith.mulf %192, %200 : vector<8x32xf32>
    %209 = arith.addf %207, %208 : vector<8x32xf32>
    %210 = math.tanh %209 : vector<8x32xf32>
    %211 = arith.mulf %206, %210 : vector<8x32xf32>
    %212 = arith.truncf %211 : vector<8x32xf32> to vector<8x32xbf16>
    %c5_65 = arith.constant 5 : index
    %c0_66 = arith.constant 0 : index
    %c0_67 = arith.constant 0 : index
    %213 = vector.load %arg18[%c5_65, %c0_66, %c0_67] : memref<8x8x32xbf16, #tpu.memory_space<vmem>>, vector<1x8x32xbf16>
    %214 = vector.shape_cast %213 : vector<1x8x32xbf16> to vector<8x32xbf16>
    %215 = vector.shape_cast %212 : vector<8x32xbf16> to vector<1x8x32xbf16>
    tpu.vector_store %arg18[%c5_65, %c0_66, %c0_67], %215 {strides = array<i32>} : memref<8x8x32xbf16, #tpu.memory_space<vmem>>, vector<1x8x32xbf16>,
    %c6 = arith.constant 6 : index
    %c0_68 = arith.constant 0 : index
    %c0_69 = arith.constant 0 : index
    %216 = vector.load %arg19[%c6, %c0_68, %c0_69] : memref<8x8x128xf32, #tpu.memory_space<vmem>>, vector<1x8x128xf32>
    %217 = vector.shape_cast %216 : vector<1x8x128xf32> to vector<8x128xf32>
    %218 = arith.truncf %211 : vector<8x32xf32> to vector<8x32xbf16>
    %cst_70 = arith.constant dense<0.000000e+00> : vector<8x128xf32>
    %219 = tpu.matmul %218, %0, %cst_70 {dimension_numbers = #tpu.dot_dimension_numbers<[1], [0], [0], [1], [0, 0, 1, 1], [], []>} : vector<8x32xbf16>, vector<32x128xbf16>, vector<8x128xf32> -> vector<8x128xf32>
    %220 = arith.addf %217, %219 : vector<8x128xf32>
    %221 = vector.extract_strided_slice %220 {offsets = [0, 0], sizes = [8, 32], strides = [1, 1]} : vector<8x128xf32> to vector<8x32xf32>
    %222 = arith.negf %221 : vector<8x32xf32>
    %223 = math.exp %222 : vector<8x32xf32>
    %cst_71 = arith.constant 1.000000e+00 : f32
    %224 = vector.broadcast %cst_71 : f32 to vector<8x32xf32>
    %225 = arith.addf %224, %223 : vector<8x32xf32>
    %226 = arith.divf %224, %225 : vector<8x32xf32>
    %227 = vector.extract_strided_slice %220 {offsets = [0, 32], sizes = [8, 32], strides = [1, 1]} : vector<8x128xf32> to vector<8x32xf32>
    %228 = arith.negf %227 : vector<8x32xf32>
    %229 = math.exp %228 : vector<8x32xf32>
    %cst_72 = arith.constant 1.000000e+00 : f32
    %230 = vector.broadcast %cst_72 : f32 to vector<8x32xf32>
    %231 = arith.addf %230, %229 : vector<8x32xf32>
    %232 = arith.divf %230, %231 : vector<8x32xf32>
    %233 = vector.extract_strided_slice %220 {offsets = [0, 64], sizes = [8, 32], strides = [1, 1]} : vector<8x128xf32> to vector<8x32xf32>
    %234 = math.tanh %233 : vector<8x32xf32>
    %235 = vector.extract_strided_slice %220 {offsets = [0, 96], sizes = [8, 32], strides = [1, 1]} : vector<8x128xf32> to vector<8x32xf32>
    %236 = arith.negf %235 : vector<8x32xf32>
    %237 = math.exp %236 : vector<8x32xf32>
    %cst_73 = arith.constant 1.000000e+00 : f32
    %238 = vector.broadcast %cst_73 : f32 to vector<8x32xf32>
    %239 = arith.addf %238, %237 : vector<8x32xf32>
    %240 = arith.divf %238, %239 : vector<8x32xf32>
    %241 = arith.mulf %232, %209 : vector<8x32xf32>
    %242 = arith.mulf %226, %234 : vector<8x32xf32>
    %243 = arith.addf %241, %242 : vector<8x32xf32>
    %244 = math.tanh %243 : vector<8x32xf32>
    %245 = arith.mulf %240, %244 : vector<8x32xf32>
    %246 = arith.truncf %245 : vector<8x32xf32> to vector<8x32xbf16>
    %c6_74 = arith.constant 6 : index
    %c0_75 = arith.constant 0 : index
    %c0_76 = arith.constant 0 : index
    %247 = vector.load %arg18[%c6_74, %c0_75, %c0_76] : memref<8x8x32xbf16, #tpu.memory_space<vmem>>, vector<1x8x32xbf16>
    %248 = vector.shape_cast %247 : vector<1x8x32xbf16> to vector<8x32xbf16>
    %249 = vector.shape_cast %246 : vector<8x32xbf16> to vector<1x8x32xbf16>
    tpu.vector_store %arg18[%c6_74, %c0_75, %c0_76], %249 {strides = array<i32>} : memref<8x8x32xbf16, #tpu.memory_space<vmem>>, vector<1x8x32xbf16>,
    %c7 = arith.constant 7 : index
    %c0_77 = arith.constant 0 : index
    %c0_78 = arith.constant 0 : index
    %250 = vector.load %arg19[%c7, %c0_77, %c0_78] : memref<8x8x128xf32, #tpu.memory_space<vmem>>, vector<1x8x128xf32>
    %251 = vector.shape_cast %250 : vector<1x8x128xf32> to vector<8x128xf32>
    %252 = arith.truncf %245 : vector<8x32xf32> to vector<8x32xbf16>
    %cst_79 = arith.constant dense<0.000000e+00> : vector<8x128xf32>
    %253 = tpu.matmul %252, %0, %cst_79 {dimension_numbers = #tpu.dot_dimension_numbers<[1], [0], [0], [1], [0, 0, 1, 1], [], []>} : vector<8x32xbf16>, vector<32x128xbf16>, vector<8x128xf32> -> vector<8x128xf32>
    %254 = arith.addf %251, %253 : vector<8x128xf32>
    %255 = vector.extract_strided_slice %254 {offsets = [0, 0], sizes = [8, 32], strides = [1, 1]} : vector<8x128xf32> to vector<8x32xf32>
    %256 = arith.negf %255 : vector<8x32xf32>
    %257 = math.exp %256 : vector<8x32xf32>
    %cst_80 = arith.constant 1.000000e+00 : f32
    %258 = vector.broadcast %cst_80 : f32 to vector<8x32xf32>
    %259 = arith.addf %258, %257 : vector<8x32xf32>
    %260 = arith.divf %258, %259 : vector<8x32xf32>
    %261 = vector.extract_strided_slice %254 {offsets = [0, 32], sizes = [8, 32], strides = [1, 1]} : vector<8x128xf32> to vector<8x32xf32>
    %262 = arith.negf %261 : vector<8x32xf32>
    %263 = math.exp %262 : vector<8x32xf32>
    %cst_81 = arith.constant 1.000000e+00 : f32
    %264 = vector.broadcast %cst_81 : f32 to vector<8x32xf32>
    %265 = arith.addf %264, %263 : vector<8x32xf32>
    %266 = arith.divf %264, %265 : vector<8x32xf32>
    %267 = vector.extract_strided_slice %254 {offsets = [0, 64], sizes = [8, 32], strides = [1, 1]} : vector<8x128xf32> to vector<8x32xf32>
    %268 = math.tanh %267 : vector<8x32xf32>
    %269 = vector.extract_strided_slice %254 {offsets = [0, 96], sizes = [8, 32], strides = [1, 1]} : vector<8x128xf32> to vector<8x32xf32>
    %270 = arith.negf %269 : vector<8x32xf32>
    %271 = math.exp %270 : vector<8x32xf32>
    %cst_82 = arith.constant 1.000000e+00 : f32
    %272 = vector.broadcast %cst_82 : f32 to vector<8x32xf32>
    %273 = arith.addf %272, %271 : vector<8x32xf32>
    %274 = arith.divf %272, %273 : vector<8x32xf32>
    %275 = arith.mulf %266, %243 : vector<8x32xf32>
    %276 = arith.mulf %260, %268 : vector<8x32xf32>
    %277 = arith.addf %275, %276 : vector<8x32xf32>
    %278 = math.tanh %277 : vector<8x32xf32>
    %279 = arith.mulf %274, %278 : vector<8x32xf32>
    %280 = arith.truncf %279 : vector<8x32xf32> to vector<8x32xbf16>
    %c7_83 = arith.constant 7 : index
    %c0_84 = arith.constant 0 : index
    %c0_85 = arith.constant 0 : index
    %281 = vector.load %arg18[%c7_83, %c0_84, %c0_85] : memref<8x8x32xbf16, #tpu.memory_space<vmem>>, vector<1x8x32xbf16>
    %282 = vector.shape_cast %281 : vector<1x8x32xbf16> to vector<8x32xbf16>
    %283 = vector.shape_cast %280 : vector<8x32xbf16> to vector<1x8x32xbf16>
    tpu.vector_store %arg18[%c7_83, %c0_84, %c0_85], %283 {strides = array<i32>} : memref<8x8x32xbf16, #tpu.memory_space<vmem>>, vector<1x8x32xbf16>,
    %c0_86 = arith.constant 0 : index
    %c0_87 = arith.constant 0 : index
    %284 = vector.load %arg5[%c0_86, %c0_87] : memref<1x32xf32, #tpu.memory_space<vmem>>, vector<1x32xf32>
    %c0_88 = arith.constant 0 : index
    %c0_89 = arith.constant 0 : index
    %285 = vector.load %arg6[%c0_88, %c0_89] : memref<1x32xf32, #tpu.memory_space<vmem>>, vector<1x32xf32>
    %c0_90 = arith.constant 0 : index
    %c0_91 = arith.constant 0 : index
    %c0_92 = arith.constant 0 : index
    %286 = vector.load %arg18[%c0_90, %c0_91, %c0_92] : memref<8x8x32xbf16, #tpu.memory_space<vmem>>, vector<8x8x32xbf16>
    %287 = vector.shape_cast %286 : vector<8x8x32xbf16> to vector<64x32xbf16>
    %288 = arith.extf %287 : vector<64x32xbf16> to vector<64x32xf32>
    %cst_93 = arith.constant dense<0.000000e+00> : vector<64xf32>
    %289 = vector.multi_reduction <add>, %288, %cst_93 [1] : vector<64x32xf32> to vector<64xf32>
    %290 = vector.shape_cast %289 : vector<64xf32> to vector<64x1xf32>
    %cst_94 = arith.constant 3.200000e+01 : f32
    %291 = vector.broadcast %cst_94 : f32 to vector<64x1xf32>
    %292 = arith.divf %290, %291 : vector<64x1xf32>
    %293 = vector.broadcast %292 : vector<64x1xf32> to vector<64x32xf32>
    %294 = arith.subf %288, %293 : vector<64x32xf32>
    %295 = arith.mulf %294, %294 : vector<64x32xf32>
    %cst_95 = arith.constant dense<0.000000e+00> : vector<64xf32>
    %296 = vector.multi_reduction <add>, %295, %cst_95 [1] : vector<64x32xf32> to vector<64xf32>
    %297 = vector.shape_cast %296 : vector<64xf32> to vector<64x1xf32>
    %cst_96 = arith.constant 3.200000e+01 : f32
    %298 = vector.broadcast %cst_96 : f32 to vector<64x1xf32>
    %299 = arith.divf %297, %298 : vector<64x1xf32>
    %300 = vector.broadcast %292 : vector<64x1xf32> to vector<64x32xf32>
    %301 = arith.subf %288, %300 : vector<64x32xf32>
    %cst_97 = arith.constant 9.99999974E-6 : f32
    %302 = vector.broadcast %cst_97 : f32 to vector<64x1xf32>
    %303 = arith.addf %299, %302 : vector<64x1xf32>
    %304 = math.rsqrt %303 : vector<64x1xf32>
    %305 = vector.broadcast %304 : vector<64x1xf32> to vector<64x32xf32>
    %306 = arith.mulf %301, %305 : vector<64x32xf32>
    %307 = vector.broadcast %284 : vector<1x32xf32> to vector<64x32xf32>
    %308 = arith.mulf %306, %307 : vector<64x32xf32>
    %309 = vector.broadcast %285 : vector<1x32xf32> to vector<64x32xf32>
    %310 = arith.addf %308, %309 : vector<64x32xf32>
    %311 = vector.shape_cast %310 : vector<64x32xf32> to vector<8x8x32xf32>
    %312 = arith.truncf %311 : vector<8x8x32xf32> to vector<8x8x32xbf16>
    %c0_98 = arith.constant 0 : index
    %c0_99 = arith.constant 0 : index
    %c0_100 = arith.constant 0 : index
    %313 = vector.load %arg17[%c0_98, %c0_99, %c0_100] : memref<8x8x32xbf16, #tpu.memory_space<vmem>>, vector<8x8x32xbf16>
    tpu.vector_store %arg17[%c0_98, %c0_99, %c0_100], %312 {strides = array<i32>} : memref<8x8x32xbf16, #tpu.memory_space<vmem>>, vector<8x8x32xbf16>,
    %c0_101 = arith.constant 0 : index
    %c0_102 = arith.constant 0 : index
    %314 = vector.load %arg8[%c0_101, %c0_102] : memref<32x128xbf16, #tpu.memory_space<vmem>>, vector<32x128xbf16>
    %cst_103 = arith.constant 0.000000e+00 : f32
    %315 = vector.broadcast %cst_103 : f32 to vector<8x32xf32>
    %cst_104 = arith.constant 0.000000e+00 : f32
    %316 = vector.broadcast %cst_104 : f32 to vector<8x32xf32>
    %c0_105 = arith.constant 0 : index
    %c0_106 = arith.constant 0 : index
    %c0_107 = arith.constant 0 : index
    %317 = vector.load %arg17[%c0_105, %c0_106, %c0_107] : memref<8x8x32xbf16, #tpu.memory_space<vmem>>, vector<8x8x32xbf16>
    %318 = vector.shape_cast %317 : vector<8x8x32xbf16> to vector<64x32xbf16>
    %c0_108 = arith.constant 0 : index
    %c0_109 = arith.constant 0 : index
    %319 = vector.load %arg7[%c0_108, %c0_109] : memref<32x128xbf16, #tpu.memory_space<vmem>>, vector<32x128xbf16>
    %cst_110 = arith.constant dense<0.000000e+00> : vector<64x128xf32>
    %320 = tpu.matmul %318, %319, %cst_110 {dimension_numbers = #tpu.dot_dimension_numbers<[1], [0], [0], [1], [0, 0, 1, 1], [], []>} : vector<64x32xbf16>, vector<32x128xbf16>, vector<64x128xf32> -> vector<64x128xf32>
    %c0_111 = arith.constant 0 : index
    %c0_112 = arith.constant 0 : index
    %321 = vector.load %arg9[%c0_111, %c0_112] : memref<1x128xf32, #tpu.memory_space<vmem>>, vector<1x128xf32>
    %322 = vector.broadcast %321 : vector<1x128xf32> to vector<64x128xf32>
    %323 = arith.addf %320, %322 : vector<64x128xf32>
    %324 = vector.shape_cast %323 : vector<64x128xf32> to vector<8x8x128xf32>
    %c0_113 = arith.constant 0 : index
    %c0_114 = arith.constant 0 : index
    %c0_115 = arith.constant 0 : index
    %325 = vector.load %arg19[%c0_113, %c0_114, %c0_115] : memref<8x8x128xf32, #tpu.memory_space<vmem>>, vector<8x8x128xf32>
    tpu.vector_store %arg19[%c0_113, %c0_114, %c0_115], %324 {strides = array<i32>} : memref<8x8x128xf32, #tpu.memory_space<vmem>>, vector<8x8x128xf32>,
    %c0_116 = arith.constant 0 : index
    %c0_117 = arith.constant 0 : index
    %c0_118 = arith.constant 0 : index
    %326 = vector.load %arg19[%c0_116, %c0_117, %c0_118] : memref<8x8x128xf32, #tpu.memory_space<vmem>>, vector<1x8x128xf32>
    %327 = vector.shape_cast %326 : vector<1x8x128xf32> to vector<8x128xf32>
    %328 = arith.truncf %315 : vector<8x32xf32> to vector<8x32xbf16>
    %cst_119 = arith.constant dense<0.000000e+00> : vector<8x128xf32>
    %329 = tpu.matmul %328, %314, %cst_119 {dimension_numbers = #tpu.dot_dimension_numbers<[1], [0], [0], [1], [0, 0, 1, 1], [], []>} : vector<8x32xbf16>, vector<32x128xbf16>, vector<8x128xf32> -> vector<8x128xf32>
    %330 = arith.addf %327, %329 : vector<8x128xf32>
    %331 = vector.extract_strided_slice %330 {offsets = [0, 0], sizes = [8, 32], strides = [1, 1]} : vector<8x128xf32> to vector<8x32xf32>
    %332 = arith.negf %331 : vector<8x32xf32>
    %333 = math.exp %332 : vector<8x32xf32>
    %cst_120 = arith.constant 1.000000e+00 : f32
    %334 = vector.broadcast %cst_120 : f32 to vector<8x32xf32>
    %335 = arith.addf %334, %333 : vector<8x32xf32>
    %336 = arith.divf %334, %335 : vector<8x32xf32>
    %337 = vector.extract_strided_slice %330 {offsets = [0, 32], sizes = [8, 32], strides = [1, 1]} : vector<8x128xf32> to vector<8x32xf32>
    %338 = arith.negf %337 : vector<8x32xf32>
    %339 = math.exp %338 : vector<8x32xf32>
    %cst_121 = arith.constant 1.000000e+00 : f32
    %340 = vector.broadcast %cst_121 : f32 to vector<8x32xf32>
    %341 = arith.addf %340, %339 : vector<8x32xf32>
    %342 = arith.divf %340, %341 : vector<8x32xf32>
    %343 = vector.extract_strided_slice %330 {offsets = [0, 64], sizes = [8, 32], strides = [1, 1]} : vector<8x128xf32> to vector<8x32xf32>
    %344 = math.tanh %343 : vector<8x32xf32>
    %345 = vector.extract_strided_slice %330 {offsets = [0, 96], sizes = [8, 32], strides = [1, 1]} : vector<8x128xf32> to vector<8x32xf32>
    %346 = arith.negf %345 : vector<8x32xf32>
    %347 = math.exp %346 : vector<8x32xf32>
    %cst_122 = arith.constant 1.000000e+00 : f32
    %348 = vector.broadcast %cst_122 : f32 to vector<8x32xf32>
    %349 = arith.addf %348, %347 : vector<8x32xf32>
    %350 = arith.divf %348, %349 : vector<8x32xf32>
    %351 = arith.mulf %342, %316 : vector<8x32xf32>
    %352 = arith.mulf %336, %344 : vector<8x32xf32>
    %353 = arith.addf %351, %352 : vector<8x32xf32>
    %354 = math.tanh %353 : vector<8x32xf32>
    %355 = arith.mulf %350, %354 : vector<8x32xf32>
    %356 = arith.truncf %355 : vector<8x32xf32> to vector<8x32xbf16>
    %c0_123 = arith.constant 0 : index
    %c0_124 = arith.constant 0 : index
    %c0_125 = arith.constant 0 : index
    %357 = vector.load %arg18[%c0_123, %c0_124, %c0_125] : memref<8x8x32xbf16, #tpu.memory_space<vmem>>, vector<1x8x32xbf16>
    %358 = vector.shape_cast %357 : vector<1x8x32xbf16> to vector<8x32xbf16>
    %359 = vector.shape_cast %356 : vector<8x32xbf16> to vector<1x8x32xbf16>
    tpu.vector_store %arg18[%c0_123, %c0_124, %c0_125], %359 {strides = array<i32>} : memref<8x8x32xbf16, #tpu.memory_space<vmem>>, vector<1x8x32xbf16>,
    %c1_126 = arith.constant 1 : index
    %c0_127 = arith.constant 0 : index
    %c0_128 = arith.constant 0 : index
    %360 = vector.load %arg19[%c1_126, %c0_127, %c0_128] : memref<8x8x128xf32, #tpu.memory_space<vmem>>, vector<1x8x128xf32>
    %361 = vector.shape_cast %360 : vector<1x8x128xf32> to vector<8x128xf32>
    %362 = arith.truncf %355 : vector<8x32xf32> to vector<8x32xbf16>
    %cst_129 = arith.constant dense<0.000000e+00> : vector<8x128xf32>
    %363 = tpu.matmul %362, %314, %cst_129 {dimension_numbers = #tpu.dot_dimension_numbers<[1], [0], [0], [1], [0, 0, 1, 1], [], []>} : vector<8x32xbf16>, vector<32x128xbf16>, vector<8x128xf32> -> vector<8x128xf32>
    %364 = arith.addf %361, %363 : vector<8x128xf32>
    %365 = vector.extract_strided_slice %364 {offsets = [0, 0], sizes = [8, 32], strides = [1, 1]} : vector<8x128xf32> to vector<8x32xf32>
    %366 = arith.negf %365 : vector<8x32xf32>
    %367 = math.exp %366 : vector<8x32xf32>
    %cst_130 = arith.constant 1.000000e+00 : f32
    %368 = vector.broadcast %cst_130 : f32 to vector<8x32xf32>
    %369 = arith.addf %368, %367 : vector<8x32xf32>
    %370 = arith.divf %368, %369 : vector<8x32xf32>
    %371 = vector.extract_strided_slice %364 {offsets = [0, 32], sizes = [8, 32], strides = [1, 1]} : vector<8x128xf32> to vector<8x32xf32>
    %372 = arith.negf %371 : vector<8x32xf32>
    %373 = math.exp %372 : vector<8x32xf32>
    %cst_131 = arith.constant 1.000000e+00 : f32
    %374 = vector.broadcast %cst_131 : f32 to vector<8x32xf32>
    %375 = arith.addf %374, %373 : vector<8x32xf32>
    %376 = arith.divf %374, %375 : vector<8x32xf32>
    %377 = vector.extract_strided_slice %364 {offsets = [0, 64], sizes = [8, 32], strides = [1, 1]} : vector<8x128xf32> to vector<8x32xf32>
    %378 = math.tanh %377 : vector<8x32xf32>
    %379 = vector.extract_strided_slice %364 {offsets = [0, 96], sizes = [8, 32], strides = [1, 1]} : vector<8x128xf32> to vector<8x32xf32>
    %380 = arith.negf %379 : vector<8x32xf32>
    %381 = math.exp %380 : vector<8x32xf32>
    %cst_132 = arith.constant 1.000000e+00 : f32
    %382 = vector.broadcast %cst_132 : f32 to vector<8x32xf32>
    %383 = arith.addf %382, %381 : vector<8x32xf32>
    %384 = arith.divf %382, %383 : vector<8x32xf32>
    %385 = arith.mulf %376, %353 : vector<8x32xf32>
    %386 = arith.mulf %370, %378 : vector<8x32xf32>
    %387 = arith.addf %385, %386 : vector<8x32xf32>
    %388 = math.tanh %387 : vector<8x32xf32>
    %389 = arith.mulf %384, %388 : vector<8x32xf32>
    %390 = arith.truncf %389 : vector<8x32xf32> to vector<8x32xbf16>
    %c1_133 = arith.constant 1 : index
    %c0_134 = arith.constant 0 : index
    %c0_135 = arith.constant 0 : index
    %391 = vector.load %arg18[%c1_133, %c0_134, %c0_135] : memref<8x8x32xbf16, #tpu.memory_space<vmem>>, vector<1x8x32xbf16>
    %392 = vector.shape_cast %391 : vector<1x8x32xbf16> to vector<8x32xbf16>
    %393 = vector.shape_cast %390 : vector<8x32xbf16> to vector<1x8x32xbf16>
    tpu.vector_store %arg18[%c1_133, %c0_134, %c0_135], %393 {strides = array<i32>} : memref<8x8x32xbf16, #tpu.memory_space<vmem>>, vector<1x8x32xbf16>,
    %c2_136 = arith.constant 2 : index
    %c0_137 = arith.constant 0 : index
    %c0_138 = arith.constant 0 : index
    %394 = vector.load %arg19[%c2_136, %c0_137, %c0_138] : memref<8x8x128xf32, #tpu.memory_space<vmem>>, vector<1x8x128xf32>
    %395 = vector.shape_cast %394 : vector<1x8x128xf32> to vector<8x128xf32>
    %396 = arith.truncf %389 : vector<8x32xf32> to vector<8x32xbf16>
    %cst_139 = arith.constant dense<0.000000e+00> : vector<8x128xf32>
    %397 = tpu.matmul %396, %314, %cst_139 {dimension_numbers = #tpu.dot_dimension_numbers<[1], [0], [0], [1], [0, 0, 1, 1], [], []>} : vector<8x32xbf16>, vector<32x128xbf16>, vector<8x128xf32> -> vector<8x128xf32>
    %398 = arith.addf %395, %397 : vector<8x128xf32>
    %399 = vector.extract_strided_slice %398 {offsets = [0, 0], sizes = [8, 32], strides = [1, 1]} : vector<8x128xf32> to vector<8x32xf32>
    %400 = arith.negf %399 : vector<8x32xf32>
    %401 = math.exp %400 : vector<8x32xf32>
    %cst_140 = arith.constant 1.000000e+00 : f32
    %402 = vector.broadcast %cst_140 : f32 to vector<8x32xf32>
    %403 = arith.addf %402, %401 : vector<8x32xf32>
    %404 = arith.divf %402, %403 : vector<8x32xf32>
    %405 = vector.extract_strided_slice %398 {offsets = [0, 32], sizes = [8, 32], strides = [1, 1]} : vector<8x128xf32> to vector<8x32xf32>
    %406 = arith.negf %405 : vector<8x32xf32>
    %407 = math.exp %406 : vector<8x32xf32>
    %cst_141 = arith.constant 1.000000e+00 : f32
    %408 = vector.broadcast %cst_141 : f32 to vector<8x32xf32>
    %409 = arith.addf %408, %407 : vector<8x32xf32>
    %410 = arith.divf %408, %409 : vector<8x32xf32>
    %411 = vector.extract_strided_slice %398 {offsets = [0, 64], sizes = [8, 32], strides = [1, 1]} : vector<8x128xf32> to vector<8x32xf32>
    %412 = math.tanh %411 : vector<8x32xf32>
    %413 = vector.extract_strided_slice %398 {offsets = [0, 96], sizes = [8, 32], strides = [1, 1]} : vector<8x128xf32> to vector<8x32xf32>
    %414 = arith.negf %413 : vector<8x32xf32>
    %415 = math.exp %414 : vector<8x32xf32>
    %cst_142 = arith.constant 1.000000e+00 : f32
    %416 = vector.broadcast %cst_142 : f32 to vector<8x32xf32>
    %417 = arith.addf %416, %415 : vector<8x32xf32>
    %418 = arith.divf %416, %417 : vector<8x32xf32>
    %419 = arith.mulf %410, %387 : vector<8x32xf32>
    %420 = arith.mulf %404, %412 : vector<8x32xf32>
    %421 = arith.addf %419, %420 : vector<8x32xf32>
    %422 = math.tanh %421 : vector<8x32xf32>
    %423 = arith.mulf %418, %422 : vector<8x32xf32>
    %424 = arith.truncf %423 : vector<8x32xf32> to vector<8x32xbf16>
    %c2_143 = arith.constant 2 : index
    %c0_144 = arith.constant 0 : index
    %c0_145 = arith.constant 0 : index
    %425 = vector.load %arg18[%c2_143, %c0_144, %c0_145] : memref<8x8x32xbf16, #tpu.memory_space<vmem>>, vector<1x8x32xbf16>
    %426 = vector.shape_cast %425 : vector<1x8x32xbf16> to vector<8x32xbf16>
    %427 = vector.shape_cast %424 : vector<8x32xbf16> to vector<1x8x32xbf16>
    tpu.vector_store %arg18[%c2_143, %c0_144, %c0_145], %427 {strides = array<i32>} : memref<8x8x32xbf16, #tpu.memory_space<vmem>>, vector<1x8x32xbf16>,
    %c3_146 = arith.constant 3 : index
    %c0_147 = arith.constant 0 : index
    %c0_148 = arith.constant 0 : index
    %428 = vector.load %arg19[%c3_146, %c0_147, %c0_148] : memref<8x8x128xf32, #tpu.memory_space<vmem>>, vector<1x8x128xf32>
    %429 = vector.shape_cast %428 : vector<1x8x128xf32> to vector<8x128xf32>
    %430 = arith.truncf %423 : vector<8x32xf32> to vector<8x32xbf16>
    %cst_149 = arith.constant dense<0.000000e+00> : vector<8x128xf32>
    %431 = tpu.matmul %430, %314, %cst_149 {dimension_numbers = #tpu.dot_dimension_numbers<[1], [0], [0], [1], [0, 0, 1, 1], [], []>} : vector<8x32xbf16>, vector<32x128xbf16>, vector<8x128xf32> -> vector<8x128xf32>
    %432 = arith.addf %429, %431 : vector<8x128xf32>
    %433 = vector.extract_strided_slice %432 {offsets = [0, 0], sizes = [8, 32], strides = [1, 1]} : vector<8x128xf32> to vector<8x32xf32>
    %434 = arith.negf %433 : vector<8x32xf32>
    %435 = math.exp %434 : vector<8x32xf32>
    %cst_150 = arith.constant 1.000000e+00 : f32
    %436 = vector.broadcast %cst_150 : f32 to vector<8x32xf32>
    %437 = arith.addf %436, %435 : vector<8x32xf32>
    %438 = arith.divf %436, %437 : vector<8x32xf32>
    %439 = vector.extract_strided_slice %432 {offsets = [0, 32], sizes = [8, 32], strides = [1, 1]} : vector<8x128xf32> to vector<8x32xf32>
    %440 = arith.negf %439 : vector<8x32xf32>
    %441 = math.exp %440 : vector<8x32xf32>
    %cst_151 = arith.constant 1.000000e+00 : f32
    %442 = vector.broadcast %cst_151 : f32 to vector<8x32xf32>
    %443 = arith.addf %442, %441 : vector<8x32xf32>
    %444 = arith.divf %442, %443 : vector<8x32xf32>
    %445 = vector.extract_strided_slice %432 {offsets = [0, 64], sizes = [8, 32], strides = [1, 1]} : vector<8x128xf32> to vector<8x32xf32>
    %446 = math.tanh %445 : vector<8x32xf32>
    %447 = vector.extract_strided_slice %432 {offsets = [0, 96], sizes = [8, 32], strides = [1, 1]} : vector<8x128xf32> to vector<8x32xf32>
    %448 = arith.negf %447 : vector<8x32xf32>
    %449 = math.exp %448 : vector<8x32xf32>
    %cst_152 = arith.constant 1.000000e+00 : f32
    %450 = vector.broadcast %cst_152 : f32 to vector<8x32xf32>
    %451 = arith.addf %450, %449 : vector<8x32xf32>
    %452 = arith.divf %450, %451 : vector<8x32xf32>
    %453 = arith.mulf %444, %421 : vector<8x32xf32>
    %454 = arith.mulf %438, %446 : vector<8x32xf32>
    %455 = arith.addf %453, %454 : vector<8x32xf32>
    %456 = math.tanh %455 : vector<8x32xf32>
    %457 = arith.mulf %452, %456 : vector<8x32xf32>
    %458 = arith.truncf %457 : vector<8x32xf32> to vector<8x32xbf16>
    %c3_153 = arith.constant 3 : index
    %c0_154 = arith.constant 0 : index
    %c0_155 = arith.constant 0 : index
    %459 = vector.load %arg18[%c3_153, %c0_154, %c0_155] : memref<8x8x32xbf16, #tpu.memory_space<vmem>>, vector<1x8x32xbf16>
    %460 = vector.shape_cast %459 : vector<1x8x32xbf16> to vector<8x32xbf16>
    %461 = vector.shape_cast %458 : vector<8x32xbf16> to vector<1x8x32xbf16>
    tpu.vector_store %arg18[%c3_153, %c0_154, %c0_155], %461 {strides = array<i32>} : memref<8x8x32xbf16, #tpu.memory_space<vmem>>, vector<1x8x32xbf16>,
    %c4_156 = arith.constant 4 : index
    %c0_157 = arith.constant 0 : index
    %c0_158 = arith.constant 0 : index
    %462 = vector.load %arg19[%c4_156, %c0_157, %c0_158] : memref<8x8x128xf32, #tpu.memory_space<vmem>>, vector<1x8x128xf32>
    %463 = vector.shape_cast %462 : vector<1x8x128xf32> to vector<8x128xf32>
    %464 = arith.truncf %457 : vector<8x32xf32> to vector<8x32xbf16>
    %cst_159 = arith.constant dense<0.000000e+00> : vector<8x128xf32>
    %465 = tpu.matmul %464, %314, %cst_159 {dimension_numbers = #tpu.dot_dimension_numbers<[1], [0], [0], [1], [0, 0, 1, 1], [], []>} : vector<8x32xbf16>, vector<32x128xbf16>, vector<8x128xf32> -> vector<8x128xf32>
    %466 = arith.addf %463, %465 : vector<8x128xf32>
    %467 = vector.extract_strided_slice %466 {offsets = [0, 0], sizes = [8, 32], strides = [1, 1]} : vector<8x128xf32> to vector<8x32xf32>
    %468 = arith.negf %467 : vector<8x32xf32>
    %469 = math.exp %468 : vector<8x32xf32>
    %cst_160 = arith.constant 1.000000e+00 : f32
    %470 = vector.broadcast %cst_160 : f32 to vector<8x32xf32>
    %471 = arith.addf %470, %469 : vector<8x32xf32>
    %472 = arith.divf %470, %471 : vector<8x32xf32>
    %473 = vector.extract_strided_slice %466 {offsets = [0, 32], sizes = [8, 32], strides = [1, 1]} : vector<8x128xf32> to vector<8x32xf32>
    %474 = arith.negf %473 : vector<8x32xf32>
    %475 = math.exp %474 : vector<8x32xf32>
    %cst_161 = arith.constant 1.000000e+00 : f32
    %476 = vector.broadcast %cst_161 : f32 to vector<8x32xf32>
    %477 = arith.addf %476, %475 : vector<8x32xf32>
    %478 = arith.divf %476, %477 : vector<8x32xf32>
    %479 = vector.extract_strided_slice %466 {offsets = [0, 64], sizes = [8, 32], strides = [1, 1]} : vector<8x128xf32> to vector<8x32xf32>
    %480 = math.tanh %479 : vector<8x32xf32>
    %481 = vector.extract_strided_slice %466 {offsets = [0, 96], sizes = [8, 32], strides = [1, 1]} : vector<8x128xf32> to vector<8x32xf32>
    %482 = arith.negf %481 : vector<8x32xf32>
    %483 = math.exp %482 : vector<8x32xf32>
    %cst_162 = arith.constant 1.000000e+00 : f32
    %484 = vector.broadcast %cst_162 : f32 to vector<8x32xf32>
    %485 = arith.addf %484, %483 : vector<8x32xf32>
    %486 = arith.divf %484, %485 : vector<8x32xf32>
    %487 = arith.mulf %478, %455 : vector<8x32xf32>
    %488 = arith.mulf %472, %480 : vector<8x32xf32>
    %489 = arith.addf %487, %488 : vector<8x32xf32>
    %490 = math.tanh %489 : vector<8x32xf32>
    %491 = arith.mulf %486, %490 : vector<8x32xf32>
    %492 = arith.truncf %491 : vector<8x32xf32> to vector<8x32xbf16>
    %c4_163 = arith.constant 4 : index
    %c0_164 = arith.constant 0 : index
    %c0_165 = arith.constant 0 : index
    %493 = vector.load %arg18[%c4_163, %c0_164, %c0_165] : memref<8x8x32xbf16, #tpu.memory_space<vmem>>, vector<1x8x32xbf16>
    %494 = vector.shape_cast %493 : vector<1x8x32xbf16> to vector<8x32xbf16>
    %495 = vector.shape_cast %492 : vector<8x32xbf16> to vector<1x8x32xbf16>
    tpu.vector_store %arg18[%c4_163, %c0_164, %c0_165], %495 {strides = array<i32>} : memref<8x8x32xbf16, #tpu.memory_space<vmem>>, vector<1x8x32xbf16>,
    %c5_166 = arith.constant 5 : index
    %c0_167 = arith.constant 0 : index
    %c0_168 = arith.constant 0 : index
    %496 = vector.load %arg19[%c5_166, %c0_167, %c0_168] : memref<8x8x128xf32, #tpu.memory_space<vmem>>, vector<1x8x128xf32>
    %497 = vector.shape_cast %496 : vector<1x8x128xf32> to vector<8x128xf32>
    %498 = arith.truncf %491 : vector<8x32xf32> to vector<8x32xbf16>
    %cst_169 = arith.constant dense<0.000000e+00> : vector<8x128xf32>
    %499 = tpu.matmul %498, %314, %cst_169 {dimension_numbers = #tpu.dot_dimension_numbers<[1], [0], [0], [1], [0, 0, 1, 1], [], []>} : vector<8x32xbf16>, vector<32x128xbf16>, vector<8x128xf32> -> vector<8x128xf32>
    %500 = arith.addf %497, %499 : vector<8x128xf32>
    %501 = vector.extract_strided_slice %500 {offsets = [0, 0], sizes = [8, 32], strides = [1, 1]} : vector<8x128xf32> to vector<8x32xf32>
    %502 = arith.negf %501 : vector<8x32xf32>
    %503 = math.exp %502 : vector<8x32xf32>
    %cst_170 = arith.constant 1.000000e+00 : f32
    %504 = vector.broadcast %cst_170 : f32 to vector<8x32xf32>
    %505 = arith.addf %504, %503 : vector<8x32xf32>
    %506 = arith.divf %504, %505 : vector<8x32xf32>
    %507 = vector.extract_strided_slice %500 {offsets = [0, 32], sizes = [8, 32], strides = [1, 1]} : vector<8x128xf32> to vector<8x32xf32>
    %508 = arith.negf %507 : vector<8x32xf32>
    %509 = math.exp %508 : vector<8x32xf32>
    %cst_171 = arith.constant 1.000000e+00 : f32
    %510 = vector.broadcast %cst_171 : f32 to vector<8x32xf32>
    %511 = arith.addf %510, %509 : vector<8x32xf32>
    %512 = arith.divf %510, %511 : vector<8x32xf32>
    %513 = vector.extract_strided_slice %500 {offsets = [0, 64], sizes = [8, 32], strides = [1, 1]} : vector<8x128xf32> to vector<8x32xf32>
    %514 = math.tanh %513 : vector<8x32xf32>
    %515 = vector.extract_strided_slice %500 {offsets = [0, 96], sizes = [8, 32], strides = [1, 1]} : vector<8x128xf32> to vector<8x32xf32>
    %516 = arith.negf %515 : vector<8x32xf32>
    %517 = math.exp %516 : vector<8x32xf32>
    %cst_172 = arith.constant 1.000000e+00 : f32
    %518 = vector.broadcast %cst_172 : f32 to vector<8x32xf32>
    %519 = arith.addf %518, %517 : vector<8x32xf32>
    %520 = arith.divf %518, %519 : vector<8x32xf32>
    %521 = arith.mulf %512, %489 : vector<8x32xf32>
    %522 = arith.mulf %506, %514 : vector<8x32xf32>
    %523 = arith.addf %521, %522 : vector<8x32xf32>
    %524 = math.tanh %523 : vector<8x32xf32>
    %525 = arith.mulf %520, %524 : vector<8x32xf32>
    %526 = arith.truncf %525 : vector<8x32xf32> to vector<8x32xbf16>
    %c5_173 = arith.constant 5 : index
    %c0_174 = arith.constant 0 : index
    %c0_175 = arith.constant 0 : index
    %527 = vector.load %arg18[%c5_173, %c0_174, %c0_175] : memref<8x8x32xbf16, #tpu.memory_space<vmem>>, vector<1x8x32xbf16>
    %528 = vector.shape_cast %527 : vector<1x8x32xbf16> to vector<8x32xbf16>
    %529 = vector.shape_cast %526 : vector<8x32xbf16> to vector<1x8x32xbf16>
    tpu.vector_store %arg18[%c5_173, %c0_174, %c0_175], %529 {strides = array<i32>} : memref<8x8x32xbf16, #tpu.memory_space<vmem>>, vector<1x8x32xbf16>,
    %c6_176 = arith.constant 6 : index
    %c0_177 = arith.constant 0 : index
    %c0_178 = arith.constant 0 : index
    %530 = vector.load %arg19[%c6_176, %c0_177, %c0_178] : memref<8x8x128xf32, #tpu.memory_space<vmem>>, vector<1x8x128xf32>
    %531 = vector.shape_cast %530 : vector<1x8x128xf32> to vector<8x128xf32>
    %532 = arith.truncf %525 : vector<8x32xf32> to vector<8x32xbf16>
    %cst_179 = arith.constant dense<0.000000e+00> : vector<8x128xf32>
    %533 = tpu.matmul %532, %314, %cst_179 {dimension_numbers = #tpu.dot_dimension_numbers<[1], [0], [0], [1], [0, 0, 1, 1], [], []>} : vector<8x32xbf16>, vector<32x128xbf16>, vector<8x128xf32> -> vector<8x128xf32>
    %534 = arith.addf %531, %533 : vector<8x128xf32>
    %535 = vector.extract_strided_slice %534 {offsets = [0, 0], sizes = [8, 32], strides = [1, 1]} : vector<8x128xf32> to vector<8x32xf32>
    %536 = arith.negf %535 : vector<8x32xf32>
    %537 = math.exp %536 : vector<8x32xf32>
    %cst_180 = arith.constant 1.000000e+00 : f32
    %538 = vector.broadcast %cst_180 : f32 to vector<8x32xf32>
    %539 = arith.addf %538, %537 : vector<8x32xf32>
    %540 = arith.divf %538, %539 : vector<8x32xf32>
    %541 = vector.extract_strided_slice %534 {offsets = [0, 32], sizes = [8, 32], strides = [1, 1]} : vector<8x128xf32> to vector<8x32xf32>
    %542 = arith.negf %541 : vector<8x32xf32>
    %543 = math.exp %542 : vector<8x32xf32>
    %cst_181 = arith.constant 1.000000e+00 : f32
    %544 = vector.broadcast %cst_181 : f32 to vector<8x32xf32>
    %545 = arith.addf %544, %543 : vector<8x32xf32>
    %546 = arith.divf %544, %545 : vector<8x32xf32>
    %547 = vector.extract_strided_slice %534 {offsets = [0, 64], sizes = [8, 32], strides = [1, 1]} : vector<8x128xf32> to vector<8x32xf32>
    %548 = math.tanh %547 : vector<8x32xf32>
    %549 = vector.extract_strided_slice %534 {offsets = [0, 96], sizes = [8, 32], strides = [1, 1]} : vector<8x128xf32> to vector<8x32xf32>
    %550 = arith.negf %549 : vector<8x32xf32>
    %551 = math.exp %550 : vector<8x32xf32>
    %cst_182 = arith.constant 1.000000e+00 : f32
    %552 = vector.broadcast %cst_182 : f32 to vector<8x32xf32>
    %553 = arith.addf %552, %551 : vector<8x32xf32>
    %554 = arith.divf %552, %553 : vector<8x32xf32>
    %555 = arith.mulf %546, %523 : vector<8x32xf32>
    %556 = arith.mulf %540, %548 : vector<8x32xf32>
    %557 = arith.addf %555, %556 : vector<8x32xf32>
    %558 = math.tanh %557 : vector<8x32xf32>
    %559 = arith.mulf %554, %558 : vector<8x32xf32>
    %560 = arith.truncf %559 : vector<8x32xf32> to vector<8x32xbf16>
    %c6_183 = arith.constant 6 : index
    %c0_184 = arith.constant 0 : index
    %c0_185 = arith.constant 0 : index
    %561 = vector.load %arg18[%c6_183, %c0_184, %c0_185] : memref<8x8x32xbf16, #tpu.memory_space<vmem>>, vector<1x8x32xbf16>
    %562 = vector.shape_cast %561 : vector<1x8x32xbf16> to vector<8x32xbf16>
    %563 = vector.shape_cast %560 : vector<8x32xbf16> to vector<1x8x32xbf16>
    tpu.vector_store %arg18[%c6_183, %c0_184, %c0_185], %563 {strides = array<i32>} : memref<8x8x32xbf16, #tpu.memory_space<vmem>>, vector<1x8x32xbf16>,
    %c7_186 = arith.constant 7 : index
    %c0_187 = arith.constant 0 : index
    %c0_188 = arith.constant 0 : index
    %564 = vector.load %arg19[%c7_186, %c0_187, %c0_188] : memref<8x8x128xf32, #tpu.memory_space<vmem>>, vector<1x8x128xf32>
    %565 = vector.shape_cast %564 : vector<1x8x128xf32> to vector<8x128xf32>
    %566 = arith.truncf %559 : vector<8x32xf32> to vector<8x32xbf16>
    %cst_189 = arith.constant dense<0.000000e+00> : vector<8x128xf32>
    %567 = tpu.matmul %566, %314, %cst_189 {dimension_numbers = #tpu.dot_dimension_numbers<[1], [0], [0], [1], [0, 0, 1, 1], [], []>} : vector<8x32xbf16>, vector<32x128xbf16>, vector<8x128xf32> -> vector<8x128xf32>
    %568 = arith.addf %565, %567 : vector<8x128xf32>
    %569 = vector.extract_strided_slice %568 {offsets = [0, 0], sizes = [8, 32], strides = [1, 1]} : vector<8x128xf32> to vector<8x32xf32>
    %570 = arith.negf %569 : vector<8x32xf32>
    %571 = math.exp %570 : vector<8x32xf32>
    %cst_190 = arith.constant 1.000000e+00 : f32
    %572 = vector.broadcast %cst_190 : f32 to vector<8x32xf32>
    %573 = arith.addf %572, %571 : vector<8x32xf32>
    %574 = arith.divf %572, %573 : vector<8x32xf32>
    %575 = vector.extract_strided_slice %568 {offsets = [0, 32], sizes = [8, 32], strides = [1, 1]} : vector<8x128xf32> to vector<8x32xf32>
    %576 = arith.negf %575 : vector<8x32xf32>
    %577 = math.exp %576 : vector<8x32xf32>
    %cst_191 = arith.constant 1.000000e+00 : f32
    %578 = vector.broadcast %cst_191 : f32 to vector<8x32xf32>
    %579 = arith.addf %578, %577 : vector<8x32xf32>
    %580 = arith.divf %578, %579 : vector<8x32xf32>
    %581 = vector.extract_strided_slice %568 {offsets = [0, 64], sizes = [8, 32], strides = [1, 1]} : vector<8x128xf32> to vector<8x32xf32>
    %582 = math.tanh %581 : vector<8x32xf32>
    %583 = vector.extract_strided_slice %568 {offsets = [0, 96], sizes = [8, 32], strides = [1, 1]} : vector<8x128xf32> to vector<8x32xf32>
    %584 = arith.negf %583 : vector<8x32xf32>
    %585 = math.exp %584 : vector<8x32xf32>
    %cst_192 = arith.constant 1.000000e+00 : f32
    %586 = vector.broadcast %cst_192 : f32 to vector<8x32xf32>
    %587 = arith.addf %586, %585 : vector<8x32xf32>
    %588 = arith.divf %586, %587 : vector<8x32xf32>
    %589 = arith.mulf %580, %557 : vector<8x32xf32>
    %590 = arith.mulf %574, %582 : vector<8x32xf32>
    %591 = arith.addf %589, %590 : vector<8x32xf32>
    %592 = math.tanh %591 : vector<8x32xf32>
    %593 = arith.mulf %588, %592 : vector<8x32xf32>
    %594 = arith.truncf %593 : vector<8x32xf32> to vector<8x32xbf16>
    %c7_193 = arith.constant 7 : index
    %c0_194 = arith.constant 0 : index
    %c0_195 = arith.constant 0 : index
    %595 = vector.load %arg18[%c7_193, %c0_194, %c0_195] : memref<8x8x32xbf16, #tpu.memory_space<vmem>>, vector<1x8x32xbf16>
    %596 = vector.shape_cast %595 : vector<1x8x32xbf16> to vector<8x32xbf16>
    %597 = vector.shape_cast %594 : vector<8x32xbf16> to vector<1x8x32xbf16>
    tpu.vector_store %arg18[%c7_193, %c0_194, %c0_195], %597 {strides = array<i32>} : memref<8x8x32xbf16, #tpu.memory_space<vmem>>, vector<1x8x32xbf16>,
    %c0_196 = arith.constant 0 : index
    %c0_197 = arith.constant 0 : index
    %598 = vector.load %arg10[%c0_196, %c0_197] : memref<1x32xf32, #tpu.memory_space<vmem>>, vector<1x32xf32>
    %c0_198 = arith.constant 0 : index
    %c0_199 = arith.constant 0 : index
    %599 = vector.load %arg11[%c0_198, %c0_199] : memref<1x32xf32, #tpu.memory_space<vmem>>, vector<1x32xf32>
    %c0_200 = arith.constant 0 : index
    %c0_201 = arith.constant 0 : index
    %c0_202 = arith.constant 0 : index
    %600 = vector.load %arg18[%c0_200, %c0_201, %c0_202] : memref<8x8x32xbf16, #tpu.memory_space<vmem>>, vector<8x8x32xbf16>
    %601 = vector.shape_cast %600 : vector<8x8x32xbf16> to vector<64x32xbf16>
    %602 = arith.extf %601 : vector<64x32xbf16> to vector<64x32xf32>
    %cst_203 = arith.constant dense<0.000000e+00> : vector<64xf32>
    %603 = vector.multi_reduction <add>, %602, %cst_203 [1] : vector<64x32xf32> to vector<64xf32>
    %604 = vector.shape_cast %603 : vector<64xf32> to vector<64x1xf32>
    %cst_204 = arith.constant 3.200000e+01 : f32
    %605 = vector.broadcast %cst_204 : f32 to vector<64x1xf32>
    %606 = arith.divf %604, %605 : vector<64x1xf32>
    %607 = vector.broadcast %606 : vector<64x1xf32> to vector<64x32xf32>
    %608 = arith.subf %602, %607 : vector<64x32xf32>
    %609 = arith.mulf %608, %608 : vector<64x32xf32>
    %cst_205 = arith.constant dense<0.000000e+00> : vector<64xf32>
    %610 = vector.multi_reduction <add>, %609, %cst_205 [1] : vector<64x32xf32> to vector<64xf32>
    %611 = vector.shape_cast %610 : vector<64xf32> to vector<64x1xf32>
    %cst_206 = arith.constant 3.200000e+01 : f32
    %612 = vector.broadcast %cst_206 : f32 to vector<64x1xf32>
    %613 = arith.divf %611, %612 : vector<64x1xf32>
    %614 = vector.broadcast %606 : vector<64x1xf32> to vector<64x32xf32>
    %615 = arith.subf %602, %614 : vector<64x32xf32>
    %cst_207 = arith.constant 9.99999974E-6 : f32
    %616 = vector.broadcast %cst_207 : f32 to vector<64x1xf32>
    %617 = arith.addf %613, %616 : vector<64x1xf32>
    %618 = math.rsqrt %617 : vector<64x1xf32>
    %619 = vector.broadcast %618 : vector<64x1xf32> to vector<64x32xf32>
    %620 = arith.mulf %615, %619 : vector<64x32xf32>
    %621 = vector.broadcast %598 : vector<1x32xf32> to vector<64x32xf32>
    %622 = arith.mulf %620, %621 : vector<64x32xf32>
    %623 = vector.broadcast %599 : vector<1x32xf32> to vector<64x32xf32>
    %624 = arith.addf %622, %623 : vector<64x32xf32>
    %c0_208 = arith.constant 0 : index
    %c0_209 = arith.constant 0 : index
    %c0_210 = arith.constant 0 : index
    %625 = vector.load %arg17[%c0_208, %c0_209, %c0_210] : memref<8x8x32xbf16, #tpu.memory_space<vmem>>, vector<8x8x32xbf16>
    %626 = vector.shape_cast %625 : vector<8x8x32xbf16> to vector<64x32xbf16>
    %627 = arith.extf %626 : vector<64x32xbf16> to vector<64x32xf32>
    %628 = arith.addf %624, %627 : vector<64x32xf32>
    %629 = vector.shape_cast %628 : vector<64x32xf32> to vector<8x8x32xf32>
    %630 = arith.truncf %629 : vector<8x8x32xf32> to vector<8x8x32xbf16>
    %c0_211 = arith.constant 0 : index
    %c0_212 = arith.constant 0 : index
    %c0_213 = arith.constant 0 : index
    %631 = vector.load %arg17[%c0_211, %c0_212, %c0_213] : memref<8x8x32xbf16, #tpu.memory_space<vmem>>, vector<8x8x32xbf16>
    tpu.vector_store %arg17[%c0_211, %c0_212, %c0_213], %630 {strides = array<i32>} : memref<8x8x32xbf16, #tpu.memory_space<vmem>>, vector<8x8x32xbf16>,
    %c0_214 = arith.constant 0 : index
    %c0_215 = arith.constant 0 : index
    %c0_216 = arith.constant 0 : index
    %632 = vector.load %arg17[%c0_214, %c0_215, %c0_216] : memref<8x8x32xbf16, #tpu.memory_space<vmem>>, vector<8x8x32xbf16>
    %633 = arith.extf %632 : vector<8x8x32xbf16> to vector<8x8x32xf32>
    %cst_217 = arith.constant dense<0.000000e+00> : vector<8x8xf32>
    %634 = vector.multi_reduction <add>, %633, %cst_217 [2] : vector<8x8x32xf32> to vector<8x8xf32>
    %cst_218 = arith.constant 3.200000e+01 : f32
    %635 = vector.broadcast %cst_218 : f32 to vector<8x8xf32>
    %636 = arith.divf %634, %635 : vector<8x8xf32>
    %637 = tpu.transpose %636, [1, 0] : vector<8x8xf32> -> vector<8x8xf32>
    %638 = arith.truncf %637 : vector<8x8xf32> to vector<8x8xbf16>
    %639 = vector.extract_strided_slice %638 {offsets = [0, 0], sizes = [4, 8], strides = [1, 1]} : vector<8x8xbf16> to vector<4x8xbf16>
    %c0_219 = arith.constant 0 : index
    %c0_220 = arith.constant 0 : index
    %640 = vector.load %arg12[%c0_219, %c0_220] : memref<16x512xbf16, #tpu.memory_space<vmem>>, vector<8x512xbf16>
    %cst_221 = arith.constant dense<0.000000e+00> : vector<4x512xf32>
    %641 = tpu.matmul %639, %640, %cst_221 {dimension_numbers = #tpu.dot_dimension_numbers<[1], [0], [0], [1], [0, 0, 1, 1], [], []>} : vector<4x8xbf16>, vector<8x512xbf16>, vector<4x512xf32> -> vector<4x512xf32>
    %642 = vector.extract_strided_slice %638 {offsets = [4, 0], sizes = [4, 8], strides = [1, 1]} : vector<8x8xbf16> to vector<4x8xbf16>
    %c8 = arith.constant 8 : index
    %c0_222 = arith.constant 0 : index
    %643 = vector.load %arg12[%c8, %c0_222] : memref<16x512xbf16, #tpu.memory_space<vmem>>, vector<8x512xbf16>
    %cst_223 = arith.constant dense<0.000000e+00> : vector<4x512xf32>
    %644 = tpu.matmul %642, %643, %cst_223 {dimension_numbers = #tpu.dot_dimension_numbers<[1], [0], [0], [1], [0, 0, 1, 1], [], []>} : vector<4x8xbf16>, vector<8x512xbf16>, vector<4x512xf32> -> vector<4x512xf32>
    %645 = arith.addf %641, %644 : vector<4x512xf32>
    %c0_224 = arith.constant 0 : index
    %c0_225 = arith.constant 0 : index
    %646 = vector.load %arg13[%c0_224, %c0_225] : memref<1x512xf32, #tpu.memory_space<vmem>>, vector<1x512xf32>
    %647 = vector.broadcast %646 : vector<1x512xf32> to vector<4x512xf32>
    %648 = arith.addf %645, %647 : vector<4x512xf32>
    %649 = arith.truncf %648 : vector<4x512xf32> to vector<4x512xbf16>
    %c0_226 = arith.constant 0 : index
    %c0_227 = arith.constant 0 : index
    %650 = vector.load %arg14[%c0_226, %c0_227] : memref<512x4xbf16, #tpu.memory_space<vmem>>, vector<512x4xbf16>
    %cst_228 = arith.constant dense<0.000000e+00> : vector<4x4xf32>
    %651 = tpu.matmul %649, %650, %cst_228 {dimension_numbers = #tpu.dot_dimension_numbers<[1], [0], [0], [1], [0, 0, 1, 1], [], []>} : vector<4x512xbf16>, vector<512x4xbf16>, vector<4x4xf32> -> vector<4x4xf32>
    %c0_229 = arith.constant 0 : index
    %c0_230 = arith.constant 0 : index
    %652 = vector.load %arg15[%c0_229, %c0_230] : memref<1x4xf32, #tpu.memory_space<vmem>>, vector<1x4xf32>
    %653 = vector.broadcast %652 : vector<1x4xf32> to vector<4x4xf32>
    %654 = arith.addf %651, %653 : vector<4x4xf32>
    %c0_231 = arith.constant 0 : index
    %c0_232 = arith.constant 0 : index
    %655 = vector.load %arg16[%c0_231, %c0_232] : memref<4x4xf32, #tpu.memory_space<vmem>>, vector<4x4xf32>
    tpu.vector_store %arg16[%c0_231, %c0_232], %654 {strides = array<i32>} : memref<4x4xf32, #tpu.memory_space<vmem>>, vector<4x4xf32>,
    return
  }
  func.func @transform_0(%arg0: i32) -> (i32, i32, i32) {
    %c0_i32 = arith.constant 0 : i32
    %c0_i32_0 = arith.constant 0 : i32
    %c0_i32_1 = arith.constant 0 : i32
    return %c0_i32, %arg0, %c0_i32_0 : i32, i32, i32
  }
  func.func @transform_1(%arg0: i32) -> (i32, i32) {
    %c0_i32 = arith.constant 0 : i32
    %c0_i32_0 = arith.constant 0 : i32
    %c0_i32_1 = arith.constant 0 : i32
    return %c0_i32, %c0_i32_0 : i32, i32
  }
  func.func @transform_2(%arg0: i32) -> (i32, i32) {
    %c0_i32 = arith.constant 0 : i32
    %c0_i32_0 = arith.constant 0 : i32
    %c0_i32_1 = arith.constant 0 : i32
    return %c0_i32, %c0_i32_0 : i32, i32
  }
  func.func @transform_3(%arg0: i32) -> (i32, i32) {
    %c0_i32 = arith.constant 0 : i32
    %c0_i32_0 = arith.constant 0 : i32
    %c0_i32_1 = arith.constant 0 : i32
    return %c0_i32, %c0_i32_0 : i32, i32
  }
  func.func @transform_4(%arg0: i32) -> (i32, i32) {
    %c0_i32 = arith.constant 0 : i32
    %c0_i32_0 = arith.constant 0 : i32
    %c0_i32_1 = arith.constant 0 : i32
    return %c0_i32, %c0_i32_0 : i32, i32
  }
  func.func @transform_5(%arg0: i32) -> (i32, i32) {
    %c0_i32 = arith.constant 0 : i32
    %c0_i32_0 = arith.constant 0 : i32
    %c0_i32_1 = arith.constant 0 : i32
    return %c0_i32, %c0_i32_0 : i32, i32
  }
  func.func @transform_6(%arg0: i32) -> (i32, i32) {
    %c0_i32 = arith.constant 0 : i32
    %c0_i32_0 = arith.constant 0 : i32
    %c0_i32_1 = arith.constant 0 : i32
    return %c0_i32, %c0_i32_0 : i32, i32
  }
  func.func @transform_7(%arg0: i32) -> (i32, i32) {
    %c0_i32 = arith.constant 0 : i32
    %c0_i32_0 = arith.constant 0 : i32
    %c0_i32_1 = arith.constant 0 : i32
    return %c0_i32, %c0_i32_0 : i32, i32
  }
  func.func @transform_8(%arg0: i32) -> (i32, i32) {
    %c0_i32 = arith.constant 0 : i32
    %c0_i32_0 = arith.constant 0 : i32
    %c0_i32_1 = arith.constant 0 : i32
    return %c0_i32, %c0_i32_0 : i32, i32
  }
  func.func @transform_9(%arg0: i32) -> (i32, i32) {
    %c0_i32 = arith.constant 0 : i32
    %c0_i32_0 = arith.constant 0 : i32
    %c0_i32_1 = arith.constant 0 : i32
    return %c0_i32, %c0_i32_0 : i32, i32
  }
  func.func @transform_10(%arg0: i32) -> (i32, i32) {
    %c0_i32 = arith.constant 0 : i32
    %c0_i32_0 = arith.constant 0 : i32
    %c0_i32_1 = arith.constant 0 : i32
    return %c0_i32, %c0_i32_0 : i32, i32
  }
  func.func @transform_11(%arg0: i32) -> (i32, i32) {
    %c0_i32 = arith.constant 0 : i32
    %c0_i32_0 = arith.constant 0 : i32
    %c0_i32_1 = arith.constant 0 : i32
    return %c0_i32, %c0_i32_0 : i32, i32
  }
  func.func @transform_12(%arg0: i32) -> (i32, i32) {
    %c0_i32 = arith.constant 0 : i32
    %c0_i32_0 = arith.constant 0 : i32
    %c0_i32_1 = arith.constant 0 : i32
    return %c0_i32, %c0_i32_0 : i32, i32
  }
  func.func @transform_13(%arg0: i32) -> (i32, i32) {
    %c0_i32 = arith.constant 0 : i32
    %c0_i32_0 = arith.constant 0 : i32
    %c0_i32_1 = arith.constant 0 : i32
    return %c0_i32, %c0_i32_0 : i32, i32
  }
  func.func @transform_14(%arg0: i32) -> (i32, i32) {
    %c0_i32 = arith.constant 0 : i32
    %c0_i32_0 = arith.constant 0 : i32
    %c0_i32_1 = arith.constant 0 : i32
    return %c0_i32, %c0_i32_0 : i32, i32
  }
  func.func @transform_15(%arg0: i32) -> (i32, i32) {
    %c0_i32 = arith.constant 0 : i32
    %c0_i32_0 = arith.constant 0 : i32
    return %arg0, %c0_i32 : i32, i32
  }
}

</mosaic_0001>

<llo_original>
// kernel: tpu_custom_call.1
$region0: #{tpu_custom_call.1}
  #allocation0 [shape = 'u32[]', space=smem, size = 0x4, offset = 0x4, fixed_abs, tag = 'smem constant byte address 0x4 - core index']
  #allocation1 [shape = 'u32[144,128]{1,0:T(1,128)}', space=vmem, size = 0x12000, scoped, tag = 'internal scratch']
  #allocation2 [shape = 'bf16[8,8,32]{2,1,0:T(8,128)(2,1)}', space=vmem, size = 0x4000, scoped, tag = 'scratch operand']
  #allocation3 [shape = 'bf16[8,8,32]{2,1,0:T(8,128)(2,1)}', space=vmem, size = 0x4000, scoped, tag = 'scratch operand']
  #allocation4 [shape = 'f32[8,8,128]{2,1,0:T(8,128)}', space=vmem, size = 0x8000, scoped, tag = 'scratch operand']
  %s0 = inlined_call_operand.vmem [shape: bf16[8,8,8], index: 0, kind: input, shape index: {}]
  %s1 = inlined_call_operand.vmem [shape: bf16[8,128], index: 1, kind: input, shape index: {}]
  %s2 = inlined_call_operand.vmem [shape: bf16[32,128], index: 2, kind: input, shape index: {}]
  %s3 = inlined_call_operand.vmem [shape: f32[1,128], index: 3, kind: input, shape index: {}]
  %s4 = inlined_call_operand.vmem [shape: f32[1,32], index: 4, kind: input, shape index: {}]
  %s5 = inlined_call_operand.vmem [shape: f32[1,32], index: 5, kind: input, shape index: {}]
  %s6 = inlined_call_operand.vmem [shape: bf16[32,128], index: 6, kind: input, shape index: {}]
  %s7 = inlined_call_operand.vmem [shape: bf16[32,128], index: 7, kind: input, shape index: {}]
  %s8 = inlined_call_operand.vmem [shape: f32[1,128], index: 8, kind: input, shape index: {}]
  %s9 = inlined_call_operand.vmem [shape: f32[1,32], index: 9, kind: input, shape index: {}]
  %s10 = inlined_call_operand.vmem [shape: f32[1,32], index: 10, kind: input, shape index: {}]
  %s11 = inlined_call_operand.vmem [shape: bf16[16,512], index: 11, kind: input, shape index: {}]
  %s12 = inlined_call_operand.vmem [shape: f32[1,512], index: 12, kind: input, shape index: {}]
  %s13 = inlined_call_operand.vmem [shape: bf16[512,4], index: 13, kind: input, shape index: {}]
  %s14 = inlined_call_operand.vmem [shape: f32[1,4], index: 14, kind: input, shape index: {}]
  %s15 = inlined_call_operand.hbm [shape: f32[4,4], index: 15, kind: output, shape index: {}]
  %s16 = sld [smem:[#allocation0]]
  $region70: #{tpu_custom_call.1} parent=0
    _
  %s18 = ssub.s32 1, %s16
  %s19 = scalar_select 0, %s18, %s16
  $region1: #{tpu_custom_call.1} parent=0
    #allocation5 [shape = 'u8[2048]{0}', space=vmem, size = 0x800, scoped, tag = 'output window, operand 0, single buffered']
    #allocation6 [shape = 's32[1]{0}', space=sflag, size = 0x4, scoped, tag = 'scoped memory for tpu_custom_call.1']
    %20 = vsyncpa [#allocation6], 0
    // Predicated region
    $region2: #{tpu_custom_call.1} parent=1 // pred_check
      _
    $region3: #{tpu_custom_call.1} parent=1 // pred_check_branch
      %22 = sbr.rel (0) target = $region5
    $region4: #{tpu_custom_call.1} parent=1 // pred_region
      _
    $region5: #{tpu_custom_call.1} parent=1 // pred_fallthru
      _
    // Predicated region
    $region6: #{tpu_custom_call.1} parent=1 // pred_check
      _
    $region7: #{tpu_custom_call.1} parent=1 // pred_check_branch
      %24 = sbr.rel (0) target = $region9
    $region8: #{tpu_custom_call.1} parent=1 // pred_region
      _
    $region9: #{tpu_custom_call.1} parent=1 // pred_fallthru
      _
    // Predicated region
    $region10: #{tpu_custom_call.1} parent=1 // pred_check
      _
    $region11: #{tpu_custom_call.1} parent=1 // pred_check_branch
      %26 = sbr.rel (0) target = $region13
    $region12: #{tpu_custom_call.1} parent=1 // pred_region
      _
    $region13: #{tpu_custom_call.1} parent=1 // pred_fallthru
      _
    // Predicated region
    $region14: #{tpu_custom_call.1} parent=1 // pred_check
      _
    $region15: #{tpu_custom_call.1} parent=1 // pred_check_branch
      %28 = sbr.rel (0) target = $region17
    $region16: #{tpu_custom_call.1} parent=1 // pred_region
      _
    $region17: #{tpu_custom_call.1} parent=1 // pred_fallthru
      _
    // Predicated region
    $region18: #{tpu_custom_call.1} parent=1 // pred_check
      _
    $region19: #{tpu_custom_call.1} parent=1 // pred_check_branch
      %30 = sbr.rel (0) target = $region21
    $region20: #{tpu_custom_call.1} parent=1 // pred_region
      _
    $region21: #{tpu_custom_call.1} parent=1 // pred_fallthru
      _
    // Predicated region
    $region22: #{tpu_custom_call.1} parent=1 // pred_check
      _
    $region23: #{tpu_custom_call.1} parent=1 // pred_check_branch
      %32 = sbr.rel (0) target = $region25
    $region24: #{tpu_custom_call.1} parent=1 // pred_region
      _
    $region25: #{tpu_custom_call.1} parent=1 // pred_fallthru
      _
    // Predicated region
    $region26: #{tpu_custom_call.1} parent=1 // pred_check
      _
    $region27: #{tpu_custom_call.1} parent=1 // pred_check_branch
      %34 = sbr.rel (0) target = $region29
    $region28: #{tpu_custom_call.1} parent=1 // pred_region
      _
    $region29: #{tpu_custom_call.1} parent=1 // pred_fallthru
      _
    // Predicated region
    $region30: #{tpu_custom_call.1} parent=1 // pred_check
      _
    $region31: #{tpu_custom_call.1} parent=1 // pred_check_branch
      %36 = sbr.rel (0) target = $region33
    $region32: #{tpu_custom_call.1} parent=1 // pred_region
      _
    $region33: #{tpu_custom_call.1} parent=1 // pred_fallthru
      _
    // Predicated region
    $region34: #{tpu_custom_call.1} parent=1 // pred_check
      _
    $region35: #{tpu_custom_call.1} parent=1 // pred_check_branch
      %38 = sbr.rel (0) target = $region37
    $region36: #{tpu_custom_call.1} parent=1 // pred_region
      _
    $region37: #{tpu_custom_call.1} parent=1 // pred_fallthru
      _
    // Predicated region
    $region38: #{tpu_custom_call.1} parent=1 // pred_check
      _
    $region39: #{tpu_custom_call.1} parent=1 // pred_check_branch
      %40 = sbr.rel (0) target = $region41
    $region40: #{tpu_custom_call.1} parent=1 // pred_region
      _
    $region41: #{tpu_custom_call.1} parent=1 // pred_fallthru
      _
    // Predicated region
    $region42: #{tpu_custom_call.1} parent=1 // pred_check
      _
    $region43: #{tpu_custom_call.1} parent=1 // pred_check_branch
      %42 = sbr.rel (0) target = $region45
    $region44: #{tpu_custom_call.1} parent=1 // pred_region
      _
    $region45: #{tpu_custom_call.1} parent=1 // pred_fallthru
      _
    // Predicated region
    $region46: #{tpu_custom_call.1} parent=1 // pred_check
      _
    $region47: #{tpu_custom_call.1} parent=1 // pred_check_branch
      %44 = sbr.rel (0) target = $region49
    $region48: #{tpu_custom_call.1} parent=1 // pred_region
      _
    $region49: #{tpu_custom_call.1} parent=1 // pred_fallthru
      _
    // Predicated region
    $region50: #{tpu_custom_call.1} parent=1 // pred_check
      _
    $region51: #{tpu_custom_call.1} parent=1 // pred_check_branch
      %46 = sbr.rel (0) target = $region53
    $region52: #{tpu_custom_call.1} parent=1 // pred_region
      _
    $region53: #{tpu_custom_call.1} parent=1 // pred_fallthru
      _
    // Predicated region
    $region54: #{tpu_custom_call.1} parent=1 // pred_check
      _
    $region55: #{tpu_custom_call.1} parent=1 // pred_check_branch
      %48 = sbr.rel (0) target = $region57
    $region56: #{tpu_custom_call.1} parent=1 // pred_region
      _
    $region57: #{tpu_custom_call.1} parent=1 // pred_fallthru
      _
    // Predicated region
    $region58: #{tpu_custom_call.1} parent=1 // pred_check
      _
    $region59: #{tpu_custom_call.1} parent=1 // pred_check_branch
      %50 = sbr.rel (0) target = $region61
    $region60: #{tpu_custom_call.1} parent=1 // pred_region
      _
    $region61: #{tpu_custom_call.1} parent=1 // pred_fallthru
      _
    %v52 = vld [vmem:[%s2] sm:$0xf]
    %v53 = vld [vmem:[%s2 + $0x4] sm:$0xf]
    %v54 = vld [vmem:[%s2 + $0x8] sm:$0xf]
    %v55 = vld [vmem:[%s2 + $0xc] sm:$0xf]
    %v56 = vld [vmem:[%s0] sm:$0xf]
    %v57 = vld [vmem:[%s0 + $0x4] sm:$0xf]
    %v58 = vld [vmem:[%s0 + $0x8] sm:$0xf]
    %v59 = vld [vmem:[%s0 + $0xc] sm:$0xf]
    %v60 = vld [vmem:[%s0 + $0x10] sm:$0xf]
    %v61 = vld [vmem:[%s0 + $0x14] sm:$0xf]
    %v62 = vld [vmem:[%s0 + $0x18] sm:$0xf]
    %v63 = vld [vmem:[%s0 + $0x1c] sm:$0xf]
    %v64 = vld [vmem:[%s1] sm:$0xf]
    %v65 = vld [vmem:[%s3] sm:$0x1]
    %v67 = vlaneseq
    %v68 = vshrl.u32 %v67, 7
    %v69 = vsub.s32 0, %v68
    %v70 = vrot.slane %v65, %v69
    %v80 = vunpack.c.l.b16 %v56
    %v81 = vunpack.c.l.b16 %v57
    %v82 = vunpack.c.l.b16 %v58
    %v83 = vunpack.c.l.b16 %v59
    %v84 = vunpack.c.l.b16 %v60
    %v85 = vunpack.c.l.b16 %v61
    %v86 = vunpack.c.l.b16 %v62
    %v87 = vunpack.c.l.b16 %v63
    %v88 = vpack.c.b16 %v81, %v80
    %v89 = vpack.c.b16 %v83, %v82
    %v90 = vpack.c.b16 %v85, %v84
    %v91 = vpack.c.b16 %v87, %v86
    %vm92 = vcmask 64512
    %v94 = vsel %vm92, %v88, 0
    %v97 = vsel %vm92, %v89, 0
    %v100 = vsel %vm92, %v90, 0
    %v103 = vsel %vm92, %v91, 0
    %vm105 = vcmask 1043456
    %v107 = vsel %vm105, %v64, 0
    %109 = vmatprep.subr.bf16.mxu0 0
    %110 = vmatpush1.bf16.msra.mxu0 0
    %111 = vmatprep.subr.bf16.mxu0 0
    %112 = vmatpush1.bf16.msra.mxu0 0
    %113 = vmatprep.subr.bf16.mxu0 0
    %114 = vmatpush1.bf16.msra.mxu0 0
    %115 = vmatprep.subr.bf16.mxu0 0
    %116 = vmatpush1.bf16.msra.mxu0 0
    %117 = vmatprep.subr.bf16.mxu0 0
    %118 = vmatpush1.bf16.msra.mxu0 0
    %119 = vmatprep.subr.bf16.mxu0 0
    %120 = vmatpush1.bf16.msra.mxu0 0
    %121 = vmatprep.subr.bf16.mxu0 0
    %122 = vmatpush1.bf16.msra.mxu0 0
    %123 = vmatprep.subr.bf16.mxu0 0
    %124 = vmatpush1.bf16.msra.mxu0 %v107
    %125 = vmatprep.subr.bf16.mxu0 0
    %126 = vmatpush2.bf16.msra.mxu0 0
    %127 = vmatprep.subr.bf16.mxu0 0
    %128 = vmatpush2.bf16.msra.mxu0 0
    %129 = vmatprep.subr.bf16.mxu0 0
    %130 = vmatpush2.bf16.msra.mxu0 0
    %131 = vmatprep.subr.bf16.mxu0 0
    %132 = vmatpush2.bf16.msra.mxu0 0
    %133 = vmatprep.subr.bf16.mxu0 0
    %134 = vmatpush2.bf16.msra.mxu0 0
    %135 = vmatprep.subr.bf16.mxu0 0
    %136 = vmatpush2.bf16.msra.mxu0 0
    %137 = vmatprep.subr.bf16.mxu0 0
    %138 = vmatpush2.bf16.msra.mxu0 0
    %139 = vmatprep.subr.bf16.mxu0 0
    %140 = vmatpush2.bf16.msra.mxu0 0
    %141 = vmatprep.mubr.bf16.mxu0 0
    %142 = vmatmul.mubr.bf16.gmra.mxu0 %v94
    %v143 = vpop.f32.mrf.mxu0
    %v144 = vadd.f32 %v70, %v143
    %v145 = vpop.f32.mrf.mxu0
    %v146 = vpop.f32.mrf.mxu0
    %v147 = vadd.f32 %v70, %v146
    %v148 = vpop.f32.mrf.mxu0
    %149 = vmatprep.mubr.bf16.mxu0 0
    %150 = vmatmul.mubr.bf16.gmra.mxu0 %v97
    %v151 = vpop.f32.mrf.mxu0
    %v152 = vadd.f32 %v70, %v151
    %v153 = vpop.f32.mrf.mxu0
    %v154 = vpop.f32.mrf.mxu0
    %v155 = vadd.f32 %v70, %v154
    %v156 = vpop.f32.mrf.mxu0
    %157 = vmatprep.mubr.bf16.mxu0 0
    %158 = vmatmul.mubr.bf16.gmra.mxu0 %v100
    %v159 = vpop.f32.mrf.mxu0
    %v160 = vadd.f32 %v70, %v159
    %v161 = vpop.f32.mrf.mxu0
    %v162 = vpop.f32.mrf.mxu0
    %v163 = vadd.f32 %v70, %v162
    %v164 = vpop.f32.mrf.mxu0
    %165 = vmatprep.mubr.bf16.mxu0 0
    %166 = vmatmul.mubr.bf16.gmra.mxu0 %v103
    %v167 = vpop.f32.mrf.mxu0
    %v168 = vadd.f32 %v70, %v167
    %v169 = vpop.f32.mrf.mxu0
    %v170 = vpop.f32.mrf.mxu0
    %v171 = vadd.f32 %v70, %v170
    %v172 = vpop.f32.mrf.mxu0
    %173 = vdwg.mxu0
    %174 = vst [vmem:[#allocation4] sm:$0xff] %v144
    %175 = vst [vmem:[#allocation4 + $0x8] sm:$0xff] %v147
    %176 = vst [vmem:[#allocation4 + $0x10] sm:$0xff] %v152
    %177 = vst [vmem:[#allocation4 + $0x18] sm:$0xff] %v155
    %178 = vst [vmem:[#allocation4 + $0x20] sm:$0xff] %v160
    %179 = vst [vmem:[#allocation4 + $0x28] sm:$0xff] %v163
    %180 = vst [vmem:[#allocation4 + $0x30] sm:$0xff] %v168
    %181 = vst [vmem:[#allocation4 + $0x38] sm:$0xff] %v171
    %v182 = vld [vmem:[#allocation4] sm:$0xff]
    %v187 = vunpack.c.l.b16 %v52
    %v188 = vunpack.c.l.b16 %v53
    %v189 = vunpack.c.l.b16 %v54
    %v190 = vunpack.c.l.b16 %v55
    %v191 = vpack.c.b16 %v188, %v187
    %v192 = vpack.c.b16 %v190, %v189
    %vm195 = vcmask 261120
    %v197 = vsel %vm195, 0, 0
    %199 = vmatprep.subr.bf16.mxu0 0
    %200 = vmatpush1.bf16.msra.mxu0 0
    %201 = vmatprep.subr.bf16.mxu0 0
    %202 = vmatpush1.bf16.msra.mxu0 0
    %203 = vmatprep.subr.bf16.mxu0 0
    %204 = vmatpush1.bf16.msra.mxu0 0
    %205 = vmatprep.subr.bf16.mxu0 0
    %206 = vmatpush1.bf16.msra.mxu0 0
    %207 = vmatprep.subr.bf16.mxu0 0
    %208 = vmatpush1.bf16.msra.mxu0 0
    %209 = vmatprep.subr.bf16.mxu0 0
    %210 = vmatpush1.bf16.msra.mxu0 0
    %211 = vmatprep.subr.bf16.mxu0 0
    %212 = vmatpush1.bf16.msra.mxu0 %v192
    %213 = vmatprep.subr.bf16.mxu0 0
    %214 = vmatpush1.bf16.msra.mxu0 %v191
    %215 = vmatprep.subr.bf16.mxu0 0
    %216 = vmatpush2.bf16.msra.mxu0 0
    %217 = vmatprep.subr.bf16.mxu0 0
    %218 = vmatpush2.bf16.msra.mxu0 0
    %219 = vmatprep.subr.bf16.mxu0 0
    %220 = vmatpush2.bf16.msra.mxu0 0
    %221 = vmatprep.subr.bf16.mxu0 0
    %222 = vmatpush2.bf16.msra.mxu0 0
    %223 = vmatprep.subr.bf16.mxu0 0
    %224 = vmatpush2.bf16.msra.mxu0 0
    %225 = vmatprep.subr.bf16.mxu0 0
    %226 = vmatpush2.bf16.msra.mxu0 0
    %227 = vmatprep.subr.bf16.mxu0 0
    %228 = vmatpush2.bf16.msra.mxu0 0
    %229 = vmatprep.subr.bf16.mxu0 0
    %230 = vmatpush2.bf16.msra.mxu0 0
    %231 = vmatprep.mubr.bf16.mxu0 0
    %232 = vmatmul.mubr.bf16.gmra.mxu0 %v197
    %v233 = vpop.f32.mrf.mxu0
    %v234 = vadd.f32 0.0, %v233
    %v235 = vpop.f32.mrf.mxu0
    %v236 = vpop.f32.mrf.mxu0
    %v237 = vpop.f32.mrf.mxu0
    %238 = vdwg.mxu0
    %v239 = vadd.f32 %v182, %v234
    %v240 = vxor.u32 %v239, 2147483648
    %v241 = vmul.f32 %v240, 1.442695
    %v242 = vpow.pop %v241
    %v243 = vadd.f32 %v242, 1.0
    %v244 = vrcp.pop %v243
    %v245 = vmul.f32 1.0, %v244
    %v246 = vtanh.pop %v239
    %v247 = vmul.f32 %v245, 0.0
    %249 = vrot.lane.b32.xlu0 %v246, 64
    %v250 = vpop.permute.xlu0 %249
    %v252 = vmul.f32 %v245, %v250
    %254 = vrot.lane.b32.xlu0 %v252, 32
    %v255 = vpop.permute.xlu0 %254
    %v257 = vadd.f32 %v247, %v255
    %v258 = vtanh.pop %v257
    %260 = vrot.lane.b32.xlu0 %v258, 64
    %v261 = vpop.permute.xlu0 %260
    %v263 = vmul.f32 %v245, %v261
    %v264 = vpack.c.bf16 %v263, %v263
    %v266 = vunpack.c.l.b16 %v264
    %v267 = vpack.c.b16 %v266, %v266
    %268 = vrot.lane.b32.xlu0 %v267, 32
    %v269 = vpop.permute.xlu0 %268
    %vm271 = vcmask 257024
    %272 = vst.msk [vmem:[#allocation3] sm:$0xf] %vm271, %v269
    %s273 = scalar_lea.vmem [#allocation4], 8
    %v274 = vld [vmem:[%s273] sm:$0xff]
    %275 = vrot.lane.b32.xlu0 %v264, 32
    %v276 = vpop.permute.xlu0 %275
    %v278 = vsel %vm195, %v276, 0
    %280 = vmatprep.subr.bf16.mxu0 0
    %281 = vmatpush1.bf16.msra.mxu0 0
    %282 = vmatprep.subr.bf16.mxu0 0
    %283 = vmatpush1.bf16.msra.mxu0 0
    %284 = vmatprep.subr.bf16.mxu0 0
    %285 = vmatpush1.bf16.msra.mxu0 0
    %286 = vmatprep.subr.bf16.mxu0 0
    %287 = vmatpush1.bf16.msra.mxu0 0
    %288 = vmatprep.subr.bf16.mxu0 0
    %289 = vmatpush1.bf16.msra.mxu0 0
    %290 = vmatprep.subr.bf16.mxu0 0
    %291 = vmatpush1.bf16.msra.mxu0 0
    %292 = vmatprep.subr.bf16.mxu0 0
    %293 = vmatpush1.bf16.msra.mxu0 %v192
    %294 = vmatprep.subr.bf16.mxu0 0
    %295 = vmatpush1.bf16.msra.mxu0 %v191
    %296 = vmatprep.subr.bf16.mxu0 0
    %297 = vmatpush2.bf16.msra.mxu0 0
    %298 = vmatprep.subr.bf16.mxu0 0
    %299 = vmatpush2.bf16.msra.mxu0 0
    %300 = vmatprep.subr.bf16.mxu0 0
    %301 = vmatpush2.bf16.msra.mxu0 0
    %302 = vmatprep.subr.bf16.mxu0 0
    %303 = vmatpush2.bf16.msra.mxu0 0
    %304 = vmatprep.subr.bf16.mxu0 0
    %305 = vmatpush2.bf16.msra.mxu0 0
    %306 = vmatprep.subr.bf16.mxu0 0
    %307 = vmatpush2.bf16.msra.mxu0 0
    %308 = vmatprep.subr.bf16.mxu0 0
    %309 = vmatpush2.bf16.msra.mxu0 0
    %310 = vmatprep.subr.bf16.mxu0 0
    %311 = vmatpush2.bf16.msra.mxu0 0
    %312 = vmatprep.mubr.bf16.mxu0 0
    %313 = vmatmul.mubr.bf16.gmra.mxu0 %v278
    %v314 = vpop.f32.mrf.mxu0
    %v315 = vadd.f32 0.0, %v314
    %v316 = vpop.f32.mrf.mxu0
    %v317 = vpop.f32.mrf.mxu0
    %v318 = vpop.f32.mrf.mxu0
    %319 = vdwg.mxu0
    %v320 = vadd.f32 %v274, %v315
    %v321 = vxor.u32 %v320, 2147483648
    %v322 = vmul.f32 %v321, 1.442695
    %v323 = vpow.pop %v322
    %v324 = vadd.f32 %v323, 1.0
    %v325 = vrcp.pop %v324
    %v326 = vmul.f32 1.0, %v325
    %v327 = vtanh.pop %v320
    %v328 = vmul.f32 %v326, %v257
    %330 = vrot.lane.b32.xlu0 %v327, 64
    %v331 = vpop.permute.xlu0 %330
    %v333 = vmul.f32 %v326, %v331
    %335 = vrot.lane.b32.xlu0 %v333, 32
    %v336 = vpop.permute.xlu0 %335
    %v338 = vadd.f32 %v328, %v336
    %v339 = vtanh.pop %v338
    %341 = vrot.lane.b32.xlu0 %v339, 64
    %v342 = vpop.permute.xlu0 %341
    %v344 = vmul.f32 %v326, %v342
    %v345 = vpack.c.bf16 %v344, %v344
    %v347 = vunpack.c.l.b16 %v345
    %v348 = vpack.c.b16 %v347, %v347
    %349 = vrot.lane.b32.xlu0 %v348, 32
    %v350 = vpop.permute.xlu0 %349
    %s352 = scalar_lea.vmem [#allocation3], 4
    %353 = vst.msk [vmem:[%s352] sm:$0xf] %vm271, %v350
    %s354 = scalar_lea.vmem [#allocation4], 16
    %v355 = vld [vmem:[%s354] sm:$0xff]
    %356 = vrot.lane.b32.xlu0 %v345, 32
    %v357 = vpop.permute.xlu0 %356
    %v359 = vsel %vm195, %v357, 0
    %361 = vmatprep.subr.bf16.mxu0 0
    %362 = vmatpush1.bf16.msra.mxu0 0
    %363 = vmatprep.subr.bf16.mxu0 0
    %364 = vmatpush1.bf16.msra.mxu0 0
    %365 = vmatprep.subr.bf16.mxu0 0
    %366 = vmatpush1.bf16.msra.mxu0 0
    %367 = vmatprep.subr.bf16.mxu0 0
    %368 = vmatpush1.bf16.msra.mxu0 0
    %369 = vmatprep.subr.bf16.mxu0 0
    %370 = vmatpush1.bf16.msra.mxu0 0
    %371 = vmatprep.subr.bf16.mxu0 0
    %372 = vmatpush1.bf16.msra.mxu0 0
    %373 = vmatprep.subr.bf16.mxu0 0
    %374 = vmatpush1.bf16.msra.mxu0 %v192
    %375 = vmatprep.subr.bf16.mxu0 0
    %376 = vmatpush1.bf16.msra.mxu0 %v191
    %377 = vmatprep.subr.bf16.mxu0 0
    %378 = vmatpush2.bf16.msra.mxu0 0
    %379 = vmatprep.subr.bf16.mxu0 0
    %380 = vmatpush2.bf16.msra.mxu0 0
    %381 = vmatprep.subr.bf16.mxu0 0
    %382 = vmatpush2.bf16.msra.mxu0 0
    %383 = vmatprep.subr.bf16.mxu0 0
    %384 = vmatpush2.bf16.msra.mxu0 0
    %385 = vmatprep.subr.bf16.mxu0 0
    %386 = vmatpush2.bf16.msra.mxu0 0
    %387 = vmatprep.subr.bf16.mxu0 0
    %388 = vmatpush2.bf16.msra.mxu0 0
    %389 = vmatprep.subr.bf16.mxu0 0
    %390 = vmatpush2.bf16.msra.mxu0 0
    %391 = vmatprep.subr.bf16.mxu0 0
    %392 = vmatpush2.bf16.msra.mxu0 0
    %393 = vmatprep.mubr.bf16.mxu0 0
    %394 = vmatmul.mubr.bf16.gmra.mxu0 %v359
    %v395 = vpop.f32.mrf.mxu0
    %v396 = vadd.f32 0.0, %v395
    %v397 = vpop.f32.mrf.mxu0
    %v398 = vpop.f32.mrf.mxu0
    %v399 = vpop.f32.mrf.mxu0
    %400 = vdwg.mxu0
    %v401 = vadd.f32 %v355, %v396
    %v402 = vxor.u32 %v401, 2147483648
    %v403 = vmul.f32 %v402, 1.442695
    %v404 = vpow.pop %v403
    %v405 = vadd.f32 %v404, 1.0
    %v406 = vrcp.pop %v405
    %v407 = vmul.f32 1.0, %v406
    %v408 = vtanh.pop %v401
    %v409 = vmul.f32 %v407, %v338
    %411 = vrot.lane.b32.xlu0 %v408, 64
    %v412 = vpop.permute.xlu0 %411
    %v414 = vmul.f32 %v407, %v412
    %416 = vrot.lane.b32.xlu0 %v414, 32
    %v417 = vpop.permute.xlu0 %416
    %v419 = vadd.f32 %v409, %v417
    %v420 = vtanh.pop %v419
    %422 = vrot.lane.b32.xlu0 %v420, 64
    %v423 = vpop.permute.xlu0 %422
    %v425 = vmul.f32 %v407, %v423
    %v426 = vpack.c.bf16 %v425, %v425
    %v428 = vunpack.c.l.b16 %v426
    %v429 = vpack.c.b16 %v428, %v428
    %430 = vrot.lane.b32.xlu0 %v429, 32
    %v431 = vpop.permute.xlu0 %430
    %s433 = scalar_lea.vmem [#allocation3], 8
    %434 = vst.msk [vmem:[%s433] sm:$0xf] %vm271, %v431
    %s435 = scalar_lea.vmem [#allocation4], 24
    %v436 = vld [vmem:[%s435] sm:$0xff]
    %437 = vrot.lane.b32.xlu0 %v426, 32
    %v438 = vpop.permute.xlu0 %437
    %v440 = vsel %vm195, %v438, 0
    %442 = vmatprep.subr.bf16.mxu0 0
    %443 = vmatpush1.bf16.msra.mxu0 0
    %444 = vmatprep.subr.bf16.mxu0 0
    %445 = vmatpush1.bf16.msra.mxu0 0
    %446 = vmatprep.subr.bf16.mxu0 0
    %447 = vmatpush1.bf16.msra.mxu0 0
    %448 = vmatprep.subr.bf16.mxu0 0
    %449 = vmatpush1.bf16.msra.mxu0 0
    %450 = vmatprep.subr.bf16.mxu0 0
    %451 = vmatpush1.bf16.msra.mxu0 0
    %452 = vmatprep.subr.bf16.mxu0 0
    %453 = vmatpush1.bf16.msra.mxu0 0
    %454 = vmatprep.subr.bf16.mxu0 0
    %455 = vmatpush1.bf16.msra.mxu0 %v192
    %456 = vmatprep.subr.bf16.mxu0 0
    %457 = vmatpush1.bf16.msra.mxu0 %v191
    %458 = vmatprep.subr.bf16.mxu0 0
    %459 = vmatpush2.bf16.msra.mxu0 0
    %460 = vmatprep.subr.bf16.mxu0 0
    %461 = vmatpush2.bf16.msra.mxu0 0
    %462 = vmatprep.subr.bf16.mxu0 0
    %463 = vmatpush2.bf16.msra.mxu0 0
    %464 = vmatprep.subr.bf16.mxu0 0
    %465 = vmatpush2.bf16.msra.mxu0 0
    %466 = vmatprep.subr.bf16.mxu0 0
    %467 = vmatpush2.bf16.msra.mxu0 0
    %468 = vmatprep.subr.bf16.mxu0 0
    %469 = vmatpush2.bf16.msra.mxu0 0
    %470 = vmatprep.subr.bf16.mxu0 0
    %471 = vmatpush2.bf16.msra.mxu0 0
    %472 = vmatprep.subr.bf16.mxu0 0
    %473 = vmatpush2.bf16.msra.mxu0 0
    %474 = vmatprep.mubr.bf16.mxu0 0
    %475 = vmatmul.mubr.bf16.gmra.mxu0 %v440
    %v476 = vpop.f32.mrf.mxu0
    %v477 = vadd.f32 0.0, %v476
    %v478 = vpop.f32.mrf.mxu0
    %v479 = vpop.f32.mrf.mxu0
    %v480 = vpop.f32.mrf.mxu0
    %481 = vdwg.mxu0
    %v482 = vadd.f32 %v436, %v477
    %v483 = vxor.u32 %v482, 2147483648
    %v484 = vmul.f32 %v483, 1.442695
    %v485 = vpow.pop %v484
    %v486 = vadd.f32 %v485, 1.0
    %v487 = vrcp.pop %v486
    %v488 = vmul.f32 1.0, %v487
    %v489 = vtanh.pop %v482
    %v490 = vmul.f32 %v488, %v419
    %492 = vrot.lane.b32.xlu0 %v489, 64
    %v493 = vpop.permute.xlu0 %492
    %v495 = vmul.f32 %v488, %v493
    %497 = vrot.lane.b32.xlu0 %v495, 32
    %v498 = vpop.permute.xlu0 %497
    %v500 = vadd.f32 %v490, %v498
    %v501 = vtanh.pop %v500
    %503 = vrot.lane.b32.xlu0 %v501, 64
    %v504 = vpop.permute.xlu0 %503
    %v506 = vmul.f32 %v488, %v504
    %v507 = vpack.c.bf16 %v506, %v506
    %v509 = vunpack.c.l.b16 %v507
    %v510 = vpack.c.b16 %v509, %v509
    %511 = vrot.lane.b32.xlu0 %v510, 32
    %v512 = vpop.permute.xlu0 %511
    %s514 = scalar_lea.vmem [#allocation3], 12
    %515 = vst.msk [vmem:[%s514] sm:$0xf] %vm271, %v512
    %s516 = scalar_lea.vmem [#allocation4], 32
    %v517 = vld [vmem:[%s516] sm:$0xff]
    %518 = vrot.lane.b32.xlu0 %v507, 32
    %v519 = vpop.permute.xlu0 %518
    %v521 = vsel %vm195, %v519, 0
    %523 = vmatprep.subr.bf16.mxu0 0
    %524 = vmatpush1.bf16.msra.mxu0 0
    %525 = vmatprep.subr.bf16.mxu0 0
    %526 = vmatpush1.bf16.msra.mxu0 0
    %527 = vmatprep.subr.bf16.mxu0 0
    %528 = vmatpush1.bf16.msra.mxu0 0
    %529 = vmatprep.subr.bf16.mxu0 0
    %530 = vmatpush1.bf16.msra.mxu0 0
    %531 = vmatprep.subr.bf16.mxu0 0
    %532 = vmatpush1.bf16.msra.mxu0 0
    %533 = vmatprep.subr.bf16.mxu0 0
    %534 = vmatpush1.bf16.msra.mxu0 0
    %535 = vmatprep.subr.bf16.mxu0 0
    %536 = vmatpush1.bf16.msra.mxu0 %v192
    %537 = vmatprep.subr.bf16.mxu0 0
    %538 = vmatpush1.bf16.msra.mxu0 %v191
    %539 = vmatprep.subr.bf16.mxu0 0
    %540 = vmatpush2.bf16.msra.mxu0 0
    %541 = vmatprep.subr.bf16.mxu0 0
    %542 = vmatpush2.bf16.msra.mxu0 0
    %543 = vmatprep.subr.bf16.mxu0 0
    %544 = vmatpush2.bf16.msra.mxu0 0
    %545 = vmatprep.subr.bf16.mxu0 0
    %546 = vmatpush2.bf16.msra.mxu0 0
    %547 = vmatprep.subr.bf16.mxu0 0
    %548 = vmatpush2.bf16.msra.mxu0 0
    %549 = vmatprep.subr.bf16.mxu0 0
    %550 = vmatpush2.bf16.msra.mxu0 0
    %551 = vmatprep.subr.bf16.mxu0 0
    %552 = vmatpush2.bf16.msra.mxu0 0
    %553 = vmatprep.subr.bf16.mxu0 0
    %554 = vmatpush2.bf16.msra.mxu0 0
    %555 = vmatprep.mubr.bf16.mxu0 0
    %556 = vmatmul.mubr.bf16.gmra.mxu0 %v521
    %v557 = vpop.f32.mrf.mxu0
    %v558 = vadd.f32 0.0, %v557
    %v559 = vpop.f32.mrf.mxu0
    %v560 = vpop.f32.mrf.mxu0
    %v561 = vpop.f32.mrf.mxu0
    %562 = vdwg.mxu0
    %v563 = vadd.f32 %v517, %v558
    %v564 = vxor.u32 %v563, 2147483648
    %v565 = vmul.f32 %v564, 1.442695
    %v566 = vpow.pop %v565
    %v567 = vadd.f32 %v566, 1.0
    %v568 = vrcp.pop %v567
    %v569 = vmul.f32 1.0, %v568
    %v570 = vtanh.pop %v563
    %v571 = vmul.f32 %v569, %v500
    %573 = vrot.lane.b32.xlu0 %v570, 64
    %v574 = vpop.permute.xlu0 %573
    %v576 = vmul.f32 %v569, %v574
    %578 = vrot.lane.b32.xlu0 %v576, 32
    %v579 = vpop.permute.xlu0 %578
    %v581 = vadd.f32 %v571, %v579
    %v582 = vtanh.pop %v581
    %584 = vrot.lane.b32.xlu0 %v582, 64
    %v585 = vpop.permute.xlu0 %584
    %v587 = vmul.f32 %v569, %v585
    %v588 = vpack.c.bf16 %v587, %v587
    %v590 = vunpack.c.l.b16 %v588
    %v591 = vpack.c.b16 %v590, %v590
    %592 = vrot.lane.b32.xlu0 %v591, 32
    %v593 = vpop.permute.xlu0 %592
    %s595 = scalar_lea.vmem [#allocation3], 16
    %596 = vst.msk [vmem:[%s595] sm:$0xf] %vm271, %v593
    %s597 = scalar_lea.vmem [#allocation4], 40
    %v598 = vld [vmem:[%s597] sm:$0xff]
    %599 = vrot.lane.b32.xlu0 %v588, 32
    %v600 = vpop.permute.xlu0 %599
    %v602 = vsel %vm195, %v600, 0
    %604 = vmatprep.subr.bf16.mxu0 0
    %605 = vmatpush1.bf16.msra.mxu0 0
    %606 = vmatprep.subr.bf16.mxu0 0
    %607 = vmatpush1.bf16.msra.mxu0 0
    %608 = vmatprep.subr.bf16.mxu0 0
    %609 = vmatpush1.bf16.msra.mxu0 0
    %610 = vmatprep.subr.bf16.mxu0 0
    %611 = vmatpush1.bf16.msra.mxu0 0
    %612 = vmatprep.subr.bf16.mxu0 0
    %613 = vmatpush1.bf16.msra.mxu0 0
    %614 = vmatprep.subr.bf16.mxu0 0
    %615 = vmatpush1.bf16.msra.mxu0 0
    %616 = vmatprep.subr.bf16.mxu0 0
    %617 = vmatpush1.bf16.msra.mxu0 %v192
    %618 = vmatprep.subr.bf16.mxu0 0
    %619 = vmatpush1.bf16.msra.mxu0 %v191
    %620 = vmatprep.subr.bf16.mxu0 0
    %621 = vmatpush2.bf16.msra.mxu0 0
    %622 = vmatprep.subr.bf16.mxu0 0
    %623 = vmatpush2.bf16.msra.mxu0 0
    %624 = vmatprep.subr.bf16.mxu0 0
    %625 = vmatpush2.bf16.msra.mxu0 0
    %626 = vmatprep.subr.bf16.mxu0 0
    %627 = vmatpush2.bf16.msra.mxu0 0
    %628 = vmatprep.subr.bf16.mxu0 0
    %629 = vmatpush2.bf16.msra.mxu0 0
    %630 = vmatprep.subr.bf16.mxu0 0
    %631 = vmatpush2.bf16.msra.mxu0 0
    %632 = vmatprep.subr.bf16.mxu0 0
    %633 = vmatpush2.bf16.msra.mxu0 0
    %634 = vmatprep.subr.bf16.mxu0 0
    %635 = vmatpush2.bf16.msra.mxu0 0
    %636 = vmatprep.mubr.bf16.mxu0 0
    %637 = vmatmul.mubr.bf16.gmra.mxu0 %v602
    %v638 = vpop.f32.mrf.mxu0
    %v639 = vadd.f32 0.0, %v638
    %v640 = vpop.f32.mrf.mxu0
    %v641 = vpop.f32.mrf.mxu0
    %v642 = vpop.f32.mrf.mxu0
    %643 = vdwg.mxu0
    %v644 = vadd.f32 %v598, %v639
    %v645 = vxor.u32 %v644, 2147483648
    %v646 = vmul.f32 %v645, 1.442695
    %v647 = vpow.pop %v646
    %v648 = vadd.f32 %v647, 1.0
    %v649 = vrcp.pop %v648
    %v650 = vmul.f32 1.0, %v649
    %v651 = vtanh.pop %v644
    %v652 = vmul.f32 %v650, %v581
    %654 = vrot.lane.b32.xlu0 %v651, 64
    %v655 = vpop.permute.xlu0 %654
    %v657 = vmul.f32 %v650, %v655
    %659 = vrot.lane.b32.xlu0 %v657, 32
    %v660 = vpop.permute.xlu0 %659
    %v662 = vadd.f32 %v652, %v660
    %v663 = vtanh.pop %v662
    %665 = vrot.lane.b32.xlu0 %v663, 64
    %v666 = vpop.permute.xlu0 %665
    %v668 = vmul.f32 %v650, %v666
    %v669 = vpack.c.bf16 %v668, %v668
    %v671 = vunpack.c.l.b16 %v669
    %v672 = vpack.c.b16 %v671, %v671
    %673 = vrot.lane.b32.xlu0 %v672, 32
    %v674 = vpop.permute.xlu0 %673
    %s676 = scalar_lea.vmem [#allocation3], 20
    %677 = vst.msk [vmem:[%s676] sm:$0xf] %vm271, %v674
    %s678 = scalar_lea.vmem [#allocation4], 48
    %v679 = vld [vmem:[%s678] sm:$0xff]
    %680 = vrot.lane.b32.xlu0 %v669, 32
    %v681 = vpop.permute.xlu0 %680
    %v683 = vsel %vm195, %v681, 0
    %685 = vmatprep.subr.bf16.mxu0 0
    %686 = vmatpush1.bf16.msra.mxu0 0
    %687 = vmatprep.subr.bf16.mxu0 0
    %688 = vmatpush1.bf16.msra.mxu0 0
    %689 = vmatprep.subr.bf16.mxu0 0
    %690 = vmatpush1.bf16.msra.mxu0 0
    %691 = vmatprep.subr.bf16.mxu0 0
    %692 = vmatpush1.bf16.msra.mxu0 0
    %693 = vmatprep.subr.bf16.mxu0 0
    %694 = vmatpush1.bf16.msra.mxu0 0
    %695 = vmatprep.subr.bf16.mxu0 0
    %696 = vmatpush1.bf16.msra.mxu0 0
    %697 = vmatprep.subr.bf16.mxu0 0
    %698 = vmatpush1.bf16.msra.mxu0 %v192
    %699 = vmatprep.subr.bf16.mxu0 0
    %700 = vmatpush1.bf16.msra.mxu0 %v191
    %701 = vmatprep.subr.bf16.mxu0 0
    %702 = vmatpush2.bf16.msra.mxu0 0
    %703 = vmatprep.subr.bf16.mxu0 0
    %704 = vmatpush2.bf16.msra.mxu0 0
    %705 = vmatprep.subr.bf16.mxu0 0
    %706 = vmatpush2.bf16.msra.mxu0 0
    %707 = vmatprep.subr.bf16.mxu0 0
    %708 = vmatpush2.bf16.msra.mxu0 0
    %709 = vmatprep.subr.bf16.mxu0 0
    %710 = vmatpush2.bf16.msra.mxu0 0
    %711 = vmatprep.subr.bf16.mxu0 0
    %712 = vmatpush2.bf16.msra.mxu0 0
    %713 = vmatprep.subr.bf16.mxu0 0
    %714 = vmatpush2.bf16.msra.mxu0 0
    %715 = vmatprep.subr.bf16.mxu0 0
    %716 = vmatpush2.bf16.msra.mxu0 0
    %717 = vmatprep.mubr.bf16.mxu0 0
    %718 = vmatmul.mubr.bf16.gmra.mxu0 %v683
    %v719 = vpop.f32.mrf.mxu0
    %v720 = vadd.f32 0.0, %v719
    %v721 = vpop.f32.mrf.mxu0
    %v722 = vpop.f32.mrf.mxu0
    %v723 = vpop.f32.mrf.mxu0
    %724 = vdwg.mxu0
    %v725 = vadd.f32 %v679, %v720
    %v726 = vxor.u32 %v725, 2147483648
    %v727 = vmul.f32 %v726, 1.442695
    %v728 = vpow.pop %v727
    %v729 = vadd.f32 %v728, 1.0
    %v730 = vrcp.pop %v729
    %v731 = vmul.f32 1.0, %v730
    %v732 = vtanh.pop %v725
    %v733 = vmul.f32 %v731, %v662
    %735 = vrot.lane.b32.xlu0 %v732, 64
    %v736 = vpop.permute.xlu0 %735
    %v738 = vmul.f32 %v731, %v736
    %740 = vrot.lane.b32.xlu0 %v738, 32
    %v741 = vpop.permute.xlu0 %740
    %v743 = vadd.f32 %v733, %v741
    %v744 = vtanh.pop %v743
    %746 = vrot.lane.b32.xlu0 %v744, 64
    %v747 = vpop.permute.xlu0 %746
    %v749 = vmul.f32 %v731, %v747
    %v750 = vpack.c.bf16 %v749, %v749
    %v752 = vunpack.c.l.b16 %v750
    %v753 = vpack.c.b16 %v752, %v752
    %754 = vrot.lane.b32.xlu0 %v753, 32
    %v755 = vpop.permute.xlu0 %754
    %s757 = scalar_lea.vmem [#allocation3], 24
    %758 = vst.msk [vmem:[%s757] sm:$0xf] %vm271, %v755
    %s759 = scalar_lea.vmem [#allocation4], 56
    %v760 = vld [vmem:[%s759] sm:$0xff]
    %761 = vrot.lane.b32.xlu0 %v750, 32
    %v762 = vpop.permute.xlu0 %761
    %v764 = vsel %vm195, %v762, 0
    %766 = vmatprep.subr.bf16.mxu0 0
    %767 = vmatpush1.bf16.msra.mxu0 0
    %768 = vmatprep.subr.bf16.mxu0 0
    %769 = vmatpush1.bf16.msra.mxu0 0
    %770 = vmatprep.subr.bf16.mxu0 0
    %771 = vmatpush1.bf16.msra.mxu0 0
    %772 = vmatprep.subr.bf16.mxu0 0
    %773 = vmatpush1.bf16.msra.mxu0 0
    %774 = vmatprep.subr.bf16.mxu0 0
    %775 = vmatpush1.bf16.msra.mxu0 0
    %776 = vmatprep.subr.bf16.mxu0 0
    %777 = vmatpush1.bf16.msra.mxu0 0
    %778 = vmatprep.subr.bf16.mxu0 0
    %779 = vmatpush1.bf16.msra.mxu0 %v192
    %780 = vmatprep.subr.bf16.mxu0 0
    %781 = vmatpush1.bf16.msra.mxu0 %v191
    %782 = vmatprep.subr.bf16.mxu0 0
    %783 = vmatpush2.bf16.msra.mxu0 0
    %784 = vmatprep.subr.bf16.mxu0 0
    %785 = vmatpush2.bf16.msra.mxu0 0
    %786 = vmatprep.subr.bf16.mxu0 0
    %787 = vmatpush2.bf16.msra.mxu0 0
    %788 = vmatprep.subr.bf16.mxu0 0
    %789 = vmatpush2.bf16.msra.mxu0 0
    %790 = vmatprep.subr.bf16.mxu0 0
    %791 = vmatpush2.bf16.msra.mxu0 0
    %792 = vmatprep.subr.bf16.mxu0 0
    %793 = vmatpush2.bf16.msra.mxu0 0
    %794 = vmatprep.subr.bf16.mxu0 0
    %795 = vmatpush2.bf16.msra.mxu0 0
    %796 = vmatprep.subr.bf16.mxu0 0
    %797 = vmatpush2.bf16.msra.mxu0 0
    %798 = vmatprep.mubr.bf16.mxu0 0
    %799 = vmatmul.mubr.bf16.gmra.mxu0 %v764
    %v800 = vpop.f32.mrf.mxu0
    %v801 = vadd.f32 0.0, %v800
    %v802 = vpop.f32.mrf.mxu0
    %v803 = vpop.f32.mrf.mxu0
    %v804 = vpop.f32.mrf.mxu0
    %805 = vdwg.mxu0
    %v806 = vadd.f32 %v760, %v801
    %v807 = vxor.u32 %v806, 2147483648
    %v808 = vmul.f32 %v807, 1.442695
    %v809 = vpow.pop %v808
    %v810 = vadd.f32 %v809, 1.0
    %v811 = vrcp.pop %v810
    %v812 = vmul.f32 1.0, %v811
    %v813 = vtanh.pop %v806
    %v814 = vmul.f32 %v812, %v743
    %816 = vrot.lane.b32.xlu0 %v813, 64
    %v817 = vpop.permute.xlu0 %816
    %v819 = vmul.f32 %v812, %v817
    %821 = vrot.lane.b32.xlu0 %v819, 32
    %v822 = vpop.permute.xlu0 %821
    %v824 = vadd.f32 %v814, %v822
    %v825 = vtanh.pop %v824
    %827 = vrot.lane.b32.xlu0 %v825, 64
    %v828 = vpop.permute.xlu0 %827
    %v830 = vmul.f32 %v812, %v828
    %v831 = vpack.c.bf16 %v830, %v830
    %v833 = vunpack.c.l.b16 %v831
    %v834 = vpack.c.b16 %v833, %v833
    %835 = vrot.lane.b32.xlu0 %v834, 32
    %v836 = vpop.permute.xlu0 %835
    %s838 = scalar_lea.vmem [#allocation3], 28
    %839 = vst.msk [vmem:[%s838] sm:$0xf] %vm271, %v836
    %v840 = vld [vmem:[%s4] sm:$0x1]
    %v841 = vld [vmem:[%s5] sm:$0x1]
    %v842 = vld [vmem:[#allocation3] sm:$0xf]
    %v843 = vld [vmem:[#allocation3 + $0x4] sm:$0xf]
    %v844 = vld [vmem:[#allocation3 + $0x8] sm:$0xf]
    %v845 = vld [vmem:[#allocation3 + $0xc] sm:$0xf]
    %v846 = vld [vmem:[#allocation3 + $0x10] sm:$0xf]
    %v847 = vld [vmem:[#allocation3 + $0x14] sm:$0xf]
    %v848 = vld [vmem:[#allocation3 + $0x18] sm:$0xf]
    %v849 = vld [vmem:[#allocation3 + $0x1c] sm:$0xf]
    %v850 = vunpack.c.l.bf16 %v842
    %v851 = vunpack.c.l.bf16 %v843
    %v852 = vunpack.c.l.bf16 %v844
    %v853 = vunpack.c.l.bf16 %v845
    %v854 = vunpack.c.l.bf16 %v846
    %v855 = vunpack.c.l.bf16 %v847
    %v856 = vunpack.c.l.bf16 %v848
    %v857 = vunpack.c.l.bf16 %v849
    %v858 = vsel %vm195, %v850, 0.0
    %859 = vadd.xlane.f32.xlu0 %v858
    %v860 = vpop.xlane.xlu0 %859
    %v861 = vsel %vm195, %v851, 0.0
    %862 = vadd.xlane.f32.xlu0 %v861
    %v863 = vpop.xlane.xlu0 %862
    %v864 = vsel %vm195, %v852, 0.0
    %865 = vadd.xlane.f32.xlu0 %v864
    %v866 = vpop.xlane.xlu0 %865
    %v867 = vsel %vm195, %v853, 0.0
    %868 = vadd.xlane.f32.xlu0 %v867
    %v869 = vpop.xlane.xlu0 %868
    %v870 = vsel %vm195, %v854, 0.0
    %871 = vadd.xlane.f32.xlu0 %v870
    %v872 = vpop.xlane.xlu0 %871
    %v873 = vsel %vm195, %v855, 0.0
    %874 = vadd.xlane.f32.xlu0 %v873
    %v875 = vpop.xlane.xlu0 %874
    %v876 = vsel %vm195, %v856, 0.0
    %877 = vadd.xlane.f32.xlu0 %v876
    %v878 = vpop.xlane.xlu0 %877
    %v879 = vsel %vm195, %v857, 0.0
    %880 = vadd.xlane.f32.xlu0 %v879
    %v881 = vpop.xlane.xlu0 %880
    %v882 = vrcp.pop 32.0
    %v883 = vmul.f32 %v860, %v882
    %v884 = vmul.f32 %v863, %v882
    %v885 = vmul.f32 %v866, %v882
    %v886 = vmul.f32 %v869, %v882
    %v887 = vmul.f32 %v872, %v882
    %v888 = vmul.f32 %v875, %v882
    %v889 = vmul.f32 %v878, %v882
    %v890 = vmul.f32 %v881, %v882
    %v891 = vsub.f32 %v850, %v883
    %v892 = vsub.f32 %v851, %v884
    %v893 = vsub.f32 %v852, %v885
    %v894 = vsub.f32 %v853, %v886
    %v895 = vsub.f32 %v854, %v887
    %v896 = vsub.f32 %v855, %v888
    %v897 = vsub.f32 %v856, %v889
    %v898 = vsub.f32 %v857, %v890
    %v899 = vmul.f32 %v891, %v891
    %v900 = vmul.f32 %v892, %v892
    %v901 = vmul.f32 %v893, %v893
    %v902 = vmul.f32 %v894, %v894
    %v903 = vmul.f32 %v895, %v895
    %v904 = vmul.f32 %v896, %v896
    %v905 = vmul.f32 %v897, %v897
    %v906 = vmul.f32 %v898, %v898
    %v907 = vsel %vm195, %v899, 0.0
    %908 = vadd.xlane.f32.xlu0 %v907
    %v909 = vpop.xlane.xlu0 %908
    %v910 = vsel %vm195, %v900, 0.0
    %911 = vadd.xlane.f32.xlu0 %v910
    %v912 = vpop.xlane.xlu0 %911
    %v913 = vsel %vm195, %v901, 0.0
    %914 = vadd.xlane.f32.xlu0 %v913
    %v915 = vpop.xlane.xlu0 %914
    %v916 = vsel %vm195, %v902, 0.0
    %917 = vadd.xlane.f32.xlu0 %v916
    %v918 = vpop.xlane.xlu0 %917
    %v919 = vsel %vm195, %v903, 0.0
    %920 = vadd.xlane.f32.xlu0 %v919
    %v921 = vpop.xlane.xlu0 %920
    %v922 = vsel %vm195, %v904, 0.0
    %923 = vadd.xlane.f32.xlu0 %v922
    %v924 = vpop.xlane.xlu0 %923
    %v925 = vsel %vm195, %v905, 0.0
    %926 = vadd.xlane.f32.xlu0 %v925
    %v927 = vpop.xlane.xlu0 %926
    %v928 = vsel %vm195, %v906, 0.0
    %929 = vadd.xlane.f32.xlu0 %v928
    %v930 = vpop.xlane.xlu0 %929
    %v931 = vmul.f32 %v909, %v882
    %v932 = vmul.f32 %v912, %v882
    %v933 = vmul.f32 %v915, %v882
    %v934 = vmul.f32 %v918, %v882
    %v935 = vmul.f32 %v921, %v882
    %v936 = vmul.f32 %v924, %v882
    %v937 = vmul.f32 %v927, %v882
    %v938 = vmul.f32 %v930, %v882
    %v939 = vadd.f32 %v931, 1e-05
    %v940 = vadd.f32 %v932, 1e-05
    %v941 = vadd.f32 %v933, 1e-05
    %v942 = vadd.f32 %v934, 1e-05
    %v943 = vadd.f32 %v935, 1e-05
    %v944 = vadd.f32 %v936, 1e-05
    %v945 = vadd.f32 %v937, 1e-05
    %v946 = vadd.f32 %v938, 1e-05
    %v947 = vrsqrt.pop %v939
    %v948 = vrsqrt.pop %v940
    %v949 = vrsqrt.pop %v941
    %v950 = vrsqrt.pop %v942
    %v951 = vrsqrt.pop %v943
    %v952 = vrsqrt.pop %v944
    %v953 = vrsqrt.pop %v945
    %v954 = vrsqrt.pop %v946
    %v955 = vmul.f32 %v891, %v947
    %v956 = vmul.f32 %v892, %v948
    %v957 = vmul.f32 %v893, %v949
    %v958 = vmul.f32 %v894, %v950
    %v959 = vmul.f32 %v895, %v951
    %v960 = vmul.f32 %v896, %v952
    %v961 = vmul.f32 %v897, %v953
    %v962 = vmul.f32 %v898, %v954
    %v964 = vlaneseq
    %v965 = vshrl.u32 %v964, 7
    %v966 = vsub.s32 0, %v965
    %v967 = vrot.slane %v840, %v966
    %v969 = vmul.f32 %v955, %v967
    %v970 = vmul.f32 %v956, %v967
    %v971 = vmul.f32 %v957, %v967
    %v972 = vmul.f32 %v958, %v967
    %v973 = vmul.f32 %v959, %v967
    %v974 = vmul.f32 %v960, %v967
    %v975 = vmul.f32 %v961, %v967
    %v976 = vmul.f32 %v962, %v967
    %v978 = vlaneseq
    %v979 = vshrl.u32 %v978, 7
    %v980 = vsub.s32 0, %v979
    %v981 = vrot.slane %v841, %v980
    %v983 = vadd.f32 %v969, %v981
    %v984 = vadd.f32 %v970, %v981
    %v985 = vadd.f32 %v971, %v981
    %v986 = vadd.f32 %v972, %v981
    %v987 = vadd.f32 %v973, %v981
    %v988 = vadd.f32 %v974, %v981
    %v989 = vadd.f32 %v975, %v981
    %v990 = vadd.f32 %v976, %v981
    %v991 = vpack.c.bf16 %v983, %v983
    %v992 = vpack.c.bf16 %v984, %v984
    %v993 = vpack.c.bf16 %v985, %v985
    %v994 = vpack.c.bf16 %v986, %v986
    %v995 = vpack.c.bf16 %v987, %v987
    %v996 = vpack.c.bf16 %v988, %v988
    %v997 = vpack.c.bf16 %v989, %v989
    %v998 = vpack.c.bf16 %v990, %v990
    %999 = vst.msk [vmem:[#allocation2] sm:$0xf] %vm271, %v991
    %1000 = vst.msk [vmem:[#allocation2 + $0x4] sm:$0xf] %vm271, %v992
    %1001 = vst.msk [vmem:[#allocation2 + $0x8] sm:$0xf] %vm271, %v993
    %1002 = vst.msk [vmem:[#allocation2 + $0xc] sm:$0xf] %vm271, %v994
    %1003 = vst.msk [vmem:[#allocation2 + $0x10] sm:$0xf] %vm271, %v995
    %1004 = vst.msk [vmem:[#allocation2 + $0x14] sm:$0xf] %vm271, %v996
    %1005 = vst.msk [vmem:[#allocation2 + $0x18] sm:$0xf] %vm271, %v997
    %1006 = vst.msk [vmem:[#allocation2 + $0x1c] sm:$0xf] %vm271, %v998
    %v1007 = vld [vmem:[%s7] sm:$0xf]
    %v1008 = vld [vmem:[%s7 + $0x4] sm:$0xf]
    %v1009 = vld [vmem:[%s7 + $0x8] sm:$0xf]
    %v1010 = vld [vmem:[%s7 + $0xc] sm:$0xf]
    %v1011 = vld [vmem:[#allocation2] sm:$0xf]
    %v1012 = vld [vmem:[#allocation2 + $0x4] sm:$0xf]
    %v1013 = vld [vmem:[#allocation2 + $0x8] sm:$0xf]
    %v1014 = vld [vmem:[#allocation2 + $0xc] sm:$0xf]
    %v1015 = vld [vmem:[#allocation2 + $0x10] sm:$0xf]
    %v1016 = vld [vmem:[#allocation2 + $0x14] sm:$0xf]
    %v1017 = vld [vmem:[#allocation2 + $0x18] sm:$0xf]
    %v1018 = vld [vmem:[#allocation2 + $0x1c] sm:$0xf]
    %v1019 = vld [vmem:[%s6] sm:$0xf]
    %v1020 = vld [vmem:[%s6 + $0x4] sm:$0xf]
    %v1021 = vld [vmem:[%s6 + $0x8] sm:$0xf]
    %v1022 = vld [vmem:[%s6 + $0xc] sm:$0xf]
    %v1023 = vld [vmem:[%s8] sm:$0x1]
    %v1025 = vlaneseq
    %v1026 = vshrl.u32 %v1025, 7
    %v1027 = vsub.s32 0, %v1026
    %v1028 = vrot.slane %v1023, %v1027
    %v1038 = vunpack.c.l.b16 %v1011
    %v1039 = vunpack.c.l.b16 %v1012
    %v1040 = vunpack.c.l.b16 %v1013
    %v1041 = vunpack.c.l.b16 %v1014
    %v1042 = vunpack.c.l.b16 %v1015
    %v1043 = vunpack.c.l.b16 %v1016
    %v1044 = vunpack.c.l.b16 %v1017
    %v1045 = vunpack.c.l.b16 %v1018
    %v1046 = vpack.c.b16 %v1039, %v1038
    %v1047 = vpack.c.b16 %v1041, %v1040
    %v1048 = vpack.c.b16 %v1043, %v1042
    %v1049 = vpack.c.b16 %v1045, %v1044
    %v1054 = vunpack.c.l.b16 %v1019
    %v1055 = vunpack.c.l.b16 %v1020
    %v1056 = vunpack.c.l.b16 %v1021
    %v1057 = vunpack.c.l.b16 %v1022
    %v1058 = vpack.c.b16 %v1055, %v1054
    %v1059 = vpack.c.b16 %v1057, %v1056
    %v1063 = vsel %vm195, %v1046, 0
    %v1066 = vsel %vm195, %v1047, 0
    %v1069 = vsel %vm195, %v1048, 0
    %v1072 = vsel %vm195, %v1049, 0
    %1074 = vmatprep.subr.bf16.mxu0 0
    %1075 = vmatpush1.bf16.msra.mxu0 0
    %1076 = vmatprep.subr.bf16.mxu0 0
    %1077 = vmatpush1.bf16.msra.mxu0 0
    %1078 = vmatprep.subr.bf16.mxu0 0
    %1079 = vmatpush1.bf16.msra.mxu0 0
    %1080 = vmatprep.subr.bf16.mxu0 0
    %1081 = vmatpush1.bf16.msra.mxu0 0
    %1082 = vmatprep.subr.bf16.mxu0 0
    %1083 = vmatpush1.bf16.msra.mxu0 0
    %1084 = vmatprep.subr.bf16.mxu0 0
    %1085 = vmatpush1.bf16.msra.mxu0 0
    %1086 = vmatprep.subr.bf16.mxu0 0
    %1087 = vmatpush1.bf16.msra.mxu0 %v1059
    %1088 = vmatprep.subr.bf16.mxu0 0
    %1089 = vmatpush1.bf16.msra.mxu0 %v1058
    %1090 = vmatprep.subr.bf16.mxu0 0
    %1091 = vmatpush2.bf16.msra.mxu0 0
    %1092 = vmatprep.subr.bf16.mxu0 0
    %1093 = vmatpush2.bf16.msra.mxu0 0
    %1094 = vmatprep.subr.bf16.mxu0 0
    %1095 = vmatpush2.bf16.msra.mxu0 0
    %1096 = vmatprep.subr.bf16.mxu0 0
    %1097 = vmatpush2.bf16.msra.mxu0 0
    %1098 = vmatprep.subr.bf16.mxu0 0
    %1099 = vmatpush2.bf16.msra.mxu0 0
    %1100 = vmatprep.subr.bf16.mxu0 0
    %1101 = vmatpush2.bf16.msra.mxu0 0
    %1102 = vmatprep.subr.bf16.mxu0 0
    %1103 = vmatpush2.bf16.msra.mxu0 0
    %1104 = vmatprep.subr.bf16.mxu0 0
    %1105 = vmatpush2.bf16.msra.mxu0 0
    %1106 = vmatprep.mubr.bf16.mxu0 0
    %1107 = vmatmul.mubr.bf16.gmra.mxu0 %v1063
    %v1108 = vpop.f32.mrf.mxu0
    %v1109 = vadd.f32 %v1028, %v1108
    %v1110 = vpop.f32.mrf.mxu0
    %v1111 = vpop.f32.mrf.mxu0
    %v1112 = vadd.f32 %v1028, %v1111
    %v1113 = vpop.f32.mrf.mxu0
    %1114 = vmatprep.mubr.bf16.mxu0 0
    %1115 = vmatmul.mubr.bf16.gmra.mxu0 %v1066
    %v1116 = vpop.f32.mrf.mxu0
    %v1117 = vadd.f32 %v1028, %v1116
    %v1118 = vpop.f32.mrf.mxu0
    %v1119 = vpop.f32.mrf.mxu0
    %v1120 = vadd.f32 %v1028, %v1119
    %v1121 = vpop.f32.mrf.mxu0
    %1122 = vmatprep.mubr.bf16.mxu0 0
    %1123 = vmatmul.mubr.bf16.gmra.mxu0 %v1069
    %v1124 = vpop.f32.mrf.mxu0
    %v1125 = vadd.f32 %v1028, %v1124
    %v1126 = vpop.f32.mrf.mxu0
    %v1127 = vpop.f32.mrf.mxu0
    %v1128 = vadd.f32 %v1028, %v1127
    %v1129 = vpop.f32.mrf.mxu0
    %1130 = vmatprep.mubr.bf16.mxu0 0
    %1131 = vmatmul.mubr.bf16.gmra.mxu0 %v1072
    %v1132 = vpop.f32.mrf.mxu0
    %v1133 = vadd.f32 %v1028, %v1132
    %v1134 = vpop.f32.mrf.mxu0
    %v1135 = vpop.f32.mrf.mxu0
    %v1136 = vadd.f32 %v1028, %v1135
    %v1137 = vpop.f32.mrf.mxu0
    %1138 = vdwg.mxu0
    %1139 = vst [vmem:[#allocation4] sm:$0xff] %v1109
    %1140 = vst [vmem:[#allocation4 + $0x8] sm:$0xff] %v1112
    %1141 = vst [vmem:[#allocation4 + $0x10] sm:$0xff] %v1117
    %1142 = vst [vmem:[#allocation4 + $0x18] sm:$0xff] %v1120
    %1143 = vst [vmem:[#allocation4 + $0x20] sm:$0xff] %v1125
    %1144 = vst [vmem:[#allocation4 + $0x28] sm:$0xff] %v1128
    %1145 = vst [vmem:[#allocation4 + $0x30] sm:$0xff] %v1133
    %1146 = vst [vmem:[#allocation4 + $0x38] sm:$0xff] %v1136
    %v1147 = vld [vmem:[#allocation4] sm:$0xff]
    %v1152 = vunpack.c.l.b16 %v1007
    %v1153 = vunpack.c.l.b16 %v1008
    %v1154 = vunpack.c.l.b16 %v1009
    %v1155 = vunpack.c.l.b16 %v1010
    %v1156 = vpack.c.b16 %v1153, %v1152
    %v1157 = vpack.c.b16 %v1155, %v1154
    %1160 = vmatprep.subr.bf16.mxu0 0
    %1161 = vmatpush1.bf16.msra.mxu0 0
    %1162 = vmatprep.subr.bf16.mxu0 0
    %1163 = vmatpush1.bf16.msra.mxu0 0
    %1164 = vmatprep.subr.bf16.mxu0 0
    %1165 = vmatpush1.bf16.msra.mxu0 0
    %1166 = vmatprep.subr.bf16.mxu0 0
    %1167 = vmatpush1.bf16.msra.mxu0 0
    %1168 = vmatprep.subr.bf16.mxu0 0
    %1169 = vmatpush1.bf16.msra.mxu0 0
    %1170 = vmatprep.subr.bf16.mxu0 0
    %1171 = vmatpush1.bf16.msra.mxu0 0
    %1172 = vmatprep.subr.bf16.mxu0 0
    %1173 = vmatpush1.bf16.msra.mxu0 %v1157
    %1174 = vmatprep.subr.bf16.mxu0 0
    %1175 = vmatpush1.bf16.msra.mxu0 %v1156
    %1176 = vmatprep.subr.bf16.mxu0 0
    %1177 = vmatpush2.bf16.msra.mxu0 0
    %1178 = vmatprep.subr.bf16.mxu0 0
    %1179 = vmatpush2.bf16.msra.mxu0 0
    %1180 = vmatprep.subr.bf16.mxu0 0
    %1181 = vmatpush2.bf16.msra.mxu0 0
    %1182 = vmatprep.subr.bf16.mxu0 0
    %1183 = vmatpush2.bf16.msra.mxu0 0
    %1184 = vmatprep.subr.bf16.mxu0 0
    %1185 = vmatpush2.bf16.msra.mxu0 0
    %1186 = vmatprep.subr.bf16.mxu0 0
    %1187 = vmatpush2.bf16.msra.mxu0 0
    %1188 = vmatprep.subr.bf16.mxu0 0
    %1189 = vmatpush2.bf16.msra.mxu0 0
    %1190 = vmatprep.subr.bf16.mxu0 0
    %1191 = vmatpush2.bf16.msra.mxu0 0
    %1192 = vmatprep.mubr.bf16.mxu0 0
    %1193 = vmatmul.mubr.bf16.gmra.mxu0 %v197
    %v1194 = vpop.f32.mrf.mxu0
    %v1195 = vadd.f32 0.0, %v1194
    %v1196 = vpop.f32.mrf.mxu0
    %v1197 = vpop.f32.mrf.mxu0
    %v1198 = vpop.f32.mrf.mxu0
    %1199 = vdwg.mxu0
    %v1200 = vadd.f32 %v1147, %v1195
    %v1201 = vxor.u32 %v1200, 2147483648
    %v1202 = vmul.f32 %v1201, 1.442695
    %v1203 = vpow.pop %v1202
    %v1204 = vadd.f32 %v1203, 1.0
    %v1205 = vrcp.pop %v1204
    %v1206 = vmul.f32 1.0, %v1205
    %v1207 = vtanh.pop %v1200
    %v1208 = vmul.f32 %v1206, 0.0
    %1210 = vrot.lane.b32.xlu0 %v1207, 64
    %v1211 = vpop.permute.xlu0 %1210
    %v1213 = vmul.f32 %v1206, %v1211
    %1215 = vrot.lane.b32.xlu0 %v1213, 32
    %v1216 = vpop.permute.xlu0 %1215
    %v1218 = vadd.f32 %v1208, %v1216
    %v1219 = vtanh.pop %v1218
    %1221 = vrot.lane.b32.xlu0 %v1219, 64
    %v1222 = vpop.permute.xlu0 %1221
    %v1224 = vmul.f32 %v1206, %v1222
    %v1225 = vpack.c.bf16 %v1224, %v1224
    %v1227 = vunpack.c.l.b16 %v1225
    %v1228 = vpack.c.b16 %v1227, %v1227
    %1229 = vrot.lane.b32.xlu0 %v1228, 32
    %v1230 = vpop.permute.xlu0 %1229
    %1232 = vst.msk [vmem:[#allocation3] sm:$0xf] %vm271, %v1230
    %v1233 = vld [vmem:[%s273] sm:$0xff]
    %1234 = vrot.lane.b32.xlu0 %v1225, 32
    %v1235 = vpop.permute.xlu0 %1234
    %v1237 = vsel %vm195, %v1235, 0
    %1239 = vmatprep.subr.bf16.mxu0 0
    %1240 = vmatpush1.bf16.msra.mxu0 0
    %1241 = vmatprep.subr.bf16.mxu0 0
    %1242 = vmatpush1.bf16.msra.mxu0 0
    %1243 = vmatprep.subr.bf16.mxu0 0
    %1244 = vmatpush1.bf16.msra.mxu0 0
    %1245 = vmatprep.subr.bf16.mxu0 0
    %1246 = vmatpush1.bf16.msra.mxu0 0
    %1247 = vmatprep.subr.bf16.mxu0 0
    %1248 = vmatpush1.bf16.msra.mxu0 0
    %1249 = vmatprep.subr.bf16.mxu0 0
    %1250 = vmatpush1.bf16.msra.mxu0 0
    %1251 = vmatprep.subr.bf16.mxu0 0
    %1252 = vmatpush1.bf16.msra.mxu0 %v1157
    %1253 = vmatprep.subr.bf16.mxu0 0
    %1254 = vmatpush1.bf16.msra.mxu0 %v1156
    %1255 = vmatprep.subr.bf16.mxu0 0
    %1256 = vmatpush2.bf16.msra.mxu0 0
    %1257 = vmatprep.subr.bf16.mxu0 0
    %1258 = vmatpush2.bf16.msra.mxu0 0
    %1259 = vmatprep.subr.bf16.mxu0 0
    %1260 = vmatpush2.bf16.msra.mxu0 0
    %1261 = vmatprep.subr.bf16.mxu0 0
    %1262 = vmatpush2.bf16.msra.mxu0 0
    %1263 = vmatprep.subr.bf16.mxu0 0
    %1264 = vmatpush2.bf16.msra.mxu0 0
    %1265 = vmatprep.subr.bf16.mxu0 0
    %1266 = vmatpush2.bf16.msra.mxu0 0
    %1267 = vmatprep.subr.bf16.mxu0 0
    %1268 = vmatpush2.bf16.msra.mxu0 0
    %1269 = vmatprep.subr.bf16.mxu0 0
    %1270 = vmatpush2.bf16.msra.mxu0 0
    %1271 = vmatprep.mubr.bf16.mxu0 0
    %1272 = vmatmul.mubr.bf16.gmra.mxu0 %v1237
    %v1273 = vpop.f32.mrf.mxu0
    %v1274 = vadd.f32 0.0, %v1273
    %v1275 = vpop.f32.mrf.mxu0
    %v1276 = vpop.f32.mrf.mxu0
    %v1277 = vpop.f32.mrf.mxu0
    %1278 = vdwg.mxu0
    %v1279 = vadd.f32 %v1233, %v1274
    %v1280 = vxor.u32 %v1279, 2147483648
    %v1281 = vmul.f32 %v1280, 1.442695
    %v1282 = vpow.pop %v1281
    %v1283 = vadd.f32 %v1282, 1.0
    %v1284 = vrcp.pop %v1283
    %v1285 = vmul.f32 1.0, %v1284
    %v1286 = vtanh.pop %v1279
    %v1287 = vmul.f32 %v1285, %v1218
    %1289 = vrot.lane.b32.xlu0 %v1286, 64
    %v1290 = vpop.permute.xlu0 %1289
    %v1292 = vmul.f32 %v1285, %v1290
    %1294 = vrot.lane.b32.xlu0 %v1292, 32
    %v1295 = vpop.permute.xlu0 %1294
    %v1297 = vadd.f32 %v1287, %v1295
    %v1298 = vtanh.pop %v1297
    %1300 = vrot.lane.b32.xlu0 %v1298, 64
    %v1301 = vpop.permute.xlu0 %1300
    %v1303 = vmul.f32 %v1285, %v1301
    %v1304 = vpack.c.bf16 %v1303, %v1303
    %v1306 = vunpack.c.l.b16 %v1304
    %v1307 = vpack.c.b16 %v1306, %v1306
    %1308 = vrot.lane.b32.xlu0 %v1307, 32
    %v1309 = vpop.permute.xlu0 %1308
    %1311 = vst.msk [vmem:[%s352] sm:$0xf] %vm271, %v1309
    %v1312 = vld [vmem:[%s354] sm:$0xff]
    %1313 = vrot.lane.b32.xlu0 %v1304, 32
    %v1314 = vpop.permute.xlu0 %1313
    %v1316 = vsel %vm195, %v1314, 0
    %1318 = vmatprep.subr.bf16.mxu0 0
    %1319 = vmatpush1.bf16.msra.mxu0 0
    %1320 = vmatprep.subr.bf16.mxu0 0
    %1321 = vmatpush1.bf16.msra.mxu0 0
    %1322 = vmatprep.subr.bf16.mxu0 0
    %1323 = vmatpush1.bf16.msra.mxu0 0
    %1324 = vmatprep.subr.bf16.mxu0 0
    %1325 = vmatpush1.bf16.msra.mxu0 0
    %1326 = vmatprep.subr.bf16.mxu0 0
    %1327 = vmatpush1.bf16.msra.mxu0 0
    %1328 = vmatprep.subr.bf16.mxu0 0
    %1329 = vmatpush1.bf16.msra.mxu0 0
    %1330 = vmatprep.subr.bf16.mxu0 0
    %1331 = vmatpush1.bf16.msra.mxu0 %v1157
    %1332 = vmatprep.subr.bf16.mxu0 0
    %1333 = vmatpush1.bf16.msra.mxu0 %v1156
    %1334 = vmatprep.subr.bf16.mxu0 0
    %1335 = vmatpush2.bf16.msra.mxu0 0
    %1336 = vmatprep.subr.bf16.mxu0 0
    %1337 = vmatpush2.bf16.msra.mxu0 0
    %1338 = vmatprep.subr.bf16.mxu0 0
    %1339 = vmatpush2.bf16.msra.mxu0 0
    %1340 = vmatprep.subr.bf16.mxu0 0
    %1341 = vmatpush2.bf16.msra.mxu0 0
    %1342 = vmatprep.subr.bf16.mxu0 0
    %1343 = vmatpush2.bf16.msra.mxu0 0
    %1344 = vmatprep.subr.bf16.mxu0 0
    %1345 = vmatpush2.bf16.msra.mxu0 0
    %1346 = vmatprep.subr.bf16.mxu0 0
    %1347 = vmatpush2.bf16.msra.mxu0 0
    %1348 = vmatprep.subr.bf16.mxu0 0
    %1349 = vmatpush2.bf16.msra.mxu0 0
    %1350 = vmatprep.mubr.bf16.mxu0 0
    %1351 = vmatmul.mubr.bf16.gmra.mxu0 %v1316
    %v1352 = vpop.f32.mrf.mxu0
    %v1353 = vadd.f32 0.0, %v1352
    %v1354 = vpop.f32.mrf.mxu0
    %v1355 = vpop.f32.mrf.mxu0
    %v1356 = vpop.f32.mrf.mxu0
    %1357 = vdwg.mxu0
    %v1358 = vadd.f32 %v1312, %v1353
    %v1359 = vxor.u32 %v1358, 2147483648
    %v1360 = vmul.f32 %v1359, 1.442695
    %v1361 = vpow.pop %v1360
    %v1362 = vadd.f32 %v1361, 1.0
    %v1363 = vrcp.pop %v1362
    %v1364 = vmul.f32 1.0, %v1363
    %v1365 = vtanh.pop %v1358
    %v1366 = vmul.f32 %v1364, %v1297
    %1368 = vrot.lane.b32.xlu0 %v1365, 64
    %v1369 = vpop.permute.xlu0 %1368
    %v1371 = vmul.f32 %v1364, %v1369
    %1373 = vrot.lane.b32.xlu0 %v1371, 32
    %v1374 = vpop.permute.xlu0 %1373
    %v1376 = vadd.f32 %v1366, %v1374
    %v1377 = vtanh.pop %v1376
    %1379 = vrot.lane.b32.xlu0 %v1377, 64
    %v1380 = vpop.permute.xlu0 %1379
    %v1382 = vmul.f32 %v1364, %v1380
    %v1383 = vpack.c.bf16 %v1382, %v1382
    %v1385 = vunpack.c.l.b16 %v1383
    %v1386 = vpack.c.b16 %v1385, %v1385
    %1387 = vrot.lane.b32.xlu0 %v1386, 32
    %v1388 = vpop.permute.xlu0 %1387
    %1390 = vst.msk [vmem:[%s433] sm:$0xf] %vm271, %v1388
    %v1391 = vld [vmem:[%s435] sm:$0xff]
    %1392 = vrot.lane.b32.xlu0 %v1383, 32
    %v1393 = vpop.permute.xlu0 %1392
    %v1395 = vsel %vm195, %v1393, 0
    %1397 = vmatprep.subr.bf16.mxu0 0
    %1398 = vmatpush1.bf16.msra.mxu0 0
    %1399 = vmatprep.subr.bf16.mxu0 0
    %1400 = vmatpush1.bf16.msra.mxu0 0
    %1401 = vmatprep.subr.bf16.mxu0 0
    %1402 = vmatpush1.bf16.msra.mxu0 0
    %1403 = vmatprep.subr.bf16.mxu0 0
    %1404 = vmatpush1.bf16.msra.mxu0 0
    %1405 = vmatprep.subr.bf16.mxu0 0
    %1406 = vmatpush1.bf16.msra.mxu0 0
    %1407 = vmatprep.subr.bf16.mxu0 0
    %1408 = vmatpush1.bf16.msra.mxu0 0
    %1409 = vmatprep.subr.bf16.mxu0 0
    %1410 = vmatpush1.bf16.msra.mxu0 %v1157
    %1411 = vmatprep.subr.bf16.mxu0 0
    %1412 = vmatpush1.bf16.msra.mxu0 %v1156
    %1413 = vmatprep.subr.bf16.mxu0 0
    %1414 = vmatpush2.bf16.msra.mxu0 0
    %1415 = vmatprep.subr.bf16.mxu0 0
    %1416 = vmatpush2.bf16.msra.mxu0 0
    %1417 = vmatprep.subr.bf16.mxu0 0
    %1418 = vmatpush2.bf16.msra.mxu0 0
    %1419 = vmatprep.subr.bf16.mxu0 0
    %1420 = vmatpush2.bf16.msra.mxu0 0
    %1421 = vmatprep.subr.bf16.mxu0 0
    %1422 = vmatpush2.bf16.msra.mxu0 0
    %1423 = vmatprep.subr.bf16.mxu0 0
    %1424 = vmatpush2.bf16.msra.mxu0 0
    %1425 = vmatprep.subr.bf16.mxu0 0
    %1426 = vmatpush2.bf16.msra.mxu0 0
    %1427 = vmatprep.subr.bf16.mxu0 0
    %1428 = vmatpush2.bf16.msra.mxu0 0
    %1429 = vmatprep.mubr.bf16.mxu0 0
    %1430 = vmatmul.mubr.bf16.gmra.mxu0 %v1395
    %v1431 = vpop.f32.mrf.mxu0
    %v1432 = vadd.f32 0.0, %v1431
    %v1433 = vpop.f32.mrf.mxu0
    %v1434 = vpop.f32.mrf.mxu0
    %v1435 = vpop.f32.mrf.mxu0
    %1436 = vdwg.mxu0
    %v1437 = vadd.f32 %v1391, %v1432
    %v1438 = vxor.u32 %v1437, 2147483648
    %v1439 = vmul.f32 %v1438, 1.442695
    %v1440 = vpow.pop %v1439
    %v1441 = vadd.f32 %v1440, 1.0
    %v1442 = vrcp.pop %v1441
    %v1443 = vmul.f32 1.0, %v1442
    %v1444 = vtanh.pop %v1437
    %v1445 = vmul.f32 %v1443, %v1376
    %1447 = vrot.lane.b32.xlu0 %v1444, 64
    %v1448 = vpop.permute.xlu0 %1447
    %v1450 = vmul.f32 %v1443, %v1448
    %1452 = vrot.lane.b32.xlu0 %v1450, 32
    %v1453 = vpop.permute.xlu0 %1452
    %v1455 = vadd.f32 %v1445, %v1453
    %v1456 = vtanh.pop %v1455
    %1458 = vrot.lane.b32.xlu0 %v1456, 64
    %v1459 = vpop.permute.xlu0 %1458
    %v1461 = vmul.f32 %v1443, %v1459
    %v1462 = vpack.c.bf16 %v1461, %v1461
    %v1464 = vunpack.c.l.b16 %v1462
    %v1465 = vpack.c.b16 %v1464, %v1464
    %1466 = vrot.lane.b32.xlu0 %v1465, 32
    %v1467 = vpop.permute.xlu0 %1466
    %1469 = vst.msk [vmem:[%s514] sm:$0xf] %vm271, %v1467
    %v1470 = vld [vmem:[%s516] sm:$0xff]
    %1471 = vrot.lane.b32.xlu0 %v1462, 32
    %v1472 = vpop.permute.xlu0 %1471
    %v1474 = vsel %vm195, %v1472, 0
    %1476 = vmatprep.subr.bf16.mxu0 0
    %1477 = vmatpush1.bf16.msra.mxu0 0
    %1478 = vmatprep.subr.bf16.mxu0 0
    %1479 = vmatpush1.bf16.msra.mxu0 0
    %1480 = vmatprep.subr.bf16.mxu0 0
    %1481 = vmatpush1.bf16.msra.mxu0 0
    %1482 = vmatprep.subr.bf16.mxu0 0
    %1483 = vmatpush1.bf16.msra.mxu0 0
    %1484 = vmatprep.subr.bf16.mxu0 0
    %1485 = vmatpush1.bf16.msra.mxu0 0
    %1486 = vmatprep.subr.bf16.mxu0 0
    %1487 = vmatpush1.bf16.msra.mxu0 0
    %1488 = vmatprep.subr.bf16.mxu0 0
    %1489 = vmatpush1.bf16.msra.mxu0 %v1157
    %1490 = vmatprep.subr.bf16.mxu0 0
    %1491 = vmatpush1.bf16.msra.mxu0 %v1156
    %1492 = vmatprep.subr.bf16.mxu0 0
    %1493 = vmatpush2.bf16.msra.mxu0 0
    %1494 = vmatprep.subr.bf16.mxu0 0
    %1495 = vmatpush2.bf16.msra.mxu0 0
    %1496 = vmatprep.subr.bf16.mxu0 0
    %1497 = vmatpush2.bf16.msra.mxu0 0
    %1498 = vmatprep.subr.bf16.mxu0 0
    %1499 = vmatpush2.bf16.msra.mxu0 0
    %1500 = vmatprep.subr.bf16.mxu0 0
    %1501 = vmatpush2.bf16.msra.mxu0 0
    %1502 = vmatprep.subr.bf16.mxu0 0
    %1503 = vmatpush2.bf16.msra.mxu0 0
    %1504 = vmatprep.subr.bf16.mxu0 0
    %1505 = vmatpush2.bf16.msra.mxu0 0
    %1506 = vmatprep.subr.bf16.mxu0 0
    %1507 = vmatpush2.bf16.msra.mxu0 0
    %1508 = vmatprep.mubr.bf16.mxu0 0
    %1509 = vmatmul.mubr.bf16.gmra.mxu0 %v1474
    %v1510 = vpop.f32.mrf.mxu0
    %v1511 = vadd.f32 0.0, %v1510
    %v1512 = vpop.f32.mrf.mxu0
    %v1513 = vpop.f32.mrf.mxu0
    %v1514 = vpop.f32.mrf.mxu0
    %1515 = vdwg.mxu0
    %v1516 = vadd.f32 %v1470, %v1511
    %v1517 = vxor.u32 %v1516, 2147483648
    %v1518 = vmul.f32 %v1517, 1.442695
    %v1519 = vpow.pop %v1518
    %v1520 = vadd.f32 %v1519, 1.0
    %v1521 = vrcp.pop %v1520
    %v1522 = vmul.f32 1.0, %v1521
    %v1523 = vtanh.pop %v1516
    %v1524 = vmul.f32 %v1522, %v1455
    %1526 = vrot.lane.b32.xlu0 %v1523, 64
    %v1527 = vpop.permute.xlu0 %1526
    %v1529 = vmul.f32 %v1522, %v1527
    %1531 = vrot.lane.b32.xlu0 %v1529, 32
    %v1532 = vpop.permute.xlu0 %1531
    %v1534 = vadd.f32 %v1524, %v1532
    %v1535 = vtanh.pop %v1534
    %1537 = vrot.lane.b32.xlu0 %v1535, 64
    %v1538 = vpop.permute.xlu0 %1537
    %v1540 = vmul.f32 %v1522, %v1538
    %v1541 = vpack.c.bf16 %v1540, %v1540
    %v1543 = vunpack.c.l.b16 %v1541
    %v1544 = vpack.c.b16 %v1543, %v1543
    %1545 = vrot.lane.b32.xlu0 %v1544, 32
    %v1546 = vpop.permute.xlu0 %1545
    %1548 = vst.msk [vmem:[%s595] sm:$0xf] %vm271, %v1546
    %v1549 = vld [vmem:[%s597] sm:$0xff]
    %1550 = vrot.lane.b32.xlu0 %v1541, 32
    %v1551 = vpop.permute.xlu0 %1550
    %v1553 = vsel %vm195, %v1551, 0
    %1555 = vmatprep.subr.bf16.mxu0 0
    %1556 = vmatpush1.bf16.msra.mxu0 0
    %1557 = vmatprep.subr.bf16.mxu0 0
    %1558 = vmatpush1.bf16.msra.mxu0 0
    %1559 = vmatprep.subr.bf16.mxu0 0
    %1560 = vmatpush1.bf16.msra.mxu0 0
    %1561 = vmatprep.subr.bf16.mxu0 0
    %1562 = vmatpush1.bf16.msra.mxu0 0
    %1563 = vmatprep.subr.bf16.mxu0 0
    %1564 = vmatpush1.bf16.msra.mxu0 0
    %1565 = vmatprep.subr.bf16.mxu0 0
    %1566 = vmatpush1.bf16.msra.mxu0 0
    %1567 = vmatprep.subr.bf16.mxu0 0
    %1568 = vmatpush1.bf16.msra.mxu0 %v1157
    %1569 = vmatprep.subr.bf16.mxu0 0
    %1570 = vmatpush1.bf16.msra.mxu0 %v1156
    %1571 = vmatprep.subr.bf16.mxu0 0
    %1572 = vmatpush2.bf16.msra.mxu0 0
    %1573 = vmatprep.subr.bf16.mxu0 0
    %1574 = vmatpush2.bf16.msra.mxu0 0
    %1575 = vmatprep.subr.bf16.mxu0 0
    %1576 = vmatpush2.bf16.msra.mxu0 0
    %1577 = vmatprep.subr.bf16.mxu0 0
    %1578 = vmatpush2.bf16.msra.mxu0 0
    %1579 = vmatprep.subr.bf16.mxu0 0
    %1580 = vmatpush2.bf16.msra.mxu0 0
    %1581 = vmatprep.subr.bf16.mxu0 0
    %1582 = vmatpush2.bf16.msra.mxu0 0
    %1583 = vmatprep.subr.bf16.mxu0 0
    %1584 = vmatpush2.bf16.msra.mxu0 0
    %1585 = vmatprep.subr.bf16.mxu0 0
    %1586 = vmatpush2.bf16.msra.mxu0 0
    %1587 = vmatprep.mubr.bf16.mxu0 0
    %1588 = vmatmul.mubr.bf16.gmra.mxu0 %v1553
    %v1589 = vpop.f32.mrf.mxu0
    %v1590 = vadd.f32 0.0, %v1589
    %v1591 = vpop.f32.mrf.mxu0
    %v1592 = vpop.f32.mrf.mxu0
    %v1593 = vpop.f32.mrf.mxu0
    %1594 = vdwg.mxu0
    %v1595 = vadd.f32 %v1549, %v1590
    %v1596 = vxor.u32 %v1595, 2147483648
    %v1597 = vmul.f32 %v1596, 1.442695
    %v1598 = vpow.pop %v1597
    %v1599 = vadd.f32 %v1598, 1.0
    %v1600 = vrcp.pop %v1599
    %v1601 = vmul.f32 1.0, %v1600
    %v1602 = vtanh.pop %v1595
    %v1603 = vmul.f32 %v1601, %v1534
    %1605 = vrot.lane.b32.xlu0 %v1602, 64
    %v1606 = vpop.permute.xlu0 %1605
    %v1608 = vmul.f32 %v1601, %v1606
    %1610 = vrot.lane.b32.xlu0 %v1608, 32
    %v1611 = vpop.permute.xlu0 %1610
    %v1613 = vadd.f32 %v1603, %v1611
    %v1614 = vtanh.pop %v1613
    %1616 = vrot.lane.b32.xlu0 %v1614, 64
    %v1617 = vpop.permute.xlu0 %1616
    %v1619 = vmul.f32 %v1601, %v1617
    %v1620 = vpack.c.bf16 %v1619, %v1619
    %v1622 = vunpack.c.l.b16 %v1620
    %v1623 = vpack.c.b16 %v1622, %v1622
    %1624 = vrot.lane.b32.xlu0 %v1623, 32
    %v1625 = vpop.permute.xlu0 %1624
    %1627 = vst.msk [vmem:[%s676] sm:$0xf] %vm271, %v1625
    %v1628 = vld [vmem:[%s678] sm:$0xff]
    %1629 = vrot.lane.b32.xlu0 %v1620, 32
    %v1630 = vpop.permute.xlu0 %1629
    %v1632 = vsel %vm195, %v1630, 0
    %1634 = vmatprep.subr.bf16.mxu0 0
    %1635 = vmatpush1.bf16.msra.mxu0 0
    %1636 = vmatprep.subr.bf16.mxu0 0
    %1637 = vmatpush1.bf16.msra.mxu0 0
    %1638 = vmatprep.subr.bf16.mxu0 0
    %1639 = vmatpush1.bf16.msra.mxu0 0
    %1640 = vmatprep.subr.bf16.mxu0 0
    %1641 = vmatpush1.bf16.msra.mxu0 0
    %1642 = vmatprep.subr.bf16.mxu0 0
    %1643 = vmatpush1.bf16.msra.mxu0 0
    %1644 = vmatprep.subr.bf16.mxu0 0
    %1645 = vmatpush1.bf16.msra.mxu0 0
    %1646 = vmatprep.subr.bf16.mxu0 0
    %1647 = vmatpush1.bf16.msra.mxu0 %v1157
    %1648 = vmatprep.subr.bf16.mxu0 0
    %1649 = vmatpush1.bf16.msra.mxu0 %v1156
    %1650 = vmatprep.subr.bf16.mxu0 0
    %1651 = vmatpush2.bf16.msra.mxu0 0
    %1652 = vmatprep.subr.bf16.mxu0 0
    %1653 = vmatpush2.bf16.msra.mxu0 0
    %1654 = vmatprep.subr.bf16.mxu0 0
    %1655 = vmatpush2.bf16.msra.mxu0 0
    %1656 = vmatprep.subr.bf16.mxu0 0
    %1657 = vmatpush2.bf16.msra.mxu0 0
    %1658 = vmatprep.subr.bf16.mxu0 0
    %1659 = vmatpush2.bf16.msra.mxu0 0
    %1660 = vmatprep.subr.bf16.mxu0 0
    %1661 = vmatpush2.bf16.msra.mxu0 0
    %1662 = vmatprep.subr.bf16.mxu0 0
    %1663 = vmatpush2.bf16.msra.mxu0 0
    %1664 = vmatprep.subr.bf16.mxu0 0
    %1665 = vmatpush2.bf16.msra.mxu0 0
    %1666 = vmatprep.mubr.bf16.mxu0 0
    %1667 = vmatmul.mubr.bf16.gmra.mxu0 %v1632
    %v1668 = vpop.f32.mrf.mxu0
    %v1669 = vadd.f32 0.0, %v1668
    %v1670 = vpop.f32.mrf.mxu0
    %v1671 = vpop.f32.mrf.mxu0
    %v1672 = vpop.f32.mrf.mxu0
    %1673 = vdwg.mxu0
    %v1674 = vadd.f32 %v1628, %v1669
    %v1675 = vxor.u32 %v1674, 2147483648
    %v1676 = vmul.f32 %v1675, 1.442695
    %v1677 = vpow.pop %v1676
    %v1678 = vadd.f32 %v1677, 1.0
    %v1679 = vrcp.pop %v1678
    %v1680 = vmul.f32 1.0, %v1679
    %v1681 = vtanh.pop %v1674
    %v1682 = vmul.f32 %v1680, %v1613
    %1684 = vrot.lane.b32.xlu0 %v1681, 64
    %v1685 = vpop.permute.xlu0 %1684
    %v1687 = vmul.f32 %v1680, %v1685
    %1689 = vrot.lane.b32.xlu0 %v1687, 32
    %v1690 = vpop.permute.xlu0 %1689
    %v1692 = vadd.f32 %v1682, %v1690
    %v1693 = vtanh.pop %v1692
    %1695 = vrot.lane.b32.xlu0 %v1693, 64
    %v1696 = vpop.permute.xlu0 %1695
    %v1698 = vmul.f32 %v1680, %v1696
    %v1699 = vpack.c.bf16 %v1698, %v1698
    %v1701 = vunpack.c.l.b16 %v1699
    %v1702 = vpack.c.b16 %v1701, %v1701
    %1703 = vrot.lane.b32.xlu0 %v1702, 32
    %v1704 = vpop.permute.xlu0 %1703
    %1706 = vst.msk [vmem:[%s757] sm:$0xf] %vm271, %v1704
    %v1707 = vld [vmem:[%s759] sm:$0xff]
    %1708 = vrot.lane.b32.xlu0 %v1699, 32
    %v1709 = vpop.permute.xlu0 %1708
    %v1711 = vsel %vm195, %v1709, 0
    %1713 = vmatprep.subr.bf16.mxu0 0
    %1714 = vmatpush1.bf16.msra.mxu0 0
    %1715 = vmatprep.subr.bf16.mxu0 0
    %1716 = vmatpush1.bf16.msra.mxu0 0
    %1717 = vmatprep.subr.bf16.mxu0 0
    %1718 = vmatpush1.bf16.msra.mxu0 0
    %1719 = vmatprep.subr.bf16.mxu0 0
    %1720 = vmatpush1.bf16.msra.mxu0 0
    %1721 = vmatprep.subr.bf16.mxu0 0
    %1722 = vmatpush1.bf16.msra.mxu0 0
    %1723 = vmatprep.subr.bf16.mxu0 0
    %1724 = vmatpush1.bf16.msra.mxu0 0
    %1725 = vmatprep.subr.bf16.mxu0 0
    %1726 = vmatpush1.bf16.msra.mxu0 %v1157
    %1727 = vmatprep.subr.bf16.mxu0 0
    %1728 = vmatpush1.bf16.msra.mxu0 %v1156
    %1729 = vmatprep.subr.bf16.mxu0 0
    %1730 = vmatpush2.bf16.msra.mxu0 0
    %1731 = vmatprep.subr.bf16.mxu0 0
    %1732 = vmatpush2.bf16.msra.mxu0 0
    %1733 = vmatprep.subr.bf16.mxu0 0
    %1734 = vmatpush2.bf16.msra.mxu0 0
    %1735 = vmatprep.subr.bf16.mxu0 0
    %1736 = vmatpush2.bf16.msra.mxu0 0
    %1737 = vmatprep.subr.bf16.mxu0 0
    %1738 = vmatpush2.bf16.msra.mxu0 0
    %1739 = vmatprep.subr.bf16.mxu0 0
    %1740 = vmatpush2.bf16.msra.mxu0 0
    %1741 = vmatprep.subr.bf16.mxu0 0
    %1742 = vmatpush2.bf16.msra.mxu0 0
    %1743 = vmatprep.subr.bf16.mxu0 0
    %1744 = vmatpush2.bf16.msra.mxu0 0
    %1745 = vmatprep.mubr.bf16.mxu0 0
    %1746 = vmatmul.mubr.bf16.gmra.mxu0 %v1711
    %v1747 = vpop.f32.mrf.mxu0
    %v1748 = vadd.f32 0.0, %v1747
    %v1749 = vpop.f32.mrf.mxu0
    %v1750 = vpop.f32.mrf.mxu0
    %v1751 = vpop.f32.mrf.mxu0
    %1752 = vdwg.mxu0
    %v1753 = vadd.f32 %v1707, %v1748
    %v1754 = vxor.u32 %v1753, 2147483648
    %v1755 = vmul.f32 %v1754, 1.442695
    %v1756 = vpow.pop %v1755
    %v1757 = vadd.f32 %v1756, 1.0
    %v1758 = vrcp.pop %v1757
    %v1759 = vmul.f32 1.0, %v1758
    %v1760 = vtanh.pop %v1753
    %v1761 = vmul.f32 %v1759, %v1692
    %1763 = vrot.lane.b32.xlu0 %v1760, 64
    %v1764 = vpop.permute.xlu0 %1763
    %v1766 = vmul.f32 %v1759, %v1764
    %1768 = vrot.lane.b32.xlu0 %v1766, 32
    %v1769 = vpop.permute.xlu0 %1768
    %v1771 = vadd.f32 %v1761, %v1769
    %v1772 = vtanh.pop %v1771
    %1774 = vrot.lane.b32.xlu0 %v1772, 64
    %v1775 = vpop.permute.xlu0 %1774
    %v1777 = vmul.f32 %v1759, %v1775
    %v1778 = vpack.c.bf16 %v1777, %v1777
    %v1780 = vunpack.c.l.b16 %v1778
    %v1781 = vpack.c.b16 %v1780, %v1780
    %1782 = vrot.lane.b32.xlu0 %v1781, 32
    %v1783 = vpop.permute.xlu0 %1782
    %1785 = vst.msk [vmem:[%s838] sm:$0xf] %vm271, %v1783
    %v1786 = vld [vmem:[%s9] sm:$0x1]
    %v1787 = vld [vmem:[%s10] sm:$0x1]
    %v1788 = vld [vmem:[#allocation3] sm:$0xf]
    %v1789 = vld [vmem:[#allocation3 + $0x4] sm:$0xf]
    %v1790 = vld [vmem:[#allocation3 + $0x8] sm:$0xf]
    %v1791 = vld [vmem:[#allocation3 + $0xc] sm:$0xf]
    %v1792 = vld [vmem:[#allocation3 + $0x10] sm:$0xf]
    %v1793 = vld [vmem:[#allocation3 + $0x14] sm:$0xf]
    %v1794 = vld [vmem:[#allocation3 + $0x18] sm:$0xf]
    %v1795 = vld [vmem:[#allocation3 + $0x1c] sm:$0xf]
    %v1796 = vunpack.c.l.bf16 %v1788
    %v1797 = vunpack.c.l.bf16 %v1789
    %v1798 = vunpack.c.l.bf16 %v1790
    %v1799 = vunpack.c.l.bf16 %v1791
    %v1800 = vunpack.c.l.bf16 %v1792
    %v1801 = vunpack.c.l.bf16 %v1793
    %v1802 = vunpack.c.l.bf16 %v1794
    %v1803 = vunpack.c.l.bf16 %v1795
    %v1804 = vsel %vm195, %v1796, 0.0
    %1805 = vadd.xlane.f32.xlu0 %v1804
    %v1806 = vpop.xlane.xlu0 %1805
    %v1807 = vsel %vm195, %v1797, 0.0
    %1808 = vadd.xlane.f32.xlu0 %v1807
    %v1809 = vpop.xlane.xlu0 %1808
    %v1810 = vsel %vm195, %v1798, 0.0
    %1811 = vadd.xlane.f32.xlu0 %v1810
    %v1812 = vpop.xlane.xlu0 %1811
    %v1813 = vsel %vm195, %v1799, 0.0
    %1814 = vadd.xlane.f32.xlu0 %v1813
    %v1815 = vpop.xlane.xlu0 %1814
    %v1816 = vsel %vm195, %v1800, 0.0
    %1817 = vadd.xlane.f32.xlu0 %v1816
    %v1818 = vpop.xlane.xlu0 %1817
    %v1819 = vsel %vm195, %v1801, 0.0
    %1820 = vadd.xlane.f32.xlu0 %v1819
    %v1821 = vpop.xlane.xlu0 %1820
    %v1822 = vsel %vm195, %v1802, 0.0
    %1823 = vadd.xlane.f32.xlu0 %v1822
    %v1824 = vpop.xlane.xlu0 %1823
    %v1825 = vsel %vm195, %v1803, 0.0
    %1826 = vadd.xlane.f32.xlu0 %v1825
    %v1827 = vpop.xlane.xlu0 %1826
    %v1828 = vmul.f32 %v1806, %v882
    %v1829 = vmul.f32 %v1809, %v882
    %v1830 = vmul.f32 %v1812, %v882
    %v1831 = vmul.f32 %v1815, %v882
    %v1832 = vmul.f32 %v1818, %v882
    %v1833 = vmul.f32 %v1821, %v882
    %v1834 = vmul.f32 %v1824, %v882
    %v1835 = vmul.f32 %v1827, %v882
    %v1836 = vsub.f32 %v1796, %v1828
    %v1837 = vsub.f32 %v1797, %v1829
    %v1838 = vsub.f32 %v1798, %v1830
    %v1839 = vsub.f32 %v1799, %v1831
    %v1840 = vsub.f32 %v1800, %v1832
    %v1841 = vsub.f32 %v1801, %v1833
    %v1842 = vsub.f32 %v1802, %v1834
    %v1843 = vsub.f32 %v1803, %v1835
    %v1844 = vmul.f32 %v1836, %v1836
    %v1845 = vmul.f32 %v1837, %v1837
    %v1846 = vmul.f32 %v1838, %v1838
    %v1847 = vmul.f32 %v1839, %v1839
    %v1848 = vmul.f32 %v1840, %v1840
    %v1849 = vmul.f32 %v1841, %v1841
    %v1850 = vmul.f32 %v1842, %v1842
    %v1851 = vmul.f32 %v1843, %v1843
    %v1852 = vsel %vm195, %v1844, 0.0
    %1853 = vadd.xlane.f32.xlu0 %v1852
    %v1854 = vpop.xlane.xlu0 %1853
    %v1855 = vsel %vm195, %v1845, 0.0
    %1856 = vadd.xlane.f32.xlu0 %v1855
    %v1857 = vpop.xlane.xlu0 %1856
    %v1858 = vsel %vm195, %v1846, 0.0
    %1859 = vadd.xlane.f32.xlu0 %v1858
    %v1860 = vpop.xlane.xlu0 %1859
    %v1861 = vsel %vm195, %v1847, 0.0
    %1862 = vadd.xlane.f32.xlu0 %v1861
    %v1863 = vpop.xlane.xlu0 %1862
    %v1864 = vsel %vm195, %v1848, 0.0
    %1865 = vadd.xlane.f32.xlu0 %v1864
    %v1866 = vpop.xlane.xlu0 %1865
    %v1867 = vsel %vm195, %v1849, 0.0
    %1868 = vadd.xlane.f32.xlu0 %v1867
    %v1869 = vpop.xlane.xlu0 %1868
    %v1870 = vsel %vm195, %v1850, 0.0
    %1871 = vadd.xlane.f32.xlu0 %v1870
    %v1872 = vpop.xlane.xlu0 %1871
    %v1873 = vsel %vm195, %v1851, 0.0
    %1874 = vadd.xlane.f32.xlu0 %v1873
    %v1875 = vpop.xlane.xlu0 %1874
    %v1876 = vmul.f32 %v1854, %v882
    %v1877 = vmul.f32 %v1857, %v882
    %v1878 = vmul.f32 %v1860, %v882
    %v1879 = vmul.f32 %v1863, %v882
    %v1880 = vmul.f32 %v1866, %v882
    %v1881 = vmul.f32 %v1869, %v882
    %v1882 = vmul.f32 %v1872, %v882
    %v1883 = vmul.f32 %v1875, %v882
    %v1884 = vadd.f32 %v1876, 1e-05
    %v1885 = vadd.f32 %v1877, 1e-05
    %v1886 = vadd.f32 %v1878, 1e-05
    %v1887 = vadd.f32 %v1879, 1e-05
    %v1888 = vadd.f32 %v1880, 1e-05
    %v1889 = vadd.f32 %v1881, 1e-05
    %v1890 = vadd.f32 %v1882, 1e-05
    %v1891 = vadd.f32 %v1883, 1e-05
    %v1892 = vrsqrt.pop %v1884
    %v1893 = vrsqrt.pop %v1885
    %v1894 = vrsqrt.pop %v1886
    %v1895 = vrsqrt.pop %v1887
    %v1896 = vrsqrt.pop %v1888
    %v1897 = vrsqrt.pop %v1889
    %v1898 = vrsqrt.pop %v1890
    %v1899 = vrsqrt.pop %v1891
    %v1900 = vmul.f32 %v1836, %v1892
    %v1901 = vmul.f32 %v1837, %v1893
    %v1902 = vmul.f32 %v1838, %v1894
    %v1903 = vmul.f32 %v1839, %v1895
    %v1904 = vmul.f32 %v1840, %v1896
    %v1905 = vmul.f32 %v1841, %v1897
    %v1906 = vmul.f32 %v1842, %v1898
    %v1907 = vmul.f32 %v1843, %v1899
    %v1909 = vlaneseq
    %v1910 = vshrl.u32 %v1909, 7
    %v1911 = vsub.s32 0, %v1910
    %v1912 = vrot.slane %v1786, %v1911
    %v1914 = vmul.f32 %v1900, %v1912
    %v1915 = vmul.f32 %v1901, %v1912
    %v1916 = vmul.f32 %v1902, %v1912
    %v1917 = vmul.f32 %v1903, %v1912
    %v1918 = vmul.f32 %v1904, %v1912
    %v1919 = vmul.f32 %v1905, %v1912
    %v1920 = vmul.f32 %v1906, %v1912
    %v1921 = vmul.f32 %v1907, %v1912
    %v1923 = vlaneseq
    %v1924 = vshrl.u32 %v1923, 7
    %v1925 = vsub.s32 0, %v1924
    %v1926 = vrot.slane %v1787, %v1925
    %v1928 = vadd.f32 %v1914, %v1926
    %v1929 = vadd.f32 %v1915, %v1926
    %v1930 = vadd.f32 %v1916, %v1926
    %v1931 = vadd.f32 %v1917, %v1926
    %v1932 = vadd.f32 %v1918, %v1926
    %v1933 = vadd.f32 %v1919, %v1926
    %v1934 = vadd.f32 %v1920, %v1926
    %v1935 = vadd.f32 %v1921, %v1926
    %v1936 = vld [vmem:[#allocation2] sm:$0xf]
    %v1937 = vld [vmem:[#allocation2 + $0x4] sm:$0xf]
    %v1938 = vld [vmem:[#allocation2 + $0x8] sm:$0xf]
    %v1939 = vld [vmem:[#allocation2 + $0xc] sm:$0xf]
    %v1940 = vld [vmem:[#allocation2 + $0x10] sm:$0xf]
    %v1941 = vld [vmem:[#allocation2 + $0x14] sm:$0xf]
    %v1942 = vld [vmem:[#allocation2 + $0x18] sm:$0xf]
    %v1943 = vld [vmem:[#allocation2 + $0x1c] sm:$0xf]
    %v1944 = vunpack.c.l.bf16 %v1936
    %v1945 = vunpack.c.l.bf16 %v1937
    %v1946 = vunpack.c.l.bf16 %v1938
    %v1947 = vunpack.c.l.bf16 %v1939
    %v1948 = vunpack.c.l.bf16 %v1940
    %v1949 = vunpack.c.l.bf16 %v1941
    %v1950 = vunpack.c.l.bf16 %v1942
    %v1951 = vunpack.c.l.bf16 %v1943
    %v1952 = vadd.f32 %v1928, %v1944
    %v1953 = vadd.f32 %v1929, %v1945
    %v1954 = vadd.f32 %v1930, %v1946
    %v1955 = vadd.f32 %v1931, %v1947
    %v1956 = vadd.f32 %v1932, %v1948
    %v1957 = vadd.f32 %v1933, %v1949
    %v1958 = vadd.f32 %v1934, %v1950
    %v1959 = vadd.f32 %v1935, %v1951
    %v1960 = vpack.c.bf16 %v1952, %v1952
    %v1961 = vpack.c.bf16 %v1953, %v1953
    %v1962 = vpack.c.bf16 %v1954, %v1954
    %v1963 = vpack.c.bf16 %v1955, %v1955
    %v1964 = vpack.c.bf16 %v1956, %v1956
    %v1965 = vpack.c.bf16 %v1957, %v1957
    %v1966 = vpack.c.bf16 %v1958, %v1958
    %v1967 = vpack.c.bf16 %v1959, %v1959
    %1968 = vst.msk [vmem:[#allocation2] sm:$0xf] %vm271, %v1960
    %1969 = vst.msk [vmem:[#allocation2 + $0x4] sm:$0xf] %vm271, %v1961
    %1970 = vst.msk [vmem:[#allocation2 + $0x8] sm:$0xf] %vm271, %v1962
    %1971 = vst.msk [vmem:[#allocation2 + $0xc] sm:$0xf] %vm271, %v1963
    %1972 = vst.msk [vmem:[#allocation2 + $0x10] sm:$0xf] %vm271, %v1964
    %1973 = vst.msk [vmem:[#allocation2 + $0x14] sm:$0xf] %vm271, %v1965
    %1974 = vst.msk [vmem:[#allocation2 + $0x18] sm:$0xf] %vm271, %v1966
    %1975 = vst.msk [vmem:[#allocation2 + $0x1c] sm:$0xf] %vm271, %v1967
    %v1976 = vld [vmem:[#allocation2] sm:$0xf]
    %v1977 = vld [vmem:[#allocation2 + $0x4] sm:$0xf]
    %v1978 = vld [vmem:[#allocation2 + $0x8] sm:$0xf]
    %v1979 = vld [vmem:[#allocation2 + $0xc] sm:$0xf]
    %v1980 = vld [vmem:[#allocation2 + $0x10] sm:$0xf]
    %v1981 = vld [vmem:[#allocation2 + $0x14] sm:$0xf]
    %v1982 = vld [vmem:[#allocation2 + $0x18] sm:$0xf]
    %v1983 = vld [vmem:[#allocation2 + $0x1c] sm:$0xf]
    %v1984 = vunpack.c.l.bf16 %v1976
    %v1985 = vunpack.c.l.bf16 %v1977
    %v1986 = vunpack.c.l.bf16 %v1978
    %v1987 = vunpack.c.l.bf16 %v1979
    %v1988 = vunpack.c.l.bf16 %v1980
    %v1989 = vunpack.c.l.bf16 %v1981
    %v1990 = vunpack.c.l.bf16 %v1982
    %v1991 = vunpack.c.l.bf16 %v1983
    %v1992 = vsel %vm195, %v1984, 0.0
    %1993 = vadd.xlane.f32.xlu0 %v1992
    %v1994 = vpop.xlane.xlu0 %1993
    %v1995 = vsel %vm195, %v1985, 0.0
    %1996 = vadd.xlane.f32.xlu0 %v1995
    %v1997 = vpop.xlane.xlu0 %1996
    %v1998 = vsel %vm195, %v1986, 0.0
    %1999 = vadd.xlane.f32.xlu0 %v1998
    %v2000 = vpop.xlane.xlu0 %1999
    %v2001 = vsel %vm195, %v1987, 0.0
    %2002 = vadd.xlane.f32.xlu0 %v2001
    %v2003 = vpop.xlane.xlu0 %2002
    %v2004 = vsel %vm195, %v1988, 0.0
    %2005 = vadd.xlane.f32.xlu0 %v2004
    %v2006 = vpop.xlane.xlu0 %2005
    %v2007 = vsel %vm195, %v1989, 0.0
    %2008 = vadd.xlane.f32.xlu0 %v2007
    %v2009 = vpop.xlane.xlu0 %2008
    %v2010 = vsel %vm195, %v1990, 0.0
    %2011 = vadd.xlane.f32.xlu0 %v2010
    %v2012 = vpop.xlane.xlu0 %2011
    %v2013 = vsel %vm195, %v1991, 0.0
    %2014 = vadd.xlane.f32.xlu0 %v2013
    %v2015 = vpop.xlane.xlu0 %2014
    %v2016 = vmul.f32 %v1994, %v882
    %v2017 = vmul.f32 %v1997, %v882
    %v2018 = vmul.f32 %v2000, %v882
    %v2019 = vmul.f32 %v2003, %v882
    %v2020 = vmul.f32 %v2006, %v882
    %v2021 = vmul.f32 %v2009, %v882
    %v2022 = vmul.f32 %v2012, %v882
    %v2023 = vmul.f32 %v2015, %v882
    %v2032 = vlaneseq
    %v2033 = vand.u32 %v2032, 127
    %v2034 = vlaneseq
    %v2035 = vshrl.u32 %v2034, 7
    %v2036 = vsub.s32 %v2033, %v2035
    %v2037 = vrot.slane %v2016, %v2036
    %v2038 = vlaneseq
    %v2039 = vshrl.u32 %v2038, 7
    %v2040 = vsub.s32 %v2033, %v2039
    %v2041 = vrot.slane %v2017, %v2040
    %v2042 = vlaneseq
    %v2043 = vshrl.u32 %v2042, 7
    %v2044 = vsub.s32 %v2033, %v2043
    %v2045 = vrot.slane %v2018, %v2044
    %v2046 = vlaneseq
    %v2047 = vshrl.u32 %v2046, 7
    %v2048 = vsub.s32 %v2033, %v2047
    %v2049 = vrot.slane %v2019, %v2048
    %v2050 = vlaneseq
    %v2051 = vshrl.u32 %v2050, 7
    %v2052 = vsub.s32 %v2033, %v2051
    %v2053 = vrot.slane %v2020, %v2052
    %v2054 = vlaneseq
    %v2055 = vshrl.u32 %v2054, 7
    %v2056 = vsub.s32 %v2033, %v2055
    %v2057 = vrot.slane %v2021, %v2056
    %v2058 = vlaneseq
    %v2059 = vshrl.u32 %v2058, 7
    %v2060 = vsub.s32 %v2033, %v2059
    %v2061 = vrot.slane %v2022, %v2060
    %v2062 = vlaneseq
    %v2063 = vshrl.u32 %v2062, 7
    %v2064 = vsub.s32 %v2033, %v2063
    %v2065 = vrot.slane %v2023, %v2064
    %vm2066 = vcmask 1041409
    %v2067 = vsel %vm2066, %v2041, %v2037
    %vm2068 = vcmask 1042434
    %v2069 = vsel %vm2068, %v2045, %v2067
    %vm2070 = vcmask 1043459
    %v2071 = vsel %vm2070, %v2049, %v2069
    %vm2072 = vcmask 1044484
    %v2073 = vsel %vm2072, %v2053, %v2071
    %vm2074 = vcmask 1045509
    %v2075 = vsel %vm2074, %v2057, %v2073
    %vm2076 = vcmask 1046534
    %v2077 = vsel %vm2076, %v2061, %v2075
    %vm2078 = vcmask 1047559
    %v2079 = vsel %vm2078, %v2065, %v2077
    %2081 = vxpose.xlu0.b32.start [1/16] %v2079, 128
    %2082 = vxpose.xlu0.b32.cont [2/16] 0.0, 128
    %2083 = vxpose.xlu0.b32.cont [3/16] 0.0, 128
    %2084 = vxpose.xlu0.b32.cont [4/16] 0.0, 128
    %2085 = vxpose.xlu0.b32.cont [5/16] 0.0, 128
    %2086 = vxpose.xlu0.b32.cont [6/16] 0.0, 128
    %2087 = vxpose.xlu0.b32.cont [7/16] 0.0, 128
    %2088 = vxpose.xlu0.b32.cont [8/16] 0.0, 128
    %2089 = vxpose.xlu0.b32.cont [9/16] 0.0, 128
    %2090 = vxpose.xlu0.b32.cont [10/16] 0.0, 128
    %2091 = vxpose.xlu0.b32.cont [11/16] 0.0, 128
    %2092 = vxpose.xlu0.b32.cont [12/16] 0.0, 128
    %2093 = vxpose.xlu0.b32.cont [13/16] 0.0, 128
    %2094 = vxpose.xlu0.b32.cont [14/16] 0.0, 128
    %2095 = vxpose.xlu0.b32.cont [15/16] 0.0, 128
    %2096 = vxpose.xlu0.b32.end [16/16] 0.0, 128
    %v2097 = vpop.trf.xlu0
    %v2098 = vpop.trf.xlu0
    %v2099 = vpop.trf.xlu0
    %v2100 = vpop.trf.xlu0
    %v2101 = vpop.trf.xlu0
    %v2102 = vpop.trf.xlu0
    %v2103 = vpop.trf.xlu0
    %v2104 = vpop.trf.xlu0
    %v2105 = vpop.trf.xlu0
    %v2106 = vpop.trf.xlu0
    %v2107 = vpop.trf.xlu0
    %v2108 = vpop.trf.xlu0
    %v2109 = vpop.trf.xlu0
    %v2110 = vpop.trf.xlu0
    %v2111 = vpop.trf.xlu0
    %v2112 = vpop.trf.xlu0
    %v2113 = vpack.c.bf16 %v2097, %v2097
    %v2114 = vld [vmem:[%s11] sm:$0xff]
    %v2115 = vld [vmem:[%s11 + $0x8] sm:$0xff]
    %v2116 = vld [vmem:[%s11 + $0x10] sm:$0xff]
    %v2117 = vld [vmem:[%s11 + $0x18] sm:$0xff]
    %v2119 = vrot.slane %v2113, 2
    %v2122 = vunpack.c.l.b16 %v2116
    %v2123 = vunpack.c.h.b16 %v2116
    %v2124 = vunpack.c.l.b16 %v2117
    %v2125 = vunpack.c.h.b16 %v2117
    %v2126 = vpack.c.b16 %v2122, %v2122
    %v2127 = vpack.c.b16 %v2123, %v2123
    %v2128 = vpack.c.b16 %v2124, %v2124
    %v2129 = vpack.c.b16 %v2125, %v2125
    %v2131 = vsel %vm92, %v2119, 0
    %v2134 = vsel %vm105, %v2126, 0
    %v2137 = vsel %vm105, %v2127, 0
    %v2140 = vsel %vm105, %v2128, 0
    %v2143 = vsel %vm105, %v2129, 0
    %2145 = vmatprep.subr.bf16.mxu0 0
    %2146 = vmatpush1.bf16.msra.mxu0 0
    %2147 = vmatprep.subr.bf16.mxu0 0
    %2148 = vmatpush1.bf16.msra.mxu0 0
    %2149 = vmatprep.subr.bf16.mxu0 0
    %2150 = vmatpush1.bf16.msra.mxu0 0
    %2151 = vmatprep.subr.bf16.mxu0 0
    %2152 = vmatpush1.bf16.msra.mxu0 0
    %2153 = vmatprep.subr.bf16.mxu0 0
    %2154 = vmatpush1.bf16.msra.mxu0 0
    %2155 = vmatprep.subr.bf16.mxu0 0
    %2156 = vmatpush1.bf16.msra.mxu0 0
    %2157 = vmatprep.subr.bf16.mxu0 0
    %2158 = vmatpush1.bf16.msra.mxu0 0
    %2159 = vmatprep.subr.bf16.mxu0 %v2137
    %2160 = vmatpush1.bf16.msra.mxu0 %v2134
    %2161 = vmatprep.subr.bf16.mxu0 0
    %2162 = vmatpush2.bf16.msra.mxu0 0
    %2163 = vmatprep.subr.bf16.mxu0 0
    %2164 = vmatpush2.bf16.msra.mxu0 0
    %2165 = vmatprep.subr.bf16.mxu0 0
    %2166 = vmatpush2.bf16.msra.mxu0 0
    %2167 = vmatprep.subr.bf16.mxu0 0
    %2168 = vmatpush2.bf16.msra.mxu0 0
    %2169 = vmatprep.subr.bf16.mxu0 0
    %2170 = vmatpush2.bf16.msra.mxu0 0
    %2171 = vmatprep.subr.bf16.mxu0 0
    %2172 = vmatpush2.bf16.msra.mxu0 0
    %2173 = vmatprep.subr.bf16.mxu0 0
    %2174 = vmatpush2.bf16.msra.mxu0 0
    %2175 = vmatprep.subr.bf16.mxu0 0
    %2176 = vmatpush2.bf16.msra.mxu0 0
    %2177 = vmatprep.mubr.bf16.mxu0 0
    %2178 = vmatmul.mubr.bf16.gmra.mxu0 %v2131
    %v2179 = vpop.f32.mrf.mxu0
    %v2180 = vadd.f32 0.0, %v2179
    %v2181 = vpop.f32.mrf.mxu0
    %v2182 = vadd.f32 0.0, %v2181
    %v2183 = vpop.f32.mrf.mxu0
    %v2184 = vpop.f32.mrf.mxu0
    %2185 = vdwg.mxu0
    %2186 = vmatprep.subr.bf16.mxu0 0
    %2187 = vmatpush1.bf16.msra.mxu0 0
    %2188 = vmatprep.subr.bf16.mxu0 0
    %2189 = vmatpush1.bf16.msra.mxu0 0
    %2190 = vmatprep.subr.bf16.mxu0 0
    %2191 = vmatpush1.bf16.msra.mxu0 0
    %2192 = vmatprep.subr.bf16.mxu0 0
    %2193 = vmatpush1.bf16.msra.mxu0 0
    %2194 = vmatprep.subr.bf16.mxu0 0
    %2195 = vmatpush1.bf16.msra.mxu0 0
    %2196 = vmatprep.subr.bf16.mxu0 0
    %2197 = vmatpush1.bf16.msra.mxu0 0
    %2198 = vmatprep.subr.bf16.mxu0 0
    %2199 = vmatpush1.bf16.msra.mxu0 0
    %2200 = vmatprep.subr.bf16.mxu0 %v2143
    %2201 = vmatpush1.bf16.msra.mxu0 %v2140
    %2202 = vmatprep.subr.bf16.mxu0 0
    %2203 = vmatpush2.bf16.msra.mxu0 0
    %2204 = vmatprep.subr.bf16.mxu0 0
    %2205 = vmatpush2.bf16.msra.mxu0 0
    %2206 = vmatprep.subr.bf16.mxu0 0
    %2207 = vmatpush2.bf16.msra.mxu0 0
    %2208 = vmatprep.subr.bf16.mxu0 0
    %2209 = vmatpush2.bf16.msra.mxu0 0
    %2210 = vmatprep.subr.bf16.mxu0 0
    %2211 = vmatpush2.bf16.msra.mxu0 0
    %2212 = vmatprep.subr.bf16.mxu0 0
    %2213 = vmatpush2.bf16.msra.mxu0 0
    %2214 = vmatprep.subr.bf16.mxu0 0
    %2215 = vmatpush2.bf16.msra.mxu0 0
    %2216 = vmatprep.subr.bf16.mxu0 0
    %2217 = vmatpush2.bf16.msra.mxu0 0
    %2218 = vmatprep.mubr.bf16.mxu0 0
    %2219 = vmatmul.mubr.bf16.gmra.mxu0 %v2131
    %v2220 = vpop.f32.mrf.mxu0
    %v2221 = vadd.f32 0.0, %v2220
    %v2222 = vpop.f32.mrf.mxu0
    %v2223 = vadd.f32 0.0, %v2222
    %v2224 = vpop.f32.mrf.mxu0
    %v2225 = vpop.f32.mrf.mxu0
    %2226 = vdwg.mxu0
    %v2229 = vunpack.c.l.b16 %v2114
    %v2230 = vunpack.c.h.b16 %v2114
    %v2231 = vunpack.c.l.b16 %v2115
    %v2232 = vunpack.c.h.b16 %v2115
    %v2233 = vpack.c.b16 %v2229, %v2229
    %v2234 = vpack.c.b16 %v2230, %v2230
    %v2235 = vpack.c.b16 %v2231, %v2231
    %v2236 = vpack.c.b16 %v2232, %v2232
    %v2238 = vsel %vm92, %v2113, 0
    %v2241 = vsel %vm105, %v2233, 0
    %v2244 = vsel %vm105, %v2234, 0
    %v2247 = vsel %vm105, %v2235, 0
    %v2250 = vsel %vm105, %v2236, 0
    %2252 = vmatprep.subr.bf16.mxu0 0
    %2253 = vmatpush1.bf16.msra.mxu0 0
    %2254 = vmatprep.subr.bf16.mxu0 0
    %2255 = vmatpush1.bf16.msra.mxu0 0
    %2256 = vmatprep.subr.bf16.mxu0 0
    %2257 = vmatpush1.bf16.msra.mxu0 0
    %2258 = vmatprep.subr.bf16.mxu0 0
    %2259 = vmatpush1.bf16.msra.mxu0 0
    %2260 = vmatprep.subr.bf16.mxu0 0
    %2261 = vmatpush1.bf16.msra.mxu0 0
    %2262 = vmatprep.subr.bf16.mxu0 0
    %2263 = vmatpush1.bf16.msra.mxu0 0
    %2264 = vmatprep.subr.bf16.mxu0 0
    %2265 = vmatpush1.bf16.msra.mxu0 0
    %2266 = vmatprep.subr.bf16.mxu0 %v2244
    %2267 = vmatpush1.bf16.msra.mxu0 %v2241
    %2268 = vmatprep.subr.bf16.mxu0 0
    %2269 = vmatpush2.bf16.msra.mxu0 0
    %2270 = vmatprep.subr.bf16.mxu0 0
    %2271 = vmatpush2.bf16.msra.mxu0 0
    %2272 = vmatprep.subr.bf16.mxu0 0
    %2273 = vmatpush2.bf16.msra.mxu0 0
    %2274 = vmatprep.subr.bf16.mxu0 0
    %2275 = vmatpush2.bf16.msra.mxu0 0
    %2276 = vmatprep.subr.bf16.mxu0 0
    %2277 = vmatpush2.bf16.msra.mxu0 0
    %2278 = vmatprep.subr.bf16.mxu0 0
    %2279 = vmatpush2.bf16.msra.mxu0 0
    %2280 = vmatprep.subr.bf16.mxu0 0
    %2281 = vmatpush2.bf16.msra.mxu0 0
    %2282 = vmatprep.subr.bf16.mxu0 0
    %2283 = vmatpush2.bf16.msra.mxu0 0
    %2284 = vmatprep.mubr.bf16.mxu0 0
    %2285 = vmatmul.mubr.bf16.gmra.mxu0 %v2238
    %v2286 = vpop.f32.mrf.mxu0
    %v2287 = vadd.f32 %v2180, %v2286
    %v2288 = vpop.f32.mrf.mxu0
    %v2289 = vadd.f32 %v2182, %v2288
    %v2290 = vpop.f32.mrf.mxu0
    %v2291 = vpop.f32.mrf.mxu0
    %2292 = vdwg.mxu0
    %2293 = vmatprep.subr.bf16.mxu0 0
    %2294 = vmatpush1.bf16.msra.mxu0 0
    %2295 = vmatprep.subr.bf16.mxu0 0
    %2296 = vmatpush1.bf16.msra.mxu0 0
    %2297 = vmatprep.subr.bf16.mxu0 0
    %2298 = vmatpush1.bf16.msra.mxu0 0
    %2299 = vmatprep.subr.bf16.mxu0 0
    %2300 = vmatpush1.bf16.msra.mxu0 0
    %2301 = vmatprep.subr.bf16.mxu0 0
    %2302 = vmatpush1.bf16.msra.mxu0 0
    %2303 = vmatprep.subr.bf16.mxu0 0
    %2304 = vmatpush1.bf16.msra.mxu0 0
    %2305 = vmatprep.subr.bf16.mxu0 0
    %2306 = vmatpush1.bf16.msra.mxu0 0
    %2307 = vmatprep.subr.bf16.mxu0 %v2250
    %2308 = vmatpush1.bf16.msra.mxu0 %v2247
    %2309 = vmatprep.subr.bf16.mxu0 0
    %2310 = vmatpush2.bf16.msra.mxu0 0
    %2311 = vmatprep.subr.bf16.mxu0 0
    %2312 = vmatpush2.bf16.msra.mxu0 0
    %2313 = vmatprep.subr.bf16.mxu0 0
    %2314 = vmatpush2.bf16.msra.mxu0 0
    %2315 = vmatprep.subr.bf16.mxu0 0
    %2316 = vmatpush2.bf16.msra.mxu0 0
    %2317 = vmatprep.subr.bf16.mxu0 0
    %2318 = vmatpush2.bf16.msra.mxu0 0
    %2319 = vmatprep.subr.bf16.mxu0 0
    %2320 = vmatpush2.bf16.msra.mxu0 0
    %2321 = vmatprep.subr.bf16.mxu0 0
    %2322 = vmatpush2.bf16.msra.mxu0 0
    %2323 = vmatprep.subr.bf16.mxu0 0
    %2324 = vmatpush2.bf16.msra.mxu0 0
    %2325 = vmatprep.mubr.bf16.mxu0 0
    %2326 = vmatmul.mubr.bf16.gmra.mxu0 %v2238
    %v2327 = vpop.f32.mrf.mxu0
    %v2328 = vadd.f32 %v2221, %v2327
    %v2329 = vpop.f32.mrf.mxu0
    %v2330 = vadd.f32 %v2223, %v2329
    %v2331 = vpop.f32.mrf.mxu0
    %v2332 = vpop.f32.mrf.mxu0
    %2333 = vdwg.mxu0
    %v2334 = vld [vmem:[%s12] sm:$0xf]
    %v2336 = vlaneseq
    %v2337 = vshrl.u32 %v2336, 7
    %v2338 = vsub.s32 0, %v2337
    %v2339 = vrot.slane %v2334, %v2338
    %v2340 = vlaneseq
    %v2341 = vshrl.u32 %v2340, 7
    %v2342 = vsub.s32 1, %v2341
    %v2343 = vrot.slane %v2334, %v2342
    %v2344 = vlaneseq
    %v2345 = vshrl.u32 %v2344, 7
    %v2346 = vsub.s32 2, %v2345
    %v2347 = vrot.slane %v2334, %v2346
    %v2348 = vlaneseq
    %v2349 = vshrl.u32 %v2348, 7
    %v2350 = vsub.s32 3, %v2349
    %v2351 = vrot.slane %v2334, %v2350
    %v2356 = vadd.f32 %v2287, %v2339
    %v2357 = vadd.f32 %v2289, %v2343
    %v2358 = vadd.f32 %v2328, %v2347
    %v2359 = vadd.f32 %v2330, %v2351
    %v2360 = vpack.c.bf16 %v2356, %v2356
    %v2361 = vpack.c.bf16 %v2357, %v2357
    %v2362 = vpack.c.bf16 %v2358, %v2358
    %v2363 = vpack.c.bf16 %v2359, %v2359
    %v2364 = vld [vmem:[%s13] sm:$0xf]
    %v2365 = vld [vmem:[%s13 + $0x4] sm:$0xf]
    %v2366 = vld [vmem:[%s13 + $0x8] sm:$0xf]
    %v2367 = vld [vmem:[%s13 + $0xc] sm:$0xf]
    %v2368 = vld [vmem:[%s13 + $0x10] sm:$0xf]
    %v2369 = vld [vmem:[%s13 + $0x14] sm:$0xf]
    %v2370 = vld [vmem:[%s13 + $0x18] sm:$0xf]
    %v2371 = vld [vmem:[%s13 + $0x1c] sm:$0xf]
    %v2372 = vld [vmem:[%s13 + $0x20] sm:$0xf]
    %v2373 = vld [vmem:[%s13 + $0x24] sm:$0xf]
    %v2374 = vld [vmem:[%s13 + $0x28] sm:$0xf]
    %v2375 = vld [vmem:[%s13 + $0x2c] sm:$0xf]
    %v2376 = vld [vmem:[%s13 + $0x30] sm:$0xf]
    %v2377 = vld [vmem:[%s13 + $0x34] sm:$0xf]
    %v2378 = vld [vmem:[%s13 + $0x38] sm:$0xf]
    %v2379 = vld [vmem:[%s13 + $0x3c] sm:$0xf]
    %v2380 = vld [vmem:[%s13 + $0x40] sm:$0xf]
    %v2381 = vld [vmem:[%s13 + $0x44] sm:$0xf]
    %v2382 = vld [vmem:[%s13 + $0x48] sm:$0xf]
    %v2383 = vld [vmem:[%s13 + $0x4c] sm:$0xf]
    %v2384 = vld [vmem:[%s13 + $0x50] sm:$0xf]
    %v2385 = vld [vmem:[%s13 + $0x54] sm:$0xf]
    %v2386 = vld [vmem:[%s13 + $0x58] sm:$0xf]
    %v2387 = vld [vmem:[%s13 + $0x5c] sm:$0xf]
    %v2388 = vld [vmem:[%s13 + $0x60] sm:$0xf]
    %v2389 = vld [vmem:[%s13 + $0x64] sm:$0xf]
    %v2390 = vld [vmem:[%s13 + $0x68] sm:$0xf]
    %v2391 = vld [vmem:[%s13 + $0x6c] sm:$0xf]
    %v2392 = vld [vmem:[%s13 + $0x70] sm:$0xf]
    %v2393 = vld [vmem:[%s13 + $0x74] sm:$0xf]
    %v2394 = vld [vmem:[%s13 + $0x78] sm:$0xf]
    %v2395 = vld [vmem:[%s13 + $0x7c] sm:$0xf]
    %v2396 = vld [vmem:[%s13 + $0x80] sm:$0xf]
    %v2397 = vld [vmem:[%s13 + $0x84] sm:$0xf]
    %v2398 = vld [vmem:[%s13 + $0x88] sm:$0xf]
    %v2399 = vld [vmem:[%s13 + $0x8c] sm:$0xf]
    %v2400 = vld [vmem:[%s13 + $0x90] sm:$0xf]
    %v2401 = vld [vmem:[%s13 + $0x94] sm:$0xf]
    %v2402 = vld [vmem:[%s13 + $0x98] sm:$0xf]
    %v2403 = vld [vmem:[%s13 + $0x9c] sm:$0xf]
    %v2404 = vld [vmem:[%s13 + $0xa0] sm:$0xf]
    %v2405 = vld [vmem:[%s13 + $0xa4] sm:$0xf]
    %v2406 = vld [vmem:[%s13 + $0xa8] sm:$0xf]
    %v2407 = vld [vmem:[%s13 + $0xac] sm:$0xf]
    %v2408 = vld [vmem:[%s13 + $0xb0] sm:$0xf]
    %v2409 = vld [vmem:[%s13 + $0xb4] sm:$0xf]
    %v2410 = vld [vmem:[%s13 + $0xb8] sm:$0xf]
    %v2411 = vld [vmem:[%s13 + $0xbc] sm:$0xf]
    %v2412 = vld [vmem:[%s13 + $0xc0] sm:$0xf]
    %v2413 = vld [vmem:[%s13 + $0xc4] sm:$0xf]
    %v2414 = vld [vmem:[%s13 + $0xc8] sm:$0xf]
    %v2415 = vld [vmem:[%s13 + $0xcc] sm:$0xf]
    %v2416 = vld [vmem:[%s13 + $0xd0] sm:$0xf]
    %v2417 = vld [vmem:[%s13 + $0xd4] sm:$0xf]
    %v2418 = vld [vmem:[%s13 + $0xd8] sm:$0xf]
    %v2419 = vld [vmem:[%s13 + $0xdc] sm:$0xf]
    %v2420 = vld [vmem:[%s13 + $0xe0] sm:$0xf]
    %v2421 = vld [vmem:[%s13 + $0xe4] sm:$0xf]
    %v2422 = vld [vmem:[%s13 + $0xe8] sm:$0xf]
    %v2423 = vld [vmem:[%s13 + $0xec] sm:$0xf]
    %v2424 = vld [vmem:[%s13 + $0xf0] sm:$0xf]
    %v2425 = vld [vmem:[%s13 + $0xf4] sm:$0xf]
    %v2426 = vld [vmem:[%s13 + $0xf8] sm:$0xf]
    %v2427 = vld [vmem:[%s13 + $0xfc] sm:$0xf]
    %v2428 = vld [vmem:[%s14] sm:$0x1]
    %v2430 = vlaneseq
    %v2431 = vshrl.u32 %v2430, 7
    %v2432 = vsub.s32 0, %v2431
    %v2433 = vrot.slane %v2428, %v2432
    %v2499 = vunpack.c.l.b16 %v2364
    %v2500 = vunpack.c.l.b16 %v2365
    %v2501 = vunpack.c.l.b16 %v2366
    %v2502 = vunpack.c.l.b16 %v2367
    %v2503 = vunpack.c.l.b16 %v2368
    %v2504 = vunpack.c.l.b16 %v2369
    %v2505 = vunpack.c.l.b16 %v2370
    %v2506 = vunpack.c.l.b16 %v2371
    %v2507 = vunpack.c.l.b16 %v2372
    %v2508 = vunpack.c.l.b16 %v2373
    %v2509 = vunpack.c.l.b16 %v2374
    %v2510 = vunpack.c.l.b16 %v2375
    %v2511 = vunpack.c.l.b16 %v2376
    %v2512 = vunpack.c.l.b16 %v2377
    %v2513 = vunpack.c.l.b16 %v2378
    %v2514 = vunpack.c.l.b16 %v2379
    %v2515 = vunpack.c.l.b16 %v2380
    %v2516 = vunpack.c.l.b16 %v2381
    %v2517 = vunpack.c.l.b16 %v2382
    %v2518 = vunpack.c.l.b16 %v2383
    %v2519 = vunpack.c.l.b16 %v2384
    %v2520 = vunpack.c.l.b16 %v2385
    %v2521 = vunpack.c.l.b16 %v2386
    %v2522 = vunpack.c.l.b16 %v2387
    %v2523 = vunpack.c.l.b16 %v2388
    %v2524 = vunpack.c.l.b16 %v2389
    %v2525 = vunpack.c.l.b16 %v2390
    %v2526 = vunpack.c.l.b16 %v2391
    %v2527 = vunpack.c.l.b16 %v2392
    %v2528 = vunpack.c.l.b16 %v2393
    %v2529 = vunpack.c.l.b16 %v2394
    %v2530 = vunpack.c.l.b16 %v2395
    %v2531 = vunpack.c.l.b16 %v2396
    %v2532 = vunpack.c.l.b16 %v2397
    %v2533 = vunpack.c.l.b16 %v2398
    %v2534 = vunpack.c.l.b16 %v2399
    %v2535 = vunpack.c.l.b16 %v2400
    %v2536 = vunpack.c.l.b16 %v2401
    %v2537 = vunpack.c.l.b16 %v2402
    %v2538 = vunpack.c.l.b16 %v2403
    %v2539 = vunpack.c.l.b16 %v2404
    %v2540 = vunpack.c.l.b16 %v2405
    %v2541 = vunpack.c.l.b16 %v2406
    %v2542 = vunpack.c.l.b16 %v2407
    %v2543 = vunpack.c.l.b16 %v2408
    %v2544 = vunpack.c.l.b16 %v2409
    %v2545 = vunpack.c.l.b16 %v2410
    %v2546 = vunpack.c.l.b16 %v2411
    %v2547 = vunpack.c.l.b16 %v2412
    %v2548 = vunpack.c.l.b16 %v2413
    %v2549 = vunpack.c.l.b16 %v2414
    %v2550 = vunpack.c.l.b16 %v2415
    %v2551 = vunpack.c.l.b16 %v2416
    %v2552 = vunpack.c.l.b16 %v2417
    %v2553 = vunpack.c.l.b16 %v2418
    %v2554 = vunpack.c.l.b16 %v2419
    %v2555 = vunpack.c.l.b16 %v2420
    %v2556 = vunpack.c.l.b16 %v2421
    %v2557 = vunpack.c.l.b16 %v2422
    %v2558 = vunpack.c.l.b16 %v2423
    %v2559 = vunpack.c.l.b16 %v2424
    %v2560 = vunpack.c.l.b16 %v2425
    %v2561 = vunpack.c.l.b16 %v2426
    %v2562 = vunpack.c.l.b16 %v2427
    %v2563 = vpack.c.b16 %v2500, %v2499
    %v2564 = vpack.c.b16 %v2502, %v2501
    %v2565 = vpack.c.b16 %v2504, %v2503
    %v2566 = vpack.c.b16 %v2506, %v2505
    %v2567 = vpack.c.b16 %v2508, %v2507
    %v2568 = vpack.c.b16 %v2510, %v2509
    %v2569 = vpack.c.b16 %v2512, %v2511
    %v2570 = vpack.c.b16 %v2514, %v2513
    %v2571 = vpack.c.b16 %v2516, %v2515
    %v2572 = vpack.c.b16 %v2518, %v2517
    %v2573 = vpack.c.b16 %v2520, %v2519
    %v2574 = vpack.c.b16 %v2522, %v2521
    %v2575 = vpack.c.b16 %v2524, %v2523
    %v2576 = vpack.c.b16 %v2526, %v2525
    %v2577 = vpack.c.b16 %v2528, %v2527
    %v2578 = vpack.c.b16 %v2530, %v2529
    %v2579 = vpack.c.b16 %v2532, %v2531
    %v2580 = vpack.c.b16 %v2534, %v2533
    %v2581 = vpack.c.b16 %v2536, %v2535
    %v2582 = vpack.c.b16 %v2538, %v2537
    %v2583 = vpack.c.b16 %v2540, %v2539
    %v2584 = vpack.c.b16 %v2542, %v2541
    %v2585 = vpack.c.b16 %v2544, %v2543
    %v2586 = vpack.c.b16 %v2546, %v2545
    %v2587 = vpack.c.b16 %v2548, %v2547
    %v2588 = vpack.c.b16 %v2550, %v2549
    %v2589 = vpack.c.b16 %v2552, %v2551
    %v2590 = vpack.c.b16 %v2554, %v2553
    %v2591 = vpack.c.b16 %v2556, %v2555
    %v2592 = vpack.c.b16 %v2558, %v2557
    %v2593 = vpack.c.b16 %v2560, %v2559
    %v2594 = vpack.c.b16 %v2562, %v2561
    %2627 = vmatprep.subr.bf16.mxu0 0
    %2628 = vmatpush1.bf16.msra.mxu0 %v2570
    %2629 = vmatprep.subr.bf16.mxu0 0
    %2630 = vmatpush1.bf16.msra.mxu0 %v2569
    %2631 = vmatprep.subr.bf16.mxu0 0
    %2632 = vmatpush1.bf16.msra.mxu0 %v2568
    %2633 = vmatprep.subr.bf16.mxu0 0
    %2634 = vmatpush1.bf16.msra.mxu0 %v2567
    %2635 = vmatprep.subr.bf16.mxu0 0
    %2636 = vmatpush1.bf16.msra.mxu0 %v2566
    %2637 = vmatprep.subr.bf16.mxu0 0
    %2638 = vmatpush1.bf16.msra.mxu0 %v2565
    %2639 = vmatprep.subr.bf16.mxu0 0
    %2640 = vmatpush1.bf16.msra.mxu0 %v2564
    %2641 = vmatprep.subr.bf16.mxu0 0
    %2642 = vmatpush1.bf16.msra.mxu0 %v2563
    %2643 = vmatprep.subr.bf16.mxu0 0
    %2644 = vmatpush2.bf16.msra.mxu0 %v2578
    %2645 = vmatprep.subr.bf16.mxu0 0
    %2646 = vmatpush2.bf16.msra.mxu0 %v2577
    %2647 = vmatprep.subr.bf16.mxu0 0
    %2648 = vmatpush2.bf16.msra.mxu0 %v2576
    %2649 = vmatprep.subr.bf16.mxu0 0
    %2650 = vmatpush2.bf16.msra.mxu0 %v2575
    %2651 = vmatprep.subr.bf16.mxu0 0
    %2652 = vmatpush2.bf16.msra.mxu0 %v2574
    %2653 = vmatprep.subr.bf16.mxu0 0
    %2654 = vmatpush2.bf16.msra.mxu0 %v2573
    %2655 = vmatprep.subr.bf16.mxu0 0
    %2656 = vmatpush2.bf16.msra.mxu0 %v2572
    %2657 = vmatprep.subr.bf16.mxu0 0
    %2658 = vmatpush2.bf16.msra.mxu0 %v2571
    %2659 = vmatprep.mubr.bf16.mxu0 %v2361
    %2660 = vmatmul.mubr.bf16.gmra.mxu0 %v2360
    %v2661 = vpop.f32.mrf.mxu0
    %v2662 = vadd.f32 %v2433, %v2661
    %v2663 = vpop.f32.mrf.mxu0
    %v2664 = vpop.f32.mrf.mxu0
    %v2665 = vpop.f32.mrf.mxu0
    %2666 = vdwg.mxu0
    %2667 = vmatprep.subr.bf16.mxu0 0
    %2668 = vmatpush1.bf16.msra.mxu0 %v2586
    %2669 = vmatprep.subr.bf16.mxu0 0
    %2670 = vmatpush1.bf16.msra.mxu0 %v2585
    %2671 = vmatprep.subr.bf16.mxu0 0
    %2672 = vmatpush1.bf16.msra.mxu0 %v2584
    %2673 = vmatprep.subr.bf16.mxu0 0
    %2674 = vmatpush1.bf16.msra.mxu0 %v2583
    %2675 = vmatprep.subr.bf16.mxu0 0
    %2676 = vmatpush1.bf16.msra.mxu0 %v2582
    %2677 = vmatprep.subr.bf16.mxu0 0
    %2678 = vmatpush1.bf16.msra.mxu0 %v2581
    %2679 = vmatprep.subr.bf16.mxu0 0
    %2680 = vmatpush1.bf16.msra.mxu0 %v2580
    %2681 = vmatprep.subr.bf16.mxu0 0
    %2682 = vmatpush1.bf16.msra.mxu0 %v2579
    %2683 = vmatprep.subr.bf16.mxu0 0
    %2684 = vmatpush2.bf16.msra.mxu0 %v2594
    %2685 = vmatprep.subr.bf16.mxu0 0
    %2686 = vmatpush2.bf16.msra.mxu0 %v2593
    %2687 = vmatprep.subr.bf16.mxu0 0
    %2688 = vmatpush2.bf16.msra.mxu0 %v2592
    %2689 = vmatprep.subr.bf16.mxu0 0
    %2690 = vmatpush2.bf16.msra.mxu0 %v2591
    %2691 = vmatprep.subr.bf16.mxu0 0
    %2692 = vmatpush2.bf16.msra.mxu0 %v2590
    %2693 = vmatprep.subr.bf16.mxu0 0
    %2694 = vmatpush2.bf16.msra.mxu0 %v2589
    %2695 = vmatprep.subr.bf16.mxu0 0
    %2696 = vmatpush2.bf16.msra.mxu0 %v2588
    %2697 = vmatprep.subr.bf16.mxu0 0
    %2698 = vmatpush2.bf16.msra.mxu0 %v2587
    %2699 = vmatprep.mubr.bf16.mxu0 %v2363
    %2700 = vmatmul.mubr.bf16.gmra.mxu0 %v2362
    %v2701 = vpop.f32.mrf.mxu0
    %v2702 = vadd.f32 %v2662, %v2701
    %v2703 = vpop.f32.mrf.mxu0
    %v2704 = vpop.f32.mrf.mxu0
    %v2705 = vpop.f32.mrf.mxu0
    %2706 = vdwg.mxu0
    %vm2707 = vcmask 27648
    %2708 = vst.msk [vmem:[#allocation5] sm:$0xf] %vm2707, %v2702
    // Predicated region
    $region62: #{tpu_custom_call.1} parent=1 // pred_check
      _
    $region63: #{tpu_custom_call.1} parent=1 // pred_check_branch
      %2710 = sbr.rel (0) target = $region65
    $region64: #{tpu_custom_call.1} parent=1 // pred_region
      %s2712 = ssub.s32 64, 64
      %2713 = vsyncadd [#allocation6], %s2712
      %s2715 = sshll.u32 [#allocation5], 4
      %s2716 = int_to_ptr.vmem [resolvable:$true] %s2715
      %2718 = dma.vmem_to_hbm [thread:$0]  %s2716, 64, %s15, [#allocation6]
    $region65: #{tpu_custom_call.1} parent=1 // pred_fallthru
      _
    // Predicated region
    $region66: #{tpu_custom_call.1} parent=1 // pred_check
      _
    $region67: #{tpu_custom_call.1} parent=1 // pred_check_branch
      %2720 = sbr.rel (0) target = $region69
    $region68: #{tpu_custom_call.1} parent=1 // pred_region
      %2721 = dma.done [#allocation6], 64
    $region69: #{tpu_custom_call.1} parent=1 // pred_fallthru
      _
    %2722 = vsyncpa [#allocation6], 1

// kernel: tpu_custom_call.1
$region0: #{tpu_custom_call.1}
  #allocation0 [shape = 'u32[]', space=smem, size = 0x4, offset = 0x4, fixed_abs, tag = 'smem constant byte address 0x4 - core index']
  #allocation1 [shape = 'u32[144,128]{1,0:T(1,128)}', space=vmem, size = 0x12000, scoped, tag = 'internal scratch']
  #allocation2 [shape = 'bf16[8,8,32]{2,1,0:T(8,128)(2,1)}', space=vmem, size = 0x4000, scoped, tag = 'scratch operand']
  #allocation3 [shape = 'bf16[8,8,32]{2,1,0:T(8,128)(2,1)}', space=vmem, size = 0x4000, scoped, tag = 'scratch operand']
  #allocation4 [shape = 'f32[8,8,128]{2,1,0:T(8,128)}', space=vmem, size = 0x8000, scoped, tag = 'scratch operand']
  %s0 = inlined_call_operand.vmem [shape: bf16[8,8,8], index: 0, kind: input, shape index: {}]
  %s1 = inlined_call_operand.vmem [shape: bf16[8,128], index: 1, kind: input, shape index: {}]
  %s2 = inlined_call_operand.vmem [shape: bf16[32,128], index: 2, kind: input, shape index: {}]
  %s3 = inlined_call_operand.vmem [shape: f32[1,128], index: 3, kind: input, shape index: {}]
  %s4 = inlined_call_operand.vmem [shape: f32[1,32], index: 4, kind: input, shape index: {}]
  %s5 = inlined_call_operand.vmem [shape: f32[1,32], index: 5, kind: input, shape index: {}]
  %s6 = inlined_call_operand.vmem [shape: bf16[32,128], index: 6, kind: input, shape index: {}]
  %s7 = inlined_call_operand.vmem [shape: bf16[32,128], index: 7, kind: input, shape index: {}]
  %s8 = inlined_call_operand.vmem [shape: f32[1,128], index: 8, kind: input, shape index: {}]
  %s9 = inlined_call_operand.vmem [shape: f32[1,32], index: 9, kind: input, shape index: {}]
  %s10 = inlined_call_operand.vmem [shape: f32[1,32], index: 10, kind: input, shape index: {}]
  %s11 = inlined_call_operand.vmem [shape: bf16[16,512], index: 11, kind: input, shape index: {}]
  %s12 = inlined_call_operand.vmem [shape: f32[1,512], index: 12, kind: input, shape index: {}]
  %s13 = inlined_call_operand.vmem [shape: bf16[512,4], index: 13, kind: input, shape index: {}]
  %s14 = inlined_call_operand.vmem [shape: f32[1,4], index: 14, kind: input, shape index: {}]
  %s15 = inlined_call_operand.hbm [shape: f32[4,4], index: 15, kind: output, shape index: {}]
  %s16 = sld [smem:[#allocation0]]
  $region70: #{tpu_custom_call.1} parent=0
    _
  %s18 = ssub.s32 1, %s16
  %s19 = scalar_select 0, %s18, %s16
  $region1: #{tpu_custom_call.1} parent=0
    #allocation5 [shape = 'u8[2048]{0}', space=vmem, size = 0x800, scoped, tag = 'output window, operand 0, single buffered']
    #allocation6 [shape = 's32[1]{0}', space=sflag, size = 0x4, scoped, tag = 'scoped memory for tpu_custom_call.1']
    %20 = vsyncpa [#allocation6], 0
    // Predicated region
    $region2: #{tpu_custom_call.1} parent=1 // pred_check
      _
    $region3: #{tpu_custom_call.1} parent=1 // pred_check_branch
      %22 = sbr.rel (0) target = $region5
    $region4: #{tpu_custom_call.1} parent=1 // pred_region
      _
    $region5: #{tpu_custom_call.1} parent=1 // pred_fallthru
      _
    // Predicated region
    $region6: #{tpu_custom_call.1} parent=1 // pred_check
      _
    $region7: #{tpu_custom_call.1} parent=1 // pred_check_branch
      %24 = sbr.rel (0) target = $region9
    $region8: #{tpu_custom_call.1} parent=1 // pred_region
      _
    $region9: #{tpu_custom_call.1} parent=1 // pred_fallthru
      _
    // Predicated region
    $region10: #{tpu_custom_call.1} parent=1 // pred_check
      _
    $region11: #{tpu_custom_call.1} parent=1 // pred_check_branch
      %26 = sbr.rel (0) target = $region13
    $region12: #{tpu_custom_call.1} parent=1 // pred_region
      _
    $region13: #{tpu_custom_call.1} parent=1 // pred_fallthru
      _
    // Predicated region
    $region14: #{tpu_custom_call.1} parent=1 // pred_check
      _
    $region15: #{tpu_custom_call.1} parent=1 // pred_check_branch
      %28 = sbr.rel (0) target = $region17
    $region16: #{tpu_custom_call.1} parent=1 // pred_region
      _
    $region17: #{tpu_custom_call.1} parent=1 // pred_fallthru
      _
    // Predicated region
    $region18: #{tpu_custom_call.1} parent=1 // pred_check
      _
    $region19: #{tpu_custom_call.1} parent=1 // pred_check_branch
      %30 = sbr.rel (0) target = $region21
    $region20: #{tpu_custom_call.1} parent=1 // pred_region
      _
    $region21: #{tpu_custom_call.1} parent=1 // pred_fallthru
      _
    // Predicated region
    $region22: #{tpu_custom_call.1} parent=1 // pred_check
      _
    $region23: #{tpu_custom_call.1} parent=1 // pred_check_branch
      %32 = sbr.rel (0) target = $region25
    $region24: #{tpu_custom_call.1} parent=1 // pred_region
      _
    $region25: #{tpu_custom_call.1} parent=1 // pred_fallthru
      _
    // Predicated region
    $region26: #{tpu_custom_call.1} parent=1 // pred_check
      _
    $region27: #{tpu_custom_call.1} parent=1 // pred_check_branch
      %34 = sbr.rel (0) target = $region29
    $region28: #{tpu_custom_call.1} parent=1 // pred_region
      _
    $region29: #{tpu_custom_call.1} parent=1 // pred_fallthru
      _
    // Predicated region
    $region30: #{tpu_custom_call.1} parent=1 // pred_check
      _
    $region31: #{tpu_custom_call.1} parent=1 // pred_check_branch
      %36 = sbr.rel (0) target = $region33
    $region32: #{tpu_custom_call.1} parent=1 // pred_region
      _
    $region33: #{tpu_custom_call.1} parent=1 // pred_fallthru
      _
    // Predicated region
    $region34: #{tpu_custom_call.1} parent=1 // pred_check
      _
    $region35: #{tpu_custom_call.1} parent=1 // pred_check_branch
      %38 = sbr.rel (0) target = $region37
    $region36: #{tpu_custom_call.1} parent=1 // pred_region
      _
    $region37: #{tpu_custom_call.1} parent=1 // pred_fallthru
      _
    // Predicated region
    $region38: #{tpu_custom_call.1} parent=1 // pred_check
      _
    $region39: #{tpu_custom_call.1} parent=1 // pred_check_branch
      %40 = sbr.rel (0) target = $region41
    $region40: #{tpu_custom_call.1} parent=1 // pred_region
      _
    $region41: #{tpu_custom_call.1} parent=1 // pred_fallthru
      _
    // Predicated region
    $region42: #{tpu_custom_call.1} parent=1 // pred_check
      _
    $region43: #{tpu_custom_call.1} parent=1 // pred_check_branch
      %42 = sbr.rel (0) target = $region45
    $region44: #{tpu_custom_call.1} parent=1 // pred_region
      _
    $region45: #{tpu_custom_call.1} parent=1 // pred_fallthru
      _
    // Predicated region
    $region46: #{tpu_custom_call.1} parent=1 // pred_check
      _
    $region47: #{tpu_custom_call.1} parent=1 // pred_check_branch
      %44 = sbr.rel (0) target = $region49
    $region48: #{tpu_custom_call.1} parent=1 // pred_region
      _
    $region49: #{tpu_custom_call.1} parent=1 // pred_fallthru
      _
    // Predicated region
    $region50: #{tpu_custom_call.1} parent=1 // pred_check
      _
    $region51: #{tpu_custom_call.1} parent=1 // pred_check_branch
      %46 = sbr.rel (0) target = $region53
    $region52: #{tpu_custom_call.1} parent=1 // pred_region
      _
    $region53: #{tpu_custom_call.1} parent=1 // pred_fallthru
      _
    // Predicated region
    $region54: #{tpu_custom_call.1} parent=1 // pred_check
      _
    $region55: #{tpu_custom_call.1} parent=1 // pred_check_branch
      %48 = sbr.rel (0) target = $region57
    $region56: #{tpu_custom_call.1} parent=1 // pred_region
      _
    $region57: #{tpu_custom_call.1} parent=1 // pred_fallthru
      _
    // Predicated region
    $region58: #{tpu_custom_call.1} parent=1 // pred_check
      _
    $region59: #{tpu_custom_call.1} parent=1 // pred_check_branch
      %50 = sbr.rel (0) target = $region61
    $region60: #{tpu_custom_call.1} parent=1 // pred_region
      _
    $region61: #{tpu_custom_call.1} parent=1 // pred_fallthru
      _
    %v52 = vld [vmem:[%s2] sm:$0xf]
    %v53 = vld [vmem:[%s2 + $0x4] sm:$0xf]
    %v54 = vld [vmem:[%s2 + $0x8] sm:$0xf]
    %v55 = vld [vmem:[%s2 + $0xc] sm:$0xf]
    %v56 = vld [vmem:[%s0] sm:$0xf]
    %v57 = vld [vmem:[%s0 + $0x4] sm:$0xf]
    %v58 = vld [vmem:[%s0 + $0x8] sm:$0xf]
    %v59 = vld [vmem:[%s0 + $0xc] sm:$0xf]
    %v60 = vld [vmem:[%s0 + $0x10] sm:$0xf]
    %v61 = vld [vmem:[%s0 + $0x14] sm:$0xf]
    %v62 = vld [vmem:[%s0 + $0x18] sm:$0xf]
    %v63 = vld [vmem:[%s0 + $0x1c] sm:$0xf]
    %v64 = vld [vmem:[%s1] sm:$0xf]
    %v65 = vld [vmem:[%s3] sm:$0x1]
    %v67 = vlaneseq
    %v68 = vshrl.u32 %v67, 7
    %v69 = vsub.s32 0, %v68
    %v70 = vrot.slane %v65, %v69
    %v80 = vunpack.c.l.b16 %v56
    %v81 = vunpack.c.l.b16 %v57
    %v82 = vunpack.c.l.b16 %v58
    %v83 = vunpack.c.l.b16 %v59
    %v84 = vunpack.c.l.b16 %v60
    %v85 = vunpack.c.l.b16 %v61
    %v86 = vunpack.c.l.b16 %v62
    %v87 = vunpack.c.l.b16 %v63
    %v88 = vpack.c.b16 %v81, %v80
    %v89 = vpack.c.b16 %v83, %v82
    %v90 = vpack.c.b16 %v85, %v84
    %v91 = vpack.c.b16 %v87, %v86
    %vm92 = vcmask 64512
    %v94 = vsel %vm92, %v88, 0
    %v97 = vsel %vm92, %v89, 0
    %v100 = vsel %vm92, %v90, 0
    %v103 = vsel %vm92, %v91, 0
    %vm105 = vcmask 1043456
    %v107 = vsel %vm105, %v64, 0
    %109 = vmatprep.subr.bf16.mxu0 0
    %110 = vmatpush1.bf16.msra.mxu0 0
    %111 = vmatprep.subr.bf16.mxu0 0
    %112 = vmatpush1.bf16.msra.mxu0 0
    %113 = vmatprep.subr.bf16.mxu0 0
    %114 = vmatpush1.bf16.msra.mxu0 0
    %115 = vmatprep.subr.bf16.mxu0 0
    %116 = vmatpush1.bf16.msra.mxu0 0
    %117 = vmatprep.subr.bf16.mxu0 0
    %118 = vmatpush1.bf16.msra.mxu0 0
    %119 = vmatprep.subr.bf16.mxu0 0
    %120 = vmatpush1.bf16.msra.mxu0 0
    %121 = vmatprep.subr.bf16.mxu0 0
    %122 = vmatpush1.bf16.msra.mxu0 0
    %123 = vmatprep.subr.bf16.mxu0 0
    %124 = vmatpush1.bf16.msra.mxu0 %v107
    %125 = vmatprep.subr.bf16.mxu0 0
    %126 = vmatpush2.bf16.msra.mxu0 0
    %127 = vmatprep.subr.bf16.mxu0 0
    %128 = vmatpush2.bf16.msra.mxu0 0
    %129 = vmatprep.subr.bf16.mxu0 0
    %130 = vmatpush2.bf16.msra.mxu0 0
    %131 = vmatprep.subr.bf16.mxu0 0
    %132 = vmatpush2.bf16.msra.mxu0 0
    %133 = vmatprep.subr.bf16.mxu0 0
    %134 = vmatpush2.bf16.msra.mxu0 0
    %135 = vmatprep.subr.bf16.mxu0 0
    %136 = vmatpush2.bf16.msra.mxu0 0
    %137 = vmatprep.subr.bf16.mxu0 0
    %138 = vmatpush2.bf16.msra.mxu0 0
    %139 = vmatprep.subr.bf16.mxu0 0
    %140 = vmatpush2.bf16.msra.mxu0 0
    %141 = vmatprep.mubr.bf16.mxu0 0
    %142 = vmatmul.mubr.bf16.gmra.mxu0 %v94
    %v143 = vpop.f32.mrf.mxu0
    %v144 = vadd.f32 %v70, %v143
    %v145 = vpop.f32.mrf.mxu0
    %v146 = vpop.f32.mrf.mxu0
    %v147 = vadd.f32 %v70, %v146
    %v148 = vpop.f32.mrf.mxu0
    %149 = vmatprep.mubr.bf16.mxu0 0
    %150 = vmatmul.mubr.bf16.gmra.mxu0 %v97
    %v151 = vpop.f32.mrf.mxu0
    %v152 = vadd.f32 %v70, %v151
    %v153 = vpop.f32.mrf.mxu0
    %v154 = vpop.f32.mrf.mxu0
    %v155 = vadd.f32 %v70, %v154
    %v156 = vpop.f32.mrf.mxu0
    %157 = vmatprep.mubr.bf16.mxu0 0
    %158 = vmatmul.mubr.bf16.gmra.mxu0 %v100
    %v159 = vpop.f32.mrf.mxu0
    %v160 = vadd.f32 %v70, %v159
    %v161 = vpop.f32.mrf.mxu0
    %v162 = vpop.f32.mrf.mxu0
    %v163 = vadd.f32 %v70, %v162
    %v164 = vpop.f32.mrf.mxu0
    %165 = vmatprep.mubr.bf16.mxu0 0
    %166 = vmatmul.mubr.bf16.gmra.mxu0 %v103
    %v167 = vpop.f32.mrf.mxu0
    %v168 = vadd.f32 %v70, %v167
    %v169 = vpop.f32.mrf.mxu0
    %v170 = vpop.f32.mrf.mxu0
    %v171 = vadd.f32 %v70, %v170
    %v172 = vpop.f32.mrf.mxu0
    %173 = vdwg.mxu0
    %174 = vst [vmem:[#allocation4] sm:$0xff] %v144
    %175 = vst [vmem:[#allocation4 + $0x8] sm:$0xff] %v147
    %176 = vst [vmem:[#allocation4 + $0x10] sm:$0xff] %v152
    %177 = vst [vmem:[#allocation4 + $0x18] sm:$0xff] %v155
    %178 = vst [vmem:[#allocation4 + $0x20] sm:$0xff] %v160
    %179 = vst [vmem:[#allocation4 + $0x28] sm:$0xff] %v163
    %180 = vst [vmem:[#allocation4 + $0x30] sm:$0xff] %v168
    %181 = vst [vmem:[#allocation4 + $0x38] sm:$0xff] %v171
    %v182 = vld [vmem:[#allocation4] sm:$0xff]
    %v187 = vunpack.c.l.b16 %v52
    %v188 = vunpack.c.l.b16 %v53
    %v189 = vunpack.c.l.b16 %v54
    %v190 = vunpack.c.l.b16 %v55
    %v191 = vpack.c.b16 %v188, %v187
    %v192 = vpack.c.b16 %v190, %v189
    %vm195 = vcmask 261120
    %v197 = vsel %vm195, 0, 0
    %199 = vmatprep.subr.bf16.mxu0 0
    %200 = vmatpush1.bf16.msra.mxu0 0
    %201 = vmatprep.subr.bf16.mxu0 0
    %202 = vmatpush1.bf16.msra.mxu0 0
    %203 = vmatprep.subr.bf16.mxu0 0
    %204 = vmatpush1.bf16.msra.mxu0 0
    %205 = vmatprep.subr.bf16.mxu0 0
    %206 = vmatpush1.bf16.msra.mxu0 0
    %207 = vmatprep.subr.bf16.mxu0 0
    %208 = vmatpush1.bf16.msra.mxu0 0
    %209 = vmatprep.subr.bf16.mxu0 0
    %210 = vmatpush1.bf16.msra.mxu0 0
    %211 = vmatprep.subr.bf16.mxu0 0
    %212 = vmatpush1.bf16.msra.mxu0 %v192
    %213 = vmatprep.subr.bf16.mxu0 0
    %214 = vmatpush1.bf16.msra.mxu0 %v191
    %215 = vmatprep.subr.bf16.mxu0 0
    %216 = vmatpush2.bf16.msra.mxu0 0
    %217 = vmatprep.subr.bf16.mxu0 0
    %218 = vmatpush2.bf16.msra.mxu0 0
    %219 = vmatprep.subr.bf16.mxu0 0
    %220 = vmatpush2.bf16.msra.mxu0 0
    %221 = vmatprep.subr.bf16.mxu0 0
    %222 = vmatpush2.bf16.msra.mxu0 0
    %223 = vmatprep.subr.bf16.mxu0 0
    %224 = vmatpush2.bf16.msra.mxu0 0
    %225 = vmatprep.subr.bf16.mxu0 0
    %226 = vmatpush2.bf16.msra.mxu0 0
    %227 = vmatprep.subr.bf16.mxu0 0
    %228 = vmatpush2.bf16.msra.mxu0 0
    %229 = vmatprep.subr.bf16.mxu0 0
    %230 = vmatpush2.bf16.msra.mxu0 0
    %231 = vmatprep.mubr.bf16.mxu0 0
    %232 = vmatmul.mubr.bf16.gmra.mxu0 %v197
    %v233 = vpop.f32.mrf.mxu0
    %v234 = vadd.f32 0.0, %v233
    %v235 = vpop.f32.mrf.mxu0
    %v236 = vpop.f32.mrf.mxu0
    %v237 = vpop.f32.mrf.mxu0
    %238 = vdwg.mxu0
    %v239 = vadd.f32 %v182, %v234
    %v240 = vxor.u32 %v239, 2147483648
    %v241 = vmul.f32 %v240, 1.442695
    %v242 = vpow.pop %v241
    %v243 = vadd.f32 %v242, 1.0
    %v244 = vrcp.pop %v243
    %v245 = vmul.f32 1.0, %v244
    %v246 = vtanh.pop %v239
    %v247 = vmul.f32 %v245, 0.0
    %249 = vrot.lane.b32.xlu0 %v246, 64
    %v250 = vpop.permute.xlu0 %249
    %v252 = vmul.f32 %v245, %v250
    %254 = vrot.lane.b32.xlu0 %v252, 32
    %v255 = vpop.permute.xlu0 %254
    %v257 = vadd.f32 %v247, %v255
    %v258 = vtanh.pop %v257
    %260 = vrot.lane.b32.xlu0 %v258, 64
    %v261 = vpop.permute.xlu0 %260
    %v263 = vmul.f32 %v245, %v261
    %v264 = vpack.c.bf16 %v263, %v263
    %v266 = vunpack.c.l.b16 %v264
    %v267 = vpack.c.b16 %v266, %v266
    %268 = vrot.lane.b32.xlu0 %v267, 32
    %v269 = vpop.permute.xlu0 %268
    %vm271 = vcmask 257024
    %272 = vst.msk [vmem:[#allocation3] sm:$0xf] %vm271, %v269
    %s273 = scalar_lea.vmem [#allocation4], 8
    %v274 = vld [vmem:[%s273] sm:$0xff]
    %275 = vrot.lane.b32.xlu0 %v264, 32
    %v276 = vpop.permute.xlu0 %275
    %v278 = vsel %vm195, %v276, 0
    %280 = vmatprep.subr.bf16.mxu0 0
    %281 = vmatpush1.bf16.msra.mxu0 0
    %282 = vmatprep.subr.bf16.mxu0 0
    %283 = vmatpush1.bf16.msra.mxu0 0
    %284 = vmatprep.subr.bf16.mxu0 0
    %285 = vmatpush1.bf16.msra.mxu0 0
    %286 = vmatprep.subr.bf16.mxu0 0
    %287 = vmatpush1.bf16.msra.mxu0 0
    %288 = vmatprep.subr.bf16.mxu0 0
    %289 = vmatpush1.bf16.msra.mxu0 0
    %290 = vmatprep.subr.bf16.mxu0 0
    %291 = vmatpush1.bf16.msra.mxu0 0
    %292 = vmatprep.subr.bf16.mxu0 0
    %293 = vmatpush1.bf16.msra.mxu0 %v192
    %294 = vmatprep.subr.bf16.mxu0 0
    %295 = vmatpush1.bf16.msra.mxu0 %v191
    %296 = vmatprep.subr.bf16.mxu0 0
    %297 = vmatpush2.bf16.msra.mxu0 0
    %298 = vmatprep.subr.bf16.mxu0 0
    %299 = vmatpush2.bf16.msra.mxu0 0
    %300 = vmatprep.subr.bf16.mxu0 0
    %301 = vmatpush2.bf16.msra.mxu0 0
    %302 = vmatprep.subr.bf16.mxu0 0
    %303 = vmatpush2.bf16.msra.mxu0 0
    %304 = vmatprep.subr.bf16.mxu0 0
    %305 = vmatpush2.bf16.msra.mxu0 0
    %306 = vmatprep.subr.bf16.mxu0 0
    %307 = vmatpush2.bf16.msra.mxu0 0
    %308 = vmatprep.subr.bf16.mxu0 0
    %309 = vmatpush2.bf16.msra.mxu0 0
    %310 = vmatprep.subr.bf16.mxu0 0
    %311 = vmatpush2.bf16.msra.mxu0 0
    %312 = vmatprep.mubr.bf16.mxu0 0
    %313 = vmatmul.mubr.bf16.gmra.mxu0 %v278
    %v314 = vpop.f32.mrf.mxu0
    %v315 = vadd.f32 0.0, %v314
    %v316 = vpop.f32.mrf.mxu0
    %v317 = vpop.f32.mrf.mxu0
    %v318 = vpop.f32.mrf.mxu0
    %319 = vdwg.mxu0
    %v320 = vadd.f32 %v274, %v315
    %v321 = vxor.u32 %v320, 2147483648
    %v322 = vmul.f32 %v321, 1.442695
    %v323 = vpow.pop %v322
    %v324 = vadd.f32 %v323, 1.0
    %v325 = vrcp.pop %v324
    %v326 = vmul.f32 1.0, %v325
    %v327 = vtanh.pop %v320
    %v328 = vmul.f32 %v326, %v257
    %330 = vrot.lane.b32.xlu0 %v327, 64
    %v331 = vpop.permute.xlu0 %330
    %v333 = vmul.f32 %v326, %v331
    %335 = vrot.lane.b32.xlu0 %v333, 32
    %v336 = vpop.permute.xlu0 %335
    %v338 = vadd.f32 %v328, %v336
    %v339 = vtanh.pop %v338
    %341 = vrot.lane.b32.xlu0 %v339, 64
    %v342 = vpop.permute.xlu0 %341
    %v344 = vmul.f32 %v326, %v342
    %v345 = vpack.c.bf16 %v344, %v344
    %v347 = vunpack.c.l.b16 %v345
    %v348 = vpack.c.b16 %v347, %v347
    %349 = vrot.lane.b32.xlu0 %v348, 32
    %v350 = vpop.permute.xlu0 %349
    %s352 = scalar_lea.vmem [#allocation3], 4
    %353 = vst.msk [vmem:[%s352] sm:$0xf] %vm271, %v350
    %s354 = scalar_lea.vmem [#allocation4], 16
    %v355 = vld [vmem:[%s354] sm:$0xff]
    %356 = vrot.lane.b32.xlu0 %v345, 32
    %v357 = vpop.permute.xlu0 %356
    %v359 = vsel %vm195, %v357, 0
    %361 = vmatprep.subr.bf16.mxu0 0
    %362 = vmatpush1.bf16.msra.mxu0 0
    %363 = vmatprep.subr.bf16.mxu0 0
    %364 = vmatpush1.bf16.msra.mxu0 0
    %365 = vmatprep.subr.bf16.mxu0 0
    %366 = vmatpush1.bf16.msra.mxu0 0
    %367 = vmatprep.subr.bf16.mxu0 0
    %368 = vmatpush1.bf16.msra.mxu0 0
    %369 = vmatprep.subr.bf16.mxu0 0
    %370 = vmatpush1.bf16.msra.mxu0 0
    %371 = vmatprep.subr.bf16.mxu0 0
    %372 = vmatpush1.bf16.msra.mxu0 0
    %373 = vmatprep.subr.bf16.mxu0 0
    %374 = vmatpush1.bf16.msra.mxu0 %v192
    %375 = vmatprep.subr.bf16.mxu0 0
    %376 = vmatpush1.bf16.msra.mxu0 %v191
    %377 = vmatprep.subr.bf16.mxu0 0
    %378 = vmatpush2.bf16.msra.mxu0 0
    %379 = vmatprep.subr.bf16.mxu0 0
    %380 = vmatpush2.bf16.msra.mxu0 0
    %381 = vmatprep.subr.bf16.mxu0 0
    %382 = vmatpush2.bf16.msra.mxu0 0
    %383 = vmatprep.subr.bf16.mxu0 0
    %384 = vmatpush2.bf16.msra.mxu0 0
    %385 = vmatprep.subr.bf16.mxu0 0
    %386 = vmatpush2.bf16.msra.mxu0 0
    %387 = vmatprep.subr.bf16.mxu0 0
    %388 = vmatpush2.bf16.msra.mxu0 0
    %389 = vmatprep.subr.bf16.mxu0 0
    %390 = vmatpush2.bf16.msra.mxu0 0
    %391 = vmatprep.subr.bf16.mxu0 0
    %392 = vmatpush2.bf16.msra.mxu0 0
    %393 = vmatprep.mubr.bf16.mxu0 0
    %394 = vmatmul.mubr.bf16.gmra.mxu0 %v359
    %v395 = vpop.f32.mrf.mxu0
    %v396 = vadd.f32 0.0, %v395
    %v397 = vpop.f32.mrf.mxu0
    %v398 = vpop.f32.mrf.mxu0
    %v399 = vpop.f32.mrf.mxu0
    %400 = vdwg.mxu0
    %v401 = vadd.f32 %v355, %v396
    %v402 = vxor.u32 %v401, 2147483648
    %v403 = vmul.f32 %v402, 1.442695
    %v404 = vpow.pop %v403
    %v405 = vadd.f32 %v404, 1.0
    %v406 = vrcp.pop %v405
    %v407 = vmul.f32 1.0, %v406
    %v408 = vtanh.pop %v401
    %v409 = vmul.f32 %v407, %v338
    %411 = vrot.lane.b32.xlu0 %v408, 64
    %v412 = vpop.permute.xlu0 %411
    %v414 = vmul.f32 %v407, %v412
    %416 = vrot.lane.b32.xlu0 %v414, 32
    %v417 = vpop.permute.xlu0 %416
    %v419 = vadd.f32 %v409, %v417
    %v420 = vtanh.pop %v419
    %422 = vrot.lane.b32.xlu0 %v420, 64
    %v423 = vpop.permute.xlu0 %422
    %v425 = vmul.f32 %v407, %v423
    %v426 = vpack.c.bf16 %v425, %v425
    %v428 = vunpack.c.l.b16 %v426
    %v429 = vpack.c.b16 %v428, %v428
    %430 = vrot.lane.b32.xlu0 %v429, 32
    %v431 = vpop.permute.xlu0 %430
    %s433 = scalar_lea.vmem [#allocation3], 8
    %434 = vst.msk [vmem:[%s433] sm:$0xf] %vm271, %v431
    %s435 = scalar_lea.vmem [#allocation4], 24
    %v436 = vld [vmem:[%s435] sm:$0xff]
    %437 = vrot.lane.b32.xlu0 %v426, 32
    %v438 = vpop.permute.xlu0 %437
    %v440 = vsel %vm195, %v438, 0
    %442 = vmatprep.subr.bf16.mxu0 0
    %443 = vmatpush1.bf16.msra.mxu0 0
    %444 = vmatprep.subr.bf16.mxu0 0
    %445 = vmatpush1.bf16.msra.mxu0 0
    %446 = vmatprep.subr.bf16.mxu0 0
    %447 = vmatpush1.bf16.msra.mxu0 0
    %448 = vmatprep.subr.bf16.mxu0 0
    %449 = vmatpush1.bf16.msra.mxu0 0
    %450 = vmatprep.subr.bf16.mxu0 0
    %451 = vmatpush1.bf16.msra.mxu0 0
    %452 = vmatprep.subr.bf16.mxu0 0
    %453 = vmatpush1.bf16.msra.mxu0 0
    %454 = vmatprep.subr.bf16.mxu0 0
    %455 = vmatpush1.bf16.msra.mxu0 %v192
    %456 = vmatprep.subr.bf16.mxu0 0
    %457 = vmatpush1.bf16.msra.mxu0 %v191
    %458 = vmatprep.subr.bf16.mxu0 0
    %459 = vmatpush2.bf16.msra.mxu0 0
    %460 = vmatprep.subr.bf16.mxu0 0
    %461 = vmatpush2.bf16.msra.mxu0 0
    %462 = vmatprep.subr.bf16.mxu0 0
    %463 = vmatpush2.bf16.msra.mxu0 0
    %464 = vmatprep.subr.bf16.mxu0 0
    %465 = vmatpush2.bf16.msra.mxu0 0
    %466 = vmatprep.subr.bf16.mxu0 0
    %467 = vmatpush2.bf16.msra.mxu0 0
    %468 = vmatprep.subr.bf16.mxu0 0
    %469 = vmatpush2.bf16.msra.mxu0 0
    %470 = vmatprep.subr.bf16.mxu0 0
    %471 = vmatpush2.bf16.msra.mxu0 0
    %472 = vmatprep.subr.bf16.mxu0 0
    %473 = vmatpush2.bf16.msra.mxu0 0
    %474 = vmatprep.mubr.bf16.mxu0 0
    %475 = vmatmul.mubr.bf16.gmra.mxu0 %v440
    %v476 = vpop.f32.mrf.mxu0
    %v477 = vadd.f32 0.0, %v476
    %v478 = vpop.f32.mrf.mxu0
    %v479 = vpop.f32.mrf.mxu0
    %v480 = vpop.f32.mrf.mxu0
    %481 = vdwg.mxu0
    %v482 = vadd.f32 %v436, %v477
    %v483 = vxor.u32 %v482, 2147483648
    %v484 = vmul.f32 %v483, 1.442695
    %v485 = vpow.pop %v484
    %v486 = vadd.f32 %v485, 1.0
    %v487 = vrcp.pop %v486
    %v488 = vmul.f32 1.0, %v487
    %v489 = vtanh.pop %v482
    %v490 = vmul.f32 %v488, %v419
    %492 = vrot.lane.b32.xlu0 %v489, 64
    %v493 = vpop.permute.xlu0 %492
    %v495 = vmul.f32 %v488, %v493
    %497 = vrot.lane.b32.xlu0 %v495, 32
    %v498 = vpop.permute.xlu0 %497
    %v500 = vadd.f32 %v490, %v498
    %v501 = vtanh.pop %v500
    %503 = vrot.lane.b32.xlu0 %v501, 64
    %v504 = vpop.permute.xlu0 %503
    %v506 = vmul.f32 %v488, %v504
    %v507 = vpack.c.bf16 %v506, %v506
    %v509 = vunpack.c.l.b16 %v507
    %v510 = vpack.c.b16 %v509, %v509
    %511 = vrot.lane.b32.xlu0 %v510, 32
    %v512 = vpop.permute.xlu0 %511
    %s514 = scalar_lea.vmem [#allocation3], 12
    %515 = vst.msk [vmem:[%s514] sm:$0xf] %vm271, %v512
    %s516 = scalar_lea.vmem [#allocation4], 32
    %v517 = vld [vmem:[%s516] sm:$0xff]
    %518 = vrot.lane.b32.xlu0 %v507, 32
    %v519 = vpop.permute.xlu0 %518
    %v521 = vsel %vm195, %v519, 0
    %523 = vmatprep.subr.bf16.mxu0 0
    %524 = vmatpush1.bf16.msra.mxu0 0
    %525 = vmatprep.subr.bf16.mxu0 0
    %526 = vmatpush1.bf16.msra.mxu0 0
    %527 = vmatprep.subr.bf16.mxu0 0
    %528 = vmatpush1.bf16.msra.mxu0 0
    %529 = vmatprep.subr.bf16.mxu0 0
    %530 = vmatpush1.bf16.msra.mxu0 0
    %531 = vmatprep.subr.bf16.mxu0 0
    %532 = vmatpush1.bf16.msra.mxu0 0
    %533 = vmatprep.subr.bf16.mxu0 0
    %534 = vmatpush1.bf16.msra.mxu0 0
    %535 = vmatprep.subr.bf16.mxu0 0
    %536 = vmatpush1.bf16.msra.mxu0 %v192
    %537 = vmatprep.subr.bf16.mxu0 0
    %538 = vmatpush1.bf16.msra.mxu0 %v191
    %539 = vmatprep.subr.bf16.mxu0 0
    %540 = vmatpush2.bf16.msra.mxu0 0
    %541 = vmatprep.subr.bf16.mxu0 0
    %542 = vmatpush2.bf16.msra.mxu0 0
    %543 = vmatprep.subr.bf16.mxu0 0
    %544 = vmatpush2.bf16.msra.mxu0 0
    %545 = vmatprep.subr.bf16.mxu0 0
    %546 = vmatpush2.bf16.msra.mxu0 0
    %547 = vmatprep.subr.bf16.mxu0 0
    %548 = vmatpush2.bf16.msra.mxu0 0
    %549 = vmatprep.subr.bf16.mxu0 0
    %550 = vmatpush2.bf16.msra.mxu0 0
    %551 = vmatprep.subr.bf16.mxu0 0
    %552 = vmatpush2.bf16.msra.mxu0 0
    %553 = vmatprep.subr.bf16.mxu0 0
    %554 = vmatpush2.bf16.msra.mxu0 0
    %555 = vmatprep.mubr.bf16.mxu0 0
    %556 = vmatmul.mubr.bf16.gmra.mxu0 %v521
    %v557 = vpop.f32.mrf.mxu0
    %v558 = vadd.f32 0.0, %v557
    %v559 = vpop.f32.mrf.mxu0
    %v560 = vpop.f32.mrf.mxu0
    %v561 = vpop.f32.mrf.mxu0
    %562 = vdwg.mxu0
    %v563 = vadd.f32 %v517, %v558
    %v564 = vxor.u32 %v563, 2147483648
    %v565 = vmul.f32 %v564, 1.442695
    %v566 = vpow.pop %v565
    %v567 = vadd.f32 %v566, 1.0
    %v568 = vrcp.pop %v567
    %v569 = vmul.f32 1.0, %v568
    %v570 = vtanh.pop %v563
    %v571 = vmul.f32 %v569, %v500
    %573 = vrot.lane.b32.xlu0 %v570, 64
    %v574 = vpop.permute.xlu0 %573
    %v576 = vmul.f32 %v569, %v574
    %578 = vrot.lane.b32.xlu0 %v576, 32
    %v579 = vpop.permute.xlu0 %578
    %v581 = vadd.f32 %v571, %v579
    %v582 = vtanh.pop %v581
    %584 = vrot.lane.b32.xlu0 %v582, 64
    %v585 = vpop.permute.xlu0 %584
    %v587 = vmul.f32 %v569, %v585
    %v588 = vpack.c.bf16 %v587, %v587
    %v590 = vunpack.c.l.b16 %v588
    %v591 = vpack.c.b16 %v590, %v590
    %592 = vrot.lane.b32.xlu0 %v591, 32
    %v593 = vpop.permute.xlu0 %592
    %s595 = scalar_lea.vmem [#allocation3], 16
    %596 = vst.msk [vmem:[%s595] sm:$0xf] %vm271, %v593
    %s597 = scalar_lea.vmem [#allocation4], 40
    %v598 = vld [vmem:[%s597] sm:$0xff]
    %599 = vrot.lane.b32.xlu0 %v588, 32
    %v600 = vpop.permute.xlu0 %599
    %v602 = vsel %vm195, %v600, 0
    %604 = vmatprep.subr.bf16.mxu0 0
    %605 = vmatpush1.bf16.msra.mxu0 0
    %606 = vmatprep.subr.bf16.mxu0 0
    %607 = vmatpush1.bf16.msra.mxu0 0
    %608 = vmatprep.subr.bf16.mxu0 0
    %609 = vmatpush1.bf16.msra.mxu0 0
    %610 = vmatprep.subr.bf16.mxu0 0
    %611 = vmatpush1.bf16.msra.mxu0 0
    %612 = vmatprep.subr.bf16.mxu0 0
    %613 = vmatpush1.bf16.msra.mxu0 0
    %614 = vmatprep.subr.bf16.mxu0 0
    %615 = vmatpush1.bf16.msra.mxu0 0
    %616 = vmatprep.subr.bf16.mxu0 0
    %617 = vmatpush1.bf16.msra.mxu0 %v192
    %618 = vmatprep.subr.bf16.mxu0 0
    %619 = vmatpush1.bf16.msra.mxu0 %v191
    %620 = vmatprep.subr.bf16.mxu0 0
    %621 = vmatpush2.bf16.msra.mxu0 0
    %622 = vmatprep.subr.bf16.mxu0 0
    %623 = vmatpush2.bf16.msra.mxu0 0
    %624 = vmatprep.subr.bf16.mxu0 0
    %625 = vmatpush2.bf16.msra.mxu0 0
    %626 = vmatprep.subr.bf16.mxu0 0
    %627 = vmatpush2.bf16.msra.mxu0 0
    %628 = vmatprep.subr.bf16.mxu0 0
    %629 = vmatpush2.bf16.msra.mxu0 0
    %630 = vmatprep.subr.bf16.mxu0 0
    %631 = vmatpush2.bf16.msra.mxu0 0
    %632 = vmatprep.subr.bf16.mxu0 0
    %633 = vmatpush2.bf16.msra.mxu0 0
    %634 = vmatprep.subr.bf16.mxu0 0
    %635 = vmatpush2.bf16.msra.mxu0 0
    %636 = vmatprep.mubr.bf16.mxu0 0
    %637 = vmatmul.mubr.bf16.gmra.mxu0 %v602
    %v638 = vpop.f32.mrf.mxu0
    %v639 = vadd.f32 0.0, %v638
    %v640 = vpop.f32.mrf.mxu0
    %v641 = vpop.f32.mrf.mxu0
    %v642 = vpop.f32.mrf.mxu0
    %643 = vdwg.mxu0
    %v644 = vadd.f32 %v598, %v639
    %v645 = vxor.u32 %v644, 2147483648
    %v646 = vmul.f32 %v645, 1.442695
    %v647 = vpow.pop %v646
    %v648 = vadd.f32 %v647, 1.0
    %v649 = vrcp.pop %v648
    %v650 = vmul.f32 1.0, %v649
    %v651 = vtanh.pop %v644
    %v652 = vmul.f32 %v650, %v581
    %654 = vrot.lane.b32.xlu0 %v651, 64
    %v655 = vpop.permute.xlu0 %654
    %v657 = vmul.f32 %v650, %v655
    %659 = vrot.lane.b32.xlu0 %v657, 32
    %v660 = vpop.permute.xlu0 %659
    %v662 = vadd.f32 %v652, %v660
    %v663 = vtanh.pop %v662
    %665 = vrot.lane.b32.xlu0 %v663, 64
    %v666 = vpop.permute.xlu0 %665
    %v668 = vmul.f32 %v650, %v666
    %v669 = vpack.c.bf16 %v668, %v668
    %v671 = vunpack.c.l.b16 %v669
    %v672 = vpack.c.b16 %v671, %v671
    %673 = vrot.lane.b32.xlu0 %v672, 32
    %v674 = vpop.permute.xlu0 %673
    %s676 = scalar_lea.vmem [#allocation3], 20
    %677 = vst.msk [vmem:[%s676] sm:$0xf] %vm271, %v674
    %s678 = scalar_lea.vmem [#allocation4], 48
    %v679 = vld [vmem:[%s678] sm:$0xff]
    %680 = vrot.lane.b32.xlu0 %v669, 32
    %v681 = vpop.permute.xlu0 %680
    %v683 = vsel %vm195, %v681, 0
    %685 = vmatprep.subr.bf16.mxu0 0
    %686 = vmatpush1.bf16.msra.mxu0 0
    %687 = vmatprep.subr.bf16.mxu0 0
    %688 = vmatpush1.bf16.msra.mxu0 0
    %689 = vmatprep.subr.bf16.mxu0 0
    %690 = vmatpush1.bf16.msra.mxu0 0
    %691 = vmatprep.subr.bf16.mxu0 0
    %692 = vmatpush1.bf16.msra.mxu0 0
    %693 = vmatprep.subr.bf16.mxu0 0
    %694 = vmatpush1.bf16.msra.mxu0 0
    %695 = vmatprep.subr.bf16.mxu0 0
    %696 = vmatpush1.bf16.msra.mxu0 0
    %697 = vmatprep.subr.bf16.mxu0 0
    %698 = vmatpush1.bf16.msra.mxu0 %v192
    %699 = vmatprep.subr.bf16.mxu0 0
    %700 = vmatpush1.bf16.msra.mxu0 %v191
    %701 = vmatprep.subr.bf16.mxu0 0
    %702 = vmatpush2.bf16.msra.mxu0 0
    %703 = vmatprep.subr.bf16.mxu0 0
    %704 = vmatpush2.bf16.msra.mxu0 0
    %705 = vmatprep.subr.bf16.mxu0 0
    %706 = vmatpush2.bf16.msra.mxu0 0
    %707 = vmatprep.subr.bf16.mxu0 0
    %708 = vmatpush2.bf16.msra.mxu0 0
    %709 = vmatprep.subr.bf16.mxu0 0
    %710 = vmatpush2.bf16.msra.mxu0 0
    %711 = vmatprep.subr.bf16.mxu0 0
    %712 = vmatpush2.bf16.msra.mxu0 0
    %713 = vmatprep.subr.bf16.mxu0 0
    %714 = vmatpush2.bf16.msra.mxu0 0
    %715 = vmatprep.subr.bf16.mxu0 0
    %716 = vmatpush2.bf16.msra.mxu0 0
    %717 = vmatprep.mubr.bf16.mxu0 0
    %718 = vmatmul.mubr.bf16.gmra.mxu0 %v683
    %v719 = vpop.f32.mrf.mxu0
    %v720 = vadd.f32 0.0, %v719
    %v721 = vpop.f32.mrf.mxu0
    %v722 = vpop.f32.mrf.mxu0
    %v723 = vpop.f32.mrf.mxu0
    %724 = vdwg.mxu0
    %v725 = vadd.f32 %v679, %v720
    %v726 = vxor.u32 %v725, 2147483648
    %v727 = vmul.f32 %v726, 1.442695
    %v728 = vpow.pop %v727
    %v729 = vadd.f32 %v728, 1.0
    %v730 = vrcp.pop %v729
    %v731 = vmul.f32 1.0, %v730
    %v732 = vtanh.pop %v725
    %v733 = vmul.f32 %v731, %v662
    %735 = vrot.lane.b32.xlu0 %v732, 64
    %v736 = vpop.permute.xlu0 %735
    %v738 = vmul.f32 %v731, %v736
    %740 = vrot.lane.b32.xlu0 %v738, 32
    %v741 = vpop.permute.xlu0 %740
    %v743 = vadd.f32 %v733, %v741
    %v744 = vtanh.pop %v743
    %746 = vrot.lane.b32.xlu0 %v744, 64
    %v747 = vpop.permute.xlu0 %746
    %v749 = vmul.f32 %v731, %v747
    %v750 = vpack.c.bf16 %v749, %v749
    %v752 = vunpack.c.l.b16 %v750
    %v753 = vpack.c.b16 %v752, %v752
    %754 = vrot.lane.b32.xlu0 %v753, 32
    %v755 = vpop.permute.xlu0 %754
    %s757 = scalar_lea.vmem [#allocation3], 24
    %758 = vst.msk [vmem:[%s757] sm:$0xf] %vm271, %v755
    %s759 = scalar_lea.vmem [#allocation4], 56
    %v760 = vld [vmem:[%s759] sm:$0xff]
    %761 = vrot.lane.b32.xlu0 %v750, 32
    %v762 = vpop.permute.xlu0 %761
    %v764 = vsel %vm195, %v762, 0
    %766 = vmatprep.subr.bf16.mxu0 0
    %767 = vmatpush1.bf16.msra.mxu0 0
    %768 = vmatprep.subr.bf16.mxu0 0
    %769 = vmatpush1.bf16.msra.mxu0 0
    %770 = vmatprep.subr.bf16.mxu0 0
    %771 = vmatpush1.bf16.msra.mxu0 0
    %772 = vmatprep.subr.bf16.mxu0 0
    %773 = vmatpush1.bf16.msra.mxu0 0
    %774 = vmatprep.subr.bf16.mxu0 0
    %775 = vmatpush1.bf16.msra.mxu0 0
    %776 = vmatprep.subr.bf16.mxu0 0
    %777 = vmatpush1.bf16.msra.mxu0 0
    %778 = vmatprep.subr.bf16.mxu0 0
    %779 = vmatpush1.bf16.msra.mxu0 %v192
    %780 = vmatprep.subr.bf16.mxu0 0
    %781 = vmatpush1.bf16.msra.mxu0 %v191
    %782 = vmatprep.subr.bf16.mxu0 0
    %783 = vmatpush2.bf16.msra.mxu0 0
    %784 = vmatprep.subr.bf16.mxu0 0
    %785 = vmatpush2.bf16.msra.mxu0 0
    %786 = vmatprep.subr.bf16.mxu0 0
    %787 = vmatpush2.bf16.msra.mxu0 0
    %788 = vmatprep.subr.bf16.mxu0 0
    %789 = vmatpush2.bf16.msra.mxu0 0
    %790 = vmatprep.subr.bf16.mxu0 0
    %791 = vmatpush2.bf16.msra.mxu0 0
    %792 = vmatprep.subr.bf16.mxu0 0
    %793 = vmatpush2.bf16.msra.mxu0 0
    %794 = vmatprep.subr.bf16.mxu0 0
    %795 = vmatpush2.bf16.msra.mxu0 0
    %796 = vmatprep.subr.bf16.mxu0 0
    %797 = vmatpush2.bf16.msra.mxu0 0
    %798 = vmatprep.mubr.bf16.mxu0 0
    %799 = vmatmul.mubr.bf16.gmra.mxu0 %v764
    %v800 = vpop.f32.mrf.mxu0
    %v801 = vadd.f32 0.0, %v800
    %v802 = vpop.f32.mrf.mxu0
    %v803 = vpop.f32.mrf.mxu0
    %v804 = vpop.f32.mrf.mxu0
    %805 = vdwg.mxu0
    %v806 = vadd.f32 %v760, %v801
    %v807 = vxor.u32 %v806, 2147483648
    %v808 = vmul.f32 %v807, 1.442695
    %v809 = vpow.pop %v808
    %v810 = vadd.f32 %v809, 1.0
    %v811 = vrcp.pop %v810
    %v812 = vmul.f32 1.0, %v811
    %v813 = vtanh.pop %v806
    %v814 = vmul.f32 %v812, %v743
    %816 = vrot.lane.b32.xlu0 %v813, 64
    %v817 = vpop.permute.xlu0 %816
    %v819 = vmul.f32 %v812, %v817
    %821 = vrot.lane.b32.xlu0 %v819, 32
    %v822 = vpop.permute.xlu0 %821
    %v824 = vadd.f32 %v814, %v822
    %v825 = vtanh.pop %v824
    %827 = vrot.lane.b32.xlu0 %v825, 64
    %v828 = vpop.permute.xlu0 %827
    %v830 = vmul.f32 %v812, %v828
    %v831 = vpack.c.bf16 %v830, %v830
    %v833 = vunpack.c.l.b16 %v831
    %v834 = vpack.c.b16 %v833, %v833
    %835 = vrot.lane.b32.xlu0 %v834, 32
    %v836 = vpop.permute.xlu0 %835
    %s838 = scalar_lea.vmem [#allocation3], 28
    %839 = vst.msk [vmem:[%s838] sm:$0xf] %vm271, %v836
    %v840 = vld [vmem:[%s4] sm:$0x1]
    %v841 = vld [vmem:[%s5] sm:$0x1]
    %v842 = vld [vmem:[#allocation3] sm:$0xf]
    %v843 = vld [vmem:[#allocation3 + $0x4] sm:$0xf]
    %v844 = vld [vmem:[#allocation3 + $0x8] sm:$0xf]
    %v845 = vld [vmem:[#allocation3 + $0xc] sm:$0xf]
    %v846 = vld [vmem:[#allocation3 + $0x10] sm:$0xf]
    %v847 = vld [vmem:[#allocation3 + $0x14] sm:$0xf]
    %v848 = vld [vmem:[#allocation3 + $0x18] sm:$0xf]
    %v849 = vld [vmem:[#allocation3 + $0x1c] sm:$0xf]
    %v850 = vunpack.c.l.bf16 %v842
    %v851 = vunpack.c.l.bf16 %v843
    %v852 = vunpack.c.l.bf16 %v844
    %v853 = vunpack.c.l.bf16 %v845
    %v854 = vunpack.c.l.bf16 %v846
    %v855 = vunpack.c.l.bf16 %v847
    %v856 = vunpack.c.l.bf16 %v848
    %v857 = vunpack.c.l.bf16 %v849
    %v858 = vsel %vm195, %v850, 0.0
    %859 = vadd.xlane.f32.xlu0 %v858
    %v860 = vpop.xlane.xlu0 %859
    %v861 = vsel %vm195, %v851, 0.0
    %862 = vadd.xlane.f32.xlu0 %v861
    %v863 = vpop.xlane.xlu0 %862
    %v864 = vsel %vm195, %v852, 0.0
    %865 = vadd.xlane.f32.xlu0 %v864
    %v866 = vpop.xlane.xlu0 %865
    %v867 = vsel %vm195, %v853, 0.0
    %868 = vadd.xlane.f32.xlu0 %v867
    %v869 = vpop.xlane.xlu0 %868
    %v870 = vsel %vm195, %v854, 0.0
    %871 = vadd.xlane.f32.xlu0 %v870
    %v872 = vpop.xlane.xlu0 %871
    %v873 = vsel %vm195, %v855, 0.0
    %874 = vadd.xlane.f32.xlu0 %v873
    %v875 = vpop.xlane.xlu0 %874
    %v876 = vsel %vm195, %v856, 0.0
    %877 = vadd.xlane.f32.xlu0 %v876
    %v878 = vpop.xlane.xlu0 %877
    %v879 = vsel %vm195, %v857, 0.0
    %880 = vadd.xlane.f32.xlu0 %v879
    %v881 = vpop.xlane.xlu0 %880
    %v882 = vrcp.pop 32.0
    %v883 = vmul.f32 %v860, %v882
    %v884 = vmul.f32 %v863, %v882
    %v885 = vmul.f32 %v866, %v882
    %v886 = vmul.f32 %v869, %v882
    %v887 = vmul.f32 %v872, %v882
    %v888 = vmul.f32 %v875, %v882
    %v889 = vmul.f32 %v878, %v882
    %v890 = vmul.f32 %v881, %v882
    %v891 = vsub.f32 %v850, %v883
    %v892 = vsub.f32 %v851, %v884
    %v893 = vsub.f32 %v852, %v885
    %v894 = vsub.f32 %v853, %v886
    %v895 = vsub.f32 %v854, %v887
    %v896 = vsub.f32 %v855, %v888
    %v897 = vsub.f32 %v856, %v889
    %v898 = vsub.f32 %v857, %v890
    %v899 = vmul.f32 %v891, %v891
    %v900 = vmul.f32 %v892, %v892
    %v901 = vmul.f32 %v893, %v893
    %v902 = vmul.f32 %v894, %v894
    %v903 = vmul.f32 %v895, %v895
    %v904 = vmul.f32 %v896, %v896
    %v905 = vmul.f32 %v897, %v897
    %v906 = vmul.f32 %v898, %v898
    %v907 = vsel %vm195, %v899, 0.0
    %908 = vadd.xlane.f32.xlu0 %v907
    %v909 = vpop.xlane.xlu0 %908
    %v910 = vsel %vm195, %v900, 0.0
    %911 = vadd.xlane.f32.xlu0 %v910
    %v912 = vpop.xlane.xlu0 %911
    %v913 = vsel %vm195, %v901, 0.0
    %914 = vadd.xlane.f32.xlu0 %v913
    %v915 = vpop.xlane.xlu0 %914
    %v916 = vsel %vm195, %v902, 0.0
    %917 = vadd.xlane.f32.xlu0 %v916
    %v918 = vpop.xlane.xlu0 %917
    %v919 = vsel %vm195, %v903, 0.0
    %920 = vadd.xlane.f32.xlu0 %v919
    %v921 = vpop.xlane.xlu0 %920
    %v922 = vsel %vm195, %v904, 0.0
    %923 = vadd.xlane.f32.xlu0 %v922
    %v924 = vpop.xlane.xlu0 %923
    %v925 = vsel %vm195, %v905, 0.0
    %926 = vadd.xlane.f32.xlu0 %v925
    %v927 = vpop.xlane.xlu0 %926
    %v928 = vsel %vm195, %v906, 0.0
    %929 = vadd.xlane.f32.xlu0 %v928
    %v930 = vpop.xlane.xlu0 %929
    %v931 = vmul.f32 %v909, %v882
    %v932 = vmul.f32 %v912, %v882
    %v933 = vmul.f32 %v915, %v882
    %v934 = vmul.f32 %v918, %v882
    %v935 = vmul.f32 %v921, %v882
    %v936 = vmul.f32 %v924, %v882
    %v937 = vmul.f32 %v927, %v882
    %v938 = vmul.f32 %v930, %v882
    %v939 = vadd.f32 %v931, 1e-05
    %v940 = vadd.f32 %v932, 1e-05
    %v941 = vadd.f32 %v933, 1e-05
    %v942 = vadd.f32 %v934, 1e-05
    %v943 = vadd.f32 %v935, 1e-05
    %v944 = vadd.f32 %v936, 1e-05
    %v945 = vadd.f32 %v937, 1e-05
    %v946 = vadd.f32 %v938, 1e-05
    %v947 = vrsqrt.pop %v939
    %v948 = vrsqrt.pop %v940
    %v949 = vrsqrt.pop %v941
    %v950 = vrsqrt.pop %v942
    %v951 = vrsqrt.pop %v943
    %v952 = vrsqrt.pop %v944
    %v953 = vrsqrt.pop %v945
    %v954 = vrsqrt.pop %v946
    %v955 = vmul.f32 %v891, %v947
    %v956 = vmul.f32 %v892, %v948
    %v957 = vmul.f32 %v893, %v949
    %v958 = vmul.f32 %v894, %v950
    %v959 = vmul.f32 %v895, %v951
    %v960 = vmul.f32 %v896, %v952
    %v961 = vmul.f32 %v897, %v953
    %v962 = vmul.f32 %v898, %v954
    %v964 = vlaneseq
    %v965 = vshrl.u32 %v964, 7
    %v966 = vsub.s32 0, %v965
    %v967 = vrot.slane %v840, %v966
    %v969 = vmul.f32 %v955, %v967
    %v970 = vmul.f32 %v956, %v967
    %v971 = vmul.f32 %v957, %v967
    %v972 = vmul.f32 %v958, %v967
    %v973 = vmul.f32 %v959, %v967
    %v974 = vmul.f32 %v960, %v967
    %v975 = vmul.f32 %v961, %v967
    %v976 = vmul.f32 %v962, %v967
    %v978 = vlaneseq
    %v979 = vshrl.u32 %v978, 7
    %v980 = vsub.s32 0, %v979
    %v981 = vrot.slane %v841, %v980
    %v983 = vadd.f32 %v969, %v981
    %v984 = vadd.f32 %v970, %v981
    %v985 = vadd.f32 %v971, %v981
    %v986 = vadd.f32 %v972, %v981
    %v987 = vadd.f32 %v973, %v981
    %v988 = vadd.f32 %v974, %v981
    %v989 = vadd.f32 %v975, %v981
    %v990 = vadd.f32 %v976, %v981
    %v991 = vpack.c.bf16 %v983, %v983
    %v992 = vpack.c.bf16 %v984, %v984
    %v993 = vpack.c.bf16 %v985, %v985
    %v994 = vpack.c.bf16 %v986, %v986
    %v995 = vpack.c.bf16 %v987, %v987
    %v996 = vpack.c.bf16 %v988, %v988
    %v997 = vpack.c.bf16 %v989, %v989
    %v998 = vpack.c.bf16 %v990, %v990
    %999 = vst.msk [vmem:[#allocation2] sm:$0xf] %vm271, %v991
    %1000 = vst.msk [vmem:[#allocation2 + $0x4] sm:$0xf] %vm271, %v992
    %1001 = vst.msk [vmem:[#allocation2 + $0x8] sm:$0xf] %vm271, %v993
    %1002 = vst.msk [vmem:[#allocation2 + $0xc] sm:$0xf] %vm271, %v994
    %1003 = vst.msk [vmem:[#allocation2 + $0x10] sm:$0xf] %vm271, %v995
    %1004 = vst.msk [vmem:[#allocation2 + $0x14] sm:$0xf] %vm271, %v996
    %1005 = vst.msk [vmem:[#allocation2 + $0x18] sm:$0xf] %vm271, %v997
    %1006 = vst.msk [vmem:[#allocation2 + $0x1c] sm:$0xf] %vm271, %v998
    %v1007 = vld [vmem:[%s7] sm:$0xf]
    %v1008 = vld [vmem:[%s7 + $0x4] sm:$0xf]
    %v1009 = vld [vmem:[%s7 + $0x8] sm:$0xf]
    %v1010 = vld [vmem:[%s7 + $0xc] sm:$0xf]
    %v1011 = vld [vmem:[#allocation2] sm:$0xf]
    %v1012 = vld [vmem:[#allocation2 + $0x4] sm:$0xf]
    %v1013 = vld [vmem:[#allocation2 + $0x8] sm:$0xf]
    %v1014 = vld [vmem:[#allocation2 + $0xc] sm:$0xf]
    %v1015 = vld [vmem:[#allocation2 + $0x10] sm:$0xf]
    %v1016 = vld [vmem:[#allocation2 + $0x14] sm:$0xf]
    %v1017 = vld [vmem:[#allocation2 + $0x18] sm:$0xf]
    %v1018 = vld [vmem:[#allocation2 + $0x1c] sm:$0xf]
    %v1019 = vld [vmem:[%s6] sm:$0xf]
    %v1020 = vld [vmem:[%s6 + $0x4] sm:$0xf]
    %v1021 = vld [vmem:[%s6 + $0x8] sm:$0xf]
    %v1022 = vld [vmem:[%s6 + $0xc] sm:$0xf]
    %v1023 = vld [vmem:[%s8] sm:$0x1]
    %v1025 = vlaneseq
    %v1026 = vshrl.u32 %v1025, 7
    %v1027 = vsub.s32 0, %v1026
    %v1028 = vrot.slane %v1023, %v1027
    %v1038 = vunpack.c.l.b16 %v1011
    %v1039 = vunpack.c.l.b16 %v1012
    %v1040 = vunpack.c.l.b16 %v1013
    %v1041 = vunpack.c.l.b16 %v1014
    %v1042 = vunpack.c.l.b16 %v1015
    %v1043 = vunpack.c.l.b16 %v1016
    %v1044 = vunpack.c.l.b16 %v1017
    %v1045 = vunpack.c.l.b16 %v1018
    %v1046 = vpack.c.b16 %v1039, %v1038
    %v1047 = vpack.c.b16 %v1041, %v1040
    %v1048 = vpack.c.b16 %v1043, %v1042
    %v1049 = vpack.c.b16 %v1045, %v1044
    %v1054 = vunpack.c.l.b16 %v1019
    %v1055 = vunpack.c.l.b16 %v1020
    %v1056 = vunpack.c.l.b16 %v1021
    %v1057 = vunpack.c.l.b16 %v1022
    %v1058 = vpack.c.b16 %v1055, %v1054
    %v1059 = vpack.c.b16 %v1057, %v1056
    %v1063 = vsel %vm195, %v1046, 0
    %v1066 = vsel %vm195, %v1047, 0
    %v1069 = vsel %vm195, %v1048, 0
    %v1072 = vsel %vm195, %v1049, 0
    %1074 = vmatprep.subr.bf16.mxu0 0
    %1075 = vmatpush1.bf16.msra.mxu0 0
    %1076 = vmatprep.subr.bf16.mxu0 0
    %1077 = vmatpush1.bf16.msra.mxu0 0
    %1078 = vmatprep.subr.bf16.mxu0 0
    %1079 = vmatpush1.bf16.msra.mxu0 0
    %1080 = vmatprep.subr.bf16.mxu0 0
    %1081 = vmatpush1.bf16.msra.mxu0 0
    %1082 = vmatprep.subr.bf16.mxu0 0
    %1083 = vmatpush1.bf16.msra.mxu0 0
    %1084 = vmatprep.subr.bf16.mxu0 0
    %1085 = vmatpush1.bf16.msra.mxu0 0
    %1086 = vmatprep.subr.bf16.mxu0 0
    %1087 = vmatpush1.bf16.msra.mxu0 %v1059
    %1088 = vmatprep.subr.bf16.mxu0 0
    %1089 = vmatpush1.bf16.msra.mxu0 %v1058
    %1090 = vmatprep.subr.bf16.mxu0 0
    %1091 = vmatpush2.bf16.msra.mxu0 0
    %1092 = vmatprep.subr.bf16.mxu0 0
    %1093 = vmatpush2.bf16.msra.mxu0 0
    %1094 = vmatprep.subr.bf16.mxu0 0
    %1095 = vmatpush2.bf16.msra.mxu0 0
    %1096 = vmatprep.subr.bf16.mxu0 0
    %1097 = vmatpush2.bf16.msra.mxu0 0
    %1098 = vmatprep.subr.bf16.mxu0 0
    %1099 = vmatpush2.bf16.msra.mxu0 0
    %1100 = vmatprep.subr.bf16.mxu0 0
    %1101 = vmatpush2.bf16.msra.mxu0 0
    %1102 = vmatprep.subr.bf16.mxu0 0
    %1103 = vmatpush2.bf16.msra.mxu0 0
    %1104 = vmatprep.subr.bf16.mxu0 0
    %1105 = vmatpush2.bf16.msra.mxu0 0
    %1106 = vmatprep.mubr.bf16.mxu0 0
    %1107 = vmatmul.mubr.bf16.gmra.mxu0 %v1063
    %v1108 = vpop.f32.mrf.mxu0
    %v1109 = vadd.f32 %v1028, %v1108
    %v1110 = vpop.f32.mrf.mxu0
    %v1111 = vpop.f32.mrf.mxu0
    %v1112 = vadd.f32 %v1028, %v1111
    %v1113 = vpop.f32.mrf.mxu0
    %1114 = vmatprep.mubr.bf16.mxu0 0
    %1115 = vmatmul.mubr.bf16.gmra.mxu0 %v1066
    %v1116 = vpop.f32.mrf.mxu0
    %v1117 = vadd.f32 %v1028, %v1116
    %v1118 = vpop.f32.mrf.mxu0
    %v1119 = vpop.f32.mrf.mxu0
    %v1120 = vadd.f32 %v1028, %v1119
    %v1121 = vpop.f32.mrf.mxu0
    %1122 = vmatprep.mubr.bf16.mxu0 0
    %1123 = vmatmul.mubr.bf16.gmra.mxu0 %v1069
    %v1124 = vpop.f32.mrf.mxu0
    %v1125 = vadd.f32 %v1028, %v1124
    %v1126 = vpop.f32.mrf.mxu0
    %v1127 = vpop.f32.mrf.mxu0
    %v1128 = vadd.f32 %v1028, %v1127
    %v1129 = vpop.f32.mrf.mxu0
    %1130 = vmatprep.mubr.bf16.mxu0 0
    %1131 = vmatmul.mubr.bf16.gmra.mxu0 %v1072
    %v1132 = vpop.f32.mrf.mxu0
    %v1133 = vadd.f32 %v1028, %v1132
    %v1134 = vpop.f32.mrf.mxu0
    %v1135 = vpop.f32.mrf.mxu0
    %v1136 = vadd.f32 %v1028, %v1135
    %v1137 = vpop.f32.mrf.mxu0
    %1138 = vdwg.mxu0
    %1139 = vst [vmem:[#allocation4] sm:$0xff] %v1109
    %1140 = vst [vmem:[#allocation4 + $0x8] sm:$0xff] %v1112
    %1141 = vst [vmem:[#allocation4 + $0x10] sm:$0xff] %v1117
    %1142 = vst [vmem:[#allocation4 + $0x18] sm:$0xff] %v1120
    %1143 = vst [vmem:[#allocation4 + $0x20] sm:$0xff] %v1125
    %1144 = vst [vmem:[#allocation4 + $0x28] sm:$0xff] %v1128
    %1145 = vst [vmem:[#allocation4 + $0x30] sm:$0xff] %v1133
    %1146 = vst [vmem:[#allocation4 + $0x38] sm:$0xff] %v1136
    %v1147 = vld [vmem:[#allocation4] sm:$0xff]
    %v1152 = vunpack.c.l.b16 %v1007
    %v1153 = vunpack.c.l.b16 %v1008
    %v1154 = vunpack.c.l.b16 %v1009
    %v1155 = vunpack.c.l.b16 %v1010
    %v1156 = vpack.c.b16 %v1153, %v1152
    %v1157 = vpack.c.b16 %v1155, %v1154
    %1160 = vmatprep.subr.bf16.mxu0 0
    %1161 = vmatpush1.bf16.msra.mxu0 0
    %1162 = vmatprep.subr.bf16.mxu0 0
    %1163 = vmatpush1.bf16.msra.mxu0 0
    %1164 = vmatprep.subr.bf16.mxu0 0
    %1165 = vmatpush1.bf16.msra.mxu0 0
    %1166 = vmatprep.subr.bf16.mxu0 0
    %1167 = vmatpush1.bf16.msra.mxu0 0
    %1168 = vmatprep.subr.bf16.mxu0 0
    %1169 = vmatpush1.bf16.msra.mxu0 0
    %1170 = vmatprep.subr.bf16.mxu0 0
    %1171 = vmatpush1.bf16.msra.mxu0 0
    %1172 = vmatprep.subr.bf16.mxu0 0
    %1173 = vmatpush1.bf16.msra.mxu0 %v1157
    %1174 = vmatprep.subr.bf16.mxu0 0
    %1175 = vmatpush1.bf16.msra.mxu0 %v1156
    %1176 = vmatprep.subr.bf16.mxu0 0
    %1177 = vmatpush2.bf16.msra.mxu0 0
    %1178 = vmatprep.subr.bf16.mxu0 0
    %1179 = vmatpush2.bf16.msra.mxu0 0
    %1180 = vmatprep.subr.bf16.mxu0 0
    %1181 = vmatpush2.bf16.msra.mxu0 0
    %1182 = vmatprep.subr.bf16.mxu0 0
    %1183 = vmatpush2.bf16.msra.mxu0 0
    %1184 = vmatprep.subr.bf16.mxu0 0
    %1185 = vmatpush2.bf16.msra.mxu0 0
    %1186 = vmatprep.subr.bf16.mxu0 0
    %1187 = vmatpush2.bf16.msra.mxu0 0
    %1188 = vmatprep.subr.bf16.mxu0 0
    %1189 = vmatpush2.bf16.msra.mxu0 0
    %1190 = vmatprep.subr.bf16.mxu0 0
    %1191 = vmatpush2.bf16.msra.mxu0 0
    %1192 = vmatprep.mubr.bf16.mxu0 0
    %1193 = vmatmul.mubr.bf16.gmra.mxu0 %v197
    %v1194 = vpop.f32.mrf.mxu0
    %v1195 = vadd.f32 0.0, %v1194
    %v1196 = vpop.f32.mrf.mxu0
    %v1197 = vpop.f32.mrf.mxu0
    %v1198 = vpop.f32.mrf.mxu0
    %1199 = vdwg.mxu0
    %v1200 = vadd.f32 %v1147, %v1195
    %v1201 = vxor.u32 %v1200, 2147483648
    %v1202 = vmul.f32 %v1201, 1.442695
    %v1203 = vpow.pop %v1202
    %v1204 = vadd.f32 %v1203, 1.0
    %v1205 = vrcp.pop %v1204
    %v1206 = vmul.f32 1.0, %v1205
    %v1207 = vtanh.pop %v1200
    %v1208 = vmul.f32 %v1206, 0.0
    %1210 = vrot.lane.b32.xlu0 %v1207, 64
    %v1211 = vpop.permute.xlu0 %1210
    %v1213 = vmul.f32 %v1206, %v1211
    %1215 = vrot.lane.b32.xlu0 %v1213, 32
    %v1216 = vpop.permute.xlu0 %1215
    %v1218 = vadd.f32 %v1208, %v1216
    %v1219 = vtanh.pop %v1218
    %1221 = vrot.lane.b32.xlu0 %v1219, 64
    %v1222 = vpop.permute.xlu0 %1221
    %v1224 = vmul.f32 %v1206, %v1222
    %v1225 = vpack.c.bf16 %v1224, %v1224
    %v1227 = vunpack.c.l.b16 %v1225
    %v1228 = vpack.c.b16 %v1227, %v1227
    %1229 = vrot.lane.b32.xlu0 %v1228, 32
    %v1230 = vpop.permute.xlu0 %1229
    %1232 = vst.msk [vmem:[#allocation3] sm:$0xf] %vm271, %v1230
    %v1233 = vld [vmem:[%s273] sm:$0xff]
    %1234 = vrot.lane.b32.xlu0 %v1225, 32
    %v1235 = vpop.permute.xlu0 %1234
    %v1237 = vsel %vm195, %v1235, 0
    %1239 = vmatprep.subr.bf16.mxu0 0
    %1240 = vmatpush1.bf16.msra.mxu0 0
    %1241 = vmatprep.subr.bf16.mxu0 0
    %1242 = vmatpush1.bf16.msra.mxu0 0
    %1243 = vmatprep.subr.bf16.mxu0 0
    %1244 = vmatpush1.bf16.msra.mxu0 0
    %1245 = vmatprep.subr.bf16.mxu0 0
    %1246 = vmatpush1.bf16.msra.mxu0 0
    %1247 = vmatprep.subr.bf16.mxu0 0
    %1248 = vmatpush1.bf16.msra.mxu0 0
    %1249 = vmatprep.subr.bf16.mxu0 0
    %1250 = vmatpush1.bf16.msra.mxu0 0
    %1251 = vmatprep.subr.bf16.mxu0 0
    %1252 = vmatpush1.bf16.msra.mxu0 %v1157
    %1253 = vmatprep.subr.bf16.mxu0 0
    %1254 = vmatpush1.bf16.msra.mxu0 %v1156
    %1255 = vmatprep.subr.bf16.mxu0 0
    %1256 = vmatpush2.bf16.msra.mxu0 0
    %1257 = vmatprep.subr.bf16.mxu0 0
    %1258 = vmatpush2.bf16.msra.mxu0 0
    %1259 = vmatprep.subr.bf16.mxu0 0
    %1260 = vmatpush2.bf16.msra.mxu0 0
    %1261 = vmatprep.subr.bf16.mxu0 0
    %1262 = vmatpush2.bf16.msra.mxu0 0
    %1263 = vmatprep.subr.bf16.mxu0 0
    %1264 = vmatpush2.bf16.msra.mxu0 0
    %1265 = vmatprep.subr.bf16.mxu0 0
    %1266 = vmatpush2.bf16.msra.mxu0 0
    %1267 = vmatprep.subr.bf16.mxu0 0
    %1268 = vmatpush2.bf16.msra.mxu0 0
    %1269 = vmatprep.subr.bf16.mxu0 0
    %1270 = vmatpush2.bf16.msra.mxu0 0
    %1271 = vmatprep.mubr.bf16.mxu0 0
    %1272 = vmatmul.mubr.bf16.gmra.mxu0 %v1237
    %v1273 = vpop.f32.mrf.mxu0
    %v1274 = vadd.f32 0.0, %v1273
    %v1275 = vpop.f32.mrf.mxu0
    %v1276 = vpop.f32.mrf.mxu0
    %v1277 = vpop.f32.mrf.mxu0
    %1278 = vdwg.mxu0
    %v1279 = vadd.f32 %v1233, %v1274
    %v1280 = vxor.u32 %v1279, 2147483648
    %v1281 = vmul.f32 %v1280, 1.442695
    %v1282 = vpow.pop %v1281
    %v1283 = vadd.f32 %v1282, 1.0
    %v1284 = vrcp.pop %v1283
    %v1285 = vmul.f32 1.0, %v1284
    %v1286 = vtanh.pop %v1279
    %v1287 = vmul.f32 %v1285, %v1218
    %1289 = vrot.lane.b32.xlu0 %v1286, 64
    %v1290 = vpop.permute.xlu0 %1289
    %v1292 = vmul.f32 %v1285, %v1290
    %1294 = vrot.lane.b32.xlu0 %v1292, 32
    %v1295 = vpop.permute.xlu0 %1294
    %v1297 = vadd.f32 %v1287, %v1295
    %v1298 = vtanh.pop %v1297
    %1300 = vrot.lane.b32.xlu0 %v1298, 64
    %v1301 = vpop.permute.xlu0 %1300
    %v1303 = vmul.f32 %v1285, %v1301
    %v1304 = vpack.c.bf16 %v1303, %v1303
    %v1306 = vunpack.c.l.b16 %v1304
    %v1307 = vpack.c.b16 %v1306, %v1306
    %1308 = vrot.lane.b32.xlu0 %v1307, 32
    %v1309 = vpop.permute.xlu0 %1308
    %1311 = vst.msk [vmem:[%s352] sm:$0xf] %vm271, %v1309
    %v1312 = vld [vmem:[%s354] sm:$0xff]
    %1313 = vrot.lane.b32.xlu0 %v1304, 32
    %v1314 = vpop.permute.xlu0 %1313
    %v1316 = vsel %vm195, %v1314, 0
    %1318 = vmatprep.subr.bf16.mxu0 0
    %1319 = vmatpush1.bf16.msra.mxu0 0
    %1320 = vmatprep.subr.bf16.mxu0 0
    %1321 = vmatpush1.bf16.msra.mxu0 0
    %1322 = vmatprep.subr.bf16.mxu0 0
    %1323 = vmatpush1.bf16.msra.mxu0 0
    %1324 = vmatprep.subr.bf16.mxu0 0
    %1325 = vmatpush1.bf16.msra.mxu0 0
    %1326 = vmatprep.subr.bf16.mxu0 0
    %1327 = vmatpush1.bf16.msra.mxu0 0
    %1328 = vmatprep.subr.bf16.mxu0 0
    %1329 = vmatpush1.bf16.msra.mxu0 0
    %1330 = vmatprep.subr.bf16.mxu0 0
    %1331 = vmatpush1.bf16.msra.mxu0 %v1157
    %1332 = vmatprep.subr.bf16.mxu0 0
    %1333 = vmatpush1.bf16.msra.mxu0 %v1156
    %1334 = vmatprep.subr.bf16.mxu0 0
    %1335 = vmatpush2.bf16.msra.mxu0 0
    %1336 = vmatprep.subr.bf16.mxu0 0
    %1337 = vmatpush2.bf16.msra.mxu0 0
    %1338 = vmatprep.subr.bf16.mxu0 0
    %1339 = vmatpush2.bf16.msra.mxu0 0
    %1340 = vmatprep.subr.bf16.mxu0 0
    %1341 = vmatpush2.bf16.msra.mxu0 0
    %1342 = vmatprep.subr.bf16.mxu0 0
    %1343 = vmatpush2.bf16.msra.mxu0 0
    %1344 = vmatprep.subr.bf16.mxu0 0
    %1345 = vmatpush2.bf16.msra.mxu0 0
    %1346 = vmatprep.subr.bf16.mxu0 0
    %1347 = vmatpush2.bf16.msra.mxu0 0
    %1348 = vmatprep.subr.bf16.mxu0 0
    %1349 = vmatpush2.bf16.msra.mxu0 0
    %1350 = vmatprep.mubr.bf16.mxu0 0
    %1351 = vmatmul.mubr.bf16.gmra.mxu0 %v1316
    %v1352 = vpop.f32.mrf.mxu0
    %v1353 = vadd.f32 0.0, %v1352
    %v1354 = vpop.f32.mrf.mxu0
    %v1355 = vpop.f32.mrf.mxu0
    %v1356 = vpop.f32.mrf.mxu0
    %1357 = vdwg.mxu0
    %v1358 = vadd.f32 %v1312, %v1353
    %v1359 = vxor.u32 %v1358, 2147483648
    %v1360 = vmul.f32 %v1359, 1.442695
    %v1361 = vpow.pop %v1360
    %v1362 = vadd.f32 %v1361, 1.0
    %v1363 = vrcp.pop %v1362
    %v1364 = vmul.f32 1.0, %v1363
    %v1365 = vtanh.pop %v1358
    %v1366 = vmul.f32 %v1364, %v1297
    %1368 = vrot.lane.b32.xlu0 %v1365, 64
    %v1369 = vpop.permute.xlu0 %1368
    %v1371 = vmul.f32 %v1364, %v1369
    %1373 = vrot.lane.b32.xlu0 %v1371, 32
    %v1374 = vpop.permute.xlu0 %1373
    %v1376 = vadd.f32 %v1366, %v1374
    %v1377 = vtanh.pop %v1376
    %1379 = vrot.lane.b32.xlu0 %v1377, 64
    %v1380 = vpop.permute.xlu0 %1379
    %v1382 = vmul.f32 %v1364, %v1380
    %v1383 = vpack.c.bf16 %v1382, %v1382
    %v1385 = vunpack.c.l.b16 %v1383
    %v1386 = vpack.c.b16 %v1385, %v1385
    %1387 = vrot.lane.b32.xlu0 %v1386, 32
    %v1388 = vpop.permute.xlu0 %1387
    %1390 = vst.msk [vmem:[%s433] sm:$0xf] %vm271, %v1388
    %v1391 = vld [vmem:[%s435] sm:$0xff]
    %1392 = vrot.lane.b32.xlu0 %v1383, 32
    %v1393 = vpop.permute.xlu0 %1392
    %v1395 = vsel %vm195, %v1393, 0
    %1397 = vmatprep.subr.bf16.mxu0 0
    %1398 = vmatpush1.bf16.msra.mxu0 0
    %1399 = vmatprep.subr.bf16.mxu0 0
    %1400 = vmatpush1.bf16.msra.mxu0 0
    %1401 = vmatprep.subr.bf16.mxu0 0
    %1402 = vmatpush1.bf16.msra.mxu0 0
    %1403 = vmatprep.subr.bf16.mxu0 0
    %1404 = vmatpush1.bf16.msra.mxu0 0
    %1405 = vmatprep.subr.bf16.mxu0 0
    %1406 = vmatpush1.bf16.msra.mxu0 0
    %1407 = vmatprep.subr.bf16.mxu0 0
    %1408 = vmatpush1.bf16.msra.mxu0 0
    %1409 = vmatprep.subr.bf16.mxu0 0
    %1410 = vmatpush1.bf16.msra.mxu0 %v1157
    %1411 = vmatprep.subr.bf16.mxu0 0
    %1412 = vmatpush1.bf16.msra.mxu0 %v1156
    %1413 = vmatprep.subr.bf16.mxu0 0
    %1414 = vmatpush2.bf16.msra.mxu0 0
    %1415 = vmatprep.subr.bf16.mxu0 0
    %1416 = vmatpush2.bf16.msra.mxu0 0
    %1417 = vmatprep.subr.bf16.mxu0 0
    %1418 = vmatpush2.bf16.msra.mxu0 0
    %1419 = vmatprep.subr.bf16.mxu0 0
    %1420 = vmatpush2.bf16.msra.mxu0 0
    %1421 = vmatprep.subr.bf16.mxu0 0
    %1422 = vmatpush2.bf16.msra.mxu0 0
    %1423 = vmatprep.subr.bf16.mxu0 0
    %1424 = vmatpush2.bf16.msra.mxu0 0
    %1425 = vmatprep.subr.bf16.mxu0 0
    %1426 = vmatpush2.bf16.msra.mxu0 0
    %1427 = vmatprep.subr.bf16.mxu0 0
    %1428 = vmatpush2.bf16.msra.mxu0 0
    %1429 = vmatprep.mubr.bf16.mxu0 0
    %1430 = vmatmul.mubr.bf16.gmra.mxu0 %v1395
    %v1431 = vpop.f32.mrf.mxu0
    %v1432 = vadd.f32 0.0, %v1431
    %v1433 = vpop.f32.mrf.mxu0
    %v1434 = vpop.f32.mrf.mxu0
    %v1435 = vpop.f32.mrf.mxu0
    %1436 = vdwg.mxu0
    %v1437 = vadd.f32 %v1391, %v1432
    %v1438 = vxor.u32 %v1437, 2147483648
    %v1439 = vmul.f32 %v1438, 1.442695
    %v1440 = vpow.pop %v1439
    %v1441 = vadd.f32 %v1440, 1.0
    %v1442 = vrcp.pop %v1441
    %v1443 = vmul.f32 1.0, %v1442
    %v1444 = vtanh.pop %v1437
    %v1445 = vmul.f32 %v1443, %v1376
    %1447 = vrot.lane.b32.xlu0 %v1444, 64
    %v1448 = vpop.permute.xlu0 %1447
    %v1450 = vmul.f32 %v1443, %v1448
    %1452 = vrot.lane.b32.xlu0 %v1450, 32
    %v1453 = vpop.permute.xlu0 %1452
    %v1455 = vadd.f32 %v1445, %v1453
    %v1456 = vtanh.pop %v1455
    %1458 = vrot.lane.b32.xlu0 %v1456, 64
    %v1459 = vpop.permute.xlu0 %1458
    %v1461 = vmul.f32 %v1443, %v1459
    %v1462 = vpack.c.bf16 %v1461, %v1461
    %v1464 = vunpack.c.l.b16 %v1462
    %v1465 = vpack.c.b16 %v1464, %v1464
    %1466 = vrot.lane.b32.xlu0 %v1465, 32
    %v1467 = vpop.permute.xlu0 %1466
    %1469 = vst.msk [vmem:[%s514] sm:$0xf] %vm271, %v1467
    %v1470 = vld [vmem:[%s516] sm:$0xff]
    %1471 = vrot.lane.b32.xlu0 %v1462, 32
    %v1472 = vpop.permute.xlu0 %1471
    %v1474 = vsel %vm195, %v1472, 0
    %1476 = vmatprep.subr.bf16.mxu0 0
    %1477 = vmatpush1.bf16.msra.mxu0 0
    %1478 = vmatprep.subr.bf16.mxu0 0
    %1479 = vmatpush1.bf16.msra.mxu0 0
    %1480 = vmatprep.subr.bf16.mxu0 0
    %1481 = vmatpush1.bf16.msra.mxu0 0
    %1482 = vmatprep.subr.bf16.mxu0 0
    %1483 = vmatpush1.bf16.msra.mxu0 0
    %1484 = vmatprep.subr.bf16.mxu0 0
    %1485 = vmatpush1.bf16.msra.mxu0 0
    %1486 = vmatprep.subr.bf16.mxu0 0
    %1487 = vmatpush1.bf16.msra.mxu0 0
    %1488 = vmatprep.subr.bf16.mxu0 0
    %1489 = vmatpush1.bf16.msra.mxu0 %v1157
    %1490 = vmatprep.subr.bf16.mxu0 0
    %1491 = vmatpush1.bf16.msra.mxu0 %v1156
    %1492 = vmatprep.subr.bf16.mxu0 0
    %1493 = vmatpush2.bf16.msra.mxu0 0
    %1494 = vmatprep.subr.bf16.mxu0 0
    %1495 = vmatpush2.bf16.msra.mxu0 0
    %1496 = vmatprep.subr.bf16.mxu0 0
    %1497 = vmatpush2.bf16.msra.mxu0 0
    %1498 = vmatprep.subr.bf16.mxu0 0
    %1499 = vmatpush2.bf16.msra.mxu0 0
    %1500 = vmatprep.subr.bf16.mxu0 0
    %1501 = vmatpush2.bf16.msra.mxu0 0
    %1502 = vmatprep.subr.bf16.mxu0 0
    %1503 = vmatpush2.bf16.msra.mxu0 0
    %1504 = vmatprep.subr.bf16.mxu0 0
    %1505 = vmatpush2.bf16.msra.mxu0 0
    %1506 = vmatprep.subr.bf16.mxu0 0
    %1507 = vmatpush2.bf16.msra.mxu0 0
    %1508 = vmatprep.mubr.bf16.mxu0 0
    %1509 = vmatmul.mubr.bf16.gmra.mxu0 %v1474
    %v1510 = vpop.f32.mrf.mxu0
    %v1511 = vadd.f32 0.0, %v1510
    %v1512 = vpop.f32.mrf.mxu0
    %v1513 = vpop.f32.mrf.mxu0
    %v1514 = vpop.f32.mrf.mxu0
    %1515 = vdwg.mxu0
    %v1516 = vadd.f32 %v1470, %v1511
    %v1517 = vxor.u32 %v1516, 2147483648
    %v1518 = vmul.f32 %v1517, 1.442695
    %v1519 = vpow.pop %v1518
    %v1520 = vadd.f32 %v1519, 1.0
    %v1521 = vrcp.pop %v1520
    %v1522 = vmul.f32 1.0, %v1521
    %v1523 = vtanh.pop %v1516
    %v1524 = vmul.f32 %v1522, %v1455
    %1526 = vrot.lane.b32.xlu0 %v1523, 64
    %v1527 = vpop.permute.xlu0 %1526
    %v1529 = vmul.f32 %v1522, %v1527
    %1531 = vrot.lane.b32.xlu0 %v1529, 32
    %v1532 = vpop.permute.xlu0 %1531
    %v1534 = vadd.f32 %v1524, %v1532
    %v1535 = vtanh.pop %v1534
    %1537 = vrot.lane.b32.xlu0 %v1535, 64
    %v1538 = vpop.permute.xlu0 %1537
    %v1540 = vmul.f32 %v1522, %v1538
    %v1541 = vpack.c.bf16 %v1540, %v1540
    %v1543 = vunpack.c.l.b16 %v1541
    %v1544 = vpack.c.b16 %v1543, %v1543
    %1545 = vrot.lane.b32.xlu0 %v1544, 32
    %v1546 = vpop.permute.xlu0 %1545
    %1548 = vst.msk [vmem:[%s595] sm:$0xf] %vm271, %v1546
    %v1549 = vld [vmem:[%s597] sm:$0xff]
    %1550 = vrot.lane.b32.xlu0 %v1541, 32
    %v1551 = vpop.permute.xlu0 %1550
    %v1553 = vsel %vm195, %v1551, 0
    %1555 = vmatprep.subr.bf16.mxu0 0
    %1556 = vmatpush1.bf16.msra.mxu0 0
    %1557 = vmatprep.subr.bf16.mxu0 0
    %1558 = vmatpush1.bf16.msra.mxu0 0
    %1559 = vmatprep.subr.bf16.mxu0 0
    %1560 = vmatpush1.bf16.msra.mxu0 0
    %1561 = vmatprep.subr.bf16.mxu0 0
    %1562 = vmatpush1.bf16.msra.mxu0 0
    %1563 = vmatprep.subr.bf16.mxu0 0
    %1564 = vmatpush1.bf16.msra.mxu0 0
    %1565 = vmatprep.subr.bf16.mxu0 0
    %1566 = vmatpush1.bf16.msra.mxu0 0
    %1567 = vmatprep.subr.bf16.mxu0 0
    %1568 = vmatpush1.bf16.msra.mxu0 %v1157
    %1569 = vmatprep.subr.bf16.mxu0 0
    %1570 = vmatpush1.bf16.msra.mxu0 %v1156
    %1571 = vmatprep.subr.bf16.mxu0 0
    %1572 = vmatpush2.bf16.msra.mxu0 0
    %1573 = vmatprep.subr.bf16.mxu0 0
    %1574 = vmatpush2.bf16.msra.mxu0 0
    %1575 = vmatprep.subr.bf16.mxu0 0
    %1576 = vmatpush2.bf16.msra.mxu0 0
    %1577 = vmatprep.subr.bf16.mxu0 0
    %1578 = vmatpush2.bf16.msra.mxu0 0
    %1579 = vmatprep.subr.bf16.mxu0 0
    %1580 = vmatpush2.bf16.msra.mxu0 0
    %1581 = vmatprep.subr.bf16.mxu0 0
    %1582 = vmatpush2.bf16.msra.mxu0 0
    %1583 = vmatprep.subr.bf16.mxu0 0
    %1584 = vmatpush2.bf16.msra.mxu0 0
    %1585 = vmatprep.subr.bf16.mxu0 0
    %1586 = vmatpush2.bf16.msra.mxu0 0
    %1587 = vmatprep.mubr.bf16.mxu0 0
    %1588 = vmatmul.mubr.bf16.gmra.mxu0 %v1553
    %v1589 = vpop.f32.mrf.mxu0
    %v1590 = vadd.f32 0.0, %v1589
    %v1591 = vpop.f32.mrf.mxu0
    %v1592 = vpop.f32.mrf.mxu0
    %v1593 = vpop.f32.mrf.mxu0
    %1594 = vdwg.mxu0
    %v1595 = vadd.f32 %v1549, %v1590
    %v1596 = vxor.u32 %v1595, 2147483648
    %v1597 = vmul.f32 %v1596, 1.442695
    %v1598 = vpow.pop %v1597
    %v1599 = vadd.f32 %v1598, 1.0
    %v1600 = vrcp.pop %v1599
    %v1601 = vmul.f32 1.0, %v1600
    %v1602 = vtanh.pop %v1595
    %v1603 = vmul.f32 %v1601, %v1534
    %1605 = vrot.lane.b32.xlu0 %v1602, 64
    %v1606 = vpop.permute.xlu0 %1605
    %v1608 = vmul.f32 %v1601, %v1606
    %1610 = vrot.lane.b32.xlu0 %v1608, 32
    %v1611 = vpop.permute.xlu0 %1610
    %v1613 = vadd.f32 %v1603, %v1611
    %v1614 = vtanh.pop %v1613
    %1616 = vrot.lane.b32.xlu0 %v1614, 64
    %v1617 = vpop.permute.xlu0 %1616
    %v1619 = vmul.f32 %v1601, %v1617
    %v1620 = vpack.c.bf16 %v1619, %v1619
    %v1622 = vunpack.c.l.b16 %v1620
    %v1623 = vpack.c.b16 %v1622, %v1622
    %1624 = vrot.lane.b32.xlu0 %v1623, 32
    %v1625 = vpop.permute.xlu0 %1624
    %1627 = vst.msk [vmem:[%s676] sm:$0xf] %vm271, %v1625
    %v1628 = vld [vmem:[%s678] sm:$0xff]
    %1629 = vrot.lane.b32.xlu0 %v1620, 32
    %v1630 = vpop.permute.xlu0 %1629
    %v1632 = vsel %vm195, %v1630, 0
    %1634 = vmatprep.subr.bf16.mxu0 0
    %1635 = vmatpush1.bf16.msra.mxu0 0
    %1636 = vmatprep.subr.bf16.mxu0 0
    %1637 = vmatpush1.bf16.msra.mxu0 0
    %1638 = vmatprep.subr.bf16.mxu0 0
    %1639 = vmatpush1.bf16.msra.mxu0 0
    %1640 = vmatprep.subr.bf16.mxu0 0
    %1641 = vmatpush1.bf16.msra.mxu0 0
    %1642 = vmatprep.subr.bf16.mxu0 0
    %1643 = vmatpush1.bf16.msra.mxu0 0
    %1644 = vmatprep.subr.bf16.mxu0 0
    %1645 = vmatpush1.bf16.msra.mxu0 0
    %1646 = vmatprep.subr.bf16.mxu0 0
    %1647 = vmatpush1.bf16.msra.mxu0 %v1157
    %1648 = vmatprep.subr.bf16.mxu0 0
    %1649 = vmatpush1.bf16.msra.mxu0 %v1156
    %1650 = vmatprep.subr.bf16.mxu0 0
    %1651 = vmatpush2.bf16.msra.mxu0 0
    %1652 = vmatprep.subr.bf16.mxu0 0
    %1653 = vmatpush2.bf16.msra.mxu0 0
    %1654 = vmatprep.subr.bf16.mxu0 0
    %1655 = vmatpush2.bf16.msra.mxu0 0
    %1656 = vmatprep.subr.bf16.mxu0 0
    %1657 = vmatpush2.bf16.msra.mxu0 0
    %1658 = vmatprep.subr.bf16.mxu0 0
    %1659 = vmatpush2.bf16.msra.mxu0 0
    %1660 = vmatprep.subr.bf16.mxu0 0
    %1661 = vmatpush2.bf16.msra.mxu0 0
    %1662 = vmatprep.subr.bf16.mxu0 0
    %1663 = vmatpush2.bf16.msra.mxu0 0
    %1664 = vmatprep.subr.bf16.mxu0 0
    %1665 = vmatpush2.bf16.msra.mxu0 0
    %1666 = vmatprep.mubr.bf16.mxu0 0
    %1667 = vmatmul.mubr.bf16.gmra.mxu0 %v1632
    %v1668 = vpop.f32.mrf.mxu0
    %v1669 = vadd.f32 0.0, %v1668
    %v1670 = vpop.f32.mrf.mxu0
    %v1671 = vpop.f32.mrf.mxu0
    %v1672 = vpop.f32.mrf.mxu0
    %1673 = vdwg.mxu0
    %v1674 = vadd.f32 %v1628, %v1669
    %v1675 = vxor.u32 %v1674, 2147483648
    %v1676 = vmul.f32 %v1675, 1.442695
    %v1677 = vpow.pop %v1676
    %v1678 = vadd.f32 %v1677, 1.0
    %v1679 = vrcp.pop %v1678
    %v1680 = vmul.f32 1.0, %v1679
    %v1681 = vtanh.pop %v1674
    %v1682 = vmul.f32 %v1680, %v1613
    %1684 = vrot.lane.b32.xlu0 %v1681, 64
    %v1685 = vpop.permute.xlu0 %1684
    %v1687 = vmul.f32 %v1680, %v1685
    %1689 = vrot.lane.b32.xlu0 %v1687, 32
    %v1690 = vpop.permute.xlu0 %1689
    %v1692 = vadd.f32 %v1682, %v1690
    %v1693 = vtanh.pop %v1692
    %1695 = vrot.lane.b32.xlu0 %v1693, 64
    %v1696 = vpop.permute.xlu0 %1695
    %v1698 = vmul.f32 %v1680, %v1696
    %v1699 = vpack.c.bf16 %v1698, %v1698
    %v1701 = vunpack.c.l.b16 %v1699
    %v1702 = vpack.c.b16 %v1701, %v1701
    %1703 = vrot.lane.b32.xlu0 %v1702, 32
    %v1704 = vpop.permute.xlu0 %1703
    %1706 = vst.msk [vmem:[%s757] sm:$0xf] %vm271, %v1704
    %v1707 = vld [vmem:[%s759] sm:$0xff]
    %1708 = vrot.lane.b32.xlu0 %v1699, 32
    %v1709 = vpop.permute.xlu0 %1708
    %v1711 = vsel %vm195, %v1709, 0
    %1713 = vmatprep.subr.bf16.mxu0 0
    %1714 = vmatpush1.bf16.msra.mxu0 0
    %1715 = vmatprep.subr.bf16.mxu0 0
    %1716 = vmatpush1.bf16.msra.mxu0 0
    %1717 = vmatprep.subr.bf16.mxu0 0
    %1718 = vmatpush1.bf16.msra.mxu0 0
    %1719 = vmatprep.subr.bf16.mxu0 0
    %1720 = vmatpush1.bf16.msra.mxu0 0
    %1721 = vmatprep.subr.bf16.mxu0 0
    %1722 = vmatpush1.bf16.msra.mxu0 0
    %1723 = vmatprep.subr.bf16.mxu0 0
    %1724 = vmatpush1.bf16.msra.mxu0 0
    %1725 = vmatprep.subr.bf16.mxu0 0
    %1726 = vmatpush1.bf16.msra.mxu0 %v1157
    %1727 = vmatprep.subr.bf16.mxu0 0
    %1728 = vmatpush1.bf16.msra.mxu0 %v1156
    %1729 = vmatprep.subr.bf16.mxu0 0
    %1730 = vmatpush2.bf16.msra.mxu0 0
    %1731 = vmatprep.subr.bf16.mxu0 0
    %1732 = vmatpush2.bf16.msra.mxu0 0
    %1733 = vmatprep.subr.bf16.mxu0 0
    %1734 = vmatpush2.bf16.msra.mxu0 0
    %1735 = vmatprep.subr.bf16.mxu0 0
    %1736 = vmatpush2.bf16.msra.mxu0 0
    %1737 = vmatprep.subr.bf16.mxu0 0
    %1738 = vmatpush2.bf16.msra.mxu0 0
    %1739 = vmatprep.subr.bf16.mxu0 0
    %1740 = vmatpush2.bf16.msra.mxu0 0
    %1741 = vmatprep.subr.bf16.mxu0 0
    %1742 = vmatpush2.bf16.msra.mxu0 0
    %1743 = vmatprep.subr.bf16.mxu0 0
    %1744 = vmatpush2.bf16.msra.mxu0 0
    %1745 = vmatprep.mubr.bf16.mxu0 0
    %1746 = vmatmul.mubr.bf16.gmra.mxu0 %v1711
    %v1747 = vpop.f32.mrf.mxu0
    %v1748 = vadd.f32 0.0, %v1747
    %v1749 = vpop.f32.mrf.mxu0
    %v1750 = vpop.f32.mrf.mxu0
    %v1751 = vpop.f32.mrf.mxu0
    %1752 = vdwg.mxu0
    %v1753 = vadd.f32 %v1707, %v1748
    %v1754 = vxor.u32 %v1753, 2147483648
    %v1755 = vmul.f32 %v1754, 1.442695
    %v1756 = vpow.pop %v1755
    %v1757 = vadd.f32 %v1756, 1.0
    %v1758 = vrcp.pop %v1757
    %v1759 = vmul.f32 1.0, %v1758
    %v1760 = vtanh.pop %v1753
    %v1761 = vmul.f32 %v1759, %v1692
    %1763 = vrot.lane.b32.xlu0 %v1760, 64
    %v1764 = vpop.permute.xlu0 %1763
    %v1766 = vmul.f32 %v1759, %v1764
    %1768 = vrot.lane.b32.xlu0 %v1766, 32
    %v1769 = vpop.permute.xlu0 %1768
    %v1771 = vadd.f32 %v1761, %v1769
    %v1772 = vtanh.pop %v1771
    %1774 = vrot.lane.b32.xlu0 %v1772, 64
    %v1775 = vpop.permute.xlu0 %1774
    %v1777 = vmul.f32 %v1759, %v1775
    %v1778 = vpack.c.bf16 %v1777, %v1777
    %v1780 = vunpack.c.l.b16 %v1778
    %v1781 = vpack.c.b16 %v1780, %v1780
    %1782 = vrot.lane.b32.xlu0 %v1781, 32
    %v1783 = vpop.permute.xlu0 %1782
    %1785 = vst.msk [vmem:[%s838] sm:$0xf] %vm271, %v1783
    %v1786 = vld [vmem:[%s9] sm:$0x1]
    %v1787 = vld [vmem:[%s10] sm:$0x1]
    %v1788 = vld [vmem:[#allocation3] sm:$0xf]
    %v1789 = vld [vmem:[#allocation3 + $0x4] sm:$0xf]
    %v1790 = vld [vmem:[#allocation3 + $0x8] sm:$0xf]
    %v1791 = vld [vmem:[#allocation3 + $0xc] sm:$0xf]
    %v1792 = vld [vmem:[#allocation3 + $0x10] sm:$0xf]
    %v1793 = vld [vmem:[#allocation3 + $0x14] sm:$0xf]
    %v1794 = vld [vmem:[#allocation3 + $0x18] sm:$0xf]
    %v1795 = vld [vmem:[#allocation3 + $0x1c] sm:$0xf]
    %v1796 = vunpack.c.l.bf16 %v1788
    %v1797 = vunpack.c.l.bf16 %v1789
    %v1798 = vunpack.c.l.bf16 %v1790
    %v1799 = vunpack.c.l.bf16 %v1791
    %v1800 = vunpack.c.l.bf16 %v1792
    %v1801 = vunpack.c.l.bf16 %v1793
    %v1802 = vunpack.c.l.bf16 %v1794
    %v1803 = vunpack.c.l.bf16 %v1795
    %v1804 = vsel %vm195, %v1796, 0.0
    %1805 = vadd.xlane.f32.xlu0 %v1804
    %v1806 = vpop.xlane.xlu0 %1805
    %v1807 = vsel %vm195, %v1797, 0.0
    %1808 = vadd.xlane.f32.xlu0 %v1807
    %v1809 = vpop.xlane.xlu0 %1808
    %v1810 = vsel %vm195, %v1798, 0.0
    %1811 = vadd.xlane.f32.xlu0 %v1810
    %v1812 = vpop.xlane.xlu0 %1811
    %v1813 = vsel %vm195, %v1799, 0.0
    %1814 = vadd.xlane.f32.xlu0 %v1813
    %v1815 = vpop.xlane.xlu0 %1814
    %v1816 = vsel %vm195, %v1800, 0.0
    %1817 = vadd.xlane.f32.xlu0 %v1816
    %v1818 = vpop.xlane.xlu0 %1817
    %v1819 = vsel %vm195, %v1801, 0.0
    %1820 = vadd.xlane.f32.xlu0 %v1819
    %v1821 = vpop.xlane.xlu0 %1820
    %v1822 = vsel %vm195, %v1802, 0.0
    %1823 = vadd.xlane.f32.xlu0 %v1822
    %v1824 = vpop.xlane.xlu0 %1823
    %v1825 = vsel %vm195, %v1803, 0.0
    %1826 = vadd.xlane.f32.xlu0 %v1825
    %v1827 = vpop.xlane.xlu0 %1826
    %v1828 = vmul.f32 %v1806, %v882
    %v1829 = vmul.f32 %v1809, %v882
    %v1830 = vmul.f32 %v1812, %v882
    %v1831 = vmul.f32 %v1815, %v882
    %v1832 = vmul.f32 %v1818, %v882
    %v1833 = vmul.f32 %v1821, %v882
    %v1834 = vmul.f32 %v1824, %v882
    %v1835 = vmul.f32 %v1827, %v882
    %v1836 = vsub.f32 %v1796, %v1828
    %v1837 = vsub.f32 %v1797, %v1829
    %v1838 = vsub.f32 %v1798, %v1830
    %v1839 = vsub.f32 %v1799, %v1831
    %v1840 = vsub.f32 %v1800, %v1832
    %v1841 = vsub.f32 %v1801, %v1833
    %v1842 = vsub.f32 %v1802, %v1834
    %v1843 = vsub.f32 %v1803, %v1835
    %v1844 = vmul.f32 %v1836, %v1836
    %v1845 = vmul.f32 %v1837, %v1837
    %v1846 = vmul.f32 %v1838, %v1838
    %v1847 = vmul.f32 %v1839, %v1839
    %v1848 = vmul.f32 %v1840, %v1840
    %v1849 = vmul.f32 %v1841, %v1841
    %v1850 = vmul.f32 %v1842, %v1842
    %v1851 = vmul.f32 %v1843, %v1843
    %v1852 = vsel %vm195, %v1844, 0.0
    %1853 = vadd.xlane.f32.xlu0 %v1852
    %v1854 = vpop.xlane.xlu0 %1853
    %v1855 = vsel %vm195, %v1845, 0.0
    %1856 = vadd.xlane.f32.xlu0 %v1855
    %v1857 = vpop.xlane.xlu0 %1856
    %v1858 = vsel %vm195, %v1846, 0.0
    %1859 = vadd.xlane.f32.xlu0 %v1858
    %v1860 = vpop.xlane.xlu0 %1859
    %v1861 = vsel %vm195, %v1847, 0.0
    %1862 = vadd.xlane.f32.xlu0 %v1861
    %v1863 = vpop.xlane.xlu0 %1862
    %v1864 = vsel %vm195, %v1848, 0.0
    %1865 = vadd.xlane.f32.xlu0 %v1864
    %v1866 = vpop.xlane.xlu0 %1865
    %v1867 = vsel %vm195, %v1849, 0.0
    %1868 = vadd.xlane.f32.xlu0 %v1867
    %v1869 = vpop.xlane.xlu0 %1868
    %v1870 = vsel %vm195, %v1850, 0.0
    %1871 = vadd.xlane.f32.xlu0 %v1870
    %v1872 = vpop.xlane.xlu0 %1871
    %v1873 = vsel %vm195, %v1851, 0.0
    %1874 = vadd.xlane.f32.xlu0 %v1873
    %v1875 = vpop.xlane.xlu0 %1874
    %v1876 = vmul.f32 %v1854, %v882
    %v1877 = vmul.f32 %v1857, %v882
    %v1878 = vmul.f32 %v1860, %v882
    %v1879 = vmul.f32 %v1863, %v882
    %v1880 = vmul.f32 %v1866, %v882
    %v1881 = vmul.f32 %v1869, %v882
    %v1882 = vmul.f32 %v1872, %v882
    %v1883 = vmul.f32 %v1875, %v882
    %v1884 = vadd.f32 %v1876, 1e-05
    %v1885 = vadd.f32 %v1877, 1e-05
    %v1886 = vadd.f32 %v1878, 1e-05
    %v1887 = vadd.f32 %v1879, 1e-05
    %v1888 = vadd.f32 %v1880, 1e-05
    %v1889 = vadd.f32 %v1881, 1e-05
    %v1890 = vadd.f32 %v1882, 1e-05
    %v1891 = vadd.f32 %v1883, 1e-05
    %v1892 = vrsqrt.pop %v1884
    %v1893 = vrsqrt.pop %v1885
    %v1894 = vrsqrt.pop %v1886
    %v1895 = vrsqrt.pop %v1887
    %v1896 = vrsqrt.pop %v1888
    %v1897 = vrsqrt.pop %v1889
    %v1898 = vrsqrt.pop %v1890
    %v1899 = vrsqrt.pop %v1891
    %v1900 = vmul.f32 %v1836, %v1892
    %v1901 = vmul.f32 %v1837, %v1893
    %v1902 = vmul.f32 %v1838, %v1894
    %v1903 = vmul.f32 %v1839, %v1895
    %v1904 = vmul.f32 %v1840, %v1896
    %v1905 = vmul.f32 %v1841, %v1897
    %v1906 = vmul.f32 %v1842, %v1898
    %v1907 = vmul.f32 %v1843, %v1899
    %v1909 = vlaneseq
    %v1910 = vshrl.u32 %v1909, 7
    %v1911 = vsub.s32 0, %v1910
    %v1912 = vrot.slane %v1786, %v1911
    %v1914 = vmul.f32 %v1900, %v1912
    %v1915 = vmul.f32 %v1901, %v1912
    %v1916 = vmul.f32 %v1902, %v1912
    %v1917 = vmul.f32 %v1903, %v1912
    %v1918 = vmul.f32 %v1904, %v1912
    %v1919 = vmul.f32 %v1905, %v1912
    %v1920 = vmul.f32 %v1906, %v1912
    %v1921 = vmul.f32 %v1907, %v1912
    %v1923 = vlaneseq
    %v1924 = vshrl.u32 %v1923, 7
    %v1925 = vsub.s32 0, %v1924
    %v1926 = vrot.slane %v1787, %v1925
    %v1928 = vadd.f32 %v1914, %v1926
    %v1929 = vadd.f32 %v1915, %v1926
    %v1930 = vadd.f32 %v1916, %v1926
    %v1931 = vadd.f32 %v1917, %v1926
    %v1932 = vadd.f32 %v1918, %v1926
    %v1933 = vadd.f32 %v1919, %v1926
    %v1934 = vadd.f32 %v1920, %v1926
    %v1935 = vadd.f32 %v1921, %v1926
    %v1936 = vld [vmem:[#allocation2] sm:$0xf]
    %v1937 = vld [vmem:[#allocation2 + $0x4] sm:$0xf]
    %v1938 = vld [vmem:[#allocation2 + $0x8] sm:$0xf]
    %v1939 = vld [vmem:[#allocation2 + $0xc] sm:$0xf]
    %v1940 = vld [vmem:[#allocation2 + $0x10] sm:$0xf]
    %v1941 = vld [vmem:[#allocation2 + $0x14] sm:$0xf]
    %v1942 = vld [vmem:[#allocation2 + $0x18] sm:$0xf]
    %v1943 = vld [vmem:[#allocation2 + $0x1c] sm:$0xf]
    %v1944 = vunpack.c.l.bf16 %v1936
    %v1945 = vunpack.c.l.bf16 %v1937
    %v1946 = vunpack.c.l.bf16 %v1938
    %v1947 = vunpack.c.l.bf16 %v1939
    %v1948 = vunpack.c.l.bf16 %v1940
    %v1949 = vunpack.c.l.bf16 %v1941
    %v1950 = vunpack.c.l.bf16 %v1942
    %v1951 = vunpack.c.l.bf16 %v1943
    %v1952 = vadd.f32 %v1928, %v1944
    %v1953 = vadd.f32 %v1929, %v1945
    %v1954 = vadd.f32 %v1930, %v1946
    %v1955 = vadd.f32 %v1931, %v1947
    %v1956 = vadd.f32 %v1932, %v1948
    %v1957 = vadd.f32 %v1933, %v1949
    %v1958 = vadd.f32 %v1934, %v1950
    %v1959 = vadd.f32 %v1935, %v1951
    %v1960 = vpack.c.bf16 %v1952, %v1952
    %v1961 = vpack.c.bf16 %v1953, %v1953
    %v1962 = vpack.c.bf16 %v1954, %v1954
    %v1963 = vpack.c.bf16 %v1955, %v1955
    %v1964 = vpack.c.bf16 %v1956, %v1956
    %v1965 = vpack.c.bf16 %v1957, %v1957
    %v1966 = vpack.c.bf16 %v1958, %v1958
    %v1967 = vpack.c.bf16 %v1959, %v1959
    %1968 = vst.msk [vmem:[#allocation2] sm:$0xf] %vm271, %v1960
    %1969 = vst.msk [vmem:[#allocation2 + $0x4] sm:$0xf] %vm271, %v1961
    %1970 = vst.msk [vmem:[#allocation2 + $0x8] sm:$0xf] %vm271, %v1962
    %1971 = vst.msk [vmem:[#allocation2 + $0xc] sm:$0xf] %vm271, %v1963
    %1972 = vst.msk [vmem:[#allocation2 + $0x10] sm:$0xf] %vm271, %v1964
    %1973 = vst.msk [vmem:[#allocation2 + $0x14] sm:$0xf] %vm271, %v1965
    %1974 = vst.msk [vmem:[#allocation2 + $0x18] sm:$0xf] %vm271, %v1966
    %1975 = vst.msk [vmem:[#allocation2 + $0x1c] sm:$0xf] %vm271, %v1967
    %v1976 = vld [vmem:[#allocation2] sm:$0xf]
    %v1977 = vld [vmem:[#allocation2 + $0x4] sm:$0xf]
    %v1978 = vld [vmem:[#allocation2 + $0x8] sm:$0xf]
    %v1979 = vld [vmem:[#allocation2 + $0xc] sm:$0xf]
    %v1980 = vld [vmem:[#allocation2 + $0x10] sm:$0xf]
    %v1981 = vld [vmem:[#allocation2 + $0x14] sm:$0xf]
    %v1982 = vld [vmem:[#allocation2 + $0x18] sm:$0xf]
    %v1983 = vld [vmem:[#allocation2 + $0x1c] sm:$0xf]
    %v1984 = vunpack.c.l.bf16 %v1976
    %v1985 = vunpack.c.l.bf16 %v1977
    %v1986 = vunpack.c.l.bf16 %v1978
    %v1987 = vunpack.c.l.bf16 %v1979
    %v1988 = vunpack.c.l.bf16 %v1980
    %v1989 = vunpack.c.l.bf16 %v1981
    %v1990 = vunpack.c.l.bf16 %v1982
    %v1991 = vunpack.c.l.bf16 %v1983
    %v1992 = vsel %vm195, %v1984, 0.0
    %1993 = vadd.xlane.f32.xlu0 %v1992
    %v1994 = vpop.xlane.xlu0 %1993
    %v1995 = vsel %vm195, %v1985, 0.0
    %1996 = vadd.xlane.f32.xlu0 %v1995
    %v1997 = vpop.xlane.xlu0 %1996
    %v1998 = vsel %vm195, %v1986, 0.0
    %1999 = vadd.xlane.f32.xlu0 %v1998
    %v2000 = vpop.xlane.xlu0 %1999
    %v2001 = vsel %vm195, %v1987, 0.0
    %2002 = vadd.xlane.f32.xlu0 %v2001
    %v2003 = vpop.xlane.xlu0 %2002
    %v2004 = vsel %vm195, %v1988, 0.0
    %2005 = vadd.xlane.f32.xlu0 %v2004
    %v2006 = vpop.xlane.xlu0 %2005
    %v2007 = vsel %vm195, %v1989, 0.0
    %2008 = vadd.xlane.f32.xlu0 %v2007
    %v2009 = vpop.xlane.xlu0 %2008
    %v2010 = vsel %vm195, %v1990, 0.0
    %2011 = vadd.xlane.f32.xlu0 %v2010
    %v2012 = vpop.xlane.xlu0 %2011
    %v2013 = vsel %vm195, %v1991, 0.0
    %2014 = vadd.xlane.f32.xlu0 %v2013
    %v2015 = vpop.xlane.xlu0 %2014
    %v2016 = vmul.f32 %v1994, %v882
    %v2017 = vmul.f32 %v1997, %v882
    %v2018 = vmul.f32 %v2000, %v882
    %v2019 = vmul.f32 %v2003, %v882
    %v2020 = vmul.f32 %v2006, %v882
    %v2021 = vmul.f32 %v2009, %v882
    %v2022 = vmul.f32 %v2012, %v882
    %v2023 = vmul.f32 %v2015, %v882
    %v2032 = vlaneseq
    %v2033 = vand.u32 %v2032, 127
    %v2034 = vlaneseq
    %v2035 = vshrl.u32 %v2034, 7
    %v2036 = vsub.s32 %v2033, %v2035
    %v2037 = vrot.slane %v2016, %v2036
    %v2038 = vlaneseq
    %v2039 = vshrl.u32 %v2038, 7
    %v2040 = vsub.s32 %v2033, %v2039
    %v2041 = vrot.slane %v2017, %v2040
    %v2042 = vlaneseq
    %v2043 = vshrl.u32 %v2042, 7
    %v2044 = vsub.s32 %v2033, %v2043
    %v2045 = vrot.slane %v2018, %v2044
    %v2046 = vlaneseq
    %v2047 = vshrl.u32 %v2046, 7
    %v2048 = vsub.s32 %v2033, %v2047
    %v2049 = vrot.slane %v2019, %v2048
    %v2050 = vlaneseq
    %v2051 = vshrl.u32 %v2050, 7
    %v2052 = vsub.s32 %v2033, %v2051
    %v2053 = vrot.slane %v2020, %v2052
    %v2054 = vlaneseq
    %v2055 = vshrl.u32 %v2054, 7
    %v2056 = vsub.s32 %v2033, %v2055
    %v2057 = vrot.slane %v2021, %v2056
    %v2058 = vlaneseq
    %v2059 = vshrl.u32 %v2058, 7
    %v2060 = vsub.s32 %v2033, %v2059
    %v2061 = vrot.slane %v2022, %v2060
    %v2062 = vlaneseq
    %v2063 = vshrl.u32 %v2062, 7
    %v2064 = vsub.s32 %v2033, %v2063
    %v2065 = vrot.slane %v2023, %v2064
    %vm2066 = vcmask 1041409
    %v2067 = vsel %vm2066, %v2041, %v2037
    %vm2068 = vcmask 1042434
    %v2069 = vsel %vm2068, %v2045, %v2067
    %vm2070 = vcmask 1043459
    %v2071 = vsel %vm2070, %v2049, %v2069
    %vm2072 = vcmask 1044484
    %v2073 = vsel %vm2072, %v2053, %v2071
    %vm2074 = vcmask 1045509
    %v2075 = vsel %vm2074, %v2057, %v2073
    %vm2076 = vcmask 1046534
    %v2077 = vsel %vm2076, %v2061, %v2075
    %vm2078 = vcmask 1047559
    %v2079 = vsel %vm2078, %v2065, %v2077
    %2081 = vxpose.xlu0.b32.start [1/16] %v2079, 128
    %2082 = vxpose.xlu0.b32.cont [2/16] 0.0, 128
    %2083 = vxpose.xlu0.b32.cont [3/16] 0.0, 128
    %2084 = vxpose.xlu0.b32.cont [4/16] 0.0, 128
    %2085 = vxpose.xlu0.b32.cont [5/16] 0.0, 128
    %2086 = vxpose.xlu0.b32.cont [6/16] 0.0, 128
    %2087 = vxpose.xlu0.b32.cont [7/16] 0.0, 128
    %2088 = vxpose.xlu0.b32.cont [8/16] 0.0, 128
    %2089 = vxpose.xlu0.b32.cont [9/16] 0.0, 128
    %2090 = vxpose.xlu0.b32.cont [10/16] 0.0, 128
    %2091 = vxpose.xlu0.b32.cont [11/16] 0.0, 128
    %2092 = vxpose.xlu0.b32.cont [12/16] 0.0, 128
    %2093 = vxpose.xlu0.b32.cont [13/16] 0.0, 128
    %2094 = vxpose.xlu0.b32.cont [14/16] 0.0, 128
    %2095 = vxpose.xlu0.b32.cont [15/16] 0.0, 128
    %2096 = vxpose.xlu0.b32.end [16/16] 0.0, 128
    %v2097 = vpop.trf.xlu0
    %v2098 = vpop.trf.xlu0
    %v2099 = vpop.trf.xlu0
    %v2100 = vpop.trf.xlu0
    %v2101 = vpop.trf.xlu0
    %v2102 = vpop.trf.xlu0
    %v2103 = vpop.trf.xlu0
    %v2104 = vpop.trf.xlu0
    %v2105 = vpop.trf.xlu0
    %v2106 = vpop.trf.xlu0
    %v2107 = vpop.trf.xlu0
    %v2108 = vpop.trf.xlu0
    %v2109 = vpop.trf.xlu0
    %v2110 = vpop.trf.xlu0
    %v2111 = vpop.trf.xlu0
    %v2112 = vpop.trf.xlu0
    %v2113 = vpack.c.bf16 %v2097, %v2097
    %v2114 = vld [vmem:[%s11] sm:$0xff]
    %v2115 = vld [vmem:[%s11 + $0x8] sm:$0xff]
    %v2116 = vld [vmem:[%s11 + $0x10] sm:$0xff]
    %v2117 = vld [vmem:[%s11 + $0x18] sm:$0xff]
    %v2119 = vrot.slane %v2113, 2
    %v2122 = vunpack.c.l.b16 %v2116
    %v2123 = vunpack.c.h.b16 %v2116
    %v2124 = vunpack.c.l.b16 %v2117
    %v2125 = vunpack.c.h.b16 %v2117
    %v2126 = vpack.c.b16 %v2122, %v2122
    %v2127 = vpack.c.b16 %v2123, %v2123
    %v2128 = vpack.c.b16 %v2124, %v2124
    %v2129 = vpack.c.b16 %v2125, %v2125
    %v2131 = vsel %vm92, %v2119, 0
    %v2134 = vsel %vm105, %v2126, 0
    %v2137 = vsel %vm105, %v2127, 0
    %v2140 = vsel %vm105, %v2128, 0
    %v2143 = vsel %vm105, %v2129, 0
    %2145 = vmatprep.subr.bf16.mxu0 0
    %2146 = vmatpush1.bf16.msra.mxu0 0
    %2147 = vmatprep.subr.bf16.mxu0 0
    %2148 = vmatpush1.bf16.msra.mxu0 0
    %2149 = vmatprep.subr.bf16.mxu0 0
    %2150 = vmatpush1.bf16.msra.mxu0 0
    %2151 = vmatprep.subr.bf16.mxu0 0
    %2152 = vmatpush1.bf16.msra.mxu0 0
    %2153 = vmatprep.subr.bf16.mxu0 0
    %2154 = vmatpush1.bf16.msra.mxu0 0
    %2155 = vmatprep.subr.bf16.mxu0 0
    %2156 = vmatpush1.bf16.msra.mxu0 0
    %2157 = vmatprep.subr.bf16.mxu0 0
    %2158 = vmatpush1.bf16.msra.mxu0 0
    %2159 = vmatprep.subr.bf16.mxu0 %v2137
    %2160 = vmatpush1.bf16.msra.mxu0 %v2134
    %2161 = vmatprep.subr.bf16.mxu0 0
    %2162 = vmatpush2.bf16.msra.mxu0 0
    %2163 = vmatprep.subr.bf16.mxu0 0
    %2164 = vmatpush2.bf16.msra.mxu0 0
    %2165 = vmatprep.subr.bf16.mxu0 0
    %2166 = vmatpush2.bf16.msra.mxu0 0
    %2167 = vmatprep.subr.bf16.mxu0 0
    %2168 = vmatpush2.bf16.msra.mxu0 0
    %2169 = vmatprep.subr.bf16.mxu0 0
    %2170 = vmatpush2.bf16.msra.mxu0 0
    %2171 = vmatprep.subr.bf16.mxu0 0
    %2172 = vmatpush2.bf16.msra.mxu0 0
    %2173 = vmatprep.subr.bf16.mxu0 0
    %2174 = vmatpush2.bf16.msra.mxu0 0
    %2175 = vmatprep.subr.bf16.mxu0 0
    %2176 = vmatpush2.bf16.msra.mxu0 0
    %2177 = vmatprep.mubr.bf16.mxu0 0
    %2178 = vmatmul.mubr.bf16.gmra.mxu0 %v2131
    %v2179 = vpop.f32.mrf.mxu0
    %v2180 = vadd.f32 0.0, %v2179
    %v2181 = vpop.f32.mrf.mxu0
    %v2182 = vadd.f32 0.0, %v2181
    %v2183 = vpop.f32.mrf.mxu0
    %v2184 = vpop.f32.mrf.mxu0
    %2185 = vdwg.mxu0
    %2186 = vmatprep.subr.bf16.mxu0 0
    %2187 = vmatpush1.bf16.msra.mxu0 0
    %2188 = vmatprep.subr.bf16.mxu0 0
    %2189 = vmatpush1.bf16.msra.mxu0 0
    %2190 = vmatprep.subr.bf16.mxu0 0
    %2191 = vmatpush1.bf16.msra.mxu0 0
    %2192 = vmatprep.subr.bf16.mxu0 0
    %2193 = vmatpush1.bf16.msra.mxu0 0
    %2194 = vmatprep.subr.bf16.mxu0 0
    %2195 = vmatpush1.bf16.msra.mxu0 0
    %2196 = vmatprep.subr.bf16.mxu0 0
    %2197 = vmatpush1.bf16.msra.mxu0 0
    %2198 = vmatprep.subr.bf16.mxu0 0
    %2199 = vmatpush1.bf16.msra.mxu0 0
    %2200 = vmatprep.subr.bf16.mxu0 %v2143
    %2201 = vmatpush1.bf16.msra.mxu0 %v2140
    %2202 = vmatprep.subr.bf16.mxu0 0
    %2203 = vmatpush2.bf16.msra.mxu0 0
    %2204 = vmatprep.subr.bf16.mxu0 0
    %2205 = vmatpush2.bf16.msra.mxu0 0
    %2206 = vmatprep.subr.bf16.mxu0 0
    %2207 = vmatpush2.bf16.msra.mxu0 0
    %2208 = vmatprep.subr.bf16.mxu0 0
    %2209 = vmatpush2.bf16.msra.mxu0 0
    %2210 = vmatprep.subr.bf16.mxu0 0
    %2211 = vmatpush2.bf16.msra.mxu0 0
    %2212 = vmatprep.subr.bf16.mxu0 0
    %2213 = vmatpush2.bf16.msra.mxu0 0
    %2214 = vmatprep.subr.bf16.mxu0 0
    %2215 = vmatpush2.bf16.msra.mxu0 0
    %2216 = vmatprep.subr.bf16.mxu0 0
    %2217 = vmatpush2.bf16.msra.mxu0 0
    %2218 = vmatprep.mubr.bf16.mxu0 0
    %2219 = vmatmul.mubr.bf16.gmra.mxu0 %v2131
    %v2220 = vpop.f32.mrf.mxu0
    %v2221 = vadd.f32 0.0, %v2220
    %v2222 = vpop.f32.mrf.mxu0
    %v2223 = vadd.f32 0.0, %v2222
    %v2224 = vpop.f32.mrf.mxu0
    %v2225 = vpop.f32.mrf.mxu0
    %2226 = vdwg.mxu0
    %v2229 = vunpack.c.l.b16 %v2114
    %v2230 = vunpack.c.h.b16 %v2114
    %v2231 = vunpack.c.l.b16 %v2115
    %v2232 = vunpack.c.h.b16 %v2115
    %v2233 = vpack.c.b16 %v2229, %v2229
    %v2234 = vpack.c.b16 %v2230, %v2230
    %v2235 = vpack.c.b16 %v2231, %v2231
    %v2236 = vpack.c.b16 %v2232, %v2232
    %v2238 = vsel %vm92, %v2113, 0
    %v2241 = vsel %vm105, %v2233, 0
    %v2244 = vsel %vm105, %v2234, 0
    %v2247 = vsel %vm105, %v2235, 0
    %v2250 = vsel %vm105, %v2236, 0
    %2252 = vmatprep.subr.bf16.mxu0 0
    %2253 = vmatpush1.bf16.msra.mxu0 0
    %2254 = vmatprep.subr.bf16.mxu0 0
    %2255 = vmatpush1.bf16.msra.mxu0 0
    %2256 = vmatprep.subr.bf16.mxu0 0
    %2257 = vmatpush1.bf16.msra.mxu0 0
    %2258 = vmatprep.subr.bf16.mxu0 0
    %2259 = vmatpush1.bf16.msra.mxu0 0
    %2260 = vmatprep.subr.bf16.mxu0 0
    %2261 = vmatpush1.bf16.msra.mxu0 0
    %2262 = vmatprep.subr.bf16.mxu0 0
    %2263 = vmatpush1.bf16.msra.mxu0 0
    %2264 = vmatprep.subr.bf16.mxu0 0
    %2265 = vmatpush1.bf16.msra.mxu0 0
    %2266 = vmatprep.subr.bf16.mxu0 %v2244
    %2267 = vmatpush1.bf16.msra.mxu0 %v2241
    %2268 = vmatprep.subr.bf16.mxu0 0
    %2269 = vmatpush2.bf16.msra.mxu0 0
    %2270 = vmatprep.subr.bf16.mxu0 0
    %2271 = vmatpush2.bf16.msra.mxu0 0
    %2272 = vmatprep.subr.bf16.mxu0 0
    %2273 = vmatpush2.bf16.msra.mxu0 0
    %2274 = vmatprep.subr.bf16.mxu0 0
    %2275 = vmatpush2.bf16.msra.mxu0 0
    %2276 = vmatprep.subr.bf16.mxu0 0
    %2277 = vmatpush2.bf16.msra.mxu0 0
    %2278 = vmatprep.subr.bf16.mxu0 0
    %2279 = vmatpush2.bf16.msra.mxu0 0
    %2280 = vmatprep.subr.bf16.mxu0 0
    %2281 = vmatpush2.bf16.msra.mxu0 0
    %2282 = vmatprep.subr.bf16.mxu0 0
    %2283 = vmatpush2.bf16.msra.mxu0 0
    %2284 = vmatprep.mubr.bf16.mxu0 0
    %2285 = vmatmul.mubr.bf16.gmra.mxu0 %v2238
    %v2286 = vpop.f32.mrf.mxu0
    %v2287 = vadd.f32 %v2180, %v2286
    %v2288 = vpop.f32.mrf.mxu0
    %v2289 = vadd.f32 %v2182, %v2288
    %v2290 = vpop.f32.mrf.mxu0
    %v2291 = vpop.f32.mrf.mxu0
    %2292 = vdwg.mxu0
    %2293 = vmatprep.subr.bf16.mxu0 0
    %2294 = vmatpush1.bf16.msra.mxu0 0
    %2295 = vmatprep.subr.bf16.mxu0 0
    %2296 = vmatpush1.bf16.msra.mxu0 0
    %2297 = vmatprep.subr.bf16.mxu0 0
    %2298 = vmatpush1.bf16.msra.mxu0 0
    %2299 = vmatprep.subr.bf16.mxu0 0
    %2300 = vmatpush1.bf16.msra.mxu0 0
    %2301 = vmatprep.subr.bf16.mxu0 0
    %2302 = vmatpush1.bf16.msra.mxu0 0
    %2303 = vmatprep.subr.bf16.mxu0 0
    %2304 = vmatpush1.bf16.msra.mxu0 0
    %2305 = vmatprep.subr.bf16.mxu0 0
    %2306 = vmatpush1.bf16.msra.mxu0 0
    %2307 = vmatprep.subr.bf16.mxu0 %v2250
    %2308 = vmatpush1.bf16.msra.mxu0 %v2247
    %2309 = vmatprep.subr.bf16.mxu0 0
    %2310 = vmatpush2.bf16.msra.mxu0 0
    %2311 = vmatprep.subr.bf16.mxu0 0
    %2312 = vmatpush2.bf16.msra.mxu0 0
    %2313 = vmatprep.subr.bf16.mxu0 0
    %2314 = vmatpush2.bf16.msra.mxu0 0
    %2315 = vmatprep.subr.bf16.mxu0 0
    %2316 = vmatpush2.bf16.msra.mxu0 0
    %2317 = vmatprep.subr.bf16.mxu0 0
    %2318 = vmatpush2.bf16.msra.mxu0 0
    %2319 = vmatprep.subr.bf16.mxu0 0
    %2320 = vmatpush2.bf16.msra.mxu0 0
    %2321 = vmatprep.subr.bf16.mxu0 0
    %2322 = vmatpush2.bf16.msra.mxu0 0
    %2323 = vmatprep.subr.bf16.mxu0 0
    %2324 = vmatpush2.bf16.msra.mxu0 0
    %2325 = vmatprep.mubr.bf16.mxu0 0
    %2326 = vmatmul.mubr.bf16.gmra.mxu0 %v2238
    %v2327 = vpop.f32.mrf.mxu0
    %v2328 = vadd.f32 %v2221, %v2327
    %v2329 = vpop.f32.mrf.mxu0
    %v2330 = vadd.f32 %v2223, %v2329
    %v2331 = vpop.f32.mrf.mxu0
    %v2332 = vpop.f32.mrf.mxu0
    %2333 = vdwg.mxu0
    %v2334 = vld [vmem:[%s12] sm:$0xf]
    %v2336 = vlaneseq
    %v2337 = vshrl.u32 %v2336, 7
    %v2338 = vsub.s32 0, %v2337
    %v2339 = vrot.slane %v2334, %v2338
    %v2340 = vlaneseq
    %v2341 = vshrl.u32 %v2340, 7
    %v2342 = vsub.s32 1, %v2341
    %v2343 = vrot.slane %v2334, %v2342
    %v2344 = vlaneseq
    %v2345 = vshrl.u32 %v2344, 7
    %v2346 = vsub.s32 2, %v2345
    %v2347 = vrot.slane %v2334, %v2346
    %v2348 = vlaneseq
    %v2349 = vshrl.u32 %v2348, 7
    %v2350 = vsub.s32 3, %v2349
    %v2351 = vrot.slane %v2334, %v2350
    %v2356 = vadd.f32 %v2287, %v2339
    %v2357 = vadd.f32 %v2289, %v2343
    %v2358 = vadd.f32 %v2328, %v2347
    %v2359 = vadd.f32 %v2330, %v2351
    %v2360 = vpack.c.bf16 %v2356, %v2356
    %v2361 = vpack.c.bf16 %v2357, %v2357
    %v2362 = vpack.c.bf16 %v2358, %v2358
    %v2363 = vpack.c.bf16 %v2359, %v2359
    %v2364 = vld [vmem:[%s13] sm:$0xf]
    %v2365 = vld [vmem:[%s13 + $0x4] sm:$0xf]
    %v2366 = vld [vmem:[%s13 + $0x8] sm:$0xf]
    %v2367 = vld [vmem:[%s13 + $0xc] sm:$0xf]
    %v2368 = vld [vmem:[%s13 + $0x10] sm:$0xf]
    %v2369 = vld [vmem:[%s13 + $0x14] sm:$0xf]
    %v2370 = vld [vmem:[%s13 + $0x18] sm:$0xf]
    %v2371 = vld [vmem:[%s13 + $0x1c] sm:$0xf]
    %v2372 = vld [vmem:[%s13 + $0x20] sm:$0xf]
    %v2373 = vld [vmem:[%s13 + $0x24] sm:$0xf]
    %v2374 = vld [vmem:[%s13 + $0x28] sm:$0xf]
    %v2375 = vld [vmem:[%s13 + $0x2c] sm:$0xf]
    %v2376 = vld [vmem:[%s13 + $0x30] sm:$0xf]
    %v2377 = vld [vmem:[%s13 + $0x34] sm:$0xf]
    %v2378 = vld [vmem:[%s13 + $0x38] sm:$0xf]
    %v2379 = vld [vmem:[%s13 + $0x3c] sm:$0xf]
    %v2380 = vld [vmem:[%s13 + $0x40] sm:$0xf]
    %v2381 = vld [vmem:[%s13 + $0x44] sm:$0xf]
    %v2382 = vld [vmem:[%s13 + $0x48] sm:$0xf]
    %v2383 = vld [vmem:[%s13 + $0x4c] sm:$0xf]
    %v2384 = vld [vmem:[%s13 + $0x50] sm:$0xf]
    %v2385 = vld [vmem:[%s13 + $0x54] sm:$0xf]
    %v2386 = vld [vmem:[%s13 + $0x58] sm:$0xf]
    %v2387 = vld [vmem:[%s13 + $0x5c] sm:$0xf]
    %v2388 = vld [vmem:[%s13 + $0x60] sm:$0xf]
    %v2389 = vld [vmem:[%s13 + $0x64] sm:$0xf]
    %v2390 = vld [vmem:[%s13 + $0x68] sm:$0xf]
    %v2391 = vld [vmem:[%s13 + $0x6c] sm:$0xf]
    %v2392 = vld [vmem:[%s13 + $0x70] sm:$0xf]
    %v2393 = vld [vmem:[%s13 + $0x74] sm:$0xf]
    %v2394 = vld [vmem:[%s13 + $0x78] sm:$0xf]
    %v2395 = vld [vmem:[%s13 + $0x7c] sm:$0xf]
    %v2396 = vld [vmem:[%s13 + $0x80] sm:$0xf]
    %v2397 = vld [vmem:[%s13 + $0x84] sm:$0xf]
    %v2398 = vld [vmem:[%s13 + $0x88] sm:$0xf]
    %v2399 = vld [vmem:[%s13 + $0x8c] sm:$0xf]
    %v2400 = vld [vmem:[%s13 + $0x90] sm:$0xf]
    %v2401 = vld [vmem:[%s13 + $0x94] sm:$0xf]
    %v2402 = vld [vmem:[%s13 + $0x98] sm:$0xf]
    %v2403 = vld [vmem:[%s13 + $0x9c] sm:$0xf]
    %v2404 = vld [vmem:[%s13 + $0xa0] sm:$0xf]
    %v2405 = vld [vmem:[%s13 + $0xa4] sm:$0xf]
    %v2406 = vld [vmem:[%s13 + $0xa8] sm:$0xf]
    %v2407 = vld [vmem:[%s13 + $0xac] sm:$0xf]
    %v2408 = vld [vmem:[%s13 + $0xb0] sm:$0xf]
    %v2409 = vld [vmem:[%s13 + $0xb4] sm:$0xf]
    %v2410 = vld [vmem:[%s13 + $0xb8] sm:$0xf]
    %v2411 = vld [vmem:[%s13 + $0xbc] sm:$0xf]
    %v2412 = vld [vmem:[%s13 + $0xc0] sm:$0xf]
    %v2413 = vld [vmem:[%s13 + $0xc4] sm:$0xf]
    %v2414 = vld [vmem:[%s13 + $0xc8] sm:$0xf]
    %v2415 = vld [vmem:[%s13 + $0xcc] sm:$0xf]
    %v2416 = vld [vmem:[%s13 + $0xd0] sm:$0xf]
    %v2417 = vld [vmem:[%s13 + $0xd4] sm:$0xf]
    %v2418 = vld [vmem:[%s13 + $0xd8] sm:$0xf]
    %v2419 = vld [vmem:[%s13 + $0xdc] sm:$0xf]
    %v2420 = vld [vmem:[%s13 + $0xe0] sm:$0xf]
    %v2421 = vld [vmem:[%s13 + $0xe4] sm:$0xf]
    %v2422 = vld [vmem:[%s13 + $0xe8] sm:$0xf]
    %v2423 = vld [vmem:[%s13 + $0xec] sm:$0xf]
    %v2424 = vld [vmem:[%s13 + $0xf0] sm:$0xf]
    %v2425 = vld [vmem:[%s13 + $0xf4] sm:$0xf]
    %v2426 = vld [vmem:[%s13 + $0xf8] sm:$0xf]
    %v2427 = vld [vmem:[%s13 + $0xfc] sm:$0xf]
    %v2428 = vld [vmem:[%s14] sm:$0x1]
    %v2430 = vlaneseq
    %v2431 = vshrl.u32 %v2430, 7
    %v2432 = vsub.s32 0, %v2431
    %v2433 = vrot.slane %v2428, %v2432
    %v2499 = vunpack.c.l.b16 %v2364
    %v2500 = vunpack.c.l.b16 %v2365
    %v2501 = vunpack.c.l.b16 %v2366
    %v2502 = vunpack.c.l.b16 %v2367
    %v2503 = vunpack.c.l.b16 %v2368
    %v2504 = vunpack.c.l.b16 %v2369
    %v2505 = vunpack.c.l.b16 %v2370
    %v2506 = vunpack.c.l.b16 %v2371
    %v2507 = vunpack.c.l.b16 %v2372
    %v2508 = vunpack.c.l.b16 %v2373
    %v2509 = vunpack.c.l.b16 %v2374
    %v2510 = vunpack.c.l.b16 %v2375
    %v2511 = vunpack.c.l.b16 %v2376
    %v2512 = vunpack.c.l.b16 %v2377
    %v2513 = vunpack.c.l.b16 %v2378
    %v2514 = vunpack.c.l.b16 %v2379
    %v2515 = vunpack.c.l.b16 %v2380
    %v2516 = vunpack.c.l.b16 %v2381
    %v2517 = vunpack.c.l.b16 %v2382
    %v2518 = vunpack.c.l.b16 %v2383
    %v2519 = vunpack.c.l.b16 %v2384
    %v2520 = vunpack.c.l.b16 %v2385
    %v2521 = vunpack.c.l.b16 %v2386
    %v2522 = vunpack.c.l.b16 %v2387
    %v2523 = vunpack.c.l.b16 %v2388
    %v2524 = vunpack.c.l.b16 %v2389
    %v2525 = vunpack.c.l.b16 %v2390
    %v2526 = vunpack.c.l.b16 %v2391
    %v2527 = vunpack.c.l.b16 %v2392
    %v2528 = vunpack.c.l.b16 %v2393
    %v2529 = vunpack.c.l.b16 %v2394
    %v2530 = vunpack.c.l.b16 %v2395
    %v2531 = vunpack.c.l.b16 %v2396
    %v2532 = vunpack.c.l.b16 %v2397
    %v2533 = vunpack.c.l.b16 %v2398
    %v2534 = vunpack.c.l.b16 %v2399
    %v2535 = vunpack.c.l.b16 %v2400
    %v2536 = vunpack.c.l.b16 %v2401
    %v2537 = vunpack.c.l.b16 %v2402
    %v2538 = vunpack.c.l.b16 %v2403
    %v2539 = vunpack.c.l.b16 %v2404
    %v2540 = vunpack.c.l.b16 %v2405
    %v2541 = vunpack.c.l.b16 %v2406
    %v2542 = vunpack.c.l.b16 %v2407
    %v2543 = vunpack.c.l.b16 %v2408
    %v2544 = vunpack.c.l.b16 %v2409
    %v2545 = vunpack.c.l.b16 %v2410
    %v2546 = vunpack.c.l.b16 %v2411
    %v2547 = vunpack.c.l.b16 %v2412
    %v2548 = vunpack.c.l.b16 %v2413
    %v2549 = vunpack.c.l.b16 %v2414
    %v2550 = vunpack.c.l.b16 %v2415
    %v2551 = vunpack.c.l.b16 %v2416
    %v2552 = vunpack.c.l.b16 %v2417
    %v2553 = vunpack.c.l.b16 %v2418
    %v2554 = vunpack.c.l.b16 %v2419
    %v2555 = vunpack.c.l.b16 %v2420
    %v2556 = vunpack.c.l.b16 %v2421
    %v2557 = vunpack.c.l.b16 %v2422
    %v2558 = vunpack.c.l.b16 %v2423
    %v2559 = vunpack.c.l.b16 %v2424
    %v2560 = vunpack.c.l.b16 %v2425
    %v2561 = vunpack.c.l.b16 %v2426
    %v2562 = vunpack.c.l.b16 %v2427
    %v2563 = vpack.c.b16 %v2500, %v2499
    %v2564 = vpack.c.b16 %v2502, %v2501
    %v2565 = vpack.c.b16 %v2504, %v2503
    %v2566 = vpack.c.b16 %v2506, %v2505
    %v2567 = vpack.c.b16 %v2508, %v2507
    %v2568 = vpack.c.b16 %v2510, %v2509
    %v2569 = vpack.c.b16 %v2512, %v2511
    %v2570 = vpack.c.b16 %v2514, %v2513
    %v2571 = vpack.c.b16 %v2516, %v2515
    %v2572 = vpack.c.b16 %v2518, %v2517
    %v2573 = vpack.c.b16 %v2520, %v2519
    %v2574 = vpack.c.b16 %v2522, %v2521
    %v2575 = vpack.c.b16 %v2524, %v2523
    %v2576 = vpack.c.b16 %v2526, %v2525
    %v2577 = vpack.c.b16 %v2528, %v2527
    %v2578 = vpack.c.b16 %v2530, %v2529
    %v2579 = vpack.c.b16 %v2532, %v2531
    %v2580 = vpack.c.b16 %v2534, %v2533
    %v2581 = vpack.c.b16 %v2536, %v2535
    %v2582 = vpack.c.b16 %v2538, %v2537
    %v2583 = vpack.c.b16 %v2540, %v2539
    %v2584 = vpack.c.b16 %v2542, %v2541
    %v2585 = vpack.c.b16 %v2544, %v2543
    %v2586 = vpack.c.b16 %v2546, %v2545
    %v2587 = vpack.c.b16 %v2548, %v2547
    %v2588 = vpack.c.b16 %v2550, %v2549
    %v2589 = vpack.c.b16 %v2552, %v2551
    %v2590 = vpack.c.b16 %v2554, %v2553
    %v2591 = vpack.c.b16 %v2556, %v2555
    %v2592 = vpack.c.b16 %v2558, %v2557
    %v2593 = vpack.c.b16 %v2560, %v2559
    %v2594 = vpack.c.b16 %v2562, %v2561
    %2627 = vmatprep.subr.bf16.mxu0 0
    %2628 = vmatpush1.bf16.msra.mxu0 %v2570
    %2629 = vmatprep.subr.bf16.mxu0 0
    %2630 = vmatpush1.bf16.msra.mxu0 %v2569
    %2631 = vmatprep.subr.bf16.mxu0 0
    %2632 = vmatpush1.bf16.msra.mxu0 %v2568
    %2633 = vmatprep.subr.bf16.mxu0 0
    %2634 = vmatpush1.bf16.msra.mxu0 %v2567
    %2635 = vmatprep.subr.bf16.mxu0 0
    %2636 = vmatpush1.bf16.msra.mxu0 %v2566
    %2637 = vmatprep.subr.bf16.mxu0 0
    %2638 = vmatpush1.bf16.msra.mxu0 %v2565
    %2639 = vmatprep.subr.bf16.mxu0 0
    %2640 = vmatpush1.bf16.msra.mxu0 %v2564
    %2641 = vmatprep.subr.bf16.mxu0 0
    %2642 = vmatpush1.bf16.msra.mxu0 %v2563
    %2643 = vmatprep.subr.bf16.mxu0 0
    %2644 = vmatpush2.bf16.msra.mxu0 %v2578
    %2645 = vmatprep.subr.bf16.mxu0 0
    %2646 = vmatpush2.bf16.msra.mxu0 %v2577
    %2647 = vmatprep.subr.bf16.mxu0 0
    %2648 = vmatpush2.bf16.msra.mxu0 %v2576
    %2649 = vmatprep.subr.bf16.mxu0 0
    %2650 = vmatpush2.bf16.msra.mxu0 %v2575
    %2651 = vmatprep.subr.bf16.mxu0 0
    %2652 = vmatpush2.bf16.msra.mxu0 %v2574
    %2653 = vmatprep.subr.bf16.mxu0 0
    %2654 = vmatpush2.bf16.msra.mxu0 %v2573
    %2655 = vmatprep.subr.bf16.mxu0 0
    %2656 = vmatpush2.bf16.msra.mxu0 %v2572
    %2657 = vmatprep.subr.bf16.mxu0 0
    %2658 = vmatpush2.bf16.msra.mxu0 %v2571
    %2659 = vmatprep.mubr.bf16.mxu0 %v2361
    %2660 = vmatmul.mubr.bf16.gmra.mxu0 %v2360
    %v2661 = vpop.f32.mrf.mxu0
    %v2662 = vadd.f32 %v2433, %v2661
    %v2663 = vpop.f32.mrf.mxu0
    %v2664 = vpop.f32.mrf.mxu0
    %v2665 = vpop.f32.mrf.mxu0
    %2666 = vdwg.mxu0
    %2667 = vmatprep.subr.bf16.mxu0 0
    %2668 = vmatpush1.bf16.msra.mxu0 %v2586
    %2669 = vmatprep.subr.bf16.mxu0 0
    %2670 = vmatpush1.bf16.msra.mxu0 %v2585
    %2671 = vmatprep.subr.bf16.mxu0 0
    %2672 = vmatpush1.bf16.msra.mxu0 %v2584
    %2673 = vmatprep.subr.bf16.mxu0 0
    %2674 = vmatpush1.bf16.msra.mxu0 %v2583
    %2675 = vmatprep.subr.bf16.mxu0 0
    %2676 = vmatpush1.bf16.msra.mxu0 %v2582
    %2677 = vmatprep.subr.bf16.mxu0 0
    %2678 = vmatpush1.bf16.msra.mxu0 %v2581
    %2679 = vmatprep.subr.bf16.mxu0 0
    %2680 = vmatpush1.bf16.msra.mxu0 %v2580
    %2681 = vmatprep.subr.bf16.mxu0 0
    %2682 = vmatpush1.bf16.msra.mxu0 %v2579
    %2683 = vmatprep.subr.bf16.mxu0 0
    %2684 = vmatpush2.bf16.msra.mxu0 %v2594
    %2685 = vmatprep.subr.bf16.mxu0 0
    %2686 = vmatpush2.bf16.msra.mxu0 %v2593
    %2687 = vmatprep.subr.bf16.mxu0 0
    %2688 = vmatpush2.bf16.msra.mxu0 %v2592
    %2689 = vmatprep.subr.bf16.mxu0 0
    %2690 = vmatpush2.bf16.msra.mxu0 %v2591
    %2691 = vmatprep.subr.bf16.mxu0 0
    %2692 = vmatpush2.bf16.msra.mxu0 %v2590
    %2693 = vmatprep.subr.bf16.mxu0 0
    %2694 = vmatpush2.bf16.msra.mxu0 %v2589
    %2695 = vmatprep.subr.bf16.mxu0 0
    %2696 = vmatpush2.bf16.msra.mxu0 %v2588
    %2697 = vmatprep.subr.bf16.mxu0 0
    %2698 = vmatpush2.bf16.msra.mxu0 %v2587
    %2699 = vmatprep.mubr.bf16.mxu0 %v2363
    %2700 = vmatmul.mubr.bf16.gmra.mxu0 %v2362
    %v2701 = vpop.f32.mrf.mxu0
    %v2702 = vadd.f32 %v2662, %v2701
    %v2703 = vpop.f32.mrf.mxu0
    %v2704 = vpop.f32.mrf.mxu0
    %v2705 = vpop.f32.mrf.mxu0
    %2706 = vdwg.mxu0
    %vm2707 = vcmask 27648
    %2708 = vst.msk [vmem:[#allocation5] sm:$0xf] %vm2707, %v2702
    // Predicated region
    $region62: #{tpu_custom_call.1} parent=1 // pred_check
      _
    $region63: #{tpu_custom_call.1} parent=1 // pred_check_branch
      %2710 = sbr.rel (0) target = $region65
    $region64: #{tpu_custom_call.1} parent=1 // pred_region
      %s2712 = ssub.s32 64, 64
      %2713 = vsyncadd [#allocation6], %s2712
      %s2715 = sshll.u32 [#allocation5], 4
      %s2716 = int_to_ptr.vmem [resolvable:$true] %s2715
      %2718 = dma.vmem_to_hbm [thread:$0]  %s2716, 64, %s15, [#allocation6]
    $region65: #{tpu_custom_call.1} parent=1 // pred_fallthru
      _
    // Predicated region
    $region66: #{tpu_custom_call.1} parent=1 // pred_check
      _
    $region67: #{tpu_custom_call.1} parent=1 // pred_check_branch
      %2720 = sbr.rel (0) target = $region69
    $region68: #{tpu_custom_call.1} parent=1 // pred_region
      %2721 = dma.done [#allocation6], 64
    $region69: #{tpu_custom_call.1} parent=1 // pred_fallthru
      _
    %2722 = vsyncpa [#allocation6], 1

</llo_original>
